<compile_context>
chip_gen: v5e
topology: v5e:2x2
jax: 0.10.0
libtpu: 0.0.40
codegen_flags: <defaults>
</compile_context>

<pallas_src>
import functools

import numpy as np
import jax
import jax.numpy as jnp
from jax import lax
from jax.experimental import pallas as pl
from jax.experimental.pallas import tpu as pltpu

LANE = 128


def _round_up(x, m):
    return (x + m - 1) // m * m


def _supports_buffered():
    if not hasattr(pl, "Buffered"):
        return False
    try:
        pl.BlockSpec((8, 128), lambda i: (0, 0), pipeline_mode=pl.Buffered(1))
        return True
    except TypeError:
        return False


_BUFFERED_OK = _supports_buffered()


def _const_spec(a):
    """BlockSpec for a weight/bias that is identical for every grid step."""
    idx = lambda i: (0,) * a.ndim
    if _BUFFERED_OK:
        return pl.BlockSpec(a.shape, idx, pipeline_mode=pl.Buffered(1))
    return pl.BlockSpec(a.shape, idx)


def _vmem_capacity():
    try:
        info = pltpu.get_tpu_info()
        cap = int(getattr(info, "vmem_capacity_bytes", 0))
        if cap > 0:
            return cap
    except Exception:
        pass
    return 64 * 1024 * 1024          # conservative fallback (v7x per-core VMEM)


def _layer_vmem_bytes(t_block, Bp, stream_dims, Hp):
    """VMEM bytes for one bidirectional LSTM layer call.

    stream_dims: list of (width, itemsize) for each distinct input stream.
    """
    blk = t_block * Bp
    w_buf = 1 if _BUFFERED_OK else 2
    b = 0
    for d, ib in stream_dims:
        b += 2 * 2 * blk * d * ib                 # fwd+bwd views, double-buffered
    b += 2 * 2 * blk * Hp * 2                     # two bf16 outputs, double-buffered
    wih_rows = sum(d for d, _ in stream_dims)
    b += w_buf * 2 * wih_rows * 4 * Hp * 2        # W_ih parts (both dirs, bf16)
    b += w_buf * 2 * Hp * 4 * Hp * 2              # W_hh (both dirs, bf16)
    b += w_buf * 2 * 4 * Hp * 4                   # biases (f32)
    b += 4 * Bp * Hp * 4                          # h/c scratch
    b += 2 * blk * 4 * Hp * 4                     # xp scratch (f32)
    return b


# ----------------------------------------------------------------------------
# Fused bidirectional LSTM kernel (one layer, both directions, time-block grid)
# ----------------------------------------------------------------------------
def _bilstm_kernel(*refs, n_in, tb, nblk, t_real):
    """One time-block of a fused bidirectional LSTM layer.

    Inputs (in order):
      n_in fwd-order input streams, n_in bwd-mirrored input streams,
      n_in W_ih parts (fwd dir), n_in W_ih parts (bwd dir),
      W_hh fwd, W_hh bwd, bias fwd, bias bwd.
    Outputs: out_f, out_b (bf16, time-major rows).
    Scratch: h_f, c_f, h_b, c_b (carry), xp_f, xp_b (hoisted input projection).
    """
    xf = refs[0:n_in]
    xb = refs[n_in:2 * n_in]
    wf = refs[2 * n_in:3 * n_in]
    wb = refs[3 * n_in:4 * n_in]
    whhf_ref, whhb_ref, bf_ref, bb_ref = refs[4 * n_in:4 * n_in + 4]
    outf_ref, outb_ref = refs[4 * n_in + 4:4 * n_in + 6]
    h_f, c_f, h_b, c_b, xp_f, xp_b = refs[4 * n_in + 6:]

    Bp, Hp = h_f.shape
    time_padded = (nblk * tb != t_real)

    @pl.when(pl.program_id(0) == 0)
    def _init():
        h_f[...] = jnp.zeros_like(h_f)
        c_f[...] = jnp.zeros_like(c_f)
        h_b[...] = jnp.zeros_like(h_b)
        c_b[...] = jnp.zeros_like(c_b)

    # Hoisted input projection + bias: big MXU matmuls once per block.
    def in_proj(x_refs, w_refs, b_ref):
        acc = jnp.dot(x_refs[0][...].astype(jnp.bfloat16), w_refs[0][...],
                      preferred_element_type=jnp.float32)
        for k in range(1, n_in):
            acc = acc + jnp.dot(x_refs[k][...].astype(jnp.bfloat16), w_refs[k][...],
                                preferred_element_type=jnp.float32)
        return acc + b_ref[...]

    xp_f[...] = in_proj(xf, wf, bf_ref)
    xp_b[...] = in_proj(xb, wb, bb_ref)

    def act(g, c):
        # Lane-aligned gate slices (Hp multiple of 128). PyTorch order i,f,g,o.
        i_g = jax.nn.sigmoid(g[:, 0 * Hp:1 * Hp])
        f_g = jax.nn.sigmoid(g[:, 1 * Hp:2 * Hp])
        g_g = jnp.tanh(g[:, 2 * Hp:3 * Hp])
        o_g = jax.nn.sigmoid(g[:, 3 * Hp:4 * Hp])
        c_new = f_g * c + i_g * g_g
        return o_g * jnp.tanh(c_new), c_new

    def step(t, carry):
        # ---- forward direction: local time t within the block ----
        rf = pl.multiple_of(t * Bp, Bp)
        g_f = xp_f[pl.ds(rf, Bp), :] + jnp.dot(
            h_f[...].astype(jnp.bfloat16), whhf_ref[...],
            preferred_element_type=jnp.float32)
        h_new, c_new = act(g_f, c_f[...])
        h_f[...] = h_new
        c_f[...] = c_new
        outf_ref[pl.ds(rf, Bp), :] = h_new.astype(outf_ref.dtype)

        # ---- backward direction: processes the block in reverse order ----
        rb = pl.multiple_of((tb - 1 - t) * Bp, Bp)
        h_prev_b = h_b[...]
        c_prev_b = c_b[...]
        g_b = xp_b[pl.ds(rb, Bp), :] + jnp.dot(
            h_prev_b.astype(jnp.bfloat16), whhb_ref[...],
            preferred_element_type=jnp.float32)
        h_new_b, c_new_b = act(g_b, c_prev_b)
        if time_padded:
            # Skip state updates on artificially padded timesteps (processed
            # FIRST by the backward direction) so results match unpadded T.
            gt_b = (nblk - 1 - pl.program_id(0)) * tb + (tb - 1 - t)
            keep = gt_b < t_real
            h_new_b = jnp.where(keep, h_new_b, h_prev_b)
            c_new_b = jnp.where(keep, c_new_b, c_prev_b)
        h_b[...] = h_new_b
        c_b[...] = c_new_b
        outb_ref[pl.ds(rb, Bp), :] = h_new_b.astype(outb_ref.dtype)
        return carry

    unroll = tb if tb <= 16 else 4
    lax.fori_loop(0, tb, step, 0, unroll=unroll)


def lstm_bidir_layer(streams, layer_p, Bp, Hp, t_block, nblk, t_real, vmem_cap):
    """streams: list of (T_pad*Bp, D_k) time-major inputs -> (out_f, out_b) bf16."""
    n_in = len(streams)
    rows = streams[0].shape[0]
    blk_rows = t_block * Bp
    wih_f, whh_f, b_f = layer_p["fwd"]
    wih_b, whh_b, b_b = layer_p["bwd"]

    in_specs = (
        [pl.BlockSpec((blk_rows, s.shape[1]), lambda i: (i, 0)) for s in streams]
        + [pl.BlockSpec((blk_rows, s.shape[1]), lambda i, n=nblk: (n - 1 - i, 0))
           for s in streams]
        + [_const_spec(w) for w in wih_f]
        + [_const_spec(w) for w in wih_b]
        + [_const_spec(whh_f), _const_spec(whh_b), _const_spec(b_f), _const_spec(b_b)]
    )
    inputs = (list(streams) + list(streams) + list(wih_f) + list(wih_b)
              + [whh_f, whh_b, b_f, b_b])
    out_specs = (
        pl.BlockSpec((blk_rows, Hp), lambda i: (i, 0)),
        pl.BlockSpec((blk_rows, Hp), lambda i, n=nblk: (n - 1 - i, 0)),
    )
    out_shape = (jax.ShapeDtypeStruct((rows, Hp), jnp.bfloat16),
                 jax.ShapeDtypeStruct((rows, Hp), jnp.bfloat16))

    dims = [(s.shape[1], s.dtype.itemsize) for s in streams]
    need = _layer_vmem_bytes(t_block, Bp, dims, Hp)
    vmem_limit = min(int(vmem_cap * 0.9), need + (8 << 20))

    return pl.pallas_call(
        functools.partial(_bilstm_kernel, n_in=n_in, tb=t_block, nblk=nblk,
                          t_real=t_real),
        out_shape=out_shape,
        grid=(nblk,),
        in_specs=in_specs,
        out_specs=out_specs,
        scratch_shapes=[
            pltpu.VMEM((Bp, Hp), jnp.float32),            # h_f
            pltpu.VMEM((Bp, Hp), jnp.float32),            # c_f
            pltpu.VMEM((Bp, Hp), jnp.float32),            # h_b
            pltpu.VMEM((Bp, Hp), jnp.float32),            # c_b
            pltpu.VMEM((blk_rows, 4 * Hp), jnp.float32),  # xp_f
            pltpu.VMEM((blk_rows, 4 * Hp), jnp.float32),  # xp_b
        ],
        compiler_params=pltpu.CompilerParams(
            dimension_semantics=("arbitrary",),           # sequential recurrence
            vmem_limit_bytes=vmem_limit),
    )(*inputs)


def bilstm_forward(x_btd, lstm_params, Hp, t_block, T_pad, t_real, Bp, vmem_cap):
    """x_btd: (B, T, D) -> time-major (T_pad, Bp, Hp) bf16 fwd/bwd hidden streams."""
    B, T, D = x_btd.shape
    nblk = T_pad // t_block
    x = jnp.pad(x_btd.astype(jnp.float32),
                ((0, Bp - B), (0, T_pad - T), (0, 0)))
    x = jnp.transpose(x, (1, 0, 2)).reshape(T_pad * Bp, D)   # time-major, flat rows
    streams = [x]
    out_f = out_b = None
    for layer_p in lstm_params:
        out_f, out_b = lstm_bidir_layer(streams, layer_p, Bp, Hp, t_block, nblk,
                                        t_real, vmem_cap)
        streams = [out_f, out_b]            # no concatenate / no HBM round-trip
    return out_f.reshape(T_pad, Bp, Hp), out_b.reshape(T_pad, Bp, Hp)


# ----------------------------------------------------------------------------
# Fused MLP kernel (all layers in VMEM, per-row-tile grid, lane-dense output)
# ----------------------------------------------------------------------------
def _mlp_kernel(x_ref, *args, n_layers):
    o_ref = args[2 * n_layers]
    h = x_ref[...]
    for l in range(n_layers):
        w = args[2 * l][...]
        b = args[2 * l + 1][...]
        h = jnp.dot(h.astype(jnp.bfloat16), w,
                    preferred_element_type=jnp.float32) + b
        if l < n_layers - 1:
            h = jnp.maximum(h, 0.0)
    o_ref[...] = h


def mlp_forward(x_rows, net_params, vmem_cap):
    rows, fin = x_rows.shape
    fin_pad = net_params[0][0].shape[0]
    n_layers = len(net_params)
    rows8 = _round_up(rows, 8)
    if rows8 >= 512:
        TR = 512
    elif rows8 >= 256:
        TR = 256
    else:
        TR = rows8
    rows_pad = _round_up(rows8, TR)
    x = jnp.pad(x_rows, ((0, rows_pad - rows), (0, fin_pad - fin)))
    w_last_pad = net_params[-1][3]

    in_specs = [pl.BlockSpec((TR, fin_pad), lambda i: (i, 0))]
    inputs = [x]
    need = 2 * TR * fin_pad * x.dtype.itemsize + 2 * TR * w_last_pad * 4
    w_buf = 1 if _BUFFERED_OK else 2
    for (w, b, _, wp) in net_params:
        in_specs.append(_const_spec(w))
        in_specs.append(_const_spec(b))
        inputs.extend([w, b])
        need += w_buf * (w.size * 2 + b.size * 4)
        need += 2 * TR * wp * 4                     # intermediate activations
    vmem_limit = min(int(vmem_cap * 0.9), need + (16 << 20))

    out = pl.pallas_call(
        functools.partial(_mlp_kernel, n_layers=n_layers),
        out_shape=jax.ShapeDtypeStruct((rows_pad, w_last_pad), jnp.float32),
        grid=(rows_pad // TR,),
        in_specs=in_specs,
        out_specs=pl.BlockSpec((TR, w_last_pad), lambda i: (i, 0)),
        compiler_params=pltpu.CompilerParams(
            dimension_semantics=("parallel",),
            vmem_limit_bytes=vmem_limit),
    )(*inputs)
    return out[:rows]


# ----------------------------------------------------------------------------
# Parameter init (internally 128-lane padded, bf16 matmul weights)
# ----------------------------------------------------------------------------
def init_params(key, input_dim, hidden_dim, linear_outputs, num_lstm_layers):
    H = hidden_dim
    Hp = _round_up(H, LANE)
    params = {"lstm": [], "net": [], "H": H, "Hp": Hp}
    bound = 1.0 / float(np.sqrt(H))

    def u(k, shape, b):
        return jax.random.uniform(k, shape, jnp.float32, -b, b)

    def pad_gate_cols(w):  # (rows, 4H) -> (rows, 4Hp), per-gate placement
        out = jnp.zeros((w.shape[0], 4 * Hp), jnp.float32)
        for g in range(4):
            out = out.at[:, g * Hp:g * Hp + H].set(w[:, g * H:(g + 1) * H])
        return out

    for layer in range(num_lstm_layers):
        d_real = input_dim if layer == 0 else 2 * H
        layer_p = {}
        for direction in ("fwd", "bwd"):
            key, k1, k2, k3, k4 = jax.random.split(key, 5)
            w_ih = u(k1, (d_real, 4 * H), bound)        # stored transposed vs torch
            w_hh = u(k2, (H, 4 * H), bound)
            b = u(k3, (1, 4 * H), bound) + u(k4, (1, 4 * H), bound)
            if layer == 0:
                wih_parts = (pad_gate_cols(w_ih).astype(jnp.bfloat16),)
            else:
                # Split into (fwd-stream rows, bwd-stream rows), each padded to Hp.
                top = jnp.zeros((Hp, 4 * Hp), jnp.float32).at[:H].set(
                    pad_gate_cols(w_ih[:H]))
                bot = jnp.zeros((Hp, 4 * Hp), jnp.float32).at[:H].set(
                    pad_gate_cols(w_ih[H:]))
                wih_parts = (top.astype(jnp.bfloat16), bot.astype(jnp.bfloat16))
            w_hh_p = jnp.zeros((Hp, 4 * Hp), jnp.float32).at[:H].set(
                pad_gate_cols(w_hh))
            layer_p[direction] = (wih_parts, w_hh_p.astype(jnp.bfloat16),
                                  pad_gate_cols(b))     # bias kept f32
        params["lstm"].append(layer_p)

    fan_in_real = 2 * H
    fan_in_pad = _round_up(2 * H, LANE)                 # lane-dense MLP fan-in
    for width in linear_outputs:
        wp = _round_up(width, LANE)
        key, k1, k2 = jax.random.split(key, 3)
        lb = 1.0 / float(np.sqrt(fan_in_real))
        w = u(k1, (fan_in_real, width), lb)
        b = u(k2, (1, width), lb)
        w_pad = jnp.zeros((fan_in_pad, wp), jnp.float32).at[:fan_in_real, :width].set(w)
        b_pad = jnp.zeros((1, wp), jnp.float32).at[:, :width].set(b)
        params["net"].append((w_pad.astype(jnp.bfloat16), b_pad, width, wp))
        fan_in_real = width
        fan_in_pad = wp
    return params


# ----------------------------------------------------------------------------
# Full forward
# ----------------------------------------------------------------------------
def lit_lstm_forward(params, padded_sequences, var_mappings, hidden_dim, max_label):
    H, Hp = params["H"], params["Hp"]
    assert H == hidden_dim
    assert params["net"][-1][2] == 1, "final Net width must be 1 for (B, max_label) reshape"
    B, T, D = padded_sequences.shape
    # Batch padded to a multiple of 16 so bf16 output stores stay tile-aligned.
    Bp = _round_up(B, 16)

    # Derive the time block from the chip's VMEM capacity (v7x: 64 MiB).
    cap = _vmem_capacity()
    budget = int(cap * 0.6)
    n_layers = len(params["lstm"])
    layer_dims = [[(D, 4)]] + [[(Hp, 2), (Hp, 2)]] * max(0, n_layers - 1)
    tb_max = 1
    for tb in range(1, T + 1):
        if max(_layer_vmem_bytes(tb, Bp, dims, Hp) for dims in layer_dims) <= budget:
            tb_max = tb
        else:
            break
    nblk = -(-T // tb_max)
    t_block = -(-T // nblk)          # minimizes time padding while keeping big blocks
    T_pad = nblk * t_block

    out_f, out_b = bilstm_forward(padded_sequences, params["lstm"], Hp,
                                  t_block, T_pad, T, Bp, cap)

    # Vectorized replacement of the per-element embedding scatter: build the
    # (batch, label) -> source-timestep map on the host, then one gather + mask.
    src_time = np.zeros((B, max_label), np.int32)
    valid = np.zeros((B, max_label), np.float32)
    for i, var_mapping in enumerate(var_mappings):
        if i >= B:
            break
        for var, occurrence in var_mapping:
            offset = abs(var) - 1
            if var < 0:
                offset += max_label // 2
            assert 0 <= occurrence < T and 0 <= offset < max_label
            src_time[i, offset] = occurrence
            valid[i, offset] = 1.0

    st = jnp.asarray(src_time)                     # (B, L)
    bidx = jnp.arange(B)[:, None]                  # (B, 1)
    g_f = out_f[st, bidx, :H]                      # (B, L, H) bf16
    g_b = out_b[st, bidx, :H]                      # (B, L, H) bf16
    emb = jnp.concatenate([g_f, g_b], axis=-1) * jnp.asarray(valid, jnp.bfloat16)[..., None]

    rows = emb.reshape(B * max_label, 2 * H)
    y = mlp_forward(rows, params["net"], cap)      # (B*L, padded_width) f32
    return y[:, 0].reshape(B, max_label)


# ----------------------------------------------------------------------------
if __name__ == "__main__":
    batch = 2
    seq_len = 8
    input_dim = 8
    hidden_dim = 32
    num_lstm_layers = 2
    max_label = 16                 # 8 positive vars + 8 negated
    linear_outputs = [64, 1]       # MLP widths; final width 1

    key = jax.random.PRNGKey(0)
    key, pkey, xkey = jax.random.split(key, 3)

    params = init_params(pkey, input_dim, hidden_dim, linear_outputs, num_lstm_layers)
    padded_sequences = jax.random.normal(
        xkey, (batch, seq_len, input_dim), jnp.float32
    )

    # Deterministic var_mappings: list (per batch element) of (var, occurrence).
    var_mappings = [
        [(1, 0), (-1, 1), (2, 2), (-2, 3), (3, 4), (-3, 5)],
        [(4, 0), (-4, 2), (5, 4), (-5, 6), (1, 7)],
    ]

    out = lit_lstm_forward(params, padded_sequences, var_mappings,
                           hidden_dim, max_label)
    out = jax.block_until_ready(out)
    assert out.shape == (batch, max_label), out.shape
    assert bool(jnp.all(jnp.isfinite(out)))
    print("KERNEL_OK")
</pallas_src>

<mosaic_0001>
module attributes {stable_mosaic.version = 11 : i64} {
  func.func @_bilstm_kernel(%arg0: i32, %arg1: memref<128x8xf32, #tpu.memory_space<vmem>>, %arg2: memref<128x8xf32, #tpu.memory_space<vmem>>, %arg3: memref<8x512xbf16, #tpu.memory_space<vmem>>, %arg4: memref<8x512xbf16, #tpu.memory_space<vmem>>, %arg5: memref<128x512xbf16, #tpu.memory_space<vmem>>, %arg6: memref<128x512xbf16, #tpu.memory_space<vmem>>, %arg7: memref<1x512xf32, #tpu.memory_space<vmem>>, %arg8: memref<1x512xf32, #tpu.memory_space<vmem>>, %arg9: memref<128x128xbf16, #tpu.memory_space<vmem>>, %arg10: memref<128x128xbf16, #tpu.memory_space<vmem>>, %arg11: memref<16x128xf32, #tpu.memory_space<vmem>>, %arg12: memref<16x128xf32, #tpu.memory_space<vmem>>, %arg13: memref<16x128xf32, #tpu.memory_space<vmem>>, %arg14: memref<16x128xf32, #tpu.memory_space<vmem>>, %arg15: memref<128x512xf32, #tpu.memory_space<vmem>>, %arg16: memref<128x512xf32, #tpu.memory_space<vmem>>) attributes {dimension_semantics = [#tpu.dimension_semantics<arbitrary>], iteration_bounds = array<i64: 1>, scalar_prefetch = 0 : i64, scratch_operands = 6 : i64, tpu.core_type = #tpu.core_type<tc>, window_params = [{transform_indices = @transform_0, window_bounds = array<i64: 128, 8>}, {transform_indices = @transform_1, window_bounds = array<i64: 128, 8>}, {pipeline_mode = #tpu.pipeline_mode<synchronous>, transform_indices = @transform_2, window_bounds = array<i64: 8, 512>}, {pipeline_mode = #tpu.pipeline_mode<synchronous>, transform_indices = @transform_3, window_bounds = array<i64: 8, 512>}, {pipeline_mode = #tpu.pipeline_mode<synchronous>, transform_indices = @transform_4, window_bounds = array<i64: 128, 512>}, {pipeline_mode = #tpu.pipeline_mode<synchronous>, transform_indices = @transform_5, window_bounds = array<i64: 128, 512>}, {pipeline_mode = #tpu.pipeline_mode<synchronous>, transform_indices = @transform_6, window_bounds = array<i64: 1, 512>}, {pipeline_mode = #tpu.pipeline_mode<synchronous>, transform_indices = @transform_7, window_bounds = array<i64: 1, 512>}, {transform_indices = @transform_8, window_bounds = array<i64: 128, 128>}, {transform_indices = @transform_9, window_bounds = array<i64: 128, 128>}]} {
    %c0_i32 = arith.constant 0 : i32
    %0 = arith.cmpi eq, %arg0, %c0_i32 : i32
    %1 = arith.extui %0 : i1 to i32
    %c0_i32_0 = arith.constant 0 : i32
    %2 = arith.cmpi ne, %1, %c0_i32_0 : i32
    scf.if %2 {
      %cst_297 = arith.constant 0.000000e+00 : f32
      %667 = vector.broadcast %cst_297 : f32 to vector<16x128xf32>
      %c0_298 = arith.constant 0 : index
      %c0_299 = arith.constant 0 : index
      %668 = vector.load %arg11[%c0_298, %c0_299] : memref<16x128xf32, #tpu.memory_space<vmem>>, vector<16x128xf32>
      tpu.vector_store %arg11[%c0_298, %c0_299], %667 {strides = array<i32>} : memref<16x128xf32, #tpu.memory_space<vmem>>, vector<16x128xf32>,
      %cst_300 = arith.constant 0.000000e+00 : f32
      %669 = vector.broadcast %cst_300 : f32 to vector<16x128xf32>
      %c0_301 = arith.constant 0 : index
      %c0_302 = arith.constant 0 : index
      %670 = vector.load %arg12[%c0_301, %c0_302] : memref<16x128xf32, #tpu.memory_space<vmem>>, vector<16x128xf32>
      tpu.vector_store %arg12[%c0_301, %c0_302], %669 {strides = array<i32>} : memref<16x128xf32, #tpu.memory_space<vmem>>, vector<16x128xf32>,
      %cst_303 = arith.constant 0.000000e+00 : f32
      %671 = vector.broadcast %cst_303 : f32 to vector<16x128xf32>
      %c0_304 = arith.constant 0 : index
      %c0_305 = arith.constant 0 : index
      %672 = vector.load %arg13[%c0_304, %c0_305] : memref<16x128xf32, #tpu.memory_space<vmem>>, vector<16x128xf32>
      tpu.vector_store %arg13[%c0_304, %c0_305], %671 {strides = array<i32>} : memref<16x128xf32, #tpu.memory_space<vmem>>, vector<16x128xf32>,
      %cst_306 = arith.constant 0.000000e+00 : f32
      %673 = vector.broadcast %cst_306 : f32 to vector<16x128xf32>
      %c0_307 = arith.constant 0 : index
      %c0_308 = arith.constant 0 : index
      %674 = vector.load %arg14[%c0_307, %c0_308] : memref<16x128xf32, #tpu.memory_space<vmem>>, vector<16x128xf32>
      tpu.vector_store %arg14[%c0_307, %c0_308], %673 {strides = array<i32>} : memref<16x128xf32, #tpu.memory_space<vmem>>, vector<16x128xf32>,
    } else {
    }
    %c0 = arith.constant 0 : index
    %c0_1 = arith.constant 0 : index
    %3 = vector.load %arg1[%c0, %c0_1] : memref<128x8xf32, #tpu.memory_space<vmem>>, vector<128x8xf32>
    %4 = arith.truncf %3 : vector<128x8xf32> to vector<128x8xbf16>
    %c0_2 = arith.constant 0 : index
    %c0_3 = arith.constant 0 : index
    %5 = vector.load %arg3[%c0_2, %c0_3] : memref<8x512xbf16, #tpu.memory_space<vmem>>, vector<8x512xbf16>
    %cst = arith.constant dense<0.000000e+00> : vector<128x512xf32>
    %6 = tpu.matmul %4, %5, %cst {dimension_numbers = #tpu.dot_dimension_numbers<[1], [0], [0], [1], [0, 0, 1, 1], [], []>} : vector<128x8xbf16>, vector<8x512xbf16>, vector<128x512xf32> -> vector<128x512xf32>
    %c0_4 = arith.constant 0 : index
    %c0_5 = arith.constant 0 : index
    %7 = vector.load %arg7[%c0_4, %c0_5] : memref<1x512xf32, #tpu.memory_space<vmem>>, vector<1x512xf32>
    %8 = vector.broadcast %7 : vector<1x512xf32> to vector<128x512xf32>
    %9 = arith.addf %6, %8 : vector<128x512xf32>
    %c0_6 = arith.constant 0 : index
    %c0_7 = arith.constant 0 : index
    %10 = vector.load %arg15[%c0_6, %c0_7] : memref<128x512xf32, #tpu.memory_space<vmem>>, vector<128x512xf32>
    tpu.vector_store %arg15[%c0_6, %c0_7], %9 {strides = array<i32>} : memref<128x512xf32, #tpu.memory_space<vmem>>, vector<128x512xf32>,
    %c0_8 = arith.constant 0 : index
    %c0_9 = arith.constant 0 : index
    %11 = vector.load %arg2[%c0_8, %c0_9] : memref<128x8xf32, #tpu.memory_space<vmem>>, vector<128x8xf32>
    %12 = arith.truncf %11 : vector<128x8xf32> to vector<128x8xbf16>
    %c0_10 = arith.constant 0 : index
    %c0_11 = arith.constant 0 : index
    %13 = vector.load %arg4[%c0_10, %c0_11] : memref<8x512xbf16, #tpu.memory_space<vmem>>, vector<8x512xbf16>
    %cst_12 = arith.constant dense<0.000000e+00> : vector<128x512xf32>
    %14 = tpu.matmul %12, %13, %cst_12 {dimension_numbers = #tpu.dot_dimension_numbers<[1], [0], [0], [1], [0, 0, 1, 1], [], []>} : vector<128x8xbf16>, vector<8x512xbf16>, vector<128x512xf32> -> vector<128x512xf32>
    %c0_13 = arith.constant 0 : index
    %c0_14 = arith.constant 0 : index
    %15 = vector.load %arg8[%c0_13, %c0_14] : memref<1x512xf32, #tpu.memory_space<vmem>>, vector<1x512xf32>
    %16 = vector.broadcast %15 : vector<1x512xf32> to vector<128x512xf32>
    %17 = arith.addf %14, %16 : vector<128x512xf32>
    %c0_15 = arith.constant 0 : index
    %c0_16 = arith.constant 0 : index
    %18 = vector.load %arg16[%c0_15, %c0_16] : memref<128x512xf32, #tpu.memory_space<vmem>>, vector<128x512xf32>
    tpu.vector_store %arg16[%c0_15, %c0_16], %17 {strides = array<i32>} : memref<128x512xf32, #tpu.memory_space<vmem>>, vector<128x512xf32>,
    %c0_i32_17 = arith.constant 0 : i32
    %c16_i32 = arith.constant 16 : i32
    %19 = arith.muli %c0_i32_17, %c16_i32 : i32
    %20 = tpu.assume_multiple %19, 16 : i32
    %21 = arith.index_cast %20 : i32 to index
    %c0_18 = arith.constant 0 : index
    %22 = vector.load %arg15[%21, %c0_18] : memref<128x512xf32, #tpu.memory_space<vmem>>, vector<16x512xf32>
    %c0_19 = arith.constant 0 : index
    %c0_20 = arith.constant 0 : index
    %23 = vector.load %arg11[%c0_19, %c0_20] : memref<16x128xf32, #tpu.memory_space<vmem>>, vector<16x128xf32>
    %24 = arith.truncf %23 : vector<16x128xf32> to vector<16x128xbf16>
    %c0_21 = arith.constant 0 : index
    %c0_22 = arith.constant 0 : index
    %25 = vector.load %arg5[%c0_21, %c0_22] : memref<128x512xbf16, #tpu.memory_space<vmem>>, vector<128x512xbf16>
    %cst_23 = arith.constant dense<0.000000e+00> : vector<16x512xf32>
    %26 = tpu.matmul %24, %25, %cst_23 {dimension_numbers = #tpu.dot_dimension_numbers<[1], [0], [0], [1], [0, 0, 1, 1], [], []>} : vector<16x128xbf16>, vector<128x512xbf16>, vector<16x512xf32> -> vector<16x512xf32>
    %27 = arith.addf %22, %26 : vector<16x512xf32>
    %c0_24 = arith.constant 0 : index
    %c0_25 = arith.constant 0 : index
    %28 = vector.load %arg12[%c0_24, %c0_25] : memref<16x128xf32, #tpu.memory_space<vmem>>, vector<16x128xf32>
    %29 = vector.extract_strided_slice %27 {offsets = [0, 0], sizes = [16, 128], strides = [1, 1]} : vector<16x512xf32> to vector<16x128xf32>
    %30 = arith.negf %29 : vector<16x128xf32>
    %31 = math.exp %30 : vector<16x128xf32>
    %cst_26 = arith.constant 1.000000e+00 : f32
    %32 = vector.broadcast %cst_26 : f32 to vector<16x128xf32>
    %33 = arith.addf %32, %31 : vector<16x128xf32>
    %34 = arith.divf %32, %33 : vector<16x128xf32>
    %35 = vector.extract_strided_slice %27 {offsets = [0, 128], sizes = [16, 128], strides = [1, 1]} : vector<16x512xf32> to vector<16x128xf32>
    %36 = arith.negf %35 : vector<16x128xf32>
    %37 = math.exp %36 : vector<16x128xf32>
    %cst_27 = arith.constant 1.000000e+00 : f32
    %38 = vector.broadcast %cst_27 : f32 to vector<16x128xf32>
    %39 = arith.addf %38, %37 : vector<16x128xf32>
    %40 = arith.divf %38, %39 : vector<16x128xf32>
    %41 = vector.extract_strided_slice %27 {offsets = [0, 256], sizes = [16, 128], strides = [1, 1]} : vector<16x512xf32> to vector<16x128xf32>
    %42 = math.tanh %41 : vector<16x128xf32>
    %43 = vector.extract_strided_slice %27 {offsets = [0, 384], sizes = [16, 128], strides = [1, 1]} : vector<16x512xf32> to vector<16x128xf32>
    %44 = arith.negf %43 : vector<16x128xf32>
    %45 = math.exp %44 : vector<16x128xf32>
    %cst_28 = arith.constant 1.000000e+00 : f32
    %46 = vector.broadcast %cst_28 : f32 to vector<16x128xf32>
    %47 = arith.addf %46, %45 : vector<16x128xf32>
    %48 = arith.divf %46, %47 : vector<16x128xf32>
    %49 = arith.mulf %40, %28 : vector<16x128xf32>
    %50 = arith.mulf %34, %42 : vector<16x128xf32>
    %51 = arith.addf %49, %50 : vector<16x128xf32>
    %52 = math.tanh %51 : vector<16x128xf32>
    %53 = arith.mulf %48, %52 : vector<16x128xf32>
    %c0_29 = arith.constant 0 : index
    %c0_30 = arith.constant 0 : index
    %54 = vector.load %arg11[%c0_29, %c0_30] : memref<16x128xf32, #tpu.memory_space<vmem>>, vector<16x128xf32>
    tpu.vector_store %arg11[%c0_29, %c0_30], %53 {strides = array<i32>} : memref<16x128xf32, #tpu.memory_space<vmem>>, vector<16x128xf32>,
    %c0_31 = arith.constant 0 : index
    %c0_32 = arith.constant 0 : index
    %55 = vector.load %arg12[%c0_31, %c0_32] : memref<16x128xf32, #tpu.memory_space<vmem>>, vector<16x128xf32>
    tpu.vector_store %arg12[%c0_31, %c0_32], %51 {strides = array<i32>} : memref<16x128xf32, #tpu.memory_space<vmem>>, vector<16x128xf32>,
    %56 = arith.truncf %53 : vector<16x128xf32> to vector<16x128xbf16>
    %57 = arith.index_cast %20 : i32 to index
    %c0_33 = arith.constant 0 : index
    %58 = vector.load %arg9[%57, %c0_33] : memref<128x128xbf16, #tpu.memory_space<vmem>>, vector<16x128xbf16>
    tpu.vector_store %arg9[%57, %c0_33], %56 {strides = array<i32>} : memref<128x128xbf16, #tpu.memory_space<vmem>>, vector<16x128xbf16>,
    %c7_i32 = arith.constant 7 : i32
    %59 = arith.subi %c7_i32, %c0_i32_17 : i32
    %c16_i32_34 = arith.constant 16 : i32
    %60 = arith.muli %59, %c16_i32_34 : i32
    %61 = tpu.assume_multiple %60, 16 : i32
    %c0_35 = arith.constant 0 : index
    %c0_36 = arith.constant 0 : index
    %62 = vector.load %arg13[%c0_35, %c0_36] : memref<16x128xf32, #tpu.memory_space<vmem>>, vector<16x128xf32>
    %c0_37 = arith.constant 0 : index
    %c0_38 = arith.constant 0 : index
    %63 = vector.load %arg14[%c0_37, %c0_38] : memref<16x128xf32, #tpu.memory_space<vmem>>, vector<16x128xf32>
    %64 = arith.index_cast %61 : i32 to index
    %c0_39 = arith.constant 0 : index
    %65 = vector.load %arg16[%64, %c0_39] : memref<128x512xf32, #tpu.memory_space<vmem>>, vector<16x512xf32>
    %66 = arith.truncf %62 : vector<16x128xf32> to vector<16x128xbf16>
    %c0_40 = arith.constant 0 : index
    %c0_41 = arith.constant 0 : index
    %67 = vector.load %arg6[%c0_40, %c0_41] : memref<128x512xbf16, #tpu.memory_space<vmem>>, vector<128x512xbf16>
    %cst_42 = arith.constant dense<0.000000e+00> : vector<16x512xf32>
    %68 = tpu.matmul %66, %67, %cst_42 {dimension_numbers = #tpu.dot_dimension_numbers<[1], [0], [0], [1], [0, 0, 1, 1], [], []>} : vector<16x128xbf16>, vector<128x512xbf16>, vector<16x512xf32> -> vector<16x512xf32>
    %69 = arith.addf %65, %68 : vector<16x512xf32>
    %70 = vector.extract_strided_slice %69 {offsets = [0, 0], sizes = [16, 128], strides = [1, 1]} : vector<16x512xf32> to vector<16x128xf32>
    %71 = arith.negf %70 : vector<16x128xf32>
    %72 = math.exp %71 : vector<16x128xf32>
    %cst_43 = arith.constant 1.000000e+00 : f32
    %73 = vector.broadcast %cst_43 : f32 to vector<16x128xf32>
    %74 = arith.addf %73, %72 : vector<16x128xf32>
    %75 = arith.divf %73, %74 : vector<16x128xf32>
    %76 = vector.extract_strided_slice %69 {offsets = [0, 128], sizes = [16, 128], strides = [1, 1]} : vector<16x512xf32> to vector<16x128xf32>
    %77 = arith.negf %76 : vector<16x128xf32>
    %78 = math.exp %77 : vector<16x128xf32>
    %cst_44 = arith.constant 1.000000e+00 : f32
    %79 = vector.broadcast %cst_44 : f32 to vector<16x128xf32>
    %80 = arith.addf %79, %78 : vector<16x128xf32>
    %81 = arith.divf %79, %80 : vector<16x128xf32>
    %82 = vector.extract_strided_slice %69 {offsets = [0, 256], sizes = [16, 128], strides = [1, 1]} : vector<16x512xf32> to vector<16x128xf32>
    %83 = math.tanh %82 : vector<16x128xf32>
    %84 = vector.extract_strided_slice %69 {offsets = [0, 384], sizes = [16, 128], strides = [1, 1]} : vector<16x512xf32> to vector<16x128xf32>
    %85 = arith.negf %84 : vector<16x128xf32>
    %86 = math.exp %85 : vector<16x128xf32>
    %cst_45 = arith.constant 1.000000e+00 : f32
    %87 = vector.broadcast %cst_45 : f32 to vector<16x128xf32>
    %88 = arith.addf %87, %86 : vector<16x128xf32>
    %89 = arith.divf %87, %88 : vector<16x128xf32>
    %90 = arith.mulf %81, %63 : vector<16x128xf32>
    %91 = arith.mulf %75, %83 : vector<16x128xf32>
    %92 = arith.addf %90, %91 : vector<16x128xf32>
    %93 = math.tanh %92 : vector<16x128xf32>
    %94 = arith.mulf %89, %93 : vector<16x128xf32>
    %c0_46 = arith.constant 0 : index
    %c0_47 = arith.constant 0 : index
    %95 = vector.load %arg13[%c0_46, %c0_47] : memref<16x128xf32, #tpu.memory_space<vmem>>, vector<16x128xf32>
    tpu.vector_store %arg13[%c0_46, %c0_47], %94 {strides = array<i32>} : memref<16x128xf32, #tpu.memory_space<vmem>>, vector<16x128xf32>,
    %c0_48 = arith.constant 0 : index
    %c0_49 = arith.constant 0 : index
    %96 = vector.load %arg14[%c0_48, %c0_49] : memref<16x128xf32, #tpu.memory_space<vmem>>, vector<16x128xf32>
    tpu.vector_store %arg14[%c0_48, %c0_49], %92 {strides = array<i32>} : memref<16x128xf32, #tpu.memory_space<vmem>>, vector<16x128xf32>,
    %97 = arith.truncf %94 : vector<16x128xf32> to vector<16x128xbf16>
    %98 = arith.index_cast %61 : i32 to index
    %c0_50 = arith.constant 0 : index
    %99 = vector.load %arg10[%98, %c0_50] : memref<128x128xbf16, #tpu.memory_space<vmem>>, vector<16x128xbf16>
    tpu.vector_store %arg10[%98, %c0_50], %97 {strides = array<i32>} : memref<128x128xbf16, #tpu.memory_space<vmem>>, vector<16x128xbf16>,
    %c1_i32 = arith.constant 1 : i32
    %c16_i32_51 = arith.constant 16 : i32
    %100 = arith.muli %c1_i32, %c16_i32_51 : i32
    %101 = tpu.assume_multiple %100, 16 : i32
    %102 = arith.index_cast %101 : i32 to index
    %c0_52 = arith.constant 0 : index
    %103 = vector.load %arg15[%102, %c0_52] : memref<128x512xf32, #tpu.memory_space<vmem>>, vector<16x512xf32>
    %c0_53 = arith.constant 0 : index
    %c0_54 = arith.constant 0 : index
    %104 = vector.load %arg11[%c0_53, %c0_54] : memref<16x128xf32, #tpu.memory_space<vmem>>, vector<16x128xf32>
    %105 = arith.truncf %104 : vector<16x128xf32> to vector<16x128xbf16>
    %c0_55 = arith.constant 0 : index
    %c0_56 = arith.constant 0 : index
    %106 = vector.load %arg5[%c0_55, %c0_56] : memref<128x512xbf16, #tpu.memory_space<vmem>>, vector<128x512xbf16>
    %cst_57 = arith.constant dense<0.000000e+00> : vector<16x512xf32>
    %107 = tpu.matmul %105, %106, %cst_57 {dimension_numbers = #tpu.dot_dimension_numbers<[1], [0], [0], [1], [0, 0, 1, 1], [], []>} : vector<16x128xbf16>, vector<128x512xbf16>, vector<16x512xf32> -> vector<16x512xf32>
    %108 = arith.addf %103, %107 : vector<16x512xf32>
    %c0_58 = arith.constant 0 : index
    %c0_59 = arith.constant 0 : index
    %109 = vector.load %arg12[%c0_58, %c0_59] : memref<16x128xf32, #tpu.memory_space<vmem>>, vector<16x128xf32>
    %110 = vector.extract_strided_slice %108 {offsets = [0, 0], sizes = [16, 128], strides = [1, 1]} : vector<16x512xf32> to vector<16x128xf32>
    %111 = arith.negf %110 : vector<16x128xf32>
    %112 = math.exp %111 : vector<16x128xf32>
    %cst_60 = arith.constant 1.000000e+00 : f32
    %113 = vector.broadcast %cst_60 : f32 to vector<16x128xf32>
    %114 = arith.addf %113, %112 : vector<16x128xf32>
    %115 = arith.divf %113, %114 : vector<16x128xf32>
    %116 = vector.extract_strided_slice %108 {offsets = [0, 128], sizes = [16, 128], strides = [1, 1]} : vector<16x512xf32> to vector<16x128xf32>
    %117 = arith.negf %116 : vector<16x128xf32>
    %118 = math.exp %117 : vector<16x128xf32>
    %cst_61 = arith.constant 1.000000e+00 : f32
    %119 = vector.broadcast %cst_61 : f32 to vector<16x128xf32>
    %120 = arith.addf %119, %118 : vector<16x128xf32>
    %121 = arith.divf %119, %120 : vector<16x128xf32>
    %122 = vector.extract_strided_slice %108 {offsets = [0, 256], sizes = [16, 128], strides = [1, 1]} : vector<16x512xf32> to vector<16x128xf32>
    %123 = math.tanh %122 : vector<16x128xf32>
    %124 = vector.extract_strided_slice %108 {offsets = [0, 384], sizes = [16, 128], strides = [1, 1]} : vector<16x512xf32> to vector<16x128xf32>
    %125 = arith.negf %124 : vector<16x128xf32>
    %126 = math.exp %125 : vector<16x128xf32>
    %cst_62 = arith.constant 1.000000e+00 : f32
    %127 = vector.broadcast %cst_62 : f32 to vector<16x128xf32>
    %128 = arith.addf %127, %126 : vector<16x128xf32>
    %129 = arith.divf %127, %128 : vector<16x128xf32>
    %130 = arith.mulf %121, %109 : vector<16x128xf32>
    %131 = arith.mulf %115, %123 : vector<16x128xf32>
    %132 = arith.addf %130, %131 : vector<16x128xf32>
    %133 = math.tanh %132 : vector<16x128xf32>
    %134 = arith.mulf %129, %133 : vector<16x128xf32>
    %c0_63 = arith.constant 0 : index
    %c0_64 = arith.constant 0 : index
    %135 = vector.load %arg11[%c0_63, %c0_64] : memref<16x128xf32, #tpu.memory_space<vmem>>, vector<16x128xf32>
    tpu.vector_store %arg11[%c0_63, %c0_64], %134 {strides = array<i32>} : memref<16x128xf32, #tpu.memory_space<vmem>>, vector<16x128xf32>,
    %c0_65 = arith.constant 0 : index
    %c0_66 = arith.constant 0 : index
    %136 = vector.load %arg12[%c0_65, %c0_66] : memref<16x128xf32, #tpu.memory_space<vmem>>, vector<16x128xf32>
    tpu.vector_store %arg12[%c0_65, %c0_66], %132 {strides = array<i32>} : memref<16x128xf32, #tpu.memory_space<vmem>>, vector<16x128xf32>,
    %137 = arith.truncf %134 : vector<16x128xf32> to vector<16x128xbf16>
    %138 = arith.index_cast %101 : i32 to index
    %c0_67 = arith.constant 0 : index
    %139 = vector.load %arg9[%138, %c0_67] : memref<128x128xbf16, #tpu.memory_space<vmem>>, vector<16x128xbf16>
    tpu.vector_store %arg9[%138, %c0_67], %137 {strides = array<i32>} : memref<128x128xbf16, #tpu.memory_space<vmem>>, vector<16x128xbf16>,
    %c7_i32_68 = arith.constant 7 : i32
    %140 = arith.subi %c7_i32_68, %c1_i32 : i32
    %c16_i32_69 = arith.constant 16 : i32
    %141 = arith.muli %140, %c16_i32_69 : i32
    %142 = tpu.assume_multiple %141, 16 : i32
    %c0_70 = arith.constant 0 : index
    %c0_71 = arith.constant 0 : index
    %143 = vector.load %arg13[%c0_70, %c0_71] : memref<16x128xf32, #tpu.memory_space<vmem>>, vector<16x128xf32>
    %c0_72 = arith.constant 0 : index
    %c0_73 = arith.constant 0 : index
    %144 = vector.load %arg14[%c0_72, %c0_73] : memref<16x128xf32, #tpu.memory_space<vmem>>, vector<16x128xf32>
    %145 = arith.index_cast %142 : i32 to index
    %c0_74 = arith.constant 0 : index
    %146 = vector.load %arg16[%145, %c0_74] : memref<128x512xf32, #tpu.memory_space<vmem>>, vector<16x512xf32>
    %147 = arith.truncf %143 : vector<16x128xf32> to vector<16x128xbf16>
    %c0_75 = arith.constant 0 : index
    %c0_76 = arith.constant 0 : index
    %148 = vector.load %arg6[%c0_75, %c0_76] : memref<128x512xbf16, #tpu.memory_space<vmem>>, vector<128x512xbf16>
    %cst_77 = arith.constant dense<0.000000e+00> : vector<16x512xf32>
    %149 = tpu.matmul %147, %148, %cst_77 {dimension_numbers = #tpu.dot_dimension_numbers<[1], [0], [0], [1], [0, 0, 1, 1], [], []>} : vector<16x128xbf16>, vector<128x512xbf16>, vector<16x512xf32> -> vector<16x512xf32>
    %150 = arith.addf %146, %149 : vector<16x512xf32>
    %151 = vector.extract_strided_slice %150 {offsets = [0, 0], sizes = [16, 128], strides = [1, 1]} : vector<16x512xf32> to vector<16x128xf32>
    %152 = arith.negf %151 : vector<16x128xf32>
    %153 = math.exp %152 : vector<16x128xf32>
    %cst_78 = arith.constant 1.000000e+00 : f32
    %154 = vector.broadcast %cst_78 : f32 to vector<16x128xf32>
    %155 = arith.addf %154, %153 : vector<16x128xf32>
    %156 = arith.divf %154, %155 : vector<16x128xf32>
    %157 = vector.extract_strided_slice %150 {offsets = [0, 128], sizes = [16, 128], strides = [1, 1]} : vector<16x512xf32> to vector<16x128xf32>
    %158 = arith.negf %157 : vector<16x128xf32>
    %159 = math.exp %158 : vector<16x128xf32>
    %cst_79 = arith.constant 1.000000e+00 : f32
    %160 = vector.broadcast %cst_79 : f32 to vector<16x128xf32>
    %161 = arith.addf %160, %159 : vector<16x128xf32>
    %162 = arith.divf %160, %161 : vector<16x128xf32>
    %163 = vector.extract_strided_slice %150 {offsets = [0, 256], sizes = [16, 128], strides = [1, 1]} : vector<16x512xf32> to vector<16x128xf32>
    %164 = math.tanh %163 : vector<16x128xf32>
    %165 = vector.extract_strided_slice %150 {offsets = [0, 384], sizes = [16, 128], strides = [1, 1]} : vector<16x512xf32> to vector<16x128xf32>
    %166 = arith.negf %165 : vector<16x128xf32>
    %167 = math.exp %166 : vector<16x128xf32>
    %cst_80 = arith.constant 1.000000e+00 : f32
    %168 = vector.broadcast %cst_80 : f32 to vector<16x128xf32>
    %169 = arith.addf %168, %167 : vector<16x128xf32>
    %170 = arith.divf %168, %169 : vector<16x128xf32>
    %171 = arith.mulf %162, %144 : vector<16x128xf32>
    %172 = arith.mulf %156, %164 : vector<16x128xf32>
    %173 = arith.addf %171, %172 : vector<16x128xf32>
    %174 = math.tanh %173 : vector<16x128xf32>
    %175 = arith.mulf %170, %174 : vector<16x128xf32>
    %c0_81 = arith.constant 0 : index
    %c0_82 = arith.constant 0 : index
    %176 = vector.load %arg13[%c0_81, %c0_82] : memref<16x128xf32, #tpu.memory_space<vmem>>, vector<16x128xf32>
    tpu.vector_store %arg13[%c0_81, %c0_82], %175 {strides = array<i32>} : memref<16x128xf32, #tpu.memory_space<vmem>>, vector<16x128xf32>,
    %c0_83 = arith.constant 0 : index
    %c0_84 = arith.constant 0 : index
    %177 = vector.load %arg14[%c0_83, %c0_84] : memref<16x128xf32, #tpu.memory_space<vmem>>, vector<16x128xf32>
    tpu.vector_store %arg14[%c0_83, %c0_84], %173 {strides = array<i32>} : memref<16x128xf32, #tpu.memory_space<vmem>>, vector<16x128xf32>,
    %178 = arith.truncf %175 : vector<16x128xf32> to vector<16x128xbf16>
    %179 = arith.index_cast %142 : i32 to index
    %c0_85 = arith.constant 0 : index
    %180 = vector.load %arg10[%179, %c0_85] : memref<128x128xbf16, #tpu.memory_space<vmem>>, vector<16x128xbf16>
    tpu.vector_store %arg10[%179, %c0_85], %178 {strides = array<i32>} : memref<128x128xbf16, #tpu.memory_space<vmem>>, vector<16x128xbf16>,
    %c2_i32 = arith.constant 2 : i32
    %c16_i32_86 = arith.constant 16 : i32
    %181 = arith.muli %c2_i32, %c16_i32_86 : i32
    %182 = tpu.assume_multiple %181, 16 : i32
    %183 = arith.index_cast %182 : i32 to index
    %c0_87 = arith.constant 0 : index
    %184 = vector.load %arg15[%183, %c0_87] : memref<128x512xf32, #tpu.memory_space<vmem>>, vector<16x512xf32>
    %c0_88 = arith.constant 0 : index
    %c0_89 = arith.constant 0 : index
    %185 = vector.load %arg11[%c0_88, %c0_89] : memref<16x128xf32, #tpu.memory_space<vmem>>, vector<16x128xf32>
    %186 = arith.truncf %185 : vector<16x128xf32> to vector<16x128xbf16>
    %c0_90 = arith.constant 0 : index
    %c0_91 = arith.constant 0 : index
    %187 = vector.load %arg5[%c0_90, %c0_91] : memref<128x512xbf16, #tpu.memory_space<vmem>>, vector<128x512xbf16>
    %cst_92 = arith.constant dense<0.000000e+00> : vector<16x512xf32>
    %188 = tpu.matmul %186, %187, %cst_92 {dimension_numbers = #tpu.dot_dimension_numbers<[1], [0], [0], [1], [0, 0, 1, 1], [], []>} : vector<16x128xbf16>, vector<128x512xbf16>, vector<16x512xf32> -> vector<16x512xf32>
    %189 = arith.addf %184, %188 : vector<16x512xf32>
    %c0_93 = arith.constant 0 : index
    %c0_94 = arith.constant 0 : index
    %190 = vector.load %arg12[%c0_93, %c0_94] : memref<16x128xf32, #tpu.memory_space<vmem>>, vector<16x128xf32>
    %191 = vector.extract_strided_slice %189 {offsets = [0, 0], sizes = [16, 128], strides = [1, 1]} : vector<16x512xf32> to vector<16x128xf32>
    %192 = arith.negf %191 : vector<16x128xf32>
    %193 = math.exp %192 : vector<16x128xf32>
    %cst_95 = arith.constant 1.000000e+00 : f32
    %194 = vector.broadcast %cst_95 : f32 to vector<16x128xf32>
    %195 = arith.addf %194, %193 : vector<16x128xf32>
    %196 = arith.divf %194, %195 : vector<16x128xf32>
    %197 = vector.extract_strided_slice %189 {offsets = [0, 128], sizes = [16, 128], strides = [1, 1]} : vector<16x512xf32> to vector<16x128xf32>
    %198 = arith.negf %197 : vector<16x128xf32>
    %199 = math.exp %198 : vector<16x128xf32>
    %cst_96 = arith.constant 1.000000e+00 : f32
    %200 = vector.broadcast %cst_96 : f32 to vector<16x128xf32>
    %201 = arith.addf %200, %199 : vector<16x128xf32>
    %202 = arith.divf %200, %201 : vector<16x128xf32>
    %203 = vector.extract_strided_slice %189 {offsets = [0, 256], sizes = [16, 128], strides = [1, 1]} : vector<16x512xf32> to vector<16x128xf32>
    %204 = math.tanh %203 : vector<16x128xf32>
    %205 = vector.extract_strided_slice %189 {offsets = [0, 384], sizes = [16, 128], strides = [1, 1]} : vector<16x512xf32> to vector<16x128xf32>
    %206 = arith.negf %205 : vector<16x128xf32>
    %207 = math.exp %206 : vector<16x128xf32>
    %cst_97 = arith.constant 1.000000e+00 : f32
    %208 = vector.broadcast %cst_97 : f32 to vector<16x128xf32>
    %209 = arith.addf %208, %207 : vector<16x128xf32>
    %210 = arith.divf %208, %209 : vector<16x128xf32>
    %211 = arith.mulf %202, %190 : vector<16x128xf32>
    %212 = arith.mulf %196, %204 : vector<16x128xf32>
    %213 = arith.addf %211, %212 : vector<16x128xf32>
    %214 = math.tanh %213 : vector<16x128xf32>
    %215 = arith.mulf %210, %214 : vector<16x128xf32>
    %c0_98 = arith.constant 0 : index
    %c0_99 = arith.constant 0 : index
    %216 = vector.load %arg11[%c0_98, %c0_99] : memref<16x128xf32, #tpu.memory_space<vmem>>, vector<16x128xf32>
    tpu.vector_store %arg11[%c0_98, %c0_99], %215 {strides = array<i32>} : memref<16x128xf32, #tpu.memory_space<vmem>>, vector<16x128xf32>,
    %c0_100 = arith.constant 0 : index
    %c0_101 = arith.constant 0 : index
    %217 = vector.load %arg12[%c0_100, %c0_101] : memref<16x128xf32, #tpu.memory_space<vmem>>, vector<16x128xf32>
    tpu.vector_store %arg12[%c0_100, %c0_101], %213 {strides = array<i32>} : memref<16x128xf32, #tpu.memory_space<vmem>>, vector<16x128xf32>,
    %218 = arith.truncf %215 : vector<16x128xf32> to vector<16x128xbf16>
    %219 = arith.index_cast %182 : i32 to index
    %c0_102 = arith.constant 0 : index
    %220 = vector.load %arg9[%219, %c0_102] : memref<128x128xbf16, #tpu.memory_space<vmem>>, vector<16x128xbf16>
    tpu.vector_store %arg9[%219, %c0_102], %218 {strides = array<i32>} : memref<128x128xbf16, #tpu.memory_space<vmem>>, vector<16x128xbf16>,
    %c7_i32_103 = arith.constant 7 : i32
    %221 = arith.subi %c7_i32_103, %c2_i32 : i32
    %c16_i32_104 = arith.constant 16 : i32
    %222 = arith.muli %221, %c16_i32_104 : i32
    %223 = tpu.assume_multiple %222, 16 : i32
    %c0_105 = arith.constant 0 : index
    %c0_106 = arith.constant 0 : index
    %224 = vector.load %arg13[%c0_105, %c0_106] : memref<16x128xf32, #tpu.memory_space<vmem>>, vector<16x128xf32>
    %c0_107 = arith.constant 0 : index
    %c0_108 = arith.constant 0 : index
    %225 = vector.load %arg14[%c0_107, %c0_108] : memref<16x128xf32, #tpu.memory_space<vmem>>, vector<16x128xf32>
    %226 = arith.index_cast %223 : i32 to index
    %c0_109 = arith.constant 0 : index
    %227 = vector.load %arg16[%226, %c0_109] : memref<128x512xf32, #tpu.memory_space<vmem>>, vector<16x512xf32>
    %228 = arith.truncf %224 : vector<16x128xf32> to vector<16x128xbf16>
    %c0_110 = arith.constant 0 : index
    %c0_111 = arith.constant 0 : index
    %229 = vector.load %arg6[%c0_110, %c0_111] : memref<128x512xbf16, #tpu.memory_space<vmem>>, vector<128x512xbf16>
    %cst_112 = arith.constant dense<0.000000e+00> : vector<16x512xf32>
    %230 = tpu.matmul %228, %229, %cst_112 {dimension_numbers = #tpu.dot_dimension_numbers<[1], [0], [0], [1], [0, 0, 1, 1], [], []>} : vector<16x128xbf16>, vector<128x512xbf16>, vector<16x512xf32> -> vector<16x512xf32>
    %231 = arith.addf %227, %230 : vector<16x512xf32>
    %232 = vector.extract_strided_slice %231 {offsets = [0, 0], sizes = [16, 128], strides = [1, 1]} : vector<16x512xf32> to vector<16x128xf32>
    %233 = arith.negf %232 : vector<16x128xf32>
    %234 = math.exp %233 : vector<16x128xf32>
    %cst_113 = arith.constant 1.000000e+00 : f32
    %235 = vector.broadcast %cst_113 : f32 to vector<16x128xf32>
    %236 = arith.addf %235, %234 : vector<16x128xf32>
    %237 = arith.divf %235, %236 : vector<16x128xf32>
    %238 = vector.extract_strided_slice %231 {offsets = [0, 128], sizes = [16, 128], strides = [1, 1]} : vector<16x512xf32> to vector<16x128xf32>
    %239 = arith.negf %238 : vector<16x128xf32>
    %240 = math.exp %239 : vector<16x128xf32>
    %cst_114 = arith.constant 1.000000e+00 : f32
    %241 = vector.broadcast %cst_114 : f32 to vector<16x128xf32>
    %242 = arith.addf %241, %240 : vector<16x128xf32>
    %243 = arith.divf %241, %242 : vector<16x128xf32>
    %244 = vector.extract_strided_slice %231 {offsets = [0, 256], sizes = [16, 128], strides = [1, 1]} : vector<16x512xf32> to vector<16x128xf32>
    %245 = math.tanh %244 : vector<16x128xf32>
    %246 = vector.extract_strided_slice %231 {offsets = [0, 384], sizes = [16, 128], strides = [1, 1]} : vector<16x512xf32> to vector<16x128xf32>
    %247 = arith.negf %246 : vector<16x128xf32>
    %248 = math.exp %247 : vector<16x128xf32>
    %cst_115 = arith.constant 1.000000e+00 : f32
    %249 = vector.broadcast %cst_115 : f32 to vector<16x128xf32>
    %250 = arith.addf %249, %248 : vector<16x128xf32>
    %251 = arith.divf %249, %250 : vector<16x128xf32>
    %252 = arith.mulf %243, %225 : vector<16x128xf32>
    %253 = arith.mulf %237, %245 : vector<16x128xf32>
    %254 = arith.addf %252, %253 : vector<16x128xf32>
    %255 = math.tanh %254 : vector<16x128xf32>
    %256 = arith.mulf %251, %255 : vector<16x128xf32>
    %c0_116 = arith.constant 0 : index
    %c0_117 = arith.constant 0 : index
    %257 = vector.load %arg13[%c0_116, %c0_117] : memref<16x128xf32, #tpu.memory_space<vmem>>, vector<16x128xf32>
    tpu.vector_store %arg13[%c0_116, %c0_117], %256 {strides = array<i32>} : memref<16x128xf32, #tpu.memory_space<vmem>>, vector<16x128xf32>,
    %c0_118 = arith.constant 0 : index
    %c0_119 = arith.constant 0 : index
    %258 = vector.load %arg14[%c0_118, %c0_119] : memref<16x128xf32, #tpu.memory_space<vmem>>, vector<16x128xf32>
    tpu.vector_store %arg14[%c0_118, %c0_119], %254 {strides = array<i32>} : memref<16x128xf32, #tpu.memory_space<vmem>>, vector<16x128xf32>,
    %259 = arith.truncf %256 : vector<16x128xf32> to vector<16x128xbf16>
    %260 = arith.index_cast %223 : i32 to index
    %c0_120 = arith.constant 0 : index
    %261 = vector.load %arg10[%260, %c0_120] : memref<128x128xbf16, #tpu.memory_space<vmem>>, vector<16x128xbf16>
    tpu.vector_store %arg10[%260, %c0_120], %259 {strides = array<i32>} : memref<128x128xbf16, #tpu.memory_space<vmem>>, vector<16x128xbf16>,
    %c3_i32 = arith.constant 3 : i32
    %c16_i32_121 = arith.constant 16 : i32
    %262 = arith.muli %c3_i32, %c16_i32_121 : i32
    %263 = tpu.assume_multiple %262, 16 : i32
    %264 = arith.index_cast %263 : i32 to index
    %c0_122 = arith.constant 0 : index
    %265 = vector.load %arg15[%264, %c0_122] : memref<128x512xf32, #tpu.memory_space<vmem>>, vector<16x512xf32>
    %c0_123 = arith.constant 0 : index
    %c0_124 = arith.constant 0 : index
    %266 = vector.load %arg11[%c0_123, %c0_124] : memref<16x128xf32, #tpu.memory_space<vmem>>, vector<16x128xf32>
    %267 = arith.truncf %266 : vector<16x128xf32> to vector<16x128xbf16>
    %c0_125 = arith.constant 0 : index
    %c0_126 = arith.constant 0 : index
    %268 = vector.load %arg5[%c0_125, %c0_126] : memref<128x512xbf16, #tpu.memory_space<vmem>>, vector<128x512xbf16>
    %cst_127 = arith.constant dense<0.000000e+00> : vector<16x512xf32>
    %269 = tpu.matmul %267, %268, %cst_127 {dimension_numbers = #tpu.dot_dimension_numbers<[1], [0], [0], [1], [0, 0, 1, 1], [], []>} : vector<16x128xbf16>, vector<128x512xbf16>, vector<16x512xf32> -> vector<16x512xf32>
    %270 = arith.addf %265, %269 : vector<16x512xf32>
    %c0_128 = arith.constant 0 : index
    %c0_129 = arith.constant 0 : index
    %271 = vector.load %arg12[%c0_128, %c0_129] : memref<16x128xf32, #tpu.memory_space<vmem>>, vector<16x128xf32>
    %272 = vector.extract_strided_slice %270 {offsets = [0, 0], sizes = [16, 128], strides = [1, 1]} : vector<16x512xf32> to vector<16x128xf32>
    %273 = arith.negf %272 : vector<16x128xf32>
    %274 = math.exp %273 : vector<16x128xf32>
    %cst_130 = arith.constant 1.000000e+00 : f32
    %275 = vector.broadcast %cst_130 : f32 to vector<16x128xf32>
    %276 = arith.addf %275, %274 : vector<16x128xf32>
    %277 = arith.divf %275, %276 : vector<16x128xf32>
    %278 = vector.extract_strided_slice %270 {offsets = [0, 128], sizes = [16, 128], strides = [1, 1]} : vector<16x512xf32> to vector<16x128xf32>
    %279 = arith.negf %278 : vector<16x128xf32>
    %280 = math.exp %279 : vector<16x128xf32>
    %cst_131 = arith.constant 1.000000e+00 : f32
    %281 = vector.broadcast %cst_131 : f32 to vector<16x128xf32>
    %282 = arith.addf %281, %280 : vector<16x128xf32>
    %283 = arith.divf %281, %282 : vector<16x128xf32>
    %284 = vector.extract_strided_slice %270 {offsets = [0, 256], sizes = [16, 128], strides = [1, 1]} : vector<16x512xf32> to vector<16x128xf32>
    %285 = math.tanh %284 : vector<16x128xf32>
    %286 = vector.extract_strided_slice %270 {offsets = [0, 384], sizes = [16, 128], strides = [1, 1]} : vector<16x512xf32> to vector<16x128xf32>
    %287 = arith.negf %286 : vector<16x128xf32>
    %288 = math.exp %287 : vector<16x128xf32>
    %cst_132 = arith.constant 1.000000e+00 : f32
    %289 = vector.broadcast %cst_132 : f32 to vector<16x128xf32>
    %290 = arith.addf %289, %288 : vector<16x128xf32>
    %291 = arith.divf %289, %290 : vector<16x128xf32>
    %292 = arith.mulf %283, %271 : vector<16x128xf32>
    %293 = arith.mulf %277, %285 : vector<16x128xf32>
    %294 = arith.addf %292, %293 : vector<16x128xf32>
    %295 = math.tanh %294 : vector<16x128xf32>
    %296 = arith.mulf %291, %295 : vector<16x128xf32>
    %c0_133 = arith.constant 0 : index
    %c0_134 = arith.constant 0 : index
    %297 = vector.load %arg11[%c0_133, %c0_134] : memref<16x128xf32, #tpu.memory_space<vmem>>, vector<16x128xf32>
    tpu.vector_store %arg11[%c0_133, %c0_134], %296 {strides = array<i32>} : memref<16x128xf32, #tpu.memory_space<vmem>>, vector<16x128xf32>,
    %c0_135 = arith.constant 0 : index
    %c0_136 = arith.constant 0 : index
    %298 = vector.load %arg12[%c0_135, %c0_136] : memref<16x128xf32, #tpu.memory_space<vmem>>, vector<16x128xf32>
    tpu.vector_store %arg12[%c0_135, %c0_136], %294 {strides = array<i32>} : memref<16x128xf32, #tpu.memory_space<vmem>>, vector<16x128xf32>,
    %299 = arith.truncf %296 : vector<16x128xf32> to vector<16x128xbf16>
    %300 = arith.index_cast %263 : i32 to index
    %c0_137 = arith.constant 0 : index
    %301 = vector.load %arg9[%300, %c0_137] : memref<128x128xbf16, #tpu.memory_space<vmem>>, vector<16x128xbf16>
    tpu.vector_store %arg9[%300, %c0_137], %299 {strides = array<i32>} : memref<128x128xbf16, #tpu.memory_space<vmem>>, vector<16x128xbf16>,
    %c7_i32_138 = arith.constant 7 : i32
    %302 = arith.subi %c7_i32_138, %c3_i32 : i32
    %c16_i32_139 = arith.constant 16 : i32
    %303 = arith.muli %302, %c16_i32_139 : i32
    %304 = tpu.assume_multiple %303, 16 : i32
    %c0_140 = arith.constant 0 : index
    %c0_141 = arith.constant 0 : index
    %305 = vector.load %arg13[%c0_140, %c0_141] : memref<16x128xf32, #tpu.memory_space<vmem>>, vector<16x128xf32>
    %c0_142 = arith.constant 0 : index
    %c0_143 = arith.constant 0 : index
    %306 = vector.load %arg14[%c0_142, %c0_143] : memref<16x128xf32, #tpu.memory_space<vmem>>, vector<16x128xf32>
    %307 = arith.index_cast %304 : i32 to index
    %c0_144 = arith.constant 0 : index
    %308 = vector.load %arg16[%307, %c0_144] : memref<128x512xf32, #tpu.memory_space<vmem>>, vector<16x512xf32>
    %309 = arith.truncf %305 : vector<16x128xf32> to vector<16x128xbf16>
    %c0_145 = arith.constant 0 : index
    %c0_146 = arith.constant 0 : index
    %310 = vector.load %arg6[%c0_145, %c0_146] : memref<128x512xbf16, #tpu.memory_space<vmem>>, vector<128x512xbf16>
    %cst_147 = arith.constant dense<0.000000e+00> : vector<16x512xf32>
    %311 = tpu.matmul %309, %310, %cst_147 {dimension_numbers = #tpu.dot_dimension_numbers<[1], [0], [0], [1], [0, 0, 1, 1], [], []>} : vector<16x128xbf16>, vector<128x512xbf16>, vector<16x512xf32> -> vector<16x512xf32>
    %312 = arith.addf %308, %311 : vector<16x512xf32>
    %313 = vector.extract_strided_slice %312 {offsets = [0, 0], sizes = [16, 128], strides = [1, 1]} : vector<16x512xf32> to vector<16x128xf32>
    %314 = arith.negf %313 : vector<16x128xf32>
    %315 = math.exp %314 : vector<16x128xf32>
    %cst_148 = arith.constant 1.000000e+00 : f32
    %316 = vector.broadcast %cst_148 : f32 to vector<16x128xf32>
    %317 = arith.addf %316, %315 : vector<16x128xf32>
    %318 = arith.divf %316, %317 : vector<16x128xf32>
    %319 = vector.extract_strided_slice %312 {offsets = [0, 128], sizes = [16, 128], strides = [1, 1]} : vector<16x512xf32> to vector<16x128xf32>
    %320 = arith.negf %319 : vector<16x128xf32>
    %321 = math.exp %320 : vector<16x128xf32>
    %cst_149 = arith.constant 1.000000e+00 : f32
    %322 = vector.broadcast %cst_149 : f32 to vector<16x128xf32>
    %323 = arith.addf %322, %321 : vector<16x128xf32>
    %324 = arith.divf %322, %323 : vector<16x128xf32>
    %325 = vector.extract_strided_slice %312 {offsets = [0, 256], sizes = [16, 128], strides = [1, 1]} : vector<16x512xf32> to vector<16x128xf32>
    %326 = math.tanh %325 : vector<16x128xf32>
    %327 = vector.extract_strided_slice %312 {offsets = [0, 384], sizes = [16, 128], strides = [1, 1]} : vector<16x512xf32> to vector<16x128xf32>
    %328 = arith.negf %327 : vector<16x128xf32>
    %329 = math.exp %328 : vector<16x128xf32>
    %cst_150 = arith.constant 1.000000e+00 : f32
    %330 = vector.broadcast %cst_150 : f32 to vector<16x128xf32>
    %331 = arith.addf %330, %329 : vector<16x128xf32>
    %332 = arith.divf %330, %331 : vector<16x128xf32>
    %333 = arith.mulf %324, %306 : vector<16x128xf32>
    %334 = arith.mulf %318, %326 : vector<16x128xf32>
    %335 = arith.addf %333, %334 : vector<16x128xf32>
    %336 = math.tanh %335 : vector<16x128xf32>
    %337 = arith.mulf %332, %336 : vector<16x128xf32>
    %c0_151 = arith.constant 0 : index
    %c0_152 = arith.constant 0 : index
    %338 = vector.load %arg13[%c0_151, %c0_152] : memref<16x128xf32, #tpu.memory_space<vmem>>, vector<16x128xf32>
    tpu.vector_store %arg13[%c0_151, %c0_152], %337 {strides = array<i32>} : memref<16x128xf32, #tpu.memory_space<vmem>>, vector<16x128xf32>,
    %c0_153 = arith.constant 0 : index
    %c0_154 = arith.constant 0 : index
    %339 = vector.load %arg14[%c0_153, %c0_154] : memref<16x128xf32, #tpu.memory_space<vmem>>, vector<16x128xf32>
    tpu.vector_store %arg14[%c0_153, %c0_154], %335 {strides = array<i32>} : memref<16x128xf32, #tpu.memory_space<vmem>>, vector<16x128xf32>,
    %340 = arith.truncf %337 : vector<16x128xf32> to vector<16x128xbf16>
    %341 = arith.index_cast %304 : i32 to index
    %c0_155 = arith.constant 0 : index
    %342 = vector.load %arg10[%341, %c0_155] : memref<128x128xbf16, #tpu.memory_space<vmem>>, vector<16x128xbf16>
    tpu.vector_store %arg10[%341, %c0_155], %340 {strides = array<i32>} : memref<128x128xbf16, #tpu.memory_space<vmem>>, vector<16x128xbf16>,
    %c4_i32 = arith.constant 4 : i32
    %c16_i32_156 = arith.constant 16 : i32
    %343 = arith.muli %c4_i32, %c16_i32_156 : i32
    %344 = tpu.assume_multiple %343, 16 : i32
    %345 = arith.index_cast %344 : i32 to index
    %c0_157 = arith.constant 0 : index
    %346 = vector.load %arg15[%345, %c0_157] : memref<128x512xf32, #tpu.memory_space<vmem>>, vector<16x512xf32>
    %c0_158 = arith.constant 0 : index
    %c0_159 = arith.constant 0 : index
    %347 = vector.load %arg11[%c0_158, %c0_159] : memref<16x128xf32, #tpu.memory_space<vmem>>, vector<16x128xf32>
    %348 = arith.truncf %347 : vector<16x128xf32> to vector<16x128xbf16>
    %c0_160 = arith.constant 0 : index
    %c0_161 = arith.constant 0 : index
    %349 = vector.load %arg5[%c0_160, %c0_161] : memref<128x512xbf16, #tpu.memory_space<vmem>>, vector<128x512xbf16>
    %cst_162 = arith.constant dense<0.000000e+00> : vector<16x512xf32>
    %350 = tpu.matmul %348, %349, %cst_162 {dimension_numbers = #tpu.dot_dimension_numbers<[1], [0], [0], [1], [0, 0, 1, 1], [], []>} : vector<16x128xbf16>, vector<128x512xbf16>, vector<16x512xf32> -> vector<16x512xf32>
    %351 = arith.addf %346, %350 : vector<16x512xf32>
    %c0_163 = arith.constant 0 : index
    %c0_164 = arith.constant 0 : index
    %352 = vector.load %arg12[%c0_163, %c0_164] : memref<16x128xf32, #tpu.memory_space<vmem>>, vector<16x128xf32>
    %353 = vector.extract_strided_slice %351 {offsets = [0, 0], sizes = [16, 128], strides = [1, 1]} : vector<16x512xf32> to vector<16x128xf32>
    %354 = arith.negf %353 : vector<16x128xf32>
    %355 = math.exp %354 : vector<16x128xf32>
    %cst_165 = arith.constant 1.000000e+00 : f32
    %356 = vector.broadcast %cst_165 : f32 to vector<16x128xf32>
    %357 = arith.addf %356, %355 : vector<16x128xf32>
    %358 = arith.divf %356, %357 : vector<16x128xf32>
    %359 = vector.extract_strided_slice %351 {offsets = [0, 128], sizes = [16, 128], strides = [1, 1]} : vector<16x512xf32> to vector<16x128xf32>
    %360 = arith.negf %359 : vector<16x128xf32>
    %361 = math.exp %360 : vector<16x128xf32>
    %cst_166 = arith.constant 1.000000e+00 : f32
    %362 = vector.broadcast %cst_166 : f32 to vector<16x128xf32>
    %363 = arith.addf %362, %361 : vector<16x128xf32>
    %364 = arith.divf %362, %363 : vector<16x128xf32>
    %365 = vector.extract_strided_slice %351 {offsets = [0, 256], sizes = [16, 128], strides = [1, 1]} : vector<16x512xf32> to vector<16x128xf32>
    %366 = math.tanh %365 : vector<16x128xf32>
    %367 = vector.extract_strided_slice %351 {offsets = [0, 384], sizes = [16, 128], strides = [1, 1]} : vector<16x512xf32> to vector<16x128xf32>
    %368 = arith.negf %367 : vector<16x128xf32>
    %369 = math.exp %368 : vector<16x128xf32>
    %cst_167 = arith.constant 1.000000e+00 : f32
    %370 = vector.broadcast %cst_167 : f32 to vector<16x128xf32>
    %371 = arith.addf %370, %369 : vector<16x128xf32>
    %372 = arith.divf %370, %371 : vector<16x128xf32>
    %373 = arith.mulf %364, %352 : vector<16x128xf32>
    %374 = arith.mulf %358, %366 : vector<16x128xf32>
    %375 = arith.addf %373, %374 : vector<16x128xf32>
    %376 = math.tanh %375 : vector<16x128xf32>
    %377 = arith.mulf %372, %376 : vector<16x128xf32>
    %c0_168 = arith.constant 0 : index
    %c0_169 = arith.constant 0 : index
    %378 = vector.load %arg11[%c0_168, %c0_169] : memref<16x128xf32, #tpu.memory_space<vmem>>, vector<16x128xf32>
    tpu.vector_store %arg11[%c0_168, %c0_169], %377 {strides = array<i32>} : memref<16x128xf32, #tpu.memory_space<vmem>>, vector<16x128xf32>,
    %c0_170 = arith.constant 0 : index
    %c0_171 = arith.constant 0 : index
    %379 = vector.load %arg12[%c0_170, %c0_171] : memref<16x128xf32, #tpu.memory_space<vmem>>, vector<16x128xf32>
    tpu.vector_store %arg12[%c0_170, %c0_171], %375 {strides = array<i32>} : memref<16x128xf32, #tpu.memory_space<vmem>>, vector<16x128xf32>,
    %380 = arith.truncf %377 : vector<16x128xf32> to vector<16x128xbf16>
    %381 = arith.index_cast %344 : i32 to index
    %c0_172 = arith.constant 0 : index
    %382 = vector.load %arg9[%381, %c0_172] : memref<128x128xbf16, #tpu.memory_space<vmem>>, vector<16x128xbf16>
    tpu.vector_store %arg9[%381, %c0_172], %380 {strides = array<i32>} : memref<128x128xbf16, #tpu.memory_space<vmem>>, vector<16x128xbf16>,
    %c7_i32_173 = arith.constant 7 : i32
    %383 = arith.subi %c7_i32_173, %c4_i32 : i32
    %c16_i32_174 = arith.constant 16 : i32
    %384 = arith.muli %383, %c16_i32_174 : i32
    %385 = tpu.assume_multiple %384, 16 : i32
    %c0_175 = arith.constant 0 : index
    %c0_176 = arith.constant 0 : index
    %386 = vector.load %arg13[%c0_175, %c0_176] : memref<16x128xf32, #tpu.memory_space<vmem>>, vector<16x128xf32>
    %c0_177 = arith.constant 0 : index
    %c0_178 = arith.constant 0 : index
    %387 = vector.load %arg14[%c0_177, %c0_178] : memref<16x128xf32, #tpu.memory_space<vmem>>, vector<16x128xf32>
    %388 = arith.index_cast %385 : i32 to index
    %c0_179 = arith.constant 0 : index
    %389 = vector.load %arg16[%388, %c0_179] : memref<128x512xf32, #tpu.memory_space<vmem>>, vector<16x512xf32>
    %390 = arith.truncf %386 : vector<16x128xf32> to vector<16x128xbf16>
    %c0_180 = arith.constant 0 : index
    %c0_181 = arith.constant 0 : index
    %391 = vector.load %arg6[%c0_180, %c0_181] : memref<128x512xbf16, #tpu.memory_space<vmem>>, vector<128x512xbf16>
    %cst_182 = arith.constant dense<0.000000e+00> : vector<16x512xf32>
    %392 = tpu.matmul %390, %391, %cst_182 {dimension_numbers = #tpu.dot_dimension_numbers<[1], [0], [0], [1], [0, 0, 1, 1], [], []>} : vector<16x128xbf16>, vector<128x512xbf16>, vector<16x512xf32> -> vector<16x512xf32>
    %393 = arith.addf %389, %392 : vector<16x512xf32>
    %394 = vector.extract_strided_slice %393 {offsets = [0, 0], sizes = [16, 128], strides = [1, 1]} : vector<16x512xf32> to vector<16x128xf32>
    %395 = arith.negf %394 : vector<16x128xf32>
    %396 = math.exp %395 : vector<16x128xf32>
    %cst_183 = arith.constant 1.000000e+00 : f32
    %397 = vector.broadcast %cst_183 : f32 to vector<16x128xf32>
    %398 = arith.addf %397, %396 : vector<16x128xf32>
    %399 = arith.divf %397, %398 : vector<16x128xf32>
    %400 = vector.extract_strided_slice %393 {offsets = [0, 128], sizes = [16, 128], strides = [1, 1]} : vector<16x512xf32> to vector<16x128xf32>
    %401 = arith.negf %400 : vector<16x128xf32>
    %402 = math.exp %401 : vector<16x128xf32>
    %cst_184 = arith.constant 1.000000e+00 : f32
    %403 = vector.broadcast %cst_184 : f32 to vector<16x128xf32>
    %404 = arith.addf %403, %402 : vector<16x128xf32>
    %405 = arith.divf %403, %404 : vector<16x128xf32>
    %406 = vector.extract_strided_slice %393 {offsets = [0, 256], sizes = [16, 128], strides = [1, 1]} : vector<16x512xf32> to vector<16x128xf32>
    %407 = math.tanh %406 : vector<16x128xf32>
    %408 = vector.extract_strided_slice %393 {offsets = [0, 384], sizes = [16, 128], strides = [1, 1]} : vector<16x512xf32> to vector<16x128xf32>
    %409 = arith.negf %408 : vector<16x128xf32>
    %410 = math.exp %409 : vector<16x128xf32>
    %cst_185 = arith.constant 1.000000e+00 : f32
    %411 = vector.broadcast %cst_185 : f32 to vector<16x128xf32>
    %412 = arith.addf %411, %410 : vector<16x128xf32>
    %413 = arith.divf %411, %412 : vector<16x128xf32>
    %414 = arith.mulf %405, %387 : vector<16x128xf32>
    %415 = arith.mulf %399, %407 : vector<16x128xf32>
    %416 = arith.addf %414, %415 : vector<16x128xf32>
    %417 = math.tanh %416 : vector<16x128xf32>
    %418 = arith.mulf %413, %417 : vector<16x128xf32>
    %c0_186 = arith.constant 0 : index
    %c0_187 = arith.constant 0 : index
    %419 = vector.load %arg13[%c0_186, %c0_187] : memref<16x128xf32, #tpu.memory_space<vmem>>, vector<16x128xf32>
    tpu.vector_store %arg13[%c0_186, %c0_187], %418 {strides = array<i32>} : memref<16x128xf32, #tpu.memory_space<vmem>>, vector<16x128xf32>,
    %c0_188 = arith.constant 0 : index
    %c0_189 = arith.constant 0 : index
    %420 = vector.load %arg14[%c0_188, %c0_189] : memref<16x128xf32, #tpu.memory_space<vmem>>, vector<16x128xf32>
    tpu.vector_store %arg14[%c0_188, %c0_189], %416 {strides = array<i32>} : memref<16x128xf32, #tpu.memory_space<vmem>>, vector<16x128xf32>,
    %421 = arith.truncf %418 : vector<16x128xf32> to vector<16x128xbf16>
    %422 = arith.index_cast %385 : i32 to index
    %c0_190 = arith.constant 0 : index
    %423 = vector.load %arg10[%422, %c0_190] : memref<128x128xbf16, #tpu.memory_space<vmem>>, vector<16x128xbf16>
    tpu.vector_store %arg10[%422, %c0_190], %421 {strides = array<i32>} : memref<128x128xbf16, #tpu.memory_space<vmem>>, vector<16x128xbf16>,
    %c5_i32 = arith.constant 5 : i32
    %c16_i32_191 = arith.constant 16 : i32
    %424 = arith.muli %c5_i32, %c16_i32_191 : i32
    %425 = tpu.assume_multiple %424, 16 : i32
    %426 = arith.index_cast %425 : i32 to index
    %c0_192 = arith.constant 0 : index
    %427 = vector.load %arg15[%426, %c0_192] : memref<128x512xf32, #tpu.memory_space<vmem>>, vector<16x512xf32>
    %c0_193 = arith.constant 0 : index
    %c0_194 = arith.constant 0 : index
    %428 = vector.load %arg11[%c0_193, %c0_194] : memref<16x128xf32, #tpu.memory_space<vmem>>, vector<16x128xf32>
    %429 = arith.truncf %428 : vector<16x128xf32> to vector<16x128xbf16>
    %c0_195 = arith.constant 0 : index
    %c0_196 = arith.constant 0 : index
    %430 = vector.load %arg5[%c0_195, %c0_196] : memref<128x512xbf16, #tpu.memory_space<vmem>>, vector<128x512xbf16>
    %cst_197 = arith.constant dense<0.000000e+00> : vector<16x512xf32>
    %431 = tpu.matmul %429, %430, %cst_197 {dimension_numbers = #tpu.dot_dimension_numbers<[1], [0], [0], [1], [0, 0, 1, 1], [], []>} : vector<16x128xbf16>, vector<128x512xbf16>, vector<16x512xf32> -> vector<16x512xf32>
    %432 = arith.addf %427, %431 : vector<16x512xf32>
    %c0_198 = arith.constant 0 : index
    %c0_199 = arith.constant 0 : index
    %433 = vector.load %arg12[%c0_198, %c0_199] : memref<16x128xf32, #tpu.memory_space<vmem>>, vector<16x128xf32>
    %434 = vector.extract_strided_slice %432 {offsets = [0, 0], sizes = [16, 128], strides = [1, 1]} : vector<16x512xf32> to vector<16x128xf32>
    %435 = arith.negf %434 : vector<16x128xf32>
    %436 = math.exp %435 : vector<16x128xf32>
    %cst_200 = arith.constant 1.000000e+00 : f32
    %437 = vector.broadcast %cst_200 : f32 to vector<16x128xf32>
    %438 = arith.addf %437, %436 : vector<16x128xf32>
    %439 = arith.divf %437, %438 : vector<16x128xf32>
    %440 = vector.extract_strided_slice %432 {offsets = [0, 128], sizes = [16, 128], strides = [1, 1]} : vector<16x512xf32> to vector<16x128xf32>
    %441 = arith.negf %440 : vector<16x128xf32>
    %442 = math.exp %441 : vector<16x128xf32>
    %cst_201 = arith.constant 1.000000e+00 : f32
    %443 = vector.broadcast %cst_201 : f32 to vector<16x128xf32>
    %444 = arith.addf %443, %442 : vector<16x128xf32>
    %445 = arith.divf %443, %444 : vector<16x128xf32>
    %446 = vector.extract_strided_slice %432 {offsets = [0, 256], sizes = [16, 128], strides = [1, 1]} : vector<16x512xf32> to vector<16x128xf32>
    %447 = math.tanh %446 : vector<16x128xf32>
    %448 = vector.extract_strided_slice %432 {offsets = [0, 384], sizes = [16, 128], strides = [1, 1]} : vector<16x512xf32> to vector<16x128xf32>
    %449 = arith.negf %448 : vector<16x128xf32>
    %450 = math.exp %449 : vector<16x128xf32>
    %cst_202 = arith.constant 1.000000e+00 : f32
    %451 = vector.broadcast %cst_202 : f32 to vector<16x128xf32>
    %452 = arith.addf %451, %450 : vector<16x128xf32>
    %453 = arith.divf %451, %452 : vector<16x128xf32>
    %454 = arith.mulf %445, %433 : vector<16x128xf32>
    %455 = arith.mulf %439, %447 : vector<16x128xf32>
    %456 = arith.addf %454, %455 : vector<16x128xf32>
    %457 = math.tanh %456 : vector<16x128xf32>
    %458 = arith.mulf %453, %457 : vector<16x128xf32>
    %c0_203 = arith.constant 0 : index
    %c0_204 = arith.constant 0 : index
    %459 = vector.load %arg11[%c0_203, %c0_204] : memref<16x128xf32, #tpu.memory_space<vmem>>, vector<16x128xf32>
    tpu.vector_store %arg11[%c0_203, %c0_204], %458 {strides = array<i32>} : memref<16x128xf32, #tpu.memory_space<vmem>>, vector<16x128xf32>,
    %c0_205 = arith.constant 0 : index
    %c0_206 = arith.constant 0 : index
    %460 = vector.load %arg12[%c0_205, %c0_206] : memref<16x128xf32, #tpu.memory_space<vmem>>, vector<16x128xf32>
    tpu.vector_store %arg12[%c0_205, %c0_206], %456 {strides = array<i32>} : memref<16x128xf32, #tpu.memory_space<vmem>>, vector<16x128xf32>,
    %461 = arith.truncf %458 : vector<16x128xf32> to vector<16x128xbf16>
    %462 = arith.index_cast %425 : i32 to index
    %c0_207 = arith.constant 0 : index
    %463 = vector.load %arg9[%462, %c0_207] : memref<128x128xbf16, #tpu.memory_space<vmem>>, vector<16x128xbf16>
    tpu.vector_store %arg9[%462, %c0_207], %461 {strides = array<i32>} : memref<128x128xbf16, #tpu.memory_space<vmem>>, vector<16x128xbf16>,
    %c7_i32_208 = arith.constant 7 : i32
    %464 = arith.subi %c7_i32_208, %c5_i32 : i32
    %c16_i32_209 = arith.constant 16 : i32
    %465 = arith.muli %464, %c16_i32_209 : i32
    %466 = tpu.assume_multiple %465, 16 : i32
    %c0_210 = arith.constant 0 : index
    %c0_211 = arith.constant 0 : index
    %467 = vector.load %arg13[%c0_210, %c0_211] : memref<16x128xf32, #tpu.memory_space<vmem>>, vector<16x128xf32>
    %c0_212 = arith.constant 0 : index
    %c0_213 = arith.constant 0 : index
    %468 = vector.load %arg14[%c0_212, %c0_213] : memref<16x128xf32, #tpu.memory_space<vmem>>, vector<16x128xf32>
    %469 = arith.index_cast %466 : i32 to index
    %c0_214 = arith.constant 0 : index
    %470 = vector.load %arg16[%469, %c0_214] : memref<128x512xf32, #tpu.memory_space<vmem>>, vector<16x512xf32>
    %471 = arith.truncf %467 : vector<16x128xf32> to vector<16x128xbf16>
    %c0_215 = arith.constant 0 : index
    %c0_216 = arith.constant 0 : index
    %472 = vector.load %arg6[%c0_215, %c0_216] : memref<128x512xbf16, #tpu.memory_space<vmem>>, vector<128x512xbf16>
    %cst_217 = arith.constant dense<0.000000e+00> : vector<16x512xf32>
    %473 = tpu.matmul %471, %472, %cst_217 {dimension_numbers = #tpu.dot_dimension_numbers<[1], [0], [0], [1], [0, 0, 1, 1], [], []>} : vector<16x128xbf16>, vector<128x512xbf16>, vector<16x512xf32> -> vector<16x512xf32>
    %474 = arith.addf %470, %473 : vector<16x512xf32>
    %475 = vector.extract_strided_slice %474 {offsets = [0, 0], sizes = [16, 128], strides = [1, 1]} : vector<16x512xf32> to vector<16x128xf32>
    %476 = arith.negf %475 : vector<16x128xf32>
    %477 = math.exp %476 : vector<16x128xf32>
    %cst_218 = arith.constant 1.000000e+00 : f32
    %478 = vector.broadcast %cst_218 : f32 to vector<16x128xf32>
    %479 = arith.addf %478, %477 : vector<16x128xf32>
    %480 = arith.divf %478, %479 : vector<16x128xf32>
    %481 = vector.extract_strided_slice %474 {offsets = [0, 128], sizes = [16, 128], strides = [1, 1]} : vector<16x512xf32> to vector<16x128xf32>
    %482 = arith.negf %481 : vector<16x128xf32>
    %483 = math.exp %482 : vector<16x128xf32>
    %cst_219 = arith.constant 1.000000e+00 : f32
    %484 = vector.broadcast %cst_219 : f32 to vector<16x128xf32>
    %485 = arith.addf %484, %483 : vector<16x128xf32>
    %486 = arith.divf %484, %485 : vector<16x128xf32>
    %487 = vector.extract_strided_slice %474 {offsets = [0, 256], sizes = [16, 128], strides = [1, 1]} : vector<16x512xf32> to vector<16x128xf32>
    %488 = math.tanh %487 : vector<16x128xf32>
    %489 = vector.extract_strided_slice %474 {offsets = [0, 384], sizes = [16, 128], strides = [1, 1]} : vector<16x512xf32> to vector<16x128xf32>
    %490 = arith.negf %489 : vector<16x128xf32>
    %491 = math.exp %490 : vector<16x128xf32>
    %cst_220 = arith.constant 1.000000e+00 : f32
    %492 = vector.broadcast %cst_220 : f32 to vector<16x128xf32>
    %493 = arith.addf %492, %491 : vector<16x128xf32>
    %494 = arith.divf %492, %493 : vector<16x128xf32>
    %495 = arith.mulf %486, %468 : vector<16x128xf32>
    %496 = arith.mulf %480, %488 : vector<16x128xf32>
    %497 = arith.addf %495, %496 : vector<16x128xf32>
    %498 = math.tanh %497 : vector<16x128xf32>
    %499 = arith.mulf %494, %498 : vector<16x128xf32>
    %c0_221 = arith.constant 0 : index
    %c0_222 = arith.constant 0 : index
    %500 = vector.load %arg13[%c0_221, %c0_222] : memref<16x128xf32, #tpu.memory_space<vmem>>, vector<16x128xf32>
    tpu.vector_store %arg13[%c0_221, %c0_222], %499 {strides = array<i32>} : memref<16x128xf32, #tpu.memory_space<vmem>>, vector<16x128xf32>,
    %c0_223 = arith.constant 0 : index
    %c0_224 = arith.constant 0 : index
    %501 = vector.load %arg14[%c0_223, %c0_224] : memref<16x128xf32, #tpu.memory_space<vmem>>, vector<16x128xf32>
    tpu.vector_store %arg14[%c0_223, %c0_224], %497 {strides = array<i32>} : memref<16x128xf32, #tpu.memory_space<vmem>>, vector<16x128xf32>,
    %502 = arith.truncf %499 : vector<16x128xf32> to vector<16x128xbf16>
    %503 = arith.index_cast %466 : i32 to index
    %c0_225 = arith.constant 0 : index
    %504 = vector.load %arg10[%503, %c0_225] : memref<128x128xbf16, #tpu.memory_space<vmem>>, vector<16x128xbf16>
    tpu.vector_store %arg10[%503, %c0_225], %502 {strides = array<i32>} : memref<128x128xbf16, #tpu.memory_space<vmem>>, vector<16x128xbf16>,
    %c6_i32 = arith.constant 6 : i32
    %c16_i32_226 = arith.constant 16 : i32
    %505 = arith.muli %c6_i32, %c16_i32_226 : i32
    %506 = tpu.assume_multiple %505, 16 : i32
    %507 = arith.index_cast %506 : i32 to index
    %c0_227 = arith.constant 0 : index
    %508 = vector.load %arg15[%507, %c0_227] : memref<128x512xf32, #tpu.memory_space<vmem>>, vector<16x512xf32>
    %c0_228 = arith.constant 0 : index
    %c0_229 = arith.constant 0 : index
    %509 = vector.load %arg11[%c0_228, %c0_229] : memref<16x128xf32, #tpu.memory_space<vmem>>, vector<16x128xf32>
    %510 = arith.truncf %509 : vector<16x128xf32> to vector<16x128xbf16>
    %c0_230 = arith.constant 0 : index
    %c0_231 = arith.constant 0 : index
    %511 = vector.load %arg5[%c0_230, %c0_231] : memref<128x512xbf16, #tpu.memory_space<vmem>>, vector<128x512xbf16>
    %cst_232 = arith.constant dense<0.000000e+00> : vector<16x512xf32>
    %512 = tpu.matmul %510, %511, %cst_232 {dimension_numbers = #tpu.dot_dimension_numbers<[1], [0], [0], [1], [0, 0, 1, 1], [], []>} : vector<16x128xbf16>, vector<128x512xbf16>, vector<16x512xf32> -> vector<16x512xf32>
    %513 = arith.addf %508, %512 : vector<16x512xf32>
    %c0_233 = arith.constant 0 : index
    %c0_234 = arith.constant 0 : index
    %514 = vector.load %arg12[%c0_233, %c0_234] : memref<16x128xf32, #tpu.memory_space<vmem>>, vector<16x128xf32>
    %515 = vector.extract_strided_slice %513 {offsets = [0, 0], sizes = [16, 128], strides = [1, 1]} : vector<16x512xf32> to vector<16x128xf32>
    %516 = arith.negf %515 : vector<16x128xf32>
    %517 = math.exp %516 : vector<16x128xf32>
    %cst_235 = arith.constant 1.000000e+00 : f32
    %518 = vector.broadcast %cst_235 : f32 to vector<16x128xf32>
    %519 = arith.addf %518, %517 : vector<16x128xf32>
    %520 = arith.divf %518, %519 : vector<16x128xf32>
    %521 = vector.extract_strided_slice %513 {offsets = [0, 128], sizes = [16, 128], strides = [1, 1]} : vector<16x512xf32> to vector<16x128xf32>
    %522 = arith.negf %521 : vector<16x128xf32>
    %523 = math.exp %522 : vector<16x128xf32>
    %cst_236 = arith.constant 1.000000e+00 : f32
    %524 = vector.broadcast %cst_236 : f32 to vector<16x128xf32>
    %525 = arith.addf %524, %523 : vector<16x128xf32>
    %526 = arith.divf %524, %525 : vector<16x128xf32>
    %527 = vector.extract_strided_slice %513 {offsets = [0, 256], sizes = [16, 128], strides = [1, 1]} : vector<16x512xf32> to vector<16x128xf32>
    %528 = math.tanh %527 : vector<16x128xf32>
    %529 = vector.extract_strided_slice %513 {offsets = [0, 384], sizes = [16, 128], strides = [1, 1]} : vector<16x512xf32> to vector<16x128xf32>
    %530 = arith.negf %529 : vector<16x128xf32>
    %531 = math.exp %530 : vector<16x128xf32>
    %cst_237 = arith.constant 1.000000e+00 : f32
    %532 = vector.broadcast %cst_237 : f32 to vector<16x128xf32>
    %533 = arith.addf %532, %531 : vector<16x128xf32>
    %534 = arith.divf %532, %533 : vector<16x128xf32>
    %535 = arith.mulf %526, %514 : vector<16x128xf32>
    %536 = arith.mulf %520, %528 : vector<16x128xf32>
    %537 = arith.addf %535, %536 : vector<16x128xf32>
    %538 = math.tanh %537 : vector<16x128xf32>
    %539 = arith.mulf %534, %538 : vector<16x128xf32>
    %c0_238 = arith.constant 0 : index
    %c0_239 = arith.constant 0 : index
    %540 = vector.load %arg11[%c0_238, %c0_239] : memref<16x128xf32, #tpu.memory_space<vmem>>, vector<16x128xf32>
    tpu.vector_store %arg11[%c0_238, %c0_239], %539 {strides = array<i32>} : memref<16x128xf32, #tpu.memory_space<vmem>>, vector<16x128xf32>,
    %c0_240 = arith.constant 0 : index
    %c0_241 = arith.constant 0 : index
    %541 = vector.load %arg12[%c0_240, %c0_241] : memref<16x128xf32, #tpu.memory_space<vmem>>, vector<16x128xf32>
    tpu.vector_store %arg12[%c0_240, %c0_241], %537 {strides = array<i32>} : memref<16x128xf32, #tpu.memory_space<vmem>>, vector<16x128xf32>,
    %542 = arith.truncf %539 : vector<16x128xf32> to vector<16x128xbf16>
    %543 = arith.index_cast %506 : i32 to index
    %c0_242 = arith.constant 0 : index
    %544 = vector.load %arg9[%543, %c0_242] : memref<128x128xbf16, #tpu.memory_space<vmem>>, vector<16x128xbf16>
    tpu.vector_store %arg9[%543, %c0_242], %542 {strides = array<i32>} : memref<128x128xbf16, #tpu.memory_space<vmem>>, vector<16x128xbf16>,
    %c7_i32_243 = arith.constant 7 : i32
    %545 = arith.subi %c7_i32_243, %c6_i32 : i32
    %c16_i32_244 = arith.constant 16 : i32
    %546 = arith.muli %545, %c16_i32_244 : i32
    %547 = tpu.assume_multiple %546, 16 : i32
    %c0_245 = arith.constant 0 : index
    %c0_246 = arith.constant 0 : index
    %548 = vector.load %arg13[%c0_245, %c0_246] : memref<16x128xf32, #tpu.memory_space<vmem>>, vector<16x128xf32>
    %c0_247 = arith.constant 0 : index
    %c0_248 = arith.constant 0 : index
    %549 = vector.load %arg14[%c0_247, %c0_248] : memref<16x128xf32, #tpu.memory_space<vmem>>, vector<16x128xf32>
    %550 = arith.index_cast %547 : i32 to index
    %c0_249 = arith.constant 0 : index
    %551 = vector.load %arg16[%550, %c0_249] : memref<128x512xf32, #tpu.memory_space<vmem>>, vector<16x512xf32>
    %552 = arith.truncf %548 : vector<16x128xf32> to vector<16x128xbf16>
    %c0_250 = arith.constant 0 : index
    %c0_251 = arith.constant 0 : index
    %553 = vector.load %arg6[%c0_250, %c0_251] : memref<128x512xbf16, #tpu.memory_space<vmem>>, vector<128x512xbf16>
    %cst_252 = arith.constant dense<0.000000e+00> : vector<16x512xf32>
    %554 = tpu.matmul %552, %553, %cst_252 {dimension_numbers = #tpu.dot_dimension_numbers<[1], [0], [0], [1], [0, 0, 1, 1], [], []>} : vector<16x128xbf16>, vector<128x512xbf16>, vector<16x512xf32> -> vector<16x512xf32>
    %555 = arith.addf %551, %554 : vector<16x512xf32>
    %556 = vector.extract_strided_slice %555 {offsets = [0, 0], sizes = [16, 128], strides = [1, 1]} : vector<16x512xf32> to vector<16x128xf32>
    %557 = arith.negf %556 : vector<16x128xf32>
    %558 = math.exp %557 : vector<16x128xf32>
    %cst_253 = arith.constant 1.000000e+00 : f32
    %559 = vector.broadcast %cst_253 : f32 to vector<16x128xf32>
    %560 = arith.addf %559, %558 : vector<16x128xf32>
    %561 = arith.divf %559, %560 : vector<16x128xf32>
    %562 = vector.extract_strided_slice %555 {offsets = [0, 128], sizes = [16, 128], strides = [1, 1]} : vector<16x512xf32> to vector<16x128xf32>
    %563 = arith.negf %562 : vector<16x128xf32>
    %564 = math.exp %563 : vector<16x128xf32>
    %cst_254 = arith.constant 1.000000e+00 : f32
    %565 = vector.broadcast %cst_254 : f32 to vector<16x128xf32>
    %566 = arith.addf %565, %564 : vector<16x128xf32>
    %567 = arith.divf %565, %566 : vector<16x128xf32>
    %568 = vector.extract_strided_slice %555 {offsets = [0, 256], sizes = [16, 128], strides = [1, 1]} : vector<16x512xf32> to vector<16x128xf32>
    %569 = math.tanh %568 : vector<16x128xf32>
    %570 = vector.extract_strided_slice %555 {offsets = [0, 384], sizes = [16, 128], strides = [1, 1]} : vector<16x512xf32> to vector<16x128xf32>
    %571 = arith.negf %570 : vector<16x128xf32>
    %572 = math.exp %571 : vector<16x128xf32>
    %cst_255 = arith.constant 1.000000e+00 : f32
    %573 = vector.broadcast %cst_255 : f32 to vector<16x128xf32>
    %574 = arith.addf %573, %572 : vector<16x128xf32>
    %575 = arith.divf %573, %574 : vector<16x128xf32>
    %576 = arith.mulf %567, %549 : vector<16x128xf32>
    %577 = arith.mulf %561, %569 : vector<16x128xf32>
    %578 = arith.addf %576, %577 : vector<16x128xf32>
    %579 = math.tanh %578 : vector<16x128xf32>
    %580 = arith.mulf %575, %579 : vector<16x128xf32>
    %c0_256 = arith.constant 0 : index
    %c0_257 = arith.constant 0 : index
    %581 = vector.load %arg13[%c0_256, %c0_257] : memref<16x128xf32, #tpu.memory_space<vmem>>, vector<16x128xf32>
    tpu.vector_store %arg13[%c0_256, %c0_257], %580 {strides = array<i32>} : memref<16x128xf32, #tpu.memory_space<vmem>>, vector<16x128xf32>,
    %c0_258 = arith.constant 0 : index
    %c0_259 = arith.constant 0 : index
    %582 = vector.load %arg14[%c0_258, %c0_259] : memref<16x128xf32, #tpu.memory_space<vmem>>, vector<16x128xf32>
    tpu.vector_store %arg14[%c0_258, %c0_259], %578 {strides = array<i32>} : memref<16x128xf32, #tpu.memory_space<vmem>>, vector<16x128xf32>,
    %583 = arith.truncf %580 : vector<16x128xf32> to vector<16x128xbf16>
    %584 = arith.index_cast %547 : i32 to index
    %c0_260 = arith.constant 0 : index
    %585 = vector.load %arg10[%584, %c0_260] : memref<128x128xbf16, #tpu.memory_space<vmem>>, vector<16x128xbf16>
    tpu.vector_store %arg10[%584, %c0_260], %583 {strides = array<i32>} : memref<128x128xbf16, #tpu.memory_space<vmem>>, vector<16x128xbf16>,
    %c7_i32_261 = arith.constant 7 : i32
    %c16_i32_262 = arith.constant 16 : i32
    %586 = arith.muli %c7_i32_261, %c16_i32_262 : i32
    %587 = tpu.assume_multiple %586, 16 : i32
    %588 = arith.index_cast %587 : i32 to index
    %c0_263 = arith.constant 0 : index
    %589 = vector.load %arg15[%588, %c0_263] : memref<128x512xf32, #tpu.memory_space<vmem>>, vector<16x512xf32>
    %c0_264 = arith.constant 0 : index
    %c0_265 = arith.constant 0 : index
    %590 = vector.load %arg11[%c0_264, %c0_265] : memref<16x128xf32, #tpu.memory_space<vmem>>, vector<16x128xf32>
    %591 = arith.truncf %590 : vector<16x128xf32> to vector<16x128xbf16>
    %c0_266 = arith.constant 0 : index
    %c0_267 = arith.constant 0 : index
    %592 = vector.load %arg5[%c0_266, %c0_267] : memref<128x512xbf16, #tpu.memory_space<vmem>>, vector<128x512xbf16>
    %cst_268 = arith.constant dense<0.000000e+00> : vector<16x512xf32>
    %593 = tpu.matmul %591, %592, %cst_268 {dimension_numbers = #tpu.dot_dimension_numbers<[1], [0], [0], [1], [0, 0, 1, 1], [], []>} : vector<16x128xbf16>, vector<128x512xbf16>, vector<16x512xf32> -> vector<16x512xf32>
    %594 = arith.addf %589, %593 : vector<16x512xf32>
    %c0_269 = arith.constant 0 : index
    %c0_270 = arith.constant 0 : index
    %595 = vector.load %arg12[%c0_269, %c0_270] : memref<16x128xf32, #tpu.memory_space<vmem>>, vector<16x128xf32>
    %596 = vector.extract_strided_slice %594 {offsets = [0, 0], sizes = [16, 128], strides = [1, 1]} : vector<16x512xf32> to vector<16x128xf32>
    %597 = arith.negf %596 : vector<16x128xf32>
    %598 = math.exp %597 : vector<16x128xf32>
    %cst_271 = arith.constant 1.000000e+00 : f32
    %599 = vector.broadcast %cst_271 : f32 to vector<16x128xf32>
    %600 = arith.addf %599, %598 : vector<16x128xf32>
    %601 = arith.divf %599, %600 : vector<16x128xf32>
    %602 = vector.extract_strided_slice %594 {offsets = [0, 128], sizes = [16, 128], strides = [1, 1]} : vector<16x512xf32> to vector<16x128xf32>
    %603 = arith.negf %602 : vector<16x128xf32>
    %604 = math.exp %603 : vector<16x128xf32>
    %cst_272 = arith.constant 1.000000e+00 : f32
    %605 = vector.broadcast %cst_272 : f32 to vector<16x128xf32>
    %606 = arith.addf %605, %604 : vector<16x128xf32>
    %607 = arith.divf %605, %606 : vector<16x128xf32>
    %608 = vector.extract_strided_slice %594 {offsets = [0, 256], sizes = [16, 128], strides = [1, 1]} : vector<16x512xf32> to vector<16x128xf32>
    %609 = math.tanh %608 : vector<16x128xf32>
    %610 = vector.extract_strided_slice %594 {offsets = [0, 384], sizes = [16, 128], strides = [1, 1]} : vector<16x512xf32> to vector<16x128xf32>
    %611 = arith.negf %610 : vector<16x128xf32>
    %612 = math.exp %611 : vector<16x128xf32>
    %cst_273 = arith.constant 1.000000e+00 : f32
    %613 = vector.broadcast %cst_273 : f32 to vector<16x128xf32>
    %614 = arith.addf %613, %612 : vector<16x128xf32>
    %615 = arith.divf %613, %614 : vector<16x128xf32>
    %616 = arith.mulf %607, %595 : vector<16x128xf32>
    %617 = arith.mulf %601, %609 : vector<16x128xf32>
    %618 = arith.addf %616, %617 : vector<16x128xf32>
    %619 = math.tanh %618 : vector<16x128xf32>
    %620 = arith.mulf %615, %619 : vector<16x128xf32>
    %c0_274 = arith.constant 0 : index
    %c0_275 = arith.constant 0 : index
    %621 = vector.load %arg11[%c0_274, %c0_275] : memref<16x128xf32, #tpu.memory_space<vmem>>, vector<16x128xf32>
    tpu.vector_store %arg11[%c0_274, %c0_275], %620 {strides = array<i32>} : memref<16x128xf32, #tpu.memory_space<vmem>>, vector<16x128xf32>,
    %c0_276 = arith.constant 0 : index
    %c0_277 = arith.constant 0 : index
    %622 = vector.load %arg12[%c0_276, %c0_277] : memref<16x128xf32, #tpu.memory_space<vmem>>, vector<16x128xf32>
    tpu.vector_store %arg12[%c0_276, %c0_277], %618 {strides = array<i32>} : memref<16x128xf32, #tpu.memory_space<vmem>>, vector<16x128xf32>,
    %623 = arith.truncf %620 : vector<16x128xf32> to vector<16x128xbf16>
    %624 = arith.index_cast %587 : i32 to index
    %c0_278 = arith.constant 0 : index
    %625 = vector.load %arg9[%624, %c0_278] : memref<128x128xbf16, #tpu.memory_space<vmem>>, vector<16x128xbf16>
    tpu.vector_store %arg9[%624, %c0_278], %623 {strides = array<i32>} : memref<128x128xbf16, #tpu.memory_space<vmem>>, vector<16x128xbf16>,
    %c7_i32_279 = arith.constant 7 : i32
    %626 = arith.subi %c7_i32_279, %c7_i32_261 : i32
    %c16_i32_280 = arith.constant 16 : i32
    %627 = arith.muli %626, %c16_i32_280 : i32
    %628 = tpu.assume_multiple %627, 16 : i32
    %c0_281 = arith.constant 0 : index
    %c0_282 = arith.constant 0 : index
    %629 = vector.load %arg13[%c0_281, %c0_282] : memref<16x128xf32, #tpu.memory_space<vmem>>, vector<16x128xf32>
    %c0_283 = arith.constant 0 : index
    %c0_284 = arith.constant 0 : index
    %630 = vector.load %arg14[%c0_283, %c0_284] : memref<16x128xf32, #tpu.memory_space<vmem>>, vector<16x128xf32>
    %631 = arith.index_cast %628 : i32 to index
    %c0_285 = arith.constant 0 : index
    %632 = vector.load %arg16[%631, %c0_285] : memref<128x512xf32, #tpu.memory_space<vmem>>, vector<16x512xf32>
    %633 = arith.truncf %629 : vector<16x128xf32> to vector<16x128xbf16>
    %c0_286 = arith.constant 0 : index
    %c0_287 = arith.constant 0 : index
    %634 = vector.load %arg6[%c0_286, %c0_287] : memref<128x512xbf16, #tpu.memory_space<vmem>>, vector<128x512xbf16>
    %cst_288 = arith.constant dense<0.000000e+00> : vector<16x512xf32>
    %635 = tpu.matmul %633, %634, %cst_288 {dimension_numbers = #tpu.dot_dimension_numbers<[1], [0], [0], [1], [0, 0, 1, 1], [], []>} : vector<16x128xbf16>, vector<128x512xbf16>, vector<16x512xf32> -> vector<16x512xf32>
    %636 = arith.addf %632, %635 : vector<16x512xf32>
    %637 = vector.extract_strided_slice %636 {offsets = [0, 0], sizes = [16, 128], strides = [1, 1]} : vector<16x512xf32> to vector<16x128xf32>
    %638 = arith.negf %637 : vector<16x128xf32>
    %639 = math.exp %638 : vector<16x128xf32>
    %cst_289 = arith.constant 1.000000e+00 : f32
    %640 = vector.broadcast %cst_289 : f32 to vector<16x128xf32>
    %641 = arith.addf %640, %639 : vector<16x128xf32>
    %642 = arith.divf %640, %641 : vector<16x128xf32>
    %643 = vector.extract_strided_slice %636 {offsets = [0, 128], sizes = [16, 128], strides = [1, 1]} : vector<16x512xf32> to vector<16x128xf32>
    %644 = arith.negf %643 : vector<16x128xf32>
    %645 = math.exp %644 : vector<16x128xf32>
    %cst_290 = arith.constant 1.000000e+00 : f32
    %646 = vector.broadcast %cst_290 : f32 to vector<16x128xf32>
    %647 = arith.addf %646, %645 : vector<16x128xf32>
    %648 = arith.divf %646, %647 : vector<16x128xf32>
    %649 = vector.extract_strided_slice %636 {offsets = [0, 256], sizes = [16, 128], strides = [1, 1]} : vector<16x512xf32> to vector<16x128xf32>
    %650 = math.tanh %649 : vector<16x128xf32>
    %651 = vector.extract_strided_slice %636 {offsets = [0, 384], sizes = [16, 128], strides = [1, 1]} : vector<16x512xf32> to vector<16x128xf32>
    %652 = arith.negf %651 : vector<16x128xf32>
    %653 = math.exp %652 : vector<16x128xf32>
    %cst_291 = arith.constant 1.000000e+00 : f32
    %654 = vector.broadcast %cst_291 : f32 to vector<16x128xf32>
    %655 = arith.addf %654, %653 : vector<16x128xf32>
    %656 = arith.divf %654, %655 : vector<16x128xf32>
    %657 = arith.mulf %648, %630 : vector<16x128xf32>
    %658 = arith.mulf %642, %650 : vector<16x128xf32>
    %659 = arith.addf %657, %658 : vector<16x128xf32>
    %660 = math.tanh %659 : vector<16x128xf32>
    %661 = arith.mulf %656, %660 : vector<16x128xf32>
    %c0_292 = arith.constant 0 : index
    %c0_293 = arith.constant 0 : index
    %662 = vector.load %arg13[%c0_292, %c0_293] : memref<16x128xf32, #tpu.memory_space<vmem>>, vector<16x128xf32>
    tpu.vector_store %arg13[%c0_292, %c0_293], %661 {strides = array<i32>} : memref<16x128xf32, #tpu.memory_space<vmem>>, vector<16x128xf32>,
    %c0_294 = arith.constant 0 : index
    %c0_295 = arith.constant 0 : index
    %663 = vector.load %arg14[%c0_294, %c0_295] : memref<16x128xf32, #tpu.memory_space<vmem>>, vector<16x128xf32>
    tpu.vector_store %arg14[%c0_294, %c0_295], %659 {strides = array<i32>} : memref<16x128xf32, #tpu.memory_space<vmem>>, vector<16x128xf32>,
    %664 = arith.truncf %661 : vector<16x128xf32> to vector<16x128xbf16>
    %665 = arith.index_cast %628 : i32 to index
    %c0_296 = arith.constant 0 : index
    %666 = vector.load %arg10[%665, %c0_296] : memref<128x128xbf16, #tpu.memory_space<vmem>>, vector<16x128xbf16>
    tpu.vector_store %arg10[%665, %c0_296], %664 {strides = array<i32>} : memref<128x128xbf16, #tpu.memory_space<vmem>>, vector<16x128xbf16>,
    %c8_i32 = arith.constant 8 : i32
    return
  }
  func.func @transform_0(%arg0: i32) -> (i32, i32) {
    %c0_i32 = arith.constant 0 : i32
    %c0_i32_0 = arith.constant 0 : i32
    return %arg0, %c0_i32 : i32, i32
  }
  func.func @transform_1(%arg0: i32) -> (i32, i32) {
    %c0_i32 = arith.constant 0 : i32
    %0 = arith.subi %c0_i32, %arg0 : i32
    %c0_i32_0 = arith.constant 0 : i32
    %c0_i32_1 = arith.constant 0 : i32
    return %0, %c0_i32_0 : i32, i32
  }
  func.func @transform_2(%arg0: i32) -> (i32, i32) {
    %c0_i32 = arith.constant 0 : i32
    %c0_i32_0 = arith.constant 0 : i32
    %c0_i32_1 = arith.constant 0 : i32
    return %c0_i32, %c0_i32_0 : i32, i32
  }
  func.func @transform_3(%arg0: i32) -> (i32, i32) {
    %c0_i32 = arith.constant 0 : i32
    %c0_i32_0 = arith.constant 0 : i32
    %c0_i32_1 = arith.constant 0 : i32
    return %c0_i32, %c0_i32_0 : i32, i32
  }
  func.func @transform_4(%arg0: i32) -> (i32, i32) {
    %c0_i32 = arith.constant 0 : i32
    %c0_i32_0 = arith.constant 0 : i32
    %c0_i32_1 = arith.constant 0 : i32
    return %c0_i32, %c0_i32_0 : i32, i32
  }
  func.func @transform_5(%arg0: i32) -> (i32, i32) {
    %c0_i32 = arith.constant 0 : i32
    %c0_i32_0 = arith.constant 0 : i32
    %c0_i32_1 = arith.constant 0 : i32
    return %c0_i32, %c0_i32_0 : i32, i32
  }
  func.func @transform_6(%arg0: i32) -> (i32, i32) {
    %c0_i32 = arith.constant 0 : i32
    %c0_i32_0 = arith.constant 0 : i32
    %c0_i32_1 = arith.constant 0 : i32
    return %c0_i32, %c0_i32_0 : i32, i32
  }
  func.func @transform_7(%arg0: i32) -> (i32, i32) {
    %c0_i32 = arith.constant 0 : i32
    %c0_i32_0 = arith.constant 0 : i32
    %c0_i32_1 = arith.constant 0 : i32
    return %c0_i32, %c0_i32_0 : i32, i32
  }
  func.func @transform_8(%arg0: i32) -> (i32, i32) {
    %c0_i32 = arith.constant 0 : i32
    %c0_i32_0 = arith.constant 0 : i32
    return %arg0, %c0_i32 : i32, i32
  }
  func.func @transform_9(%arg0: i32) -> (i32, i32) {
    %c0_i32 = arith.constant 0 : i32
    %0 = arith.subi %c0_i32, %arg0 : i32
    %c0_i32_0 = arith.constant 0 : i32
    %c0_i32_1 = arith.constant 0 : i32
    return %0, %c0_i32_0 : i32, i32
  }
}

</mosaic_0001>

<llo_original>
// kernel: tpu_custom_call.1
$region0: #{tpu_custom_call.1}
  #allocation0 [shape = 'u32[]', space=smem, size = 0x4, offset = 0x4, fixed_abs, tag = 'smem constant byte address 0x4 - core index']
  #allocation1 [shape = 'u32[72,128]{1,0:T(1,128)}', space=vmem, size = 0x9000, scoped, tag = 'internal scratch']
  #allocation2 [shape = 'f32[16,128]{1,0:T(8,128)}', space=vmem, size = 0x2000, scoped, tag = 'scratch operand']
  #allocation3 [shape = 'f32[16,128]{1,0:T(8,128)}', space=vmem, size = 0x2000, scoped, tag = 'scratch operand']
  #allocation4 [shape = 'f32[16,128]{1,0:T(8,128)}', space=vmem, size = 0x2000, scoped, tag = 'scratch operand']
  #allocation5 [shape = 'f32[16,128]{1,0:T(8,128)}', space=vmem, size = 0x2000, scoped, tag = 'scratch operand']
  #allocation6 [shape = 'f32[128,512]{1,0:T(8,128)}', space=vmem, size = 0x40000, scoped, tag = 'scratch operand']
  #allocation7 [shape = 'f32[128,512]{1,0:T(8,128)}', space=vmem, size = 0x40000, scoped, tag = 'scratch operand']
  %s0 = inlined_call_operand.vmem [shape: f32[128,8], index: 0, kind: input, shape index: {}]
  %s1 = inlined_call_operand.vmem [shape: f32[128,8], index: 1, kind: input, shape index: {}]
  %s2 = inlined_call_operand.hbm [shape: bf16[8,512], index: 2, kind: input, shape index: {}]
  %s3 = inlined_call_operand.hbm [shape: bf16[8,512], index: 3, kind: input, shape index: {}]
  %s4 = inlined_call_operand.vmem [shape: bf16[128,512], index: 4, kind: input, shape index: {}]
  %s5 = inlined_call_operand.hbm [shape: bf16[128,512], index: 5, kind: input, shape index: {}]
  %s6 = inlined_call_operand.vmem [shape: f32[1,512], index: 6, kind: input, shape index: {}]
  %s7 = inlined_call_operand.vmem [shape: f32[1,512], index: 7, kind: input, shape index: {}]
  %s8 = inlined_call_operand.hbm [shape: bf16[128,128], index: 8, kind: output, shape index: {0}]
  %s9 = inlined_call_operand.hbm [shape: bf16[128,128], index: 9, kind: output, shape index: {1}]
  %10 = xla_tuple %s8, %s9
  %s11 = sld [smem:[#allocation0]]
  $region66: #{tpu_custom_call.1} parent=0
    _
  %s13 = ssub.s32 1, %s11
  %s14 = scalar_select 0, %s13, %s11
  $region1: #{tpu_custom_call.1} parent=0
    #allocation8 [shape = 'u8[8192]{0}', space=vmem, size = 0x2000, scoped, tag = 'input window, operand 2, single buffered']
    #allocation9 [shape = 's32[1]{0}', space=sflag, size = 0x4, scoped, tag = 'scoped memory for tpu_custom_call.1']
    #allocation10 [shape = 's32[1]{0}', space=sflag, size = 0x4, scoped, tag = 'scoped memory for tpu_custom_call.1']
    #allocation11 [shape = 'u8[8192]{0}', space=vmem, size = 0x2000, scoped, tag = 'input window, operand 3, single buffered']
    #allocation12 [shape = 's32[1]{0}', space=sflag, size = 0x4, scoped, tag = 'scoped memory for tpu_custom_call.1']
    #allocation13 [shape = 'u8[131072]{0}', space=vmem, size = 0x20000, scoped, tag = 'input window, operand 5, single buffered']
    #allocation14 [shape = 'u8[32768]{0}', space=vmem, size = 0x8000, scoped, tag = 'output window, operand 0, single buffered']
    #allocation15 [shape = 'u8[32768]{0}', space=vmem, size = 0x8000, scoped, tag = 'output window, operand 1, single buffered']
    #allocation16 [shape = 's32[1]{0}', space=sflag, size = 0x4, scoped, tag = 'scoped memory for tpu_custom_call.1']
    %15 = vsyncpa [#allocation9], 0
    %16 = vsyncpa [#allocation12], 0
    %17 = vsyncpa [#allocation10], 0
    %18 = vsyncpa [#allocation16], 0
    // Predicated region
    $region2: #{tpu_custom_call.1} parent=1 // pred_check
      _
    $region3: #{tpu_custom_call.1} parent=1 // pred_check_branch
      %20 = sbr.rel (0) target = $region5
    $region4: #{tpu_custom_call.1} parent=1 // pred_region
      _
    $region5: #{tpu_custom_call.1} parent=1 // pred_fallthru
      _
    // Predicated region
    $region6: #{tpu_custom_call.1} parent=1 // pred_check
      _
    $region7: #{tpu_custom_call.1} parent=1 // pred_check_branch
      %22 = sbr.rel (0) target = $region9
    $region8: #{tpu_custom_call.1} parent=1 // pred_region
      %s23 = ssub.s32 0, 0
      %s24 = smul.u32 16, %s23
      %p25 = scmp.lt.s32.totalorder %s24, 15
      %s26 = scalar_select %p25, %s24, 15
      %s27 = smul.addr %s26, 8
      %s28 = scalar_lea.vmem %s1, %s27
      %s29 = ssub.s32 0, 0
      %s30 = smul.u32 16, %s29
    $region9: #{tpu_custom_call.1} parent=1 // pred_fallthru
      _
    // Predicated region
    $region10: #{tpu_custom_call.1} parent=1 // pred_check
      _
    $region11: #{tpu_custom_call.1} parent=1 // pred_check_branch
      %32 = sbr.rel (0) target = $region13
    $region12: #{tpu_custom_call.1} parent=1 // pred_region
      %34 = vsyncadd [#allocation9], 0
      %s36 = sshll.u32 %s2, 4
      %s37 = int_to_ptr.hbm [resolvable:$true] %s36
      %s38 = sshll.u32 [#allocation8], 4
      %s39 = int_to_ptr.vmem [resolvable:$true] %s38
      %41 = dma.hbm_to_vmem [thread:$0]  %s37, 256, %s39, [#allocation9]
    $region13: #{tpu_custom_call.1} parent=1 // pred_fallthru
      _
    // Predicated region
    $region14: #{tpu_custom_call.1} parent=1 // pred_check
      _
    $region15: #{tpu_custom_call.1} parent=1 // pred_check_branch
      %43 = sbr.rel (0) target = $region17
    $region16: #{tpu_custom_call.1} parent=1 // pred_region
      %45 = vsyncadd [#allocation12], 0
      %s47 = sshll.u32 %s3, 4
      %s48 = int_to_ptr.hbm [resolvable:$true] %s47
      %s49 = sshll.u32 [#allocation11], 4
      %s50 = int_to_ptr.vmem [resolvable:$true] %s49
      %52 = dma.hbm_to_vmem [thread:$0]  %s48, 256, %s50, [#allocation12]
    $region17: #{tpu_custom_call.1} parent=1 // pred_fallthru
      _
    // Predicated region
    $region18: #{tpu_custom_call.1} parent=1 // pred_check
      _
    $region19: #{tpu_custom_call.1} parent=1 // pred_check_branch
      %54 = sbr.rel (0) target = $region21
    $region20: #{tpu_custom_call.1} parent=1 // pred_region
      _
    $region21: #{tpu_custom_call.1} parent=1 // pred_fallthru
      _
    // Predicated region
    $region22: #{tpu_custom_call.1} parent=1 // pred_check
      _
    $region23: #{tpu_custom_call.1} parent=1 // pred_check_branch
      %56 = sbr.rel (0) target = $region25
    $region24: #{tpu_custom_call.1} parent=1 // pred_region
      %58 = vsyncadd [#allocation12], 0
      %s59 = sshll.u32 %s5, 4
      %s60 = int_to_ptr.hbm [resolvable:$true] %s59
      %s61 = sshll.u32 [#allocation13], 4
      %s62 = int_to_ptr.vmem [resolvable:$true] %s61
      %67 = dma.hbm_to_vmem [thread:$0]  %s60, 4096, %s62, [#allocation12], 256, 256, 16
    $region25: #{tpu_custom_call.1} parent=1 // pred_fallthru
      _
    // Predicated region
    $region26: #{tpu_custom_call.1} parent=1 // pred_check
      _
    $region27: #{tpu_custom_call.1} parent=1 // pred_check_branch
      %69 = sbr.rel (0) target = $region29
    $region28: #{tpu_custom_call.1} parent=1 // pred_region
      _
    $region29: #{tpu_custom_call.1} parent=1 // pred_fallthru
      _
    // Predicated region
    $region30: #{tpu_custom_call.1} parent=1 // pred_check
      _
    $region31: #{tpu_custom_call.1} parent=1 // pred_check_branch
      %71 = sbr.rel (0) target = $region33
    $region32: #{tpu_custom_call.1} parent=1 // pred_region
      _
    $region33: #{tpu_custom_call.1} parent=1 // pred_fallthru
      _
    // Predicated region
    $region34: #{tpu_custom_call.1} parent=1 // pred_check
      _
    $region35: #{tpu_custom_call.1} parent=1 // pred_check_branch
      %73 = sbr.rel (0) target = $region37
    $region36: #{tpu_custom_call.1} parent=1 // pred_region
      %75 = dma.done [#allocation9], 256
    $region37: #{tpu_custom_call.1} parent=1 // pred_fallthru
      _
    // Predicated region
    $region38: #{tpu_custom_call.1} parent=1 // pred_check
      _
    $region39: #{tpu_custom_call.1} parent=1 // pred_check_branch
      %77 = sbr.rel (0) target = $region41
    $region40: #{tpu_custom_call.1} parent=1 // pred_region
      %79 = dma.done [#allocation12], 256
    $region41: #{tpu_custom_call.1} parent=1 // pred_fallthru
      _
    // Predicated region
    $region42: #{tpu_custom_call.1} parent=1 // pred_check
      _
    $region43: #{tpu_custom_call.1} parent=1 // pred_check_branch
      %81 = sbr.rel (0) target = $region45
    $region44: #{tpu_custom_call.1} parent=1 // pred_region
      %83 = dma.done [#allocation12], 4096
    $region45: #{tpu_custom_call.1} parent=1 // pred_fallthru
      _
    %s84 = ssub.s32 0, 0
    %s85 = smul.u32 16, %s84
    %p86 = scmp.lt.s32.totalorder %s85, 15
    %s87 = scalar_select %p86, %s85, 15
    %s88 = smul.addr %s87, 8
    %s89 = scalar_lea.vmem %s1, %s88
    %s90 = ssub.s32 0, 0
    %s91 = smul.u32 16, %s90
    %p92 = scmp.lt.s32.totalorder %s91, 15
    %s93 = scalar_select %p92, %s91, 15
    %s94 = smul.addr %s93, 8
    %s95 = scalar_lea.vmem %s1, %s94
    %s96 = ssub.s32 0, 0
    %s97 = smul.u32 16, %s96
    %s98 = ssub.s32 0, 0
    %s99 = smul.u32 16, %s98
    %p101 = scmp.eq.s32.totalorder 0, 0
    // Predicated region
    $region46: #{tpu_custom_call.1} parent=1 // pred_check
      %p102 = pneg %p101
    $region47: #{tpu_custom_call.1} parent=1 // pred_check_branch
      %104 = sbr.rel (%p102) target = $region49
    $region48: #{tpu_custom_call.1} parent=1 // pred_region
      %105 = vst [vmem:[#allocation2] sm:$0xff] 0.0
      %106 = vst [vmem:[#allocation2 + $0x8] sm:$0xff] 0.0
      %107 = vst [vmem:[#allocation3] sm:$0xff] 0.0
      %108 = vst [vmem:[#allocation3 + $0x8] sm:$0xff] 0.0
      %109 = vst [vmem:[#allocation4] sm:$0xff] 0.0
      %110 = vst [vmem:[#allocation4 + $0x8] sm:$0xff] 0.0
      %111 = vst [vmem:[#allocation5] sm:$0xff] 0.0
      %112 = vst [vmem:[#allocation5 + $0x8] sm:$0xff] 0.0
    $region49: #{tpu_custom_call.1} parent=1 // pred_fallthru
      _
    %v113 = vld [vmem:[%s0] sm:$0xff]
    %v114 = vld [vmem:[%s0 + $0x8] sm:$0xff]
    %v115 = vld [vmem:[%s0 + $0x10] sm:$0xff]
    %v116 = vld [vmem:[%s0 + $0x18] sm:$0xff]
    %v117 = vld [vmem:[%s0 + $0x20] sm:$0xff]
    %v118 = vld [vmem:[%s0 + $0x28] sm:$0xff]
    %v119 = vld [vmem:[%s0 + $0x30] sm:$0xff]
    %v120 = vld [vmem:[%s0 + $0x38] sm:$0xff]
    %v121 = vld [vmem:[%s0 + $0x40] sm:$0xff]
    %v122 = vld [vmem:[%s0 + $0x48] sm:$0xff]
    %v123 = vld [vmem:[%s0 + $0x50] sm:$0xff]
    %v124 = vld [vmem:[%s0 + $0x58] sm:$0xff]
    %v125 = vld [vmem:[%s0 + $0x60] sm:$0xff]
    %v126 = vld [vmem:[%s0 + $0x68] sm:$0xff]
    %v127 = vld [vmem:[%s0 + $0x70] sm:$0xff]
    %v128 = vld [vmem:[%s0 + $0x78] sm:$0xff]
    %v129 = vpack.c.bf16 %v114, %v113
    %v130 = vpack.c.bf16 %v116, %v115
    %v131 = vpack.c.bf16 %v118, %v117
    %v132 = vpack.c.bf16 %v120, %v119
    %v133 = vpack.c.bf16 %v122, %v121
    %v134 = vpack.c.bf16 %v124, %v123
    %v135 = vpack.c.bf16 %v126, %v125
    %v136 = vpack.c.bf16 %v128, %v127
    %v137 = vld [vmem:[#allocation8] sm:$0xff]
    %v138 = vld [vmem:[#allocation8 + $0x8] sm:$0xff]
    %v139 = vld [vmem:[%s6] sm:$0xf]
    %v141 = vperm.slane %v139, 0
    %v142 = vperm.slane %v139, 1
    %v143 = vperm.slane %v139, 2
    %v144 = vperm.slane %v139, 3
    %v151 = vunpack.c.l.b16 %v137
    %v152 = vunpack.c.h.b16 %v137
    %v153 = vunpack.c.l.b16 %v138
    %v154 = vunpack.c.h.b16 %v138
    %v155 = vpack.c.b16 %v151, %v151
    %v156 = vpack.c.b16 %v152, %v152
    %v157 = vpack.c.b16 %v153, %v153
    %v158 = vpack.c.b16 %v154, %v154
    %vm159 = vcmask 64512
    %v161 = vsel %vm159, %v129, 0
    %v164 = vsel %vm159, %v130, 0
    %v167 = vsel %vm159, %v131, 0
    %v170 = vsel %vm159, %v132, 0
    %v173 = vsel %vm159, %v133, 0
    %v176 = vsel %vm159, %v134, 0
    %v179 = vsel %vm159, %v135, 0
    %v182 = vsel %vm159, %v136, 0
    %vm184 = vcmask 1043456
    %v186 = vsel %vm184, %v155, 0
    %v189 = vsel %vm184, %v156, 0
    %v192 = vsel %vm184, %v157, 0
    %v195 = vsel %vm184, %v158, 0
    %197 = vmatpush.bf16.msra.mxu0 0
    %198 = vmatpush.bf16.msra.mxu0 0
    %199 = vmatpush.bf16.msra.mxu0 0
    %200 = vmatpush.bf16.msra.mxu0 0
    %201 = vmatpush.bf16.msra.mxu0 0
    %202 = vmatpush.bf16.msra.mxu0 0
    %203 = vmatpush.bf16.msra.mxu0 0
    %204 = vmatpush.bf16.msra.mxu0 %v186
    %205 = vmatmul.bf16.gmra.mxu0 %v161
    %v206 = vpop.f32.mrf.mxu0
    %v207 = vadd.f32 %v141, %v206
    %v208 = vpop.f32.mrf.mxu0
    %v209 = vadd.f32 %v141, %v208
    %210 = vmatmul.bf16.gmra.mxu0 %v164
    %v211 = vpop.f32.mrf.mxu0
    %v212 = vadd.f32 %v141, %v211
    %v213 = vpop.f32.mrf.mxu0
    %v214 = vadd.f32 %v141, %v213
    %215 = vmatmul.bf16.gmra.mxu0 %v167
    %v216 = vpop.f32.mrf.mxu0
    %v217 = vadd.f32 %v141, %v216
    %v218 = vpop.f32.mrf.mxu0
    %v219 = vadd.f32 %v141, %v218
    %220 = vmatmul.bf16.gmra.mxu0 %v170
    %v221 = vpop.f32.mrf.mxu0
    %v222 = vadd.f32 %v141, %v221
    %v223 = vpop.f32.mrf.mxu0
    %v224 = vadd.f32 %v141, %v223
    %225 = vmatmul.bf16.gmra.mxu0 %v173
    %v226 = vpop.f32.mrf.mxu0
    %v227 = vadd.f32 %v141, %v226
    %v228 = vpop.f32.mrf.mxu0
    %v229 = vadd.f32 %v141, %v228
    %230 = vmatmul.bf16.gmra.mxu0 %v176
    %v231 = vpop.f32.mrf.mxu0
    %v232 = vadd.f32 %v141, %v231
    %v233 = vpop.f32.mrf.mxu0
    %v234 = vadd.f32 %v141, %v233
    %235 = vmatmul.bf16.gmra.mxu0 %v179
    %v236 = vpop.f32.mrf.mxu0
    %v237 = vadd.f32 %v141, %v236
    %v238 = vpop.f32.mrf.mxu0
    %v239 = vadd.f32 %v141, %v238
    %240 = vmatmul.bf16.gmra.mxu0 %v182
    %v241 = vpop.f32.mrf.mxu0
    %v242 = vadd.f32 %v141, %v241
    %v243 = vpop.f32.mrf.mxu0
    %v244 = vadd.f32 %v141, %v243
    %245 = vdwg.mxu0
    %246 = vmatpush.bf16.msra.mxu0 0
    %247 = vmatpush.bf16.msra.mxu0 0
    %248 = vmatpush.bf16.msra.mxu0 0
    %249 = vmatpush.bf16.msra.mxu0 0
    %250 = vmatpush.bf16.msra.mxu0 0
    %251 = vmatpush.bf16.msra.mxu0 0
    %252 = vmatpush.bf16.msra.mxu0 0
    %253 = vmatpush.bf16.msra.mxu0 %v189
    %254 = vmatmul.bf16.gmra.mxu0 %v161
    %v255 = vpop.f32.mrf.mxu0
    %v256 = vadd.f32 %v142, %v255
    %v257 = vpop.f32.mrf.mxu0
    %v258 = vadd.f32 %v142, %v257
    %259 = vmatmul.bf16.gmra.mxu0 %v164
    %v260 = vpop.f32.mrf.mxu0
    %v261 = vadd.f32 %v142, %v260
    %v262 = vpop.f32.mrf.mxu0
    %v263 = vadd.f32 %v142, %v262
    %264 = vmatmul.bf16.gmra.mxu0 %v167
    %v265 = vpop.f32.mrf.mxu0
    %v266 = vadd.f32 %v142, %v265
    %v267 = vpop.f32.mrf.mxu0
    %v268 = vadd.f32 %v142, %v267
    %269 = vmatmul.bf16.gmra.mxu0 %v170
    %v270 = vpop.f32.mrf.mxu0
    %v271 = vadd.f32 %v142, %v270
    %v272 = vpop.f32.mrf.mxu0
    %v273 = vadd.f32 %v142, %v272
    %274 = vmatmul.bf16.gmra.mxu0 %v173
    %v275 = vpop.f32.mrf.mxu0
    %v276 = vadd.f32 %v142, %v275
    %v277 = vpop.f32.mrf.mxu0
    %v278 = vadd.f32 %v142, %v277
    %279 = vmatmul.bf16.gmra.mxu0 %v176
    %v280 = vpop.f32.mrf.mxu0
    %v281 = vadd.f32 %v142, %v280
    %v282 = vpop.f32.mrf.mxu0
    %v283 = vadd.f32 %v142, %v282
    %284 = vmatmul.bf16.gmra.mxu0 %v179
    %v285 = vpop.f32.mrf.mxu0
    %v286 = vadd.f32 %v142, %v285
    %v287 = vpop.f32.mrf.mxu0
    %v288 = vadd.f32 %v142, %v287
    %289 = vmatmul.bf16.gmra.mxu0 %v182
    %v290 = vpop.f32.mrf.mxu0
    %v291 = vadd.f32 %v142, %v290
    %v292 = vpop.f32.mrf.mxu0
    %v293 = vadd.f32 %v142, %v292
    %294 = vdwg.mxu0
    %295 = vmatpush.bf16.msra.mxu0 0
    %296 = vmatpush.bf16.msra.mxu0 0
    %297 = vmatpush.bf16.msra.mxu0 0
    %298 = vmatpush.bf16.msra.mxu0 0
    %299 = vmatpush.bf16.msra.mxu0 0
    %300 = vmatpush.bf16.msra.mxu0 0
    %301 = vmatpush.bf16.msra.mxu0 0
    %302 = vmatpush.bf16.msra.mxu0 %v192
    %303 = vmatmul.bf16.gmra.mxu0 %v161
    %v304 = vpop.f32.mrf.mxu0
    %v305 = vadd.f32 %v143, %v304
    %v306 = vpop.f32.mrf.mxu0
    %v307 = vadd.f32 %v143, %v306
    %308 = vmatmul.bf16.gmra.mxu0 %v164
    %v309 = vpop.f32.mrf.mxu0
    %v310 = vadd.f32 %v143, %v309
    %v311 = vpop.f32.mrf.mxu0
    %v312 = vadd.f32 %v143, %v311
    %313 = vmatmul.bf16.gmra.mxu0 %v167
    %v314 = vpop.f32.mrf.mxu0
    %v315 = vadd.f32 %v143, %v314
    %v316 = vpop.f32.mrf.mxu0
    %v317 = vadd.f32 %v143, %v316
    %318 = vmatmul.bf16.gmra.mxu0 %v170
    %v319 = vpop.f32.mrf.mxu0
    %v320 = vadd.f32 %v143, %v319
    %v321 = vpop.f32.mrf.mxu0
    %v322 = vadd.f32 %v143, %v321
    %323 = vmatmul.bf16.gmra.mxu0 %v173
    %v324 = vpop.f32.mrf.mxu0
    %v325 = vadd.f32 %v143, %v324
    %v326 = vpop.f32.mrf.mxu0
    %v327 = vadd.f32 %v143, %v326
    %328 = vmatmul.bf16.gmra.mxu0 %v176
    %v329 = vpop.f32.mrf.mxu0
    %v330 = vadd.f32 %v143, %v329
    %v331 = vpop.f32.mrf.mxu0
    %v332 = vadd.f32 %v143, %v331
    %333 = vmatmul.bf16.gmra.mxu0 %v179
    %v334 = vpop.f32.mrf.mxu0
    %v335 = vadd.f32 %v143, %v334
    %v336 = vpop.f32.mrf.mxu0
    %v337 = vadd.f32 %v143, %v336
    %338 = vmatmul.bf16.gmra.mxu0 %v182
    %v339 = vpop.f32.mrf.mxu0
    %v340 = vadd.f32 %v143, %v339
    %v341 = vpop.f32.mrf.mxu0
    %v342 = vadd.f32 %v143, %v341
    %343 = vdwg.mxu0
    %344 = vmatpush.bf16.msra.mxu0 0
    %345 = vmatpush.bf16.msra.mxu0 0
    %346 = vmatpush.bf16.msra.mxu0 0
    %347 = vmatpush.bf16.msra.mxu0 0
    %348 = vmatpush.bf16.msra.mxu0 0
    %349 = vmatpush.bf16.msra.mxu0 0
    %350 = vmatpush.bf16.msra.mxu0 0
    %351 = vmatpush.bf16.msra.mxu0 %v195
    %352 = vmatmul.bf16.gmra.mxu0 %v161
    %v353 = vpop.f32.mrf.mxu0
    %v354 = vadd.f32 %v144, %v353
    %v355 = vpop.f32.mrf.mxu0
    %v356 = vadd.f32 %v144, %v355
    %357 = vmatmul.bf16.gmra.mxu0 %v164
    %v358 = vpop.f32.mrf.mxu0
    %v359 = vadd.f32 %v144, %v358
    %v360 = vpop.f32.mrf.mxu0
    %v361 = vadd.f32 %v144, %v360
    %362 = vmatmul.bf16.gmra.mxu0 %v167
    %v363 = vpop.f32.mrf.mxu0
    %v364 = vadd.f32 %v144, %v363
    %v365 = vpop.f32.mrf.mxu0
    %v366 = vadd.f32 %v144, %v365
    %367 = vmatmul.bf16.gmra.mxu0 %v170
    %v368 = vpop.f32.mrf.mxu0
    %v369 = vadd.f32 %v144, %v368
    %v370 = vpop.f32.mrf.mxu0
    %v371 = vadd.f32 %v144, %v370
    %372 = vmatmul.bf16.gmra.mxu0 %v173
    %v373 = vpop.f32.mrf.mxu0
    %v374 = vadd.f32 %v144, %v373
    %v375 = vpop.f32.mrf.mxu0
    %v376 = vadd.f32 %v144, %v375
    %377 = vmatmul.bf16.gmra.mxu0 %v176
    %v378 = vpop.f32.mrf.mxu0
    %v379 = vadd.f32 %v144, %v378
    %v380 = vpop.f32.mrf.mxu0
    %v381 = vadd.f32 %v144, %v380
    %382 = vmatmul.bf16.gmra.mxu0 %v179
    %v383 = vpop.f32.mrf.mxu0
    %v384 = vadd.f32 %v144, %v383
    %v385 = vpop.f32.mrf.mxu0
    %v386 = vadd.f32 %v144, %v385
    %387 = vmatmul.bf16.gmra.mxu0 %v182
    %v388 = vpop.f32.mrf.mxu0
    %v389 = vadd.f32 %v144, %v388
    %v390 = vpop.f32.mrf.mxu0
    %v391 = vadd.f32 %v144, %v390
    %392 = vdwg.mxu0
    %393 = vst [vmem:[#allocation6] sm:$0xff] %v207
    %394 = vst [vmem:[#allocation6 + $0x8] sm:$0xff] %v256
    %395 = vst [vmem:[#allocation6 + $0x10] sm:$0xff] %v305
    %396 = vst [vmem:[#allocation6 + $0x18] sm:$0xff] %v354
    %397 = vst [vmem:[#allocation6 + $0x20] sm:$0xff] %v209
    %398 = vst [vmem:[#allocation6 + $0x28] sm:$0xff] %v258
    %399 = vst [vmem:[#allocation6 + $0x30] sm:$0xff] %v307
    %400 = vst [vmem:[#allocation6 + $0x38] sm:$0xff] %v356
    %401 = vst [vmem:[#allocation6 + $0x40] sm:$0xff] %v212
    %402 = vst [vmem:[#allocation6 + $0x48] sm:$0xff] %v261
    %403 = vst [vmem:[#allocation6 + $0x50] sm:$0xff] %v310
    %404 = vst [vmem:[#allocation6 + $0x58] sm:$0xff] %v359
    %405 = vst [vmem:[#allocation6 + $0x60] sm:$0xff] %v214
    %406 = vst [vmem:[#allocation6 + $0x68] sm:$0xff] %v263
    %407 = vst [vmem:[#allocation6 + $0x70] sm:$0xff] %v312
    %408 = vst [vmem:[#allocation6 + $0x78] sm:$0xff] %v361
    %409 = vst [vmem:[#allocation6 + $0x80] sm:$0xff] %v217
    %410 = vst [vmem:[#allocation6 + $0x88] sm:$0xff] %v266
    %411 = vst [vmem:[#allocation6 + $0x90] sm:$0xff] %v315
    %412 = vst [vmem:[#allocation6 + $0x98] sm:$0xff] %v364
    %413 = vst [vmem:[#allocation6 + $0xa0] sm:$0xff] %v219
    %414 = vst [vmem:[#allocation6 + $0xa8] sm:$0xff] %v268
    %415 = vst [vmem:[#allocation6 + $0xb0] sm:$0xff] %v317
    %416 = vst [vmem:[#allocation6 + $0xb8] sm:$0xff] %v366
    %417 = vst [vmem:[#allocation6 + $0xc0] sm:$0xff] %v222
    %418 = vst [vmem:[#allocation6 + $0xc8] sm:$0xff] %v271
    %419 = vst [vmem:[#allocation6 + $0xd0] sm:$0xff] %v320
    %420 = vst [vmem:[#allocation6 + $0xd8] sm:$0xff] %v369
    %421 = vst [vmem:[#allocation6 + $0xe0] sm:$0xff] %v224
    %422 = vst [vmem:[#allocation6 + $0xe8] sm:$0xff] %v273
    %423 = vst [vmem:[#allocation6 + $0xf0] sm:$0xff] %v322
    %424 = vst [vmem:[#allocation6 + $0xf8] sm:$0xff] %v371
    %425 = vst [vmem:[#allocation6 + $0x100] sm:$0xff] %v227
    %426 = vst [vmem:[#allocation6 + $0x108] sm:$0xff] %v276
    %427 = vst [vmem:[#allocation6 + $0x110] sm:$0xff] %v325
    %428 = vst [vmem:[#allocation6 + $0x118] sm:$0xff] %v374
    %429 = vst [vmem:[#allocation6 + $0x120] sm:$0xff] %v229
    %430 = vst [vmem:[#allocation6 + $0x128] sm:$0xff] %v278
    %431 = vst [vmem:[#allocation6 + $0x130] sm:$0xff] %v327
    %432 = vst [vmem:[#allocation6 + $0x138] sm:$0xff] %v376
    %433 = vst [vmem:[#allocation6 + $0x140] sm:$0xff] %v232
    %434 = vst [vmem:[#allocation6 + $0x148] sm:$0xff] %v281
    %435 = vst [vmem:[#allocation6 + $0x150] sm:$0xff] %v330
    %436 = vst [vmem:[#allocation6 + $0x158] sm:$0xff] %v379
    %437 = vst [vmem:[#allocation6 + $0x160] sm:$0xff] %v234
    %438 = vst [vmem:[#allocation6 + $0x168] sm:$0xff] %v283
    %439 = vst [vmem:[#allocation6 + $0x170] sm:$0xff] %v332
    %440 = vst [vmem:[#allocation6 + $0x178] sm:$0xff] %v381
    %441 = vst [vmem:[#allocation6 + $0x180] sm:$0xff] %v237
    %442 = vst [vmem:[#allocation6 + $0x188] sm:$0xff] %v286
    %443 = vst [vmem:[#allocation6 + $0x190] sm:$0xff] %v335
    %444 = vst [vmem:[#allocation6 + $0x198] sm:$0xff] %v384
    %445 = vst [vmem:[#allocation6 + $0x1a0] sm:$0xff] %v239
    %446 = vst [vmem:[#allocation6 + $0x1a8] sm:$0xff] %v288
    %447 = vst [vmem:[#allocation6 + $0x1b0] sm:$0xff] %v337
    %448 = vst [vmem:[#allocation6 + $0x1b8] sm:$0xff] %v386
    %449 = vst [vmem:[#allocation6 + $0x1c0] sm:$0xff] %v242
    %450 = vst [vmem:[#allocation6 + $0x1c8] sm:$0xff] %v291
    %451 = vst [vmem:[#allocation6 + $0x1d0] sm:$0xff] %v340
    %452 = vst [vmem:[#allocation6 + $0x1d8] sm:$0xff] %v389
    %453 = vst [vmem:[#allocation6 + $0x1e0] sm:$0xff] %v244
    %454 = vst [vmem:[#allocation6 + $0x1e8] sm:$0xff] %v293
    %455 = vst [vmem:[#allocation6 + $0x1f0] sm:$0xff] %v342
    %456 = vst [vmem:[#allocation6 + $0x1f8] sm:$0xff] %v391
    %v457 = vld [vmem:[%s95] sm:$0xff]
    %v458 = vld [vmem:[%s95 + $0x8] sm:$0xff]
    %v459 = vld [vmem:[%s95 + $0x10] sm:$0xff]
    %v460 = vld [vmem:[%s95 + $0x18] sm:$0xff]
    %v461 = vld [vmem:[%s95 + $0x20] sm:$0xff]
    %v462 = vld [vmem:[%s95 + $0x28] sm:$0xff]
    %v463 = vld [vmem:[%s95 + $0x30] sm:$0xff]
    %v464 = vld [vmem:[%s95 + $0x38] sm:$0xff]
    %v465 = vld [vmem:[%s95 + $0x40] sm:$0xff]
    %v466 = vld [vmem:[%s95 + $0x48] sm:$0xff]
    %v467 = vld [vmem:[%s95 + $0x50] sm:$0xff]
    %v468 = vld [vmem:[%s95 + $0x58] sm:$0xff]
    %v469 = vld [vmem:[%s95 + $0x60] sm:$0xff]
    %v470 = vld [vmem:[%s95 + $0x68] sm:$0xff]
    %v471 = vld [vmem:[%s95 + $0x70] sm:$0xff]
    %v472 = vld [vmem:[%s95 + $0x78] sm:$0xff]
    %v473 = vpack.c.bf16 %v458, %v457
    %v474 = vpack.c.bf16 %v460, %v459
    %v475 = vpack.c.bf16 %v462, %v461
    %v476 = vpack.c.bf16 %v464, %v463
    %v477 = vpack.c.bf16 %v466, %v465
    %v478 = vpack.c.bf16 %v468, %v467
    %v479 = vpack.c.bf16 %v470, %v469
    %v480 = vpack.c.bf16 %v472, %v471
    %v481 = vld [vmem:[#allocation11] sm:$0xff]
    %v482 = vld [vmem:[#allocation11 + $0x8] sm:$0xff]
    %v483 = vld [vmem:[%s7] sm:$0xf]
    %v485 = vperm.slane %v483, 0
    %v486 = vperm.slane %v483, 1
    %v487 = vperm.slane %v483, 2
    %v488 = vperm.slane %v483, 3
    %v495 = vunpack.c.l.b16 %v481
    %v496 = vunpack.c.h.b16 %v481
    %v497 = vunpack.c.l.b16 %v482
    %v498 = vunpack.c.h.b16 %v482
    %v499 = vpack.c.b16 %v495, %v495
    %v500 = vpack.c.b16 %v496, %v496
    %v501 = vpack.c.b16 %v497, %v497
    %v502 = vpack.c.b16 %v498, %v498
    %v504 = vsel %vm159, %v473, 0
    %v507 = vsel %vm159, %v474, 0
    %v510 = vsel %vm159, %v475, 0
    %v513 = vsel %vm159, %v476, 0
    %v516 = vsel %vm159, %v477, 0
    %v519 = vsel %vm159, %v478, 0
    %v522 = vsel %vm159, %v479, 0
    %v525 = vsel %vm159, %v480, 0
    %v528 = vsel %vm184, %v499, 0
    %v531 = vsel %vm184, %v500, 0
    %v534 = vsel %vm184, %v501, 0
    %v537 = vsel %vm184, %v502, 0
    %539 = vmatpush.bf16.msra.mxu0 0
    %540 = vmatpush.bf16.msra.mxu0 0
    %541 = vmatpush.bf16.msra.mxu0 0
    %542 = vmatpush.bf16.msra.mxu0 0
    %543 = vmatpush.bf16.msra.mxu0 0
    %544 = vmatpush.bf16.msra.mxu0 0
    %545 = vmatpush.bf16.msra.mxu0 0
    %546 = vmatpush.bf16.msra.mxu0 %v528
    %547 = vmatmul.bf16.gmra.mxu0 %v504
    %v548 = vpop.f32.mrf.mxu0
    %v549 = vadd.f32 %v485, %v548
    %v550 = vpop.f32.mrf.mxu0
    %v551 = vadd.f32 %v485, %v550
    %552 = vmatmul.bf16.gmra.mxu0 %v507
    %v553 = vpop.f32.mrf.mxu0
    %v554 = vadd.f32 %v485, %v553
    %v555 = vpop.f32.mrf.mxu0
    %v556 = vadd.f32 %v485, %v555
    %557 = vmatmul.bf16.gmra.mxu0 %v510
    %v558 = vpop.f32.mrf.mxu0
    %v559 = vadd.f32 %v485, %v558
    %v560 = vpop.f32.mrf.mxu0
    %v561 = vadd.f32 %v485, %v560
    %562 = vmatmul.bf16.gmra.mxu0 %v513
    %v563 = vpop.f32.mrf.mxu0
    %v564 = vadd.f32 %v485, %v563
    %v565 = vpop.f32.mrf.mxu0
    %v566 = vadd.f32 %v485, %v565
    %567 = vmatmul.bf16.gmra.mxu0 %v516
    %v568 = vpop.f32.mrf.mxu0
    %v569 = vadd.f32 %v485, %v568
    %v570 = vpop.f32.mrf.mxu0
    %v571 = vadd.f32 %v485, %v570
    %572 = vmatmul.bf16.gmra.mxu0 %v519
    %v573 = vpop.f32.mrf.mxu0
    %v574 = vadd.f32 %v485, %v573
    %v575 = vpop.f32.mrf.mxu0
    %v576 = vadd.f32 %v485, %v575
    %577 = vmatmul.bf16.gmra.mxu0 %v522
    %v578 = vpop.f32.mrf.mxu0
    %v579 = vadd.f32 %v485, %v578
    %v580 = vpop.f32.mrf.mxu0
    %v581 = vadd.f32 %v485, %v580
    %582 = vmatmul.bf16.gmra.mxu0 %v525
    %v583 = vpop.f32.mrf.mxu0
    %v584 = vadd.f32 %v485, %v583
    %v585 = vpop.f32.mrf.mxu0
    %v586 = vadd.f32 %v485, %v585
    %587 = vdwg.mxu0
    %588 = vmatpush.bf16.msra.mxu0 0
    %589 = vmatpush.bf16.msra.mxu0 0
    %590 = vmatpush.bf16.msra.mxu0 0
    %591 = vmatpush.bf16.msra.mxu0 0
    %592 = vmatpush.bf16.msra.mxu0 0
    %593 = vmatpush.bf16.msra.mxu0 0
    %594 = vmatpush.bf16.msra.mxu0 0
    %595 = vmatpush.bf16.msra.mxu0 %v531
    %596 = vmatmul.bf16.gmra.mxu0 %v504
    %v597 = vpop.f32.mrf.mxu0
    %v598 = vadd.f32 %v486, %v597
    %v599 = vpop.f32.mrf.mxu0
    %v600 = vadd.f32 %v486, %v599
    %601 = vmatmul.bf16.gmra.mxu0 %v507
    %v602 = vpop.f32.mrf.mxu0
    %v603 = vadd.f32 %v486, %v602
    %v604 = vpop.f32.mrf.mxu0
    %v605 = vadd.f32 %v486, %v604
    %606 = vmatmul.bf16.gmra.mxu0 %v510
    %v607 = vpop.f32.mrf.mxu0
    %v608 = vadd.f32 %v486, %v607
    %v609 = vpop.f32.mrf.mxu0
    %v610 = vadd.f32 %v486, %v609
    %611 = vmatmul.bf16.gmra.mxu0 %v513
    %v612 = vpop.f32.mrf.mxu0
    %v613 = vadd.f32 %v486, %v612
    %v614 = vpop.f32.mrf.mxu0
    %v615 = vadd.f32 %v486, %v614
    %616 = vmatmul.bf16.gmra.mxu0 %v516
    %v617 = vpop.f32.mrf.mxu0
    %v618 = vadd.f32 %v486, %v617
    %v619 = vpop.f32.mrf.mxu0
    %v620 = vadd.f32 %v486, %v619
    %621 = vmatmul.bf16.gmra.mxu0 %v519
    %v622 = vpop.f32.mrf.mxu0
    %v623 = vadd.f32 %v486, %v622
    %v624 = vpop.f32.mrf.mxu0
    %v625 = vadd.f32 %v486, %v624
    %626 = vmatmul.bf16.gmra.mxu0 %v522
    %v627 = vpop.f32.mrf.mxu0
    %v628 = vadd.f32 %v486, %v627
    %v629 = vpop.f32.mrf.mxu0
    %v630 = vadd.f32 %v486, %v629
    %631 = vmatmul.bf16.gmra.mxu0 %v525
    %v632 = vpop.f32.mrf.mxu0
    %v633 = vadd.f32 %v486, %v632
    %v634 = vpop.f32.mrf.mxu0
    %v635 = vadd.f32 %v486, %v634
    %636 = vdwg.mxu0
    %637 = vmatpush.bf16.msra.mxu0 0
    %638 = vmatpush.bf16.msra.mxu0 0
    %639 = vmatpush.bf16.msra.mxu0 0
    %640 = vmatpush.bf16.msra.mxu0 0
    %641 = vmatpush.bf16.msra.mxu0 0
    %642 = vmatpush.bf16.msra.mxu0 0
    %643 = vmatpush.bf16.msra.mxu0 0
    %644 = vmatpush.bf16.msra.mxu0 %v534
    %645 = vmatmul.bf16.gmra.mxu0 %v504
    %v646 = vpop.f32.mrf.mxu0
    %v647 = vadd.f32 %v487, %v646
    %v648 = vpop.f32.mrf.mxu0
    %v649 = vadd.f32 %v487, %v648
    %650 = vmatmul.bf16.gmra.mxu0 %v507
    %v651 = vpop.f32.mrf.mxu0
    %v652 = vadd.f32 %v487, %v651
    %v653 = vpop.f32.mrf.mxu0
    %v654 = vadd.f32 %v487, %v653
    %655 = vmatmul.bf16.gmra.mxu0 %v510
    %v656 = vpop.f32.mrf.mxu0
    %v657 = vadd.f32 %v487, %v656
    %v658 = vpop.f32.mrf.mxu0
    %v659 = vadd.f32 %v487, %v658
    %660 = vmatmul.bf16.gmra.mxu0 %v513
    %v661 = vpop.f32.mrf.mxu0
    %v662 = vadd.f32 %v487, %v661
    %v663 = vpop.f32.mrf.mxu0
    %v664 = vadd.f32 %v487, %v663
    %665 = vmatmul.bf16.gmra.mxu0 %v516
    %v666 = vpop.f32.mrf.mxu0
    %v667 = vadd.f32 %v487, %v666
    %v668 = vpop.f32.mrf.mxu0
    %v669 = vadd.f32 %v487, %v668
    %670 = vmatmul.bf16.gmra.mxu0 %v519
    %v671 = vpop.f32.mrf.mxu0
    %v672 = vadd.f32 %v487, %v671
    %v673 = vpop.f32.mrf.mxu0
    %v674 = vadd.f32 %v487, %v673
    %675 = vmatmul.bf16.gmra.mxu0 %v522
    %v676 = vpop.f32.mrf.mxu0
    %v677 = vadd.f32 %v487, %v676
    %v678 = vpop.f32.mrf.mxu0
    %v679 = vadd.f32 %v487, %v678
    %680 = vmatmul.bf16.gmra.mxu0 %v525
    %v681 = vpop.f32.mrf.mxu0
    %v682 = vadd.f32 %v487, %v681
    %v683 = vpop.f32.mrf.mxu0
    %v684 = vadd.f32 %v487, %v683
    %685 = vdwg.mxu0
    %686 = vmatpush.bf16.msra.mxu0 0
    %687 = vmatpush.bf16.msra.mxu0 0
    %688 = vmatpush.bf16.msra.mxu0 0
    %689 = vmatpush.bf16.msra.mxu0 0
    %690 = vmatpush.bf16.msra.mxu0 0
    %691 = vmatpush.bf16.msra.mxu0 0
    %692 = vmatpush.bf16.msra.mxu0 0
    %693 = vmatpush.bf16.msra.mxu0 %v537
    %694 = vmatmul.bf16.gmra.mxu0 %v504
    %v695 = vpop.f32.mrf.mxu0
    %v696 = vadd.f32 %v488, %v695
    %v697 = vpop.f32.mrf.mxu0
    %v698 = vadd.f32 %v488, %v697
    %699 = vmatmul.bf16.gmra.mxu0 %v507
    %v700 = vpop.f32.mrf.mxu0
    %v701 = vadd.f32 %v488, %v700
    %v702 = vpop.f32.mrf.mxu0
    %v703 = vadd.f32 %v488, %v702
    %704 = vmatmul.bf16.gmra.mxu0 %v510
    %v705 = vpop.f32.mrf.mxu0
    %v706 = vadd.f32 %v488, %v705
    %v707 = vpop.f32.mrf.mxu0
    %v708 = vadd.f32 %v488, %v707
    %709 = vmatmul.bf16.gmra.mxu0 %v513
    %v710 = vpop.f32.mrf.mxu0
    %v711 = vadd.f32 %v488, %v710
    %v712 = vpop.f32.mrf.mxu0
    %v713 = vadd.f32 %v488, %v712
    %714 = vmatmul.bf16.gmra.mxu0 %v516
    %v715 = vpop.f32.mrf.mxu0
    %v716 = vadd.f32 %v488, %v715
    %v717 = vpop.f32.mrf.mxu0
    %v718 = vadd.f32 %v488, %v717
    %719 = vmatmul.bf16.gmra.mxu0 %v519
    %v720 = vpop.f32.mrf.mxu0
    %v721 = vadd.f32 %v488, %v720
    %v722 = vpop.f32.mrf.mxu0
    %v723 = vadd.f32 %v488, %v722
    %724 = vmatmul.bf16.gmra.mxu0 %v522
    %v725 = vpop.f32.mrf.mxu0
    %v726 = vadd.f32 %v488, %v725
    %v727 = vpop.f32.mrf.mxu0
    %v728 = vadd.f32 %v488, %v727
    %729 = vmatmul.bf16.gmra.mxu0 %v525
    %v730 = vpop.f32.mrf.mxu0
    %v731 = vadd.f32 %v488, %v730
    %v732 = vpop.f32.mrf.mxu0
    %v733 = vadd.f32 %v488, %v732
    %734 = vdwg.mxu0
    %735 = vst [vmem:[#allocation7] sm:$0xff] %v549
    %736 = vst [vmem:[#allocation7 + $0x8] sm:$0xff] %v598
    %737 = vst [vmem:[#allocation7 + $0x10] sm:$0xff] %v647
    %738 = vst [vmem:[#allocation7 + $0x18] sm:$0xff] %v696
    %739 = vst [vmem:[#allocation7 + $0x20] sm:$0xff] %v551
    %740 = vst [vmem:[#allocation7 + $0x28] sm:$0xff] %v600
    %741 = vst [vmem:[#allocation7 + $0x30] sm:$0xff] %v649
    %742 = vst [vmem:[#allocation7 + $0x38] sm:$0xff] %v698
    %743 = vst [vmem:[#allocation7 + $0x40] sm:$0xff] %v554
    %744 = vst [vmem:[#allocation7 + $0x48] sm:$0xff] %v603
    %745 = vst [vmem:[#allocation7 + $0x50] sm:$0xff] %v652
    %746 = vst [vmem:[#allocation7 + $0x58] sm:$0xff] %v701
    %747 = vst [vmem:[#allocation7 + $0x60] sm:$0xff] %v556
    %748 = vst [vmem:[#allocation7 + $0x68] sm:$0xff] %v605
    %749 = vst [vmem:[#allocation7 + $0x70] sm:$0xff] %v654
    %750 = vst [vmem:[#allocation7 + $0x78] sm:$0xff] %v703
    %751 = vst [vmem:[#allocation7 + $0x80] sm:$0xff] %v559
    %752 = vst [vmem:[#allocation7 + $0x88] sm:$0xff] %v608
    %753 = vst [vmem:[#allocation7 + $0x90] sm:$0xff] %v657
    %754 = vst [vmem:[#allocation7 + $0x98] sm:$0xff] %v706
    %755 = vst [vmem:[#allocation7 + $0xa0] sm:$0xff] %v561
    %756 = vst [vmem:[#allocation7 + $0xa8] sm:$0xff] %v610
    %757 = vst [vmem:[#allocation7 + $0xb0] sm:$0xff] %v659
    %758 = vst [vmem:[#allocation7 + $0xb8] sm:$0xff] %v708
    %759 = vst [vmem:[#allocation7 + $0xc0] sm:$0xff] %v564
    %760 = vst [vmem:[#allocation7 + $0xc8] sm:$0xff] %v613
    %761 = vst [vmem:[#allocation7 + $0xd0] sm:$0xff] %v662
    %762 = vst [vmem:[#allocation7 + $0xd8] sm:$0xff] %v711
    %763 = vst [vmem:[#allocation7 + $0xe0] sm:$0xff] %v566
    %764 = vst [vmem:[#allocation7 + $0xe8] sm:$0xff] %v615
    %765 = vst [vmem:[#allocation7 + $0xf0] sm:$0xff] %v664
    %766 = vst [vmem:[#allocation7 + $0xf8] sm:$0xff] %v713
    %767 = vst [vmem:[#allocation7 + $0x100] sm:$0xff] %v569
    %768 = vst [vmem:[#allocation7 + $0x108] sm:$0xff] %v618
    %769 = vst [vmem:[#allocation7 + $0x110] sm:$0xff] %v667
    %770 = vst [vmem:[#allocation7 + $0x118] sm:$0xff] %v716
    %771 = vst [vmem:[#allocation7 + $0x120] sm:$0xff] %v571
    %772 = vst [vmem:[#allocation7 + $0x128] sm:$0xff] %v620
    %773 = vst [vmem:[#allocation7 + $0x130] sm:$0xff] %v669
    %774 = vst [vmem:[#allocation7 + $0x138] sm:$0xff] %v718
    %775 = vst [vmem:[#allocation7 + $0x140] sm:$0xff] %v574
    %776 = vst [vmem:[#allocation7 + $0x148] sm:$0xff] %v623
    %777 = vst [vmem:[#allocation7 + $0x150] sm:$0xff] %v672
    %778 = vst [vmem:[#allocation7 + $0x158] sm:$0xff] %v721
    %779 = vst [vmem:[#allocation7 + $0x160] sm:$0xff] %v576
    %780 = vst [vmem:[#allocation7 + $0x168] sm:$0xff] %v625
    %781 = vst [vmem:[#allocation7 + $0x170] sm:$0xff] %v674
    %782 = vst [vmem:[#allocation7 + $0x178] sm:$0xff] %v723
    %783 = vst [vmem:[#allocation7 + $0x180] sm:$0xff] %v579
    %784 = vst [vmem:[#allocation7 + $0x188] sm:$0xff] %v628
    %785 = vst [vmem:[#allocation7 + $0x190] sm:$0xff] %v677
    %786 = vst [vmem:[#allocation7 + $0x198] sm:$0xff] %v726
    %787 = vst [vmem:[#allocation7 + $0x1a0] sm:$0xff] %v581
    %788 = vst [vmem:[#allocation7 + $0x1a8] sm:$0xff] %v630
    %789 = vst [vmem:[#allocation7 + $0x1b0] sm:$0xff] %v679
    %790 = vst [vmem:[#allocation7 + $0x1b8] sm:$0xff] %v728
    %791 = vst [vmem:[#allocation7 + $0x1c0] sm:$0xff] %v584
    %792 = vst [vmem:[#allocation7 + $0x1c8] sm:$0xff] %v633
    %793 = vst [vmem:[#allocation7 + $0x1d0] sm:$0xff] %v682
    %794 = vst [vmem:[#allocation7 + $0x1d8] sm:$0xff] %v731
    %795 = vst [vmem:[#allocation7 + $0x1e0] sm:$0xff] %v586
    %796 = vst [vmem:[#allocation7 + $0x1e8] sm:$0xff] %v635
    %797 = vst [vmem:[#allocation7 + $0x1f0] sm:$0xff] %v684
    %798 = vst [vmem:[#allocation7 + $0x1f8] sm:$0xff] %v733
    %s799 = smul.u32 0, 4
    %s800 = smul.addr %s799, 8
    %s801 = scalar_lea.vmem [#allocation6], %s800
    %v802 = vld [vmem:[%s801] sm:$0xff]
    %v803 = vld [vmem:[%s801 + $0x8] sm:$0xff]
    %v804 = vld [vmem:[%s801 + $0x10] sm:$0xff]
    %v805 = vld [vmem:[%s801 + $0x18] sm:$0xff]
    %v806 = vld [vmem:[%s801 + $0x20] sm:$0xff]
    %v807 = vld [vmem:[%s801 + $0x28] sm:$0xff]
    %v808 = vld [vmem:[%s801 + $0x30] sm:$0xff]
    %v809 = vld [vmem:[%s801 + $0x38] sm:$0xff]
    %v810 = vld [vmem:[#allocation2] sm:$0xff]
    %v811 = vld [vmem:[#allocation2 + $0x8] sm:$0xff]
    %v812 = vpack.c.bf16 %v811, %v810
    %v813 = vld [vmem:[%s4] sm:$0xff]
    %v814 = vld [vmem:[%s4 + $0x8] sm:$0xff]
    %v815 = vld [vmem:[%s4 + $0x10] sm:$0xff]
    %v816 = vld [vmem:[%s4 + $0x18] sm:$0xff]
    %v817 = vld [vmem:[%s4 + $0x20] sm:$0xff]
    %v818 = vld [vmem:[%s4 + $0x28] sm:$0xff]
    %v819 = vld [vmem:[%s4 + $0x30] sm:$0xff]
    %v820 = vld [vmem:[%s4 + $0x38] sm:$0xff]
    %v821 = vld [vmem:[%s4 + $0x40] sm:$0xff]
    %v822 = vld [vmem:[%s4 + $0x48] sm:$0xff]
    %v823 = vld [vmem:[%s4 + $0x50] sm:$0xff]
    %v824 = vld [vmem:[%s4 + $0x58] sm:$0xff]
    %v825 = vld [vmem:[%s4 + $0x60] sm:$0xff]
    %v826 = vld [vmem:[%s4 + $0x68] sm:$0xff]
    %v827 = vld [vmem:[%s4 + $0x70] sm:$0xff]
    %v828 = vld [vmem:[%s4 + $0x78] sm:$0xff]
    %v829 = vld [vmem:[%s4 + $0x80] sm:$0xff]
    %v830 = vld [vmem:[%s4 + $0x88] sm:$0xff]
    %v831 = vld [vmem:[%s4 + $0x90] sm:$0xff]
    %v832 = vld [vmem:[%s4 + $0x98] sm:$0xff]
    %v833 = vld [vmem:[%s4 + $0xa0] sm:$0xff]
    %v834 = vld [vmem:[%s4 + $0xa8] sm:$0xff]
    %v835 = vld [vmem:[%s4 + $0xb0] sm:$0xff]
    %v836 = vld [vmem:[%s4 + $0xb8] sm:$0xff]
    %v837 = vld [vmem:[%s4 + $0xc0] sm:$0xff]
    %v838 = vld [vmem:[%s4 + $0xc8] sm:$0xff]
    %v839 = vld [vmem:[%s4 + $0xd0] sm:$0xff]
    %v840 = vld [vmem:[%s4 + $0xd8] sm:$0xff]
    %v841 = vld [vmem:[%s4 + $0xe0] sm:$0xff]
    %v842 = vld [vmem:[%s4 + $0xe8] sm:$0xff]
    %v843 = vld [vmem:[%s4 + $0xf0] sm:$0xff]
    %v844 = vld [vmem:[%s4 + $0xf8] sm:$0xff]
    %v877 = vunpack.c.l.b16 %v813
    %v878 = vunpack.c.h.b16 %v813
    %v879 = vunpack.c.l.b16 %v814
    %v880 = vunpack.c.h.b16 %v814
    %v881 = vunpack.c.l.b16 %v815
    %v882 = vunpack.c.h.b16 %v815
    %v883 = vunpack.c.l.b16 %v816
    %v884 = vunpack.c.h.b16 %v816
    %v885 = vunpack.c.l.b16 %v817
    %v886 = vunpack.c.h.b16 %v817
    %v887 = vunpack.c.l.b16 %v818
    %v888 = vunpack.c.h.b16 %v818
    %v889 = vunpack.c.l.b16 %v819
    %v890 = vunpack.c.h.b16 %v819
    %v891 = vunpack.c.l.b16 %v820
    %v892 = vunpack.c.h.b16 %v820
    %v893 = vunpack.c.l.b16 %v821
    %v894 = vunpack.c.h.b16 %v821
    %v895 = vunpack.c.l.b16 %v822
    %v896 = vunpack.c.h.b16 %v822
    %v897 = vunpack.c.l.b16 %v823
    %v898 = vunpack.c.h.b16 %v823
    %v899 = vunpack.c.l.b16 %v824
    %v900 = vunpack.c.h.b16 %v824
    %v901 = vunpack.c.l.b16 %v825
    %v902 = vunpack.c.h.b16 %v825
    %v903 = vunpack.c.l.b16 %v826
    %v904 = vunpack.c.h.b16 %v826
    %v905 = vunpack.c.l.b16 %v827
    %v906 = vunpack.c.h.b16 %v827
    %v907 = vunpack.c.l.b16 %v828
    %v908 = vunpack.c.h.b16 %v828
    %v909 = vunpack.c.l.b16 %v829
    %v910 = vunpack.c.h.b16 %v829
    %v911 = vunpack.c.l.b16 %v830
    %v912 = vunpack.c.h.b16 %v830
    %v913 = vunpack.c.l.b16 %v831
    %v914 = vunpack.c.h.b16 %v831
    %v915 = vunpack.c.l.b16 %v832
    %v916 = vunpack.c.h.b16 %v832
    %v917 = vunpack.c.l.b16 %v833
    %v918 = vunpack.c.h.b16 %v833
    %v919 = vunpack.c.l.b16 %v834
    %v920 = vunpack.c.h.b16 %v834
    %v921 = vunpack.c.l.b16 %v835
    %v922 = vunpack.c.h.b16 %v835
    %v923 = vunpack.c.l.b16 %v836
    %v924 = vunpack.c.h.b16 %v836
    %v925 = vunpack.c.l.b16 %v837
    %v926 = vunpack.c.h.b16 %v837
    %v927 = vunpack.c.l.b16 %v838
    %v928 = vunpack.c.h.b16 %v838
    %v929 = vunpack.c.l.b16 %v839
    %v930 = vunpack.c.h.b16 %v839
    %v931 = vunpack.c.l.b16 %v840
    %v932 = vunpack.c.h.b16 %v840
    %v933 = vunpack.c.l.b16 %v841
    %v934 = vunpack.c.h.b16 %v841
    %v935 = vunpack.c.l.b16 %v842
    %v936 = vunpack.c.h.b16 %v842
    %v937 = vunpack.c.l.b16 %v843
    %v938 = vunpack.c.h.b16 %v843
    %v939 = vunpack.c.l.b16 %v844
    %v940 = vunpack.c.h.b16 %v844
    %v941 = vpack.c.b16 %v881, %v877
    %v942 = vpack.c.b16 %v882, %v878
    %v943 = vpack.c.b16 %v883, %v879
    %v944 = vpack.c.b16 %v884, %v880
    %v945 = vpack.c.b16 %v889, %v885
    %v946 = vpack.c.b16 %v890, %v886
    %v947 = vpack.c.b16 %v891, %v887
    %v948 = vpack.c.b16 %v892, %v888
    %v949 = vpack.c.b16 %v897, %v893
    %v950 = vpack.c.b16 %v898, %v894
    %v951 = vpack.c.b16 %v899, %v895
    %v952 = vpack.c.b16 %v900, %v896
    %v953 = vpack.c.b16 %v905, %v901
    %v954 = vpack.c.b16 %v906, %v902
    %v955 = vpack.c.b16 %v907, %v903
    %v956 = vpack.c.b16 %v908, %v904
    %v957 = vpack.c.b16 %v913, %v909
    %v958 = vpack.c.b16 %v914, %v910
    %v959 = vpack.c.b16 %v915, %v911
    %v960 = vpack.c.b16 %v916, %v912
    %v961 = vpack.c.b16 %v921, %v917
    %v962 = vpack.c.b16 %v922, %v918
    %v963 = vpack.c.b16 %v923, %v919
    %v964 = vpack.c.b16 %v924, %v920
    %v965 = vpack.c.b16 %v929, %v925
    %v966 = vpack.c.b16 %v930, %v926
    %v967 = vpack.c.b16 %v931, %v927
    %v968 = vpack.c.b16 %v932, %v928
    %v969 = vpack.c.b16 %v937, %v933
    %v970 = vpack.c.b16 %v938, %v934
    %v971 = vpack.c.b16 %v939, %v935
    %v972 = vpack.c.b16 %v940, %v936
    %1005 = vmatpush.bf16.msra.mxu0 %v969
    %1006 = vmatpush.bf16.msra.mxu0 %v965
    %1007 = vmatpush.bf16.msra.mxu0 %v961
    %1008 = vmatpush.bf16.msra.mxu0 %v957
    %1009 = vmatpush.bf16.msra.mxu0 %v953
    %1010 = vmatpush.bf16.msra.mxu0 %v949
    %1011 = vmatpush.bf16.msra.mxu0 %v945
    %1012 = vmatpush.bf16.msra.mxu0 %v941
    %1013 = vmatmul.bf16.gmra.mxu0 %v812
    %v1014 = vpop.f32.mrf.mxu0
    %v1015 = vadd.f32 0.0, %v1014
    %v1016 = vpop.f32.mrf.mxu0
    %v1017 = vadd.f32 0.0, %v1016
    %1018 = vdwg.mxu0
    %1019 = vmatpush.bf16.msra.mxu0 %v970
    %1020 = vmatpush.bf16.msra.mxu0 %v966
    %1021 = vmatpush.bf16.msra.mxu0 %v962
    %1022 = vmatpush.bf16.msra.mxu0 %v958
    %1023 = vmatpush.bf16.msra.mxu0 %v954
    %1024 = vmatpush.bf16.msra.mxu0 %v950
    %1025 = vmatpush.bf16.msra.mxu0 %v946
    %1026 = vmatpush.bf16.msra.mxu0 %v942
    %1027 = vmatmul.bf16.gmra.mxu0 %v812
    %v1028 = vpop.f32.mrf.mxu0
    %v1029 = vadd.f32 0.0, %v1028
    %v1030 = vpop.f32.mrf.mxu0
    %v1031 = vadd.f32 0.0, %v1030
    %1032 = vdwg.mxu0
    %1033 = vmatpush.bf16.msra.mxu0 %v971
    %1034 = vmatpush.bf16.msra.mxu0 %v967
    %1035 = vmatpush.bf16.msra.mxu0 %v963
    %1036 = vmatpush.bf16.msra.mxu0 %v959
    %1037 = vmatpush.bf16.msra.mxu0 %v955
    %1038 = vmatpush.bf16.msra.mxu0 %v951
    %1039 = vmatpush.bf16.msra.mxu0 %v947
    %1040 = vmatpush.bf16.msra.mxu0 %v943
    %1041 = vmatmul.bf16.gmra.mxu0 %v812
    %v1042 = vpop.f32.mrf.mxu0
    %v1043 = vadd.f32 0.0, %v1042
    %v1044 = vpop.f32.mrf.mxu0
    %v1045 = vadd.f32 0.0, %v1044
    %1046 = vdwg.mxu0
    %1047 = vmatpush.bf16.msra.mxu0 %v972
    %1048 = vmatpush.bf16.msra.mxu0 %v968
    %1049 = vmatpush.bf16.msra.mxu0 %v964
    %1050 = vmatpush.bf16.msra.mxu0 %v960
    %1051 = vmatpush.bf16.msra.mxu0 %v956
    %1052 = vmatpush.bf16.msra.mxu0 %v952
    %1053 = vmatpush.bf16.msra.mxu0 %v948
    %1054 = vmatpush.bf16.msra.mxu0 %v944
    %1055 = vmatmul.bf16.gmra.mxu0 %v812
    %v1056 = vpop.f32.mrf.mxu0
    %v1057 = vadd.f32 0.0, %v1056
    %v1058 = vpop.f32.mrf.mxu0
    %v1059 = vadd.f32 0.0, %v1058
    %1060 = vdwg.mxu0
    %v1061 = vadd.f32 %v802, %v1015
    %v1062 = vadd.f32 %v803, %v1029
    %v1063 = vadd.f32 %v804, %v1043
    %v1064 = vadd.f32 %v805, %v1057
    %v1065 = vadd.f32 %v806, %v1017
    %v1066 = vadd.f32 %v807, %v1031
    %v1067 = vadd.f32 %v808, %v1045
    %v1068 = vadd.f32 %v809, %v1059
    %v1069 = vld [vmem:[#allocation3] sm:$0xff]
    %v1070 = vld [vmem:[#allocation3 + $0x8] sm:$0xff]
    %v1071 = vxor.u32 %v1061, 2147483648
    %v1072 = vxor.u32 %v1065, 2147483648
    %v1073 = vmul.f32 %v1071, 1.442695
    %v1074 = vpow.pop %v1073
    %v1075 = vmul.f32 %v1072, 1.442695
    %v1076 = vpow.pop %v1075
    %v1077 = vadd.f32 %v1074, 1.0
    %v1078 = vadd.f32 %v1076, 1.0
    %v1079 = vrcp.pop %v1077
    %v1080 = vmul.f32 %v1077, %v1079
    %v1081 = vsub.f32 1.0, %v1080
    %v1082 = vmul.f32 %v1079, %v1081
    %v1083 = vadd.f32 %v1079, %v1082
    %vm1084 = vweird.f32 %v1077
    %vm1085 = vweird.f32 %v1079
    %vm1086 = vmor %vm1084, %vm1085
    %v1087 = vsel %vm1086, %v1079, %v1083
    %v1088 = vand.u32 2147483647, %v1077
    %vm1089 = vcmp.eq.f32.partialorder %v1088, 8.507059e+37
    %v1090 = vand.u32 %v1077, 2147483648
    %v1091 = vor.u32 1.1754944e-38, %v1090
    %v1092 = vsel %vm1089, %v1091, %v1087
    %v1093 = vmul.f32 1.0, %v1092
    %v1094 = vrcp.pop %v1078
    %v1095 = vmul.f32 %v1078, %v1094
    %v1096 = vsub.f32 1.0, %v1095
    %v1097 = vmul.f32 %v1094, %v1096
    %v1098 = vadd.f32 %v1094, %v1097
    %vm1099 = vweird.f32 %v1078
    %vm1100 = vweird.f32 %v1094
    %vm1101 = vmor %vm1099, %vm1100
    %v1102 = vsel %vm1101, %v1094, %v1098
    %v1103 = vand.u32 2147483647, %v1078
    %vm1104 = vcmp.eq.f32.partialorder %v1103, 8.507059e+37
    %v1105 = vand.u32 %v1078, 2147483648
    %v1106 = vor.u32 1.1754944e-38, %v1105
    %v1107 = vsel %vm1104, %v1106, %v1102
    %v1108 = vmul.f32 1.0, %v1107
    %v1109 = vxor.u32 %v1062, 2147483648
    %v1110 = vxor.u32 %v1066, 2147483648
    %v1111 = vmul.f32 %v1109, 1.442695
    %v1112 = vpow.pop %v1111
    %v1113 = vmul.f32 %v1110, 1.442695
    %v1114 = vpow.pop %v1113
    %v1115 = vadd.f32 %v1112, 1.0
    %v1116 = vadd.f32 %v1114, 1.0
    %v1117 = vrcp.pop %v1115
    %v1118 = vmul.f32 %v1115, %v1117
    %v1119 = vsub.f32 1.0, %v1118
    %v1120 = vmul.f32 %v1117, %v1119
    %v1121 = vadd.f32 %v1117, %v1120
    %vm1122 = vweird.f32 %v1115
    %vm1123 = vweird.f32 %v1117
    %vm1124 = vmor %vm1122, %vm1123
    %v1125 = vsel %vm1124, %v1117, %v1121
    %v1126 = vand.u32 2147483647, %v1115
    %vm1127 = vcmp.eq.f32.partialorder %v1126, 8.507059e+37
    %v1128 = vand.u32 %v1115, 2147483648
    %v1129 = vor.u32 1.1754944e-38, %v1128
    %v1130 = vsel %vm1127, %v1129, %v1125
    %v1131 = vmul.f32 1.0, %v1130
    %v1132 = vrcp.pop %v1116
    %v1133 = vmul.f32 %v1116, %v1132
    %v1134 = vsub.f32 1.0, %v1133
    %v1135 = vmul.f32 %v1132, %v1134
    %v1136 = vadd.f32 %v1132, %v1135
    %vm1137 = vweird.f32 %v1116
    %vm1138 = vweird.f32 %v1132
    %vm1139 = vmor %vm1137, %vm1138
    %v1140 = vsel %vm1139, %v1132, %v1136
    %v1141 = vand.u32 2147483647, %v1116
    %vm1142 = vcmp.eq.f32.partialorder %v1141, 8.507059e+37
    %v1143 = vand.u32 %v1116, 2147483648
    %v1144 = vor.u32 1.1754944e-38, %v1143
    %v1145 = vsel %vm1142, %v1144, %v1140
    %v1146 = vmul.f32 1.0, %v1145
    %v1147 = vtanh.pop %v1063
    %v1148 = vtanh.pop %v1067
    %v1149 = vxor.u32 %v1064, 2147483648
    %v1150 = vxor.u32 %v1068, 2147483648
    %v1151 = vmul.f32 %v1149, 1.442695
    %v1152 = vpow.pop %v1151
    %v1153 = vmul.f32 %v1150, 1.442695
    %v1154 = vpow.pop %v1153
    %v1155 = vadd.f32 %v1152, 1.0
    %v1156 = vadd.f32 %v1154, 1.0
    %v1157 = vrcp.pop %v1155
    %v1158 = vmul.f32 %v1155, %v1157
    %v1159 = vsub.f32 1.0, %v1158
    %v1160 = vmul.f32 %v1157, %v1159
    %v1161 = vadd.f32 %v1157, %v1160
    %vm1162 = vweird.f32 %v1155
    %vm1163 = vweird.f32 %v1157
    %vm1164 = vmor %vm1162, %vm1163
    %v1165 = vsel %vm1164, %v1157, %v1161
    %v1166 = vand.u32 2147483647, %v1155
    %vm1167 = vcmp.eq.f32.partialorder %v1166, 8.507059e+37
    %v1168 = vand.u32 %v1155, 2147483648
    %v1169 = vor.u32 1.1754944e-38, %v1168
    %v1170 = vsel %vm1167, %v1169, %v1165
    %v1171 = vmul.f32 1.0, %v1170
    %v1172 = vrcp.pop %v1156
    %v1173 = vmul.f32 %v1156, %v1172
    %v1174 = vsub.f32 1.0, %v1173
    %v1175 = vmul.f32 %v1172, %v1174
    %v1176 = vadd.f32 %v1172, %v1175
    %vm1177 = vweird.f32 %v1156
    %vm1178 = vweird.f32 %v1172
    %vm1179 = vmor %vm1177, %vm1178
    %v1180 = vsel %vm1179, %v1172, %v1176
    %v1181 = vand.u32 2147483647, %v1156
    %vm1182 = vcmp.eq.f32.partialorder %v1181, 8.507059e+37
    %v1183 = vand.u32 %v1156, 2147483648
    %v1184 = vor.u32 1.1754944e-38, %v1183
    %v1185 = vsel %vm1182, %v1184, %v1180
    %v1186 = vmul.f32 1.0, %v1185
    %v1187 = vmul.f32 %v1131, %v1069
    %v1188 = vmul.f32 %v1146, %v1070
    %v1189 = vmul.f32 %v1093, %v1147
    %v1190 = vmul.f32 %v1108, %v1148
    %v1191 = vadd.f32 %v1187, %v1189
    %v1192 = vadd.f32 %v1188, %v1190
    %v1193 = vtanh.pop %v1191
    %v1194 = vtanh.pop %v1192
    %v1195 = vmul.f32 %v1171, %v1193
    %v1196 = vmul.f32 %v1186, %v1194
    %1197 = vst [vmem:[#allocation2] sm:$0xff] %v1195
    %1198 = vst [vmem:[#allocation2 + $0x8] sm:$0xff] %v1196
    %1199 = vst [vmem:[#allocation3] sm:$0xff] %v1191
    %1200 = vst [vmem:[#allocation3 + $0x8] sm:$0xff] %v1192
    %v1201 = vpack.c.bf16 %v1195, %v1195
    %v1202 = vpack.c.bf16 %v1196, %v1196
    %1203 = vst [vmem:[#allocation14] sm:$0xf] %v1201
    %1204 = vst [vmem:[#allocation14 + $0x4] sm:$0xf] %v1202
    %v1205 = vld [vmem:[#allocation4] sm:$0xff]
    %v1206 = vld [vmem:[#allocation4 + $0x8] sm:$0xff]
    %v1207 = vld [vmem:[#allocation5] sm:$0xff]
    %v1208 = vld [vmem:[#allocation5 + $0x8] sm:$0xff]
    %s1209 = smul.u32 14, 4
    %s1210 = smul.addr %s1209, 8
    %s1211 = scalar_lea.vmem [#allocation7], %s1210
    %v1212 = vld [vmem:[%s1211] sm:$0xff]
    %v1213 = vld [vmem:[%s1211 + $0x8] sm:$0xff]
    %v1214 = vld [vmem:[%s1211 + $0x10] sm:$0xff]
    %v1215 = vld [vmem:[%s1211 + $0x18] sm:$0xff]
    %v1216 = vld [vmem:[%s1211 + $0x20] sm:$0xff]
    %v1217 = vld [vmem:[%s1211 + $0x28] sm:$0xff]
    %v1218 = vld [vmem:[%s1211 + $0x30] sm:$0xff]
    %v1219 = vld [vmem:[%s1211 + $0x38] sm:$0xff]
    %v1220 = vpack.c.bf16 %v1206, %v1205
    %v1221 = vld [vmem:[#allocation13] sm:$0xff]
    %v1222 = vld [vmem:[#allocation13 + $0x8] sm:$0xff]
    %v1223 = vld [vmem:[#allocation13 + $0x10] sm:$0xff]
    %v1224 = vld [vmem:[#allocation13 + $0x18] sm:$0xff]
    %v1225 = vld [vmem:[#allocation13 + $0x20] sm:$0xff]
    %v1226 = vld [vmem:[#allocation13 + $0x28] sm:$0xff]
    %v1227 = vld [vmem:[#allocation13 + $0x30] sm:$0xff]
    %v1228 = vld [vmem:[#allocation13 + $0x38] sm:$0xff]
    %v1229 = vld [vmem:[#allocation13 + $0x40] sm:$0xff]
    %v1230 = vld [vmem:[#allocation13 + $0x48] sm:$0xff]
    %v1231 = vld [vmem:[#allocation13 + $0x50] sm:$0xff]
    %v1232 = vld [vmem:[#allocation13 + $0x58] sm:$0xff]
    %v1233 = vld [vmem:[#allocation13 + $0x60] sm:$0xff]
    %v1234 = vld [vmem:[#allocation13 + $0x68] sm:$0xff]
    %v1235 = vld [vmem:[#allocation13 + $0x70] sm:$0xff]
    %v1236 = vld [vmem:[#allocation13 + $0x78] sm:$0xff]
    %v1237 = vld [vmem:[#allocation13 + $0x80] sm:$0xff]
    %v1238 = vld [vmem:[#allocation13 + $0x88] sm:$0xff]
    %v1239 = vld [vmem:[#allocation13 + $0x90] sm:$0xff]
    %v1240 = vld [vmem:[#allocation13 + $0x98] sm:$0xff]
    %v1241 = vld [vmem:[#allocation13 + $0xa0] sm:$0xff]
    %v1242 = vld [vmem:[#allocation13 + $0xa8] sm:$0xff]
    %v1243 = vld [vmem:[#allocation13 + $0xb0] sm:$0xff]
    %v1244 = vld [vmem:[#allocation13 + $0xb8] sm:$0xff]
    %v1245 = vld [vmem:[#allocation13 + $0xc0] sm:$0xff]
    %v1246 = vld [vmem:[#allocation13 + $0xc8] sm:$0xff]
    %v1247 = vld [vmem:[#allocation13 + $0xd0] sm:$0xff]
    %v1248 = vld [vmem:[#allocation13 + $0xd8] sm:$0xff]
    %v1249 = vld [vmem:[#allocation13 + $0xe0] sm:$0xff]
    %v1250 = vld [vmem:[#allocation13 + $0xe8] sm:$0xff]
    %v1251 = vld [vmem:[#allocation13 + $0xf0] sm:$0xff]
    %v1252 = vld [vmem:[#allocation13 + $0xf8] sm:$0xff]
    %v1285 = vunpack.c.l.b16 %v1221
    %v1286 = vunpack.c.h.b16 %v1221
    %v1287 = vunpack.c.l.b16 %v1222
    %v1288 = vunpack.c.h.b16 %v1222
    %v1289 = vunpack.c.l.b16 %v1223
    %v1290 = vunpack.c.h.b16 %v1223
    %v1291 = vunpack.c.l.b16 %v1224
    %v1292 = vunpack.c.h.b16 %v1224
    %v1293 = vunpack.c.l.b16 %v1225
    %v1294 = vunpack.c.h.b16 %v1225
    %v1295 = vunpack.c.l.b16 %v1226
    %v1296 = vunpack.c.h.b16 %v1226
    %v1297 = vunpack.c.l.b16 %v1227
    %v1298 = vunpack.c.h.b16 %v1227
    %v1299 = vunpack.c.l.b16 %v1228
    %v1300 = vunpack.c.h.b16 %v1228
    %v1301 = vunpack.c.l.b16 %v1229
    %v1302 = vunpack.c.h.b16 %v1229
    %v1303 = vunpack.c.l.b16 %v1230
    %v1304 = vunpack.c.h.b16 %v1230
    %v1305 = vunpack.c.l.b16 %v1231
    %v1306 = vunpack.c.h.b16 %v1231
    %v1307 = vunpack.c.l.b16 %v1232
    %v1308 = vunpack.c.h.b16 %v1232
    %v1309 = vunpack.c.l.b16 %v1233
    %v1310 = vunpack.c.h.b16 %v1233
    %v1311 = vunpack.c.l.b16 %v1234
    %v1312 = vunpack.c.h.b16 %v1234
    %v1313 = vunpack.c.l.b16 %v1235
    %v1314 = vunpack.c.h.b16 %v1235
    %v1315 = vunpack.c.l.b16 %v1236
    %v1316 = vunpack.c.h.b16 %v1236
    %v1317 = vunpack.c.l.b16 %v1237
    %v1318 = vunpack.c.h.b16 %v1237
    %v1319 = vunpack.c.l.b16 %v1238
    %v1320 = vunpack.c.h.b16 %v1238
    %v1321 = vunpack.c.l.b16 %v1239
    %v1322 = vunpack.c.h.b16 %v1239
    %v1323 = vunpack.c.l.b16 %v1240
    %v1324 = vunpack.c.h.b16 %v1240
    %v1325 = vunpack.c.l.b16 %v1241
    %v1326 = vunpack.c.h.b16 %v1241
    %v1327 = vunpack.c.l.b16 %v1242
    %v1328 = vunpack.c.h.b16 %v1242
    %v1329 = vunpack.c.l.b16 %v1243
    %v1330 = vunpack.c.h.b16 %v1243
    %v1331 = vunpack.c.l.b16 %v1244
    %v1332 = vunpack.c.h.b16 %v1244
    %v1333 = vunpack.c.l.b16 %v1245
    %v1334 = vunpack.c.h.b16 %v1245
    %v1335 = vunpack.c.l.b16 %v1246
    %v1336 = vunpack.c.h.b16 %v1246
    %v1337 = vunpack.c.l.b16 %v1247
    %v1338 = vunpack.c.h.b16 %v1247
    %v1339 = vunpack.c.l.b16 %v1248
    %v1340 = vunpack.c.h.b16 %v1248
    %v1341 = vunpack.c.l.b16 %v1249
    %v1342 = vunpack.c.h.b16 %v1249
    %v1343 = vunpack.c.l.b16 %v1250
    %v1344 = vunpack.c.h.b16 %v1250
    %v1345 = vunpack.c.l.b16 %v1251
    %v1346 = vunpack.c.h.b16 %v1251
    %v1347 = vunpack.c.l.b16 %v1252
    %v1348 = vunpack.c.h.b16 %v1252
    %v1349 = vpack.c.b16 %v1289, %v1285
    %v1350 = vpack.c.b16 %v1290, %v1286
    %v1351 = vpack.c.b16 %v1291, %v1287
    %v1352 = vpack.c.b16 %v1292, %v1288
    %v1353 = vpack.c.b16 %v1297, %v1293
    %v1354 = vpack.c.b16 %v1298, %v1294
    %v1355 = vpack.c.b16 %v1299, %v1295
    %v1356 = vpack.c.b16 %v1300, %v1296
    %v1357 = vpack.c.b16 %v1305, %v1301
    %v1358 = vpack.c.b16 %v1306, %v1302
    %v1359 = vpack.c.b16 %v1307, %v1303
    %v1360 = vpack.c.b16 %v1308, %v1304
    %v1361 = vpack.c.b16 %v1313, %v1309
    %v1362 = vpack.c.b16 %v1314, %v1310
    %v1363 = vpack.c.b16 %v1315, %v1311
    %v1364 = vpack.c.b16 %v1316, %v1312
    %v1365 = vpack.c.b16 %v1321, %v1317
    %v1366 = vpack.c.b16 %v1322, %v1318
    %v1367 = vpack.c.b16 %v1323, %v1319
    %v1368 = vpack.c.b16 %v1324, %v1320
    %v1369 = vpack.c.b16 %v1329, %v1325
    %v1370 = vpack.c.b16 %v1330, %v1326
    %v1371 = vpack.c.b16 %v1331, %v1327
    %v1372 = vpack.c.b16 %v1332, %v1328
    %v1373 = vpack.c.b16 %v1337, %v1333
    %v1374 = vpack.c.b16 %v1338, %v1334
    %v1375 = vpack.c.b16 %v1339, %v1335
    %v1376 = vpack.c.b16 %v1340, %v1336
    %v1377 = vpack.c.b16 %v1345, %v1341
    %v1378 = vpack.c.b16 %v1346, %v1342
    %v1379 = vpack.c.b16 %v1347, %v1343
    %v1380 = vpack.c.b16 %v1348, %v1344
    %1413 = vmatpush.bf16.msra.mxu0 %v1377
    %1414 = vmatpush.bf16.msra.mxu0 %v1373
    %1415 = vmatpush.bf16.msra.mxu0 %v1369
    %1416 = vmatpush.bf16.msra.mxu0 %v1365
    %1417 = vmatpush.bf16.msra.mxu0 %v1361
    %1418 = vmatpush.bf16.msra.mxu0 %v1357
    %1419 = vmatpush.bf16.msra.mxu0 %v1353
    %1420 = vmatpush.bf16.msra.mxu0 %v1349
    %1421 = vmatmul.bf16.gmra.mxu0 %v1220
    %v1422 = vpop.f32.mrf.mxu0
    %v1423 = vadd.f32 0.0, %v1422
    %v1424 = vpop.f32.mrf.mxu0
    %v1425 = vadd.f32 0.0, %v1424
    %1426 = vdwg.mxu0
    %1427 = vmatpush.bf16.msra.mxu0 %v1378
    %1428 = vmatpush.bf16.msra.mxu0 %v1374
    %1429 = vmatpush.bf16.msra.mxu0 %v1370
    %1430 = vmatpush.bf16.msra.mxu0 %v1366
    %1431 = vmatpush.bf16.msra.mxu0 %v1362
    %1432 = vmatpush.bf16.msra.mxu0 %v1358
    %1433 = vmatpush.bf16.msra.mxu0 %v1354
    %1434 = vmatpush.bf16.msra.mxu0 %v1350
    %1435 = vmatmul.bf16.gmra.mxu0 %v1220
    %v1436 = vpop.f32.mrf.mxu0
    %v1437 = vadd.f32 0.0, %v1436
    %v1438 = vpop.f32.mrf.mxu0
    %v1439 = vadd.f32 0.0, %v1438
    %1440 = vdwg.mxu0
    %1441 = vmatpush.bf16.msra.mxu0 %v1379
    %1442 = vmatpush.bf16.msra.mxu0 %v1375
    %1443 = vmatpush.bf16.msra.mxu0 %v1371
    %1444 = vmatpush.bf16.msra.mxu0 %v1367
    %1445 = vmatpush.bf16.msra.mxu0 %v1363
    %1446 = vmatpush.bf16.msra.mxu0 %v1359
    %1447 = vmatpush.bf16.msra.mxu0 %v1355
    %1448 = vmatpush.bf16.msra.mxu0 %v1351
    %1449 = vmatmul.bf16.gmra.mxu0 %v1220
    %v1450 = vpop.f32.mrf.mxu0
    %v1451 = vadd.f32 0.0, %v1450
    %v1452 = vpop.f32.mrf.mxu0
    %v1453 = vadd.f32 0.0, %v1452
    %1454 = vdwg.mxu0
    %1455 = vmatpush.bf16.msra.mxu0 %v1380
    %1456 = vmatpush.bf16.msra.mxu0 %v1376
    %1457 = vmatpush.bf16.msra.mxu0 %v1372
    %1458 = vmatpush.bf16.msra.mxu0 %v1368
    %1459 = vmatpush.bf16.msra.mxu0 %v1364
    %1460 = vmatpush.bf16.msra.mxu0 %v1360
    %1461 = vmatpush.bf16.msra.mxu0 %v1356
    %1462 = vmatpush.bf16.msra.mxu0 %v1352
    %1463 = vmatmul.bf16.gmra.mxu0 %v1220
    %v1464 = vpop.f32.mrf.mxu0
    %v1465 = vadd.f32 0.0, %v1464
    %v1466 = vpop.f32.mrf.mxu0
    %v1467 = vadd.f32 0.0, %v1466
    %1468 = vdwg.mxu0
    %v1469 = vadd.f32 %v1212, %v1423
    %v1470 = vadd.f32 %v1213, %v1437
    %v1471 = vadd.f32 %v1214, %v1451
    %v1472 = vadd.f32 %v1215, %v1465
    %v1473 = vadd.f32 %v1216, %v1425
    %v1474 = vadd.f32 %v1217, %v1439
    %v1475 = vadd.f32 %v1218, %v1453
    %v1476 = vadd.f32 %v1219, %v1467
    %v1477 = vxor.u32 %v1469, 2147483648
    %v1478 = vxor.u32 %v1473, 2147483648
    %v1479 = vmul.f32 %v1477, 1.442695
    %v1480 = vpow.pop %v1479
    %v1481 = vmul.f32 %v1478, 1.442695
    %v1482 = vpow.pop %v1481
    %v1483 = vadd.f32 %v1480, 1.0
    %v1484 = vadd.f32 %v1482, 1.0
    %v1485 = vrcp.pop %v1483
    %v1486 = vmul.f32 %v1483, %v1485
    %v1487 = vsub.f32 1.0, %v1486
    %v1488 = vmul.f32 %v1485, %v1487
    %v1489 = vadd.f32 %v1485, %v1488
    %vm1490 = vweird.f32 %v1483
    %vm1491 = vweird.f32 %v1485
    %vm1492 = vmor %vm1490, %vm1491
    %v1493 = vsel %vm1492, %v1485, %v1489
    %v1494 = vand.u32 2147483647, %v1483
    %vm1495 = vcmp.eq.f32.partialorder %v1494, 8.507059e+37
    %v1496 = vand.u32 %v1483, 2147483648
    %v1497 = vor.u32 1.1754944e-38, %v1496
    %v1498 = vsel %vm1495, %v1497, %v1493
    %v1499 = vmul.f32 1.0, %v1498
    %v1500 = vrcp.pop %v1484
    %v1501 = vmul.f32 %v1484, %v1500
    %v1502 = vsub.f32 1.0, %v1501
    %v1503 = vmul.f32 %v1500, %v1502
    %v1504 = vadd.f32 %v1500, %v1503
    %vm1505 = vweird.f32 %v1484
    %vm1506 = vweird.f32 %v1500
    %vm1507 = vmor %vm1505, %vm1506
    %v1508 = vsel %vm1507, %v1500, %v1504
    %v1509 = vand.u32 2147483647, %v1484
    %vm1510 = vcmp.eq.f32.partialorder %v1509, 8.507059e+37
    %v1511 = vand.u32 %v1484, 2147483648
    %v1512 = vor.u32 1.1754944e-38, %v1511
    %v1513 = vsel %vm1510, %v1512, %v1508
    %v1514 = vmul.f32 1.0, %v1513
    %v1515 = vxor.u32 %v1470, 2147483648
    %v1516 = vxor.u32 %v1474, 2147483648
    %v1517 = vmul.f32 %v1515, 1.442695
    %v1518 = vpow.pop %v1517
    %v1519 = vmul.f32 %v1516, 1.442695
    %v1520 = vpow.pop %v1519
    %v1521 = vadd.f32 %v1518, 1.0
    %v1522 = vadd.f32 %v1520, 1.0
    %v1523 = vrcp.pop %v1521
    %v1524 = vmul.f32 %v1521, %v1523
    %v1525 = vsub.f32 1.0, %v1524
    %v1526 = vmul.f32 %v1523, %v1525
    %v1527 = vadd.f32 %v1523, %v1526
    %vm1528 = vweird.f32 %v1521
    %vm1529 = vweird.f32 %v1523
    %vm1530 = vmor %vm1528, %vm1529
    %v1531 = vsel %vm1530, %v1523, %v1527
    %v1532 = vand.u32 2147483647, %v1521
    %vm1533 = vcmp.eq.f32.partialorder %v1532, 8.507059e+37
    %v1534 = vand.u32 %v1521, 2147483648
    %v1535 = vor.u32 1.1754944e-38, %v1534
    %v1536 = vsel %vm1533, %v1535, %v1531
    %v1537 = vmul.f32 1.0, %v1536
    %v1538 = vrcp.pop %v1522
    %v1539 = vmul.f32 %v1522, %v1538
    %v1540 = vsub.f32 1.0, %v1539
    %v1541 = vmul.f32 %v1538, %v1540
    %v1542 = vadd.f32 %v1538, %v1541
    %vm1543 = vweird.f32 %v1522
    %vm1544 = vweird.f32 %v1538
    %vm1545 = vmor %vm1543, %vm1544
    %v1546 = vsel %vm1545, %v1538, %v1542
    %v1547 = vand.u32 2147483647, %v1522
    %vm1548 = vcmp.eq.f32.partialorder %v1547, 8.507059e+37
    %v1549 = vand.u32 %v1522, 2147483648
    %v1550 = vor.u32 1.1754944e-38, %v1549
    %v1551 = vsel %vm1548, %v1550, %v1546
    %v1552 = vmul.f32 1.0, %v1551
    %v1553 = vtanh.pop %v1471
    %v1554 = vtanh.pop %v1475
    %v1555 = vxor.u32 %v1472, 2147483648
    %v1556 = vxor.u32 %v1476, 2147483648
    %v1557 = vmul.f32 %v1555, 1.442695
    %v1558 = vpow.pop %v1557
    %v1559 = vmul.f32 %v1556, 1.442695
    %v1560 = vpow.pop %v1559
    %v1561 = vadd.f32 %v1558, 1.0
    %v1562 = vadd.f32 %v1560, 1.0
    %v1563 = vrcp.pop %v1561
    %v1564 = vmul.f32 %v1561, %v1563
    %v1565 = vsub.f32 1.0, %v1564
    %v1566 = vmul.f32 %v1563, %v1565
    %v1567 = vadd.f32 %v1563, %v1566
    %vm1568 = vweird.f32 %v1561
    %vm1569 = vweird.f32 %v1563
    %vm1570 = vmor %vm1568, %vm1569
    %v1571 = vsel %vm1570, %v1563, %v1567
    %v1572 = vand.u32 2147483647, %v1561
    %vm1573 = vcmp.eq.f32.partialorder %v1572, 8.507059e+37
    %v1574 = vand.u32 %v1561, 2147483648
    %v1575 = vor.u32 1.1754944e-38, %v1574
    %v1576 = vsel %vm1573, %v1575, %v1571
    %v1577 = vmul.f32 1.0, %v1576
    %v1578 = vrcp.pop %v1562
    %v1579 = vmul.f32 %v1562, %v1578
    %v1580 = vsub.f32 1.0, %v1579
    %v1581 = vmul.f32 %v1578, %v1580
    %v1582 = vadd.f32 %v1578, %v1581
    %vm1583 = vweird.f32 %v1562
    %vm1584 = vweird.f32 %v1578
    %vm1585 = vmor %vm1583, %vm1584
    %v1586 = vsel %vm1585, %v1578, %v1582
    %v1587 = vand.u32 2147483647, %v1562
    %vm1588 = vcmp.eq.f32.partialorder %v1587, 8.507059e+37
    %v1589 = vand.u32 %v1562, 2147483648
    %v1590 = vor.u32 1.1754944e-38, %v1589
    %v1591 = vsel %vm1588, %v1590, %v1586
    %v1592 = vmul.f32 1.0, %v1591
    %v1593 = vmul.f32 %v1537, %v1207
    %v1594 = vmul.f32 %v1552, %v1208
    %v1595 = vmul.f32 %v1499, %v1553
    %v1596 = vmul.f32 %v1514, %v1554
    %v1597 = vadd.f32 %v1593, %v1595
    %v1598 = vadd.f32 %v1594, %v1596
    %v1599 = vtanh.pop %v1597
    %v1600 = vtanh.pop %v1598
    %v1601 = vmul.f32 %v1577, %v1599
    %v1602 = vmul.f32 %v1592, %v1600
    %1603 = vst [vmem:[#allocation4] sm:$0xff] %v1601
    %1604 = vst [vmem:[#allocation4 + $0x8] sm:$0xff] %v1602
    %1605 = vst [vmem:[#allocation5] sm:$0xff] %v1597
    %1606 = vst [vmem:[#allocation5 + $0x8] sm:$0xff] %v1598
    %v1607 = vpack.c.bf16 %v1601, %v1601
    %v1608 = vpack.c.bf16 %v1602, %v1602
    %s1609 = scalar_lea.vmem [#allocation15], 56
    %1610 = vst [vmem:[%s1609] sm:$0xf] %v1607
    %1611 = vst [vmem:[%s1609 + $0x4] sm:$0xf] %v1608
    %s1612 = smul.u32 2, 4
    %s1613 = smul.addr %s1612, 8
    %s1614 = scalar_lea.vmem [#allocation6], %s1613
    %v1615 = vld [vmem:[%s1614] sm:$0xff]
    %v1616 = vld [vmem:[%s1614 + $0x8] sm:$0xff]
    %v1617 = vld [vmem:[%s1614 + $0x10] sm:$0xff]
    %v1618 = vld [vmem:[%s1614 + $0x18] sm:$0xff]
    %v1619 = vld [vmem:[%s1614 + $0x20] sm:$0xff]
    %v1620 = vld [vmem:[%s1614 + $0x28] sm:$0xff]
    %v1621 = vld [vmem:[%s1614 + $0x30] sm:$0xff]
    %v1622 = vld [vmem:[%s1614 + $0x38] sm:$0xff]
    %v1623 = vld [vmem:[#allocation2] sm:$0xff]
    %v1624 = vld [vmem:[#allocation2 + $0x8] sm:$0xff]
    %v1625 = vpack.c.bf16 %v1624, %v1623
    %v1626 = vld [vmem:[%s4] sm:$0xff]
    %v1627 = vld [vmem:[%s4 + $0x8] sm:$0xff]
    %v1628 = vld [vmem:[%s4 + $0x10] sm:$0xff]
    %v1629 = vld [vmem:[%s4 + $0x18] sm:$0xff]
    %v1630 = vld [vmem:[%s4 + $0x20] sm:$0xff]
    %v1631 = vld [vmem:[%s4 + $0x28] sm:$0xff]
    %v1632 = vld [vmem:[%s4 + $0x30] sm:$0xff]
    %v1633 = vld [vmem:[%s4 + $0x38] sm:$0xff]
    %v1634 = vld [vmem:[%s4 + $0x40] sm:$0xff]
    %v1635 = vld [vmem:[%s4 + $0x48] sm:$0xff]
    %v1636 = vld [vmem:[%s4 + $0x50] sm:$0xff]
    %v1637 = vld [vmem:[%s4 + $0x58] sm:$0xff]
    %v1638 = vld [vmem:[%s4 + $0x60] sm:$0xff]
    %v1639 = vld [vmem:[%s4 + $0x68] sm:$0xff]
    %v1640 = vld [vmem:[%s4 + $0x70] sm:$0xff]
    %v1641 = vld [vmem:[%s4 + $0x78] sm:$0xff]
    %v1642 = vld [vmem:[%s4 + $0x80] sm:$0xff]
    %v1643 = vld [vmem:[%s4 + $0x88] sm:$0xff]
    %v1644 = vld [vmem:[%s4 + $0x90] sm:$0xff]
    %v1645 = vld [vmem:[%s4 + $0x98] sm:$0xff]
    %v1646 = vld [vmem:[%s4 + $0xa0] sm:$0xff]
    %v1647 = vld [vmem:[%s4 + $0xa8] sm:$0xff]
    %v1648 = vld [vmem:[%s4 + $0xb0] sm:$0xff]
    %v1649 = vld [vmem:[%s4 + $0xb8] sm:$0xff]
    %v1650 = vld [vmem:[%s4 + $0xc0] sm:$0xff]
    %v1651 = vld [vmem:[%s4 + $0xc8] sm:$0xff]
    %v1652 = vld [vmem:[%s4 + $0xd0] sm:$0xff]
    %v1653 = vld [vmem:[%s4 + $0xd8] sm:$0xff]
    %v1654 = vld [vmem:[%s4 + $0xe0] sm:$0xff]
    %v1655 = vld [vmem:[%s4 + $0xe8] sm:$0xff]
    %v1656 = vld [vmem:[%s4 + $0xf0] sm:$0xff]
    %v1657 = vld [vmem:[%s4 + $0xf8] sm:$0xff]
    %v1690 = vunpack.c.l.b16 %v1626
    %v1691 = vunpack.c.h.b16 %v1626
    %v1692 = vunpack.c.l.b16 %v1627
    %v1693 = vunpack.c.h.b16 %v1627
    %v1694 = vunpack.c.l.b16 %v1628
    %v1695 = vunpack.c.h.b16 %v1628
    %v1696 = vunpack.c.l.b16 %v1629
    %v1697 = vunpack.c.h.b16 %v1629
    %v1698 = vunpack.c.l.b16 %v1630
    %v1699 = vunpack.c.h.b16 %v1630
    %v1700 = vunpack.c.l.b16 %v1631
    %v1701 = vunpack.c.h.b16 %v1631
    %v1702 = vunpack.c.l.b16 %v1632
    %v1703 = vunpack.c.h.b16 %v1632
    %v1704 = vunpack.c.l.b16 %v1633
    %v1705 = vunpack.c.h.b16 %v1633
    %v1706 = vunpack.c.l.b16 %v1634
    %v1707 = vunpack.c.h.b16 %v1634
    %v1708 = vunpack.c.l.b16 %v1635
    %v1709 = vunpack.c.h.b16 %v1635
    %v1710 = vunpack.c.l.b16 %v1636
    %v1711 = vunpack.c.h.b16 %v1636
    %v1712 = vunpack.c.l.b16 %v1637
    %v1713 = vunpack.c.h.b16 %v1637
    %v1714 = vunpack.c.l.b16 %v1638
    %v1715 = vunpack.c.h.b16 %v1638
    %v1716 = vunpack.c.l.b16 %v1639
    %v1717 = vunpack.c.h.b16 %v1639
    %v1718 = vunpack.c.l.b16 %v1640
    %v1719 = vunpack.c.h.b16 %v1640
    %v1720 = vunpack.c.l.b16 %v1641
    %v1721 = vunpack.c.h.b16 %v1641
    %v1722 = vunpack.c.l.b16 %v1642
    %v1723 = vunpack.c.h.b16 %v1642
    %v1724 = vunpack.c.l.b16 %v1643
    %v1725 = vunpack.c.h.b16 %v1643
    %v1726 = vunpack.c.l.b16 %v1644
    %v1727 = vunpack.c.h.b16 %v1644
    %v1728 = vunpack.c.l.b16 %v1645
    %v1729 = vunpack.c.h.b16 %v1645
    %v1730 = vunpack.c.l.b16 %v1646
    %v1731 = vunpack.c.h.b16 %v1646
    %v1732 = vunpack.c.l.b16 %v1647
    %v1733 = vunpack.c.h.b16 %v1647
    %v1734 = vunpack.c.l.b16 %v1648
    %v1735 = vunpack.c.h.b16 %v1648
    %v1736 = vunpack.c.l.b16 %v1649
    %v1737 = vunpack.c.h.b16 %v1649
    %v1738 = vunpack.c.l.b16 %v1650
    %v1739 = vunpack.c.h.b16 %v1650
    %v1740 = vunpack.c.l.b16 %v1651
    %v1741 = vunpack.c.h.b16 %v1651
    %v1742 = vunpack.c.l.b16 %v1652
    %v1743 = vunpack.c.h.b16 %v1652
    %v1744 = vunpack.c.l.b16 %v1653
    %v1745 = vunpack.c.h.b16 %v1653
    %v1746 = vunpack.c.l.b16 %v1654
    %v1747 = vunpack.c.h.b16 %v1654
    %v1748 = vunpack.c.l.b16 %v1655
    %v1749 = vunpack.c.h.b16 %v1655
    %v1750 = vunpack.c.l.b16 %v1656
    %v1751 = vunpack.c.h.b16 %v1656
    %v1752 = vunpack.c.l.b16 %v1657
    %v1753 = vunpack.c.h.b16 %v1657
    %v1754 = vpack.c.b16 %v1694, %v1690
    %v1755 = vpack.c.b16 %v1695, %v1691
    %v1756 = vpack.c.b16 %v1696, %v1692
    %v1757 = vpack.c.b16 %v1697, %v1693
    %v1758 = vpack.c.b16 %v1702, %v1698
    %v1759 = vpack.c.b16 %v1703, %v1699
    %v1760 = vpack.c.b16 %v1704, %v1700
    %v1761 = vpack.c.b16 %v1705, %v1701
    %v1762 = vpack.c.b16 %v1710, %v1706
    %v1763 = vpack.c.b16 %v1711, %v1707
    %v1764 = vpack.c.b16 %v1712, %v1708
    %v1765 = vpack.c.b16 %v1713, %v1709
    %v1766 = vpack.c.b16 %v1718, %v1714
    %v1767 = vpack.c.b16 %v1719, %v1715
    %v1768 = vpack.c.b16 %v1720, %v1716
    %v1769 = vpack.c.b16 %v1721, %v1717
    %v1770 = vpack.c.b16 %v1726, %v1722
    %v1771 = vpack.c.b16 %v1727, %v1723
    %v1772 = vpack.c.b16 %v1728, %v1724
    %v1773 = vpack.c.b16 %v1729, %v1725
    %v1774 = vpack.c.b16 %v1734, %v1730
    %v1775 = vpack.c.b16 %v1735, %v1731
    %v1776 = vpack.c.b16 %v1736, %v1732
    %v1777 = vpack.c.b16 %v1737, %v1733
    %v1778 = vpack.c.b16 %v1742, %v1738
    %v1779 = vpack.c.b16 %v1743, %v1739
    %v1780 = vpack.c.b16 %v1744, %v1740
    %v1781 = vpack.c.b16 %v1745, %v1741
    %v1782 = vpack.c.b16 %v1750, %v1746
    %v1783 = vpack.c.b16 %v1751, %v1747
    %v1784 = vpack.c.b16 %v1752, %v1748
    %v1785 = vpack.c.b16 %v1753, %v1749
    %1818 = vmatpush.bf16.msra.mxu0 %v1782
    %1819 = vmatpush.bf16.msra.mxu0 %v1778
    %1820 = vmatpush.bf16.msra.mxu0 %v1774
    %1821 = vmatpush.bf16.msra.mxu0 %v1770
    %1822 = vmatpush.bf16.msra.mxu0 %v1766
    %1823 = vmatpush.bf16.msra.mxu0 %v1762
    %1824 = vmatpush.bf16.msra.mxu0 %v1758
    %1825 = vmatpush.bf16.msra.mxu0 %v1754
    %1826 = vmatmul.bf16.gmra.mxu0 %v1625
    %v1827 = vpop.f32.mrf.mxu0
    %v1828 = vadd.f32 0.0, %v1827
    %v1829 = vpop.f32.mrf.mxu0
    %v1830 = vadd.f32 0.0, %v1829
    %1831 = vdwg.mxu0
    %1832 = vmatpush.bf16.msra.mxu0 %v1783
    %1833 = vmatpush.bf16.msra.mxu0 %v1779
    %1834 = vmatpush.bf16.msra.mxu0 %v1775
    %1835 = vmatpush.bf16.msra.mxu0 %v1771
    %1836 = vmatpush.bf16.msra.mxu0 %v1767
    %1837 = vmatpush.bf16.msra.mxu0 %v1763
    %1838 = vmatpush.bf16.msra.mxu0 %v1759
    %1839 = vmatpush.bf16.msra.mxu0 %v1755
    %1840 = vmatmul.bf16.gmra.mxu0 %v1625
    %v1841 = vpop.f32.mrf.mxu0
    %v1842 = vadd.f32 0.0, %v1841
    %v1843 = vpop.f32.mrf.mxu0
    %v1844 = vadd.f32 0.0, %v1843
    %1845 = vdwg.mxu0
    %1846 = vmatpush.bf16.msra.mxu0 %v1784
    %1847 = vmatpush.bf16.msra.mxu0 %v1780
    %1848 = vmatpush.bf16.msra.mxu0 %v1776
    %1849 = vmatpush.bf16.msra.mxu0 %v1772
    %1850 = vmatpush.bf16.msra.mxu0 %v1768
    %1851 = vmatpush.bf16.msra.mxu0 %v1764
    %1852 = vmatpush.bf16.msra.mxu0 %v1760
    %1853 = vmatpush.bf16.msra.mxu0 %v1756
    %1854 = vmatmul.bf16.gmra.mxu0 %v1625
    %v1855 = vpop.f32.mrf.mxu0
    %v1856 = vadd.f32 0.0, %v1855
    %v1857 = vpop.f32.mrf.mxu0
    %v1858 = vadd.f32 0.0, %v1857
    %1859 = vdwg.mxu0
    %1860 = vmatpush.bf16.msra.mxu0 %v1785
    %1861 = vmatpush.bf16.msra.mxu0 %v1781
    %1862 = vmatpush.bf16.msra.mxu0 %v1777
    %1863 = vmatpush.bf16.msra.mxu0 %v1773
    %1864 = vmatpush.bf16.msra.mxu0 %v1769
    %1865 = vmatpush.bf16.msra.mxu0 %v1765
    %1866 = vmatpush.bf16.msra.mxu0 %v1761
    %1867 = vmatpush.bf16.msra.mxu0 %v1757
    %1868 = vmatmul.bf16.gmra.mxu0 %v1625
    %v1869 = vpop.f32.mrf.mxu0
    %v1870 = vadd.f32 0.0, %v1869
    %v1871 = vpop.f32.mrf.mxu0
    %v1872 = vadd.f32 0.0, %v1871
    %1873 = vdwg.mxu0
    %v1874 = vadd.f32 %v1615, %v1828
    %v1875 = vadd.f32 %v1616, %v1842
    %v1876 = vadd.f32 %v1617, %v1856
    %v1877 = vadd.f32 %v1618, %v1870
    %v1878 = vadd.f32 %v1619, %v1830
    %v1879 = vadd.f32 %v1620, %v1844
    %v1880 = vadd.f32 %v1621, %v1858
    %v1881 = vadd.f32 %v1622, %v1872
    %v1882 = vld [vmem:[#allocation3] sm:$0xff]
    %v1883 = vld [vmem:[#allocation3 + $0x8] sm:$0xff]
    %v1884 = vxor.u32 %v1874, 2147483648
    %v1885 = vxor.u32 %v1878, 2147483648
    %v1886 = vmul.f32 %v1884, 1.442695
    %v1887 = vpow.pop %v1886
    %v1888 = vmul.f32 %v1885, 1.442695
    %v1889 = vpow.pop %v1888
    %v1890 = vadd.f32 %v1887, 1.0
    %v1891 = vadd.f32 %v1889, 1.0
    %v1892 = vrcp.pop %v1890
    %v1893 = vmul.f32 %v1890, %v1892
    %v1894 = vsub.f32 1.0, %v1893
    %v1895 = vmul.f32 %v1892, %v1894
    %v1896 = vadd.f32 %v1892, %v1895
    %vm1897 = vweird.f32 %v1890
    %vm1898 = vweird.f32 %v1892
    %vm1899 = vmor %vm1897, %vm1898
    %v1900 = vsel %vm1899, %v1892, %v1896
    %v1901 = vand.u32 2147483647, %v1890
    %vm1902 = vcmp.eq.f32.partialorder %v1901, 8.507059e+37
    %v1903 = vand.u32 %v1890, 2147483648
    %v1904 = vor.u32 1.1754944e-38, %v1903
    %v1905 = vsel %vm1902, %v1904, %v1900
    %v1906 = vmul.f32 1.0, %v1905
    %v1907 = vrcp.pop %v1891
    %v1908 = vmul.f32 %v1891, %v1907
    %v1909 = vsub.f32 1.0, %v1908
    %v1910 = vmul.f32 %v1907, %v1909
    %v1911 = vadd.f32 %v1907, %v1910
    %vm1912 = vweird.f32 %v1891
    %vm1913 = vweird.f32 %v1907
    %vm1914 = vmor %vm1912, %vm1913
    %v1915 = vsel %vm1914, %v1907, %v1911
    %v1916 = vand.u32 2147483647, %v1891
    %vm1917 = vcmp.eq.f32.partialorder %v1916, 8.507059e+37
    %v1918 = vand.u32 %v1891, 2147483648
    %v1919 = vor.u32 1.1754944e-38, %v1918
    %v1920 = vsel %vm1917, %v1919, %v1915
    %v1921 = vmul.f32 1.0, %v1920
    %v1922 = vxor.u32 %v1875, 2147483648
    %v1923 = vxor.u32 %v1879, 2147483648
    %v1924 = vmul.f32 %v1922, 1.442695
    %v1925 = vpow.pop %v1924
    %v1926 = vmul.f32 %v1923, 1.442695
    %v1927 = vpow.pop %v1926
    %v1928 = vadd.f32 %v1925, 1.0
    %v1929 = vadd.f32 %v1927, 1.0
    %v1930 = vrcp.pop %v1928
    %v1931 = vmul.f32 %v1928, %v1930
    %v1932 = vsub.f32 1.0, %v1931
    %v1933 = vmul.f32 %v1930, %v1932
    %v1934 = vadd.f32 %v1930, %v1933
    %vm1935 = vweird.f32 %v1928
    %vm1936 = vweird.f32 %v1930
    %vm1937 = vmor %vm1935, %vm1936
    %v1938 = vsel %vm1937, %v1930, %v1934
    %v1939 = vand.u32 2147483647, %v1928
    %vm1940 = vcmp.eq.f32.partialorder %v1939, 8.507059e+37
    %v1941 = vand.u32 %v1928, 2147483648
    %v1942 = vor.u32 1.1754944e-38, %v1941
    %v1943 = vsel %vm1940, %v1942, %v1938
    %v1944 = vmul.f32 1.0, %v1943
    %v1945 = vrcp.pop %v1929
    %v1946 = vmul.f32 %v1929, %v1945
    %v1947 = vsub.f32 1.0, %v1946
    %v1948 = vmul.f32 %v1945, %v1947
    %v1949 = vadd.f32 %v1945, %v1948
    %vm1950 = vweird.f32 %v1929
    %vm1951 = vweird.f32 %v1945
    %vm1952 = vmor %vm1950, %vm1951
    %v1953 = vsel %vm1952, %v1945, %v1949
    %v1954 = vand.u32 2147483647, %v1929
    %vm1955 = vcmp.eq.f32.partialorder %v1954, 8.507059e+37
    %v1956 = vand.u32 %v1929, 2147483648
    %v1957 = vor.u32 1.1754944e-38, %v1956
    %v1958 = vsel %vm1955, %v1957, %v1953
    %v1959 = vmul.f32 1.0, %v1958
    %v1960 = vtanh.pop %v1876
    %v1961 = vtanh.pop %v1880
    %v1962 = vxor.u32 %v1877, 2147483648
    %v1963 = vxor.u32 %v1881, 2147483648
    %v1964 = vmul.f32 %v1962, 1.442695
    %v1965 = vpow.pop %v1964
    %v1966 = vmul.f32 %v1963, 1.442695
    %v1967 = vpow.pop %v1966
    %v1968 = vadd.f32 %v1965, 1.0
    %v1969 = vadd.f32 %v1967, 1.0
    %v1970 = vrcp.pop %v1968
    %v1971 = vmul.f32 %v1968, %v1970
    %v1972 = vsub.f32 1.0, %v1971
    %v1973 = vmul.f32 %v1970, %v1972
    %v1974 = vadd.f32 %v1970, %v1973
    %vm1975 = vweird.f32 %v1968
    %vm1976 = vweird.f32 %v1970
    %vm1977 = vmor %vm1975, %vm1976
    %v1978 = vsel %vm1977, %v1970, %v1974
    %v1979 = vand.u32 2147483647, %v1968
    %vm1980 = vcmp.eq.f32.partialorder %v1979, 8.507059e+37
    %v1981 = vand.u32 %v1968, 2147483648
    %v1982 = vor.u32 1.1754944e-38, %v1981
    %v1983 = vsel %vm1980, %v1982, %v1978
    %v1984 = vmul.f32 1.0, %v1983
    %v1985 = vrcp.pop %v1969
    %v1986 = vmul.f32 %v1969, %v1985
    %v1987 = vsub.f32 1.0, %v1986
    %v1988 = vmul.f32 %v1985, %v1987
    %v1989 = vadd.f32 %v1985, %v1988
    %vm1990 = vweird.f32 %v1969
    %vm1991 = vweird.f32 %v1985
    %vm1992 = vmor %vm1990, %vm1991
    %v1993 = vsel %vm1992, %v1985, %v1989
    %v1994 = vand.u32 2147483647, %v1969
    %vm1995 = vcmp.eq.f32.partialorder %v1994, 8.507059e+37
    %v1996 = vand.u32 %v1969, 2147483648
    %v1997 = vor.u32 1.1754944e-38, %v1996
    %v1998 = vsel %vm1995, %v1997, %v1993
    %v1999 = vmul.f32 1.0, %v1998
    %v2000 = vmul.f32 %v1944, %v1882
    %v2001 = vmul.f32 %v1959, %v1883
    %v2002 = vmul.f32 %v1906, %v1960
    %v2003 = vmul.f32 %v1921, %v1961
    %v2004 = vadd.f32 %v2000, %v2002
    %v2005 = vadd.f32 %v2001, %v2003
    %v2006 = vtanh.pop %v2004
    %v2007 = vtanh.pop %v2005
    %v2008 = vmul.f32 %v1984, %v2006
    %v2009 = vmul.f32 %v1999, %v2007
    %2010 = vst [vmem:[#allocation2] sm:$0xff] %v2008
    %2011 = vst [vmem:[#allocation2 + $0x8] sm:$0xff] %v2009
    %2012 = vst [vmem:[#allocation3] sm:$0xff] %v2004
    %2013 = vst [vmem:[#allocation3 + $0x8] sm:$0xff] %v2005
    %v2014 = vpack.c.bf16 %v2008, %v2008
    %v2015 = vpack.c.bf16 %v2009, %v2009
    %s2016 = scalar_lea.vmem [#allocation14], 8
    %2017 = vst [vmem:[%s2016] sm:$0xf] %v2014
    %2018 = vst [vmem:[%s2016 + $0x4] sm:$0xf] %v2015
    %v2019 = vld [vmem:[#allocation4] sm:$0xff]
    %v2020 = vld [vmem:[#allocation4 + $0x8] sm:$0xff]
    %v2021 = vld [vmem:[#allocation5] sm:$0xff]
    %v2022 = vld [vmem:[#allocation5 + $0x8] sm:$0xff]
    %s2023 = smul.u32 12, 4
    %s2024 = smul.addr %s2023, 8
    %s2025 = scalar_lea.vmem [#allocation7], %s2024
    %v2026 = vld [vmem:[%s2025] sm:$0xff]
    %v2027 = vld [vmem:[%s2025 + $0x8] sm:$0xff]
    %v2028 = vld [vmem:[%s2025 + $0x10] sm:$0xff]
    %v2029 = vld [vmem:[%s2025 + $0x18] sm:$0xff]
    %v2030 = vld [vmem:[%s2025 + $0x20] sm:$0xff]
    %v2031 = vld [vmem:[%s2025 + $0x28] sm:$0xff]
    %v2032 = vld [vmem:[%s2025 + $0x30] sm:$0xff]
    %v2033 = vld [vmem:[%s2025 + $0x38] sm:$0xff]
    %v2034 = vpack.c.bf16 %v2020, %v2019
    %v2035 = vld [vmem:[#allocation13] sm:$0xff]
    %v2036 = vld [vmem:[#allocation13 + $0x8] sm:$0xff]
    %v2037 = vld [vmem:[#allocation13 + $0x10] sm:$0xff]
    %v2038 = vld [vmem:[#allocation13 + $0x18] sm:$0xff]
    %v2039 = vld [vmem:[#allocation13 + $0x20] sm:$0xff]
    %v2040 = vld [vmem:[#allocation13 + $0x28] sm:$0xff]
    %v2041 = vld [vmem:[#allocation13 + $0x30] sm:$0xff]
    %v2042 = vld [vmem:[#allocation13 + $0x38] sm:$0xff]
    %v2043 = vld [vmem:[#allocation13 + $0x40] sm:$0xff]
    %v2044 = vld [vmem:[#allocation13 + $0x48] sm:$0xff]
    %v2045 = vld [vmem:[#allocation13 + $0x50] sm:$0xff]
    %v2046 = vld [vmem:[#allocation13 + $0x58] sm:$0xff]
    %v2047 = vld [vmem:[#allocation13 + $0x60] sm:$0xff]
    %v2048 = vld [vmem:[#allocation13 + $0x68] sm:$0xff]
    %v2049 = vld [vmem:[#allocation13 + $0x70] sm:$0xff]
    %v2050 = vld [vmem:[#allocation13 + $0x78] sm:$0xff]
    %v2051 = vld [vmem:[#allocation13 + $0x80] sm:$0xff]
    %v2052 = vld [vmem:[#allocation13 + $0x88] sm:$0xff]
    %v2053 = vld [vmem:[#allocation13 + $0x90] sm:$0xff]
    %v2054 = vld [vmem:[#allocation13 + $0x98] sm:$0xff]
    %v2055 = vld [vmem:[#allocation13 + $0xa0] sm:$0xff]
    %v2056 = vld [vmem:[#allocation13 + $0xa8] sm:$0xff]
    %v2057 = vld [vmem:[#allocation13 + $0xb0] sm:$0xff]
    %v2058 = vld [vmem:[#allocation13 + $0xb8] sm:$0xff]
    %v2059 = vld [vmem:[#allocation13 + $0xc0] sm:$0xff]
    %v2060 = vld [vmem:[#allocation13 + $0xc8] sm:$0xff]
    %v2061 = vld [vmem:[#allocation13 + $0xd0] sm:$0xff]
    %v2062 = vld [vmem:[#allocation13 + $0xd8] sm:$0xff]
    %v2063 = vld [vmem:[#allocation13 + $0xe0] sm:$0xff]
    %v2064 = vld [vmem:[#allocation13 + $0xe8] sm:$0xff]
    %v2065 = vld [vmem:[#allocation13 + $0xf0] sm:$0xff]
    %v2066 = vld [vmem:[#allocation13 + $0xf8] sm:$0xff]
    %v2099 = vunpack.c.l.b16 %v2035
    %v2100 = vunpack.c.h.b16 %v2035
    %v2101 = vunpack.c.l.b16 %v2036
    %v2102 = vunpack.c.h.b16 %v2036
    %v2103 = vunpack.c.l.b16 %v2037
    %v2104 = vunpack.c.h.b16 %v2037
    %v2105 = vunpack.c.l.b16 %v2038
    %v2106 = vunpack.c.h.b16 %v2038
    %v2107 = vunpack.c.l.b16 %v2039
    %v2108 = vunpack.c.h.b16 %v2039
    %v2109 = vunpack.c.l.b16 %v2040
    %v2110 = vunpack.c.h.b16 %v2040
    %v2111 = vunpack.c.l.b16 %v2041
    %v2112 = vunpack.c.h.b16 %v2041
    %v2113 = vunpack.c.l.b16 %v2042
    %v2114 = vunpack.c.h.b16 %v2042
    %v2115 = vunpack.c.l.b16 %v2043
    %v2116 = vunpack.c.h.b16 %v2043
    %v2117 = vunpack.c.l.b16 %v2044
    %v2118 = vunpack.c.h.b16 %v2044
    %v2119 = vunpack.c.l.b16 %v2045
    %v2120 = vunpack.c.h.b16 %v2045
    %v2121 = vunpack.c.l.b16 %v2046
    %v2122 = vunpack.c.h.b16 %v2046
    %v2123 = vunpack.c.l.b16 %v2047
    %v2124 = vunpack.c.h.b16 %v2047
    %v2125 = vunpack.c.l.b16 %v2048
    %v2126 = vunpack.c.h.b16 %v2048
    %v2127 = vunpack.c.l.b16 %v2049
    %v2128 = vunpack.c.h.b16 %v2049
    %v2129 = vunpack.c.l.b16 %v2050
    %v2130 = vunpack.c.h.b16 %v2050
    %v2131 = vunpack.c.l.b16 %v2051
    %v2132 = vunpack.c.h.b16 %v2051
    %v2133 = vunpack.c.l.b16 %v2052
    %v2134 = vunpack.c.h.b16 %v2052
    %v2135 = vunpack.c.l.b16 %v2053
    %v2136 = vunpack.c.h.b16 %v2053
    %v2137 = vunpack.c.l.b16 %v2054
    %v2138 = vunpack.c.h.b16 %v2054
    %v2139 = vunpack.c.l.b16 %v2055
    %v2140 = vunpack.c.h.b16 %v2055
    %v2141 = vunpack.c.l.b16 %v2056
    %v2142 = vunpack.c.h.b16 %v2056
    %v2143 = vunpack.c.l.b16 %v2057
    %v2144 = vunpack.c.h.b16 %v2057
    %v2145 = vunpack.c.l.b16 %v2058
    %v2146 = vunpack.c.h.b16 %v2058
    %v2147 = vunpack.c.l.b16 %v2059
    %v2148 = vunpack.c.h.b16 %v2059
    %v2149 = vunpack.c.l.b16 %v2060
    %v2150 = vunpack.c.h.b16 %v2060
    %v2151 = vunpack.c.l.b16 %v2061
    %v2152 = vunpack.c.h.b16 %v2061
    %v2153 = vunpack.c.l.b16 %v2062
    %v2154 = vunpack.c.h.b16 %v2062
    %v2155 = vunpack.c.l.b16 %v2063
    %v2156 = vunpack.c.h.b16 %v2063
    %v2157 = vunpack.c.l.b16 %v2064
    %v2158 = vunpack.c.h.b16 %v2064
    %v2159 = vunpack.c.l.b16 %v2065
    %v2160 = vunpack.c.h.b16 %v2065
    %v2161 = vunpack.c.l.b16 %v2066
    %v2162 = vunpack.c.h.b16 %v2066
    %v2163 = vpack.c.b16 %v2103, %v2099
    %v2164 = vpack.c.b16 %v2104, %v2100
    %v2165 = vpack.c.b16 %v2105, %v2101
    %v2166 = vpack.c.b16 %v2106, %v2102
    %v2167 = vpack.c.b16 %v2111, %v2107
    %v2168 = vpack.c.b16 %v2112, %v2108
    %v2169 = vpack.c.b16 %v2113, %v2109
    %v2170 = vpack.c.b16 %v2114, %v2110
    %v2171 = vpack.c.b16 %v2119, %v2115
    %v2172 = vpack.c.b16 %v2120, %v2116
    %v2173 = vpack.c.b16 %v2121, %v2117
    %v2174 = vpack.c.b16 %v2122, %v2118
    %v2175 = vpack.c.b16 %v2127, %v2123
    %v2176 = vpack.c.b16 %v2128, %v2124
    %v2177 = vpack.c.b16 %v2129, %v2125
    %v2178 = vpack.c.b16 %v2130, %v2126
    %v2179 = vpack.c.b16 %v2135, %v2131
    %v2180 = vpack.c.b16 %v2136, %v2132
    %v2181 = vpack.c.b16 %v2137, %v2133
    %v2182 = vpack.c.b16 %v2138, %v2134
    %v2183 = vpack.c.b16 %v2143, %v2139
    %v2184 = vpack.c.b16 %v2144, %v2140
    %v2185 = vpack.c.b16 %v2145, %v2141
    %v2186 = vpack.c.b16 %v2146, %v2142
    %v2187 = vpack.c.b16 %v2151, %v2147
    %v2188 = vpack.c.b16 %v2152, %v2148
    %v2189 = vpack.c.b16 %v2153, %v2149
    %v2190 = vpack.c.b16 %v2154, %v2150
    %v2191 = vpack.c.b16 %v2159, %v2155
    %v2192 = vpack.c.b16 %v2160, %v2156
    %v2193 = vpack.c.b16 %v2161, %v2157
    %v2194 = vpack.c.b16 %v2162, %v2158
    %2227 = vmatpush.bf16.msra.mxu0 %v2191
    %2228 = vmatpush.bf16.msra.mxu0 %v2187
    %2229 = vmatpush.bf16.msra.mxu0 %v2183
    %2230 = vmatpush.bf16.msra.mxu0 %v2179
    %2231 = vmatpush.bf16.msra.mxu0 %v2175
    %2232 = vmatpush.bf16.msra.mxu0 %v2171
    %2233 = vmatpush.bf16.msra.mxu0 %v2167
    %2234 = vmatpush.bf16.msra.mxu0 %v2163
    %2235 = vmatmul.bf16.gmra.mxu0 %v2034
    %v2236 = vpop.f32.mrf.mxu0
    %v2237 = vadd.f32 0.0, %v2236
    %v2238 = vpop.f32.mrf.mxu0
    %v2239 = vadd.f32 0.0, %v2238
    %2240 = vdwg.mxu0
    %2241 = vmatpush.bf16.msra.mxu0 %v2192
    %2242 = vmatpush.bf16.msra.mxu0 %v2188
    %2243 = vmatpush.bf16.msra.mxu0 %v2184
    %2244 = vmatpush.bf16.msra.mxu0 %v2180
    %2245 = vmatpush.bf16.msra.mxu0 %v2176
    %2246 = vmatpush.bf16.msra.mxu0 %v2172
    %2247 = vmatpush.bf16.msra.mxu0 %v2168
    %2248 = vmatpush.bf16.msra.mxu0 %v2164
    %2249 = vmatmul.bf16.gmra.mxu0 %v2034
    %v2250 = vpop.f32.mrf.mxu0
    %v2251 = vadd.f32 0.0, %v2250
    %v2252 = vpop.f32.mrf.mxu0
    %v2253 = vadd.f32 0.0, %v2252
    %2254 = vdwg.mxu0
    %2255 = vmatpush.bf16.msra.mxu0 %v2193
    %2256 = vmatpush.bf16.msra.mxu0 %v2189
    %2257 = vmatpush.bf16.msra.mxu0 %v2185
    %2258 = vmatpush.bf16.msra.mxu0 %v2181
    %2259 = vmatpush.bf16.msra.mxu0 %v2177
    %2260 = vmatpush.bf16.msra.mxu0 %v2173
    %2261 = vmatpush.bf16.msra.mxu0 %v2169
    %2262 = vmatpush.bf16.msra.mxu0 %v2165
    %2263 = vmatmul.bf16.gmra.mxu0 %v2034
    %v2264 = vpop.f32.mrf.mxu0
    %v2265 = vadd.f32 0.0, %v2264
    %v2266 = vpop.f32.mrf.mxu0
    %v2267 = vadd.f32 0.0, %v2266
    %2268 = vdwg.mxu0
    %2269 = vmatpush.bf16.msra.mxu0 %v2194
    %2270 = vmatpush.bf16.msra.mxu0 %v2190
    %2271 = vmatpush.bf16.msra.mxu0 %v2186
    %2272 = vmatpush.bf16.msra.mxu0 %v2182
    %2273 = vmatpush.bf16.msra.mxu0 %v2178
    %2274 = vmatpush.bf16.msra.mxu0 %v2174
    %2275 = vmatpush.bf16.msra.mxu0 %v2170
    %2276 = vmatpush.bf16.msra.mxu0 %v2166
    %2277 = vmatmul.bf16.gmra.mxu0 %v2034
    %v2278 = vpop.f32.mrf.mxu0
    %v2279 = vadd.f32 0.0, %v2278
    %v2280 = vpop.f32.mrf.mxu0
    %v2281 = vadd.f32 0.0, %v2280
    %2282 = vdwg.mxu0
    %v2283 = vadd.f32 %v2026, %v2237
    %v2284 = vadd.f32 %v2027, %v2251
    %v2285 = vadd.f32 %v2028, %v2265
    %v2286 = vadd.f32 %v2029, %v2279
    %v2287 = vadd.f32 %v2030, %v2239
    %v2288 = vadd.f32 %v2031, %v2253
    %v2289 = vadd.f32 %v2032, %v2267
    %v2290 = vadd.f32 %v2033, %v2281
    %v2291 = vxor.u32 %v2283, 2147483648
    %v2292 = vxor.u32 %v2287, 2147483648
    %v2293 = vmul.f32 %v2291, 1.442695
    %v2294 = vpow.pop %v2293
    %v2295 = vmul.f32 %v2292, 1.442695
    %v2296 = vpow.pop %v2295
    %v2297 = vadd.f32 %v2294, 1.0
    %v2298 = vadd.f32 %v2296, 1.0
    %v2299 = vrcp.pop %v2297
    %v2300 = vmul.f32 %v2297, %v2299
    %v2301 = vsub.f32 1.0, %v2300
    %v2302 = vmul.f32 %v2299, %v2301
    %v2303 = vadd.f32 %v2299, %v2302
    %vm2304 = vweird.f32 %v2297
    %vm2305 = vweird.f32 %v2299
    %vm2306 = vmor %vm2304, %vm2305
    %v2307 = vsel %vm2306, %v2299, %v2303
    %v2308 = vand.u32 2147483647, %v2297
    %vm2309 = vcmp.eq.f32.partialorder %v2308, 8.507059e+37
    %v2310 = vand.u32 %v2297, 2147483648
    %v2311 = vor.u32 1.1754944e-38, %v2310
    %v2312 = vsel %vm2309, %v2311, %v2307
    %v2313 = vmul.f32 1.0, %v2312
    %v2314 = vrcp.pop %v2298
    %v2315 = vmul.f32 %v2298, %v2314
    %v2316 = vsub.f32 1.0, %v2315
    %v2317 = vmul.f32 %v2314, %v2316
    %v2318 = vadd.f32 %v2314, %v2317
    %vm2319 = vweird.f32 %v2298
    %vm2320 = vweird.f32 %v2314
    %vm2321 = vmor %vm2319, %vm2320
    %v2322 = vsel %vm2321, %v2314, %v2318
    %v2323 = vand.u32 2147483647, %v2298
    %vm2324 = vcmp.eq.f32.partialorder %v2323, 8.507059e+37
    %v2325 = vand.u32 %v2298, 2147483648
    %v2326 = vor.u32 1.1754944e-38, %v2325
    %v2327 = vsel %vm2324, %v2326, %v2322
    %v2328 = vmul.f32 1.0, %v2327
    %v2329 = vxor.u32 %v2284, 2147483648
    %v2330 = vxor.u32 %v2288, 2147483648
    %v2331 = vmul.f32 %v2329, 1.442695
    %v2332 = vpow.pop %v2331
    %v2333 = vmul.f32 %v2330, 1.442695
    %v2334 = vpow.pop %v2333
    %v2335 = vadd.f32 %v2332, 1.0
    %v2336 = vadd.f32 %v2334, 1.0
    %v2337 = vrcp.pop %v2335
    %v2338 = vmul.f32 %v2335, %v2337
    %v2339 = vsub.f32 1.0, %v2338
    %v2340 = vmul.f32 %v2337, %v2339
    %v2341 = vadd.f32 %v2337, %v2340
    %vm2342 = vweird.f32 %v2335
    %vm2343 = vweird.f32 %v2337
    %vm2344 = vmor %vm2342, %vm2343
    %v2345 = vsel %vm2344, %v2337, %v2341
    %v2346 = vand.u32 2147483647, %v2335
    %vm2347 = vcmp.eq.f32.partialorder %v2346, 8.507059e+37
    %v2348 = vand.u32 %v2335, 2147483648
    %v2349 = vor.u32 1.1754944e-38, %v2348
    %v2350 = vsel %vm2347, %v2349, %v2345
    %v2351 = vmul.f32 1.0, %v2350
    %v2352 = vrcp.pop %v2336
    %v2353 = vmul.f32 %v2336, %v2352
    %v2354 = vsub.f32 1.0, %v2353
    %v2355 = vmul.f32 %v2352, %v2354
    %v2356 = vadd.f32 %v2352, %v2355
    %vm2357 = vweird.f32 %v2336
    %vm2358 = vweird.f32 %v2352
    %vm2359 = vmor %vm2357, %vm2358
    %v2360 = vsel %vm2359, %v2352, %v2356
    %v2361 = vand.u32 2147483647, %v2336
    %vm2362 = vcmp.eq.f32.partialorder %v2361, 8.507059e+37
    %v2363 = vand.u32 %v2336, 2147483648
    %v2364 = vor.u32 1.1754944e-38, %v2363
    %v2365 = vsel %vm2362, %v2364, %v2360
    %v2366 = vmul.f32 1.0, %v2365
    %v2367 = vtanh.pop %v2285
    %v2368 = vtanh.pop %v2289
    %v2369 = vxor.u32 %v2286, 2147483648
    %v2370 = vxor.u32 %v2290, 2147483648
    %v2371 = vmul.f32 %v2369, 1.442695
    %v2372 = vpow.pop %v2371
    %v2373 = vmul.f32 %v2370, 1.442695
    %v2374 = vpow.pop %v2373
    %v2375 = vadd.f32 %v2372, 1.0
    %v2376 = vadd.f32 %v2374, 1.0
    %v2377 = vrcp.pop %v2375
    %v2378 = vmul.f32 %v2375, %v2377
    %v2379 = vsub.f32 1.0, %v2378
    %v2380 = vmul.f32 %v2377, %v2379
    %v2381 = vadd.f32 %v2377, %v2380
    %vm2382 = vweird.f32 %v2375
    %vm2383 = vweird.f32 %v2377
    %vm2384 = vmor %vm2382, %vm2383
    %v2385 = vsel %vm2384, %v2377, %v2381
    %v2386 = vand.u32 2147483647, %v2375
    %vm2387 = vcmp.eq.f32.partialorder %v2386, 8.507059e+37
    %v2388 = vand.u32 %v2375, 2147483648
    %v2389 = vor.u32 1.1754944e-38, %v2388
    %v2390 = vsel %vm2387, %v2389, %v2385
    %v2391 = vmul.f32 1.0, %v2390
    %v2392 = vrcp.pop %v2376
    %v2393 = vmul.f32 %v2376, %v2392
    %v2394 = vsub.f32 1.0, %v2393
    %v2395 = vmul.f32 %v2392, %v2394
    %v2396 = vadd.f32 %v2392, %v2395
    %vm2397 = vweird.f32 %v2376
    %vm2398 = vweird.f32 %v2392
    %vm2399 = vmor %vm2397, %vm2398
    %v2400 = vsel %vm2399, %v2392, %v2396
    %v2401 = vand.u32 2147483647, %v2376
    %vm2402 = vcmp.eq.f32.partialorder %v2401, 8.507059e+37
    %v2403 = vand.u32 %v2376, 2147483648
    %v2404 = vor.u32 1.1754944e-38, %v2403
    %v2405 = vsel %vm2402, %v2404, %v2400
    %v2406 = vmul.f32 1.0, %v2405
    %v2407 = vmul.f32 %v2351, %v2021
    %v2408 = vmul.f32 %v2366, %v2022
    %v2409 = vmul.f32 %v2313, %v2367
    %v2410 = vmul.f32 %v2328, %v2368
    %v2411 = vadd.f32 %v2407, %v2409
    %v2412 = vadd.f32 %v2408, %v2410
    %v2413 = vtanh.pop %v2411
    %v2414 = vtanh.pop %v2412
    %v2415 = vmul.f32 %v2391, %v2413
    %v2416 = vmul.f32 %v2406, %v2414
    %2417 = vst [vmem:[#allocation4] sm:$0xff] %v2415
    %2418 = vst [vmem:[#allocation4 + $0x8] sm:$0xff] %v2416
    %2419 = vst [vmem:[#allocation5] sm:$0xff] %v2411
    %2420 = vst [vmem:[#allocation5 + $0x8] sm:$0xff] %v2412
    %v2421 = vpack.c.bf16 %v2415, %v2415
    %v2422 = vpack.c.bf16 %v2416, %v2416
    %s2423 = scalar_lea.vmem [#allocation15], 48
    %2424 = vst [vmem:[%s2423] sm:$0xf] %v2421
    %2425 = vst [vmem:[%s2423 + $0x4] sm:$0xf] %v2422
    %s2426 = smul.u32 4, 4
    %s2427 = smul.addr %s2426, 8
    %s2428 = scalar_lea.vmem [#allocation6], %s2427
    %v2429 = vld [vmem:[%s2428] sm:$0xff]
    %v2430 = vld [vmem:[%s2428 + $0x8] sm:$0xff]
    %v2431 = vld [vmem:[%s2428 + $0x10] sm:$0xff]
    %v2432 = vld [vmem:[%s2428 + $0x18] sm:$0xff]
    %v2433 = vld [vmem:[%s2428 + $0x20] sm:$0xff]
    %v2434 = vld [vmem:[%s2428 + $0x28] sm:$0xff]
    %v2435 = vld [vmem:[%s2428 + $0x30] sm:$0xff]
    %v2436 = vld [vmem:[%s2428 + $0x38] sm:$0xff]
    %v2437 = vld [vmem:[#allocation2] sm:$0xff]
    %v2438 = vld [vmem:[#allocation2 + $0x8] sm:$0xff]
    %v2439 = vpack.c.bf16 %v2438, %v2437
    %v2440 = vld [vmem:[%s4] sm:$0xff]
    %v2441 = vld [vmem:[%s4 + $0x8] sm:$0xff]
    %v2442 = vld [vmem:[%s4 + $0x10] sm:$0xff]
    %v2443 = vld [vmem:[%s4 + $0x18] sm:$0xff]
    %v2444 = vld [vmem:[%s4 + $0x20] sm:$0xff]
    %v2445 = vld [vmem:[%s4 + $0x28] sm:$0xff]
    %v2446 = vld [vmem:[%s4 + $0x30] sm:$0xff]
    %v2447 = vld [vmem:[%s4 + $0x38] sm:$0xff]
    %v2448 = vld [vmem:[%s4 + $0x40] sm:$0xff]
    %v2449 = vld [vmem:[%s4 + $0x48] sm:$0xff]
    %v2450 = vld [vmem:[%s4 + $0x50] sm:$0xff]
    %v2451 = vld [vmem:[%s4 + $0x58] sm:$0xff]
    %v2452 = vld [vmem:[%s4 + $0x60] sm:$0xff]
    %v2453 = vld [vmem:[%s4 + $0x68] sm:$0xff]
    %v2454 = vld [vmem:[%s4 + $0x70] sm:$0xff]
    %v2455 = vld [vmem:[%s4 + $0x78] sm:$0xff]
    %v2456 = vld [vmem:[%s4 + $0x80] sm:$0xff]
    %v2457 = vld [vmem:[%s4 + $0x88] sm:$0xff]
    %v2458 = vld [vmem:[%s4 + $0x90] sm:$0xff]
    %v2459 = vld [vmem:[%s4 + $0x98] sm:$0xff]
    %v2460 = vld [vmem:[%s4 + $0xa0] sm:$0xff]
    %v2461 = vld [vmem:[%s4 + $0xa8] sm:$0xff]
    %v2462 = vld [vmem:[%s4 + $0xb0] sm:$0xff]
    %v2463 = vld [vmem:[%s4 + $0xb8] sm:$0xff]
    %v2464 = vld [vmem:[%s4 + $0xc0] sm:$0xff]
    %v2465 = vld [vmem:[%s4 + $0xc8] sm:$0xff]
    %v2466 = vld [vmem:[%s4 + $0xd0] sm:$0xff]
    %v2467 = vld [vmem:[%s4 + $0xd8] sm:$0xff]
    %v2468 = vld [vmem:[%s4 + $0xe0] sm:$0xff]
    %v2469 = vld [vmem:[%s4 + $0xe8] sm:$0xff]
    %v2470 = vld [vmem:[%s4 + $0xf0] sm:$0xff]
    %v2471 = vld [vmem:[%s4 + $0xf8] sm:$0xff]
    %v2504 = vunpack.c.l.b16 %v2440
    %v2505 = vunpack.c.h.b16 %v2440
    %v2506 = vunpack.c.l.b16 %v2441
    %v2507 = vunpack.c.h.b16 %v2441
    %v2508 = vunpack.c.l.b16 %v2442
    %v2509 = vunpack.c.h.b16 %v2442
    %v2510 = vunpack.c.l.b16 %v2443
    %v2511 = vunpack.c.h.b16 %v2443
    %v2512 = vunpack.c.l.b16 %v2444
    %v2513 = vunpack.c.h.b16 %v2444
    %v2514 = vunpack.c.l.b16 %v2445
    %v2515 = vunpack.c.h.b16 %v2445
    %v2516 = vunpack.c.l.b16 %v2446
    %v2517 = vunpack.c.h.b16 %v2446
    %v2518 = vunpack.c.l.b16 %v2447
    %v2519 = vunpack.c.h.b16 %v2447
    %v2520 = vunpack.c.l.b16 %v2448
    %v2521 = vunpack.c.h.b16 %v2448
    %v2522 = vunpack.c.l.b16 %v2449
    %v2523 = vunpack.c.h.b16 %v2449
    %v2524 = vunpack.c.l.b16 %v2450
    %v2525 = vunpack.c.h.b16 %v2450
    %v2526 = vunpack.c.l.b16 %v2451
    %v2527 = vunpack.c.h.b16 %v2451
    %v2528 = vunpack.c.l.b16 %v2452
    %v2529 = vunpack.c.h.b16 %v2452
    %v2530 = vunpack.c.l.b16 %v2453
    %v2531 = vunpack.c.h.b16 %v2453
    %v2532 = vunpack.c.l.b16 %v2454
    %v2533 = vunpack.c.h.b16 %v2454
    %v2534 = vunpack.c.l.b16 %v2455
    %v2535 = vunpack.c.h.b16 %v2455
    %v2536 = vunpack.c.l.b16 %v2456
    %v2537 = vunpack.c.h.b16 %v2456
    %v2538 = vunpack.c.l.b16 %v2457
    %v2539 = vunpack.c.h.b16 %v2457
    %v2540 = vunpack.c.l.b16 %v2458
    %v2541 = vunpack.c.h.b16 %v2458
    %v2542 = vunpack.c.l.b16 %v2459
    %v2543 = vunpack.c.h.b16 %v2459
    %v2544 = vunpack.c.l.b16 %v2460
    %v2545 = vunpack.c.h.b16 %v2460
    %v2546 = vunpack.c.l.b16 %v2461
    %v2547 = vunpack.c.h.b16 %v2461
    %v2548 = vunpack.c.l.b16 %v2462
    %v2549 = vunpack.c.h.b16 %v2462
    %v2550 = vunpack.c.l.b16 %v2463
    %v2551 = vunpack.c.h.b16 %v2463
    %v2552 = vunpack.c.l.b16 %v2464
    %v2553 = vunpack.c.h.b16 %v2464
    %v2554 = vunpack.c.l.b16 %v2465
    %v2555 = vunpack.c.h.b16 %v2465
    %v2556 = vunpack.c.l.b16 %v2466
    %v2557 = vunpack.c.h.b16 %v2466
    %v2558 = vunpack.c.l.b16 %v2467
    %v2559 = vunpack.c.h.b16 %v2467
    %v2560 = vunpack.c.l.b16 %v2468
    %v2561 = vunpack.c.h.b16 %v2468
    %v2562 = vunpack.c.l.b16 %v2469
    %v2563 = vunpack.c.h.b16 %v2469
    %v2564 = vunpack.c.l.b16 %v2470
    %v2565 = vunpack.c.h.b16 %v2470
    %v2566 = vunpack.c.l.b16 %v2471
    %v2567 = vunpack.c.h.b16 %v2471
    %v2568 = vpack.c.b16 %v2508, %v2504
    %v2569 = vpack.c.b16 %v2509, %v2505
    %v2570 = vpack.c.b16 %v2510, %v2506
    %v2571 = vpack.c.b16 %v2511, %v2507
    %v2572 = vpack.c.b16 %v2516, %v2512
    %v2573 = vpack.c.b16 %v2517, %v2513
    %v2574 = vpack.c.b16 %v2518, %v2514
    %v2575 = vpack.c.b16 %v2519, %v2515
    %v2576 = vpack.c.b16 %v2524, %v2520
    %v2577 = vpack.c.b16 %v2525, %v2521
    %v2578 = vpack.c.b16 %v2526, %v2522
    %v2579 = vpack.c.b16 %v2527, %v2523
    %v2580 = vpack.c.b16 %v2532, %v2528
    %v2581 = vpack.c.b16 %v2533, %v2529
    %v2582 = vpack.c.b16 %v2534, %v2530
    %v2583 = vpack.c.b16 %v2535, %v2531
    %v2584 = vpack.c.b16 %v2540, %v2536
    %v2585 = vpack.c.b16 %v2541, %v2537
    %v2586 = vpack.c.b16 %v2542, %v2538
    %v2587 = vpack.c.b16 %v2543, %v2539
    %v2588 = vpack.c.b16 %v2548, %v2544
    %v2589 = vpack.c.b16 %v2549, %v2545
    %v2590 = vpack.c.b16 %v2550, %v2546
    %v2591 = vpack.c.b16 %v2551, %v2547
    %v2592 = vpack.c.b16 %v2556, %v2552
    %v2593 = vpack.c.b16 %v2557, %v2553
    %v2594 = vpack.c.b16 %v2558, %v2554
    %v2595 = vpack.c.b16 %v2559, %v2555
    %v2596 = vpack.c.b16 %v2564, %v2560
    %v2597 = vpack.c.b16 %v2565, %v2561
    %v2598 = vpack.c.b16 %v2566, %v2562
    %v2599 = vpack.c.b16 %v2567, %v2563
    %2632 = vmatpush.bf16.msra.mxu0 %v2596
    %2633 = vmatpush.bf16.msra.mxu0 %v2592
    %2634 = vmatpush.bf16.msra.mxu0 %v2588
    %2635 = vmatpush.bf16.msra.mxu0 %v2584
    %2636 = vmatpush.bf16.msra.mxu0 %v2580
    %2637 = vmatpush.bf16.msra.mxu0 %v2576
    %2638 = vmatpush.bf16.msra.mxu0 %v2572
    %2639 = vmatpush.bf16.msra.mxu0 %v2568
    %2640 = vmatmul.bf16.gmra.mxu0 %v2439
    %v2641 = vpop.f32.mrf.mxu0
    %v2642 = vadd.f32 0.0, %v2641
    %v2643 = vpop.f32.mrf.mxu0
    %v2644 = vadd.f32 0.0, %v2643
    %2645 = vdwg.mxu0
    %2646 = vmatpush.bf16.msra.mxu0 %v2597
    %2647 = vmatpush.bf16.msra.mxu0 %v2593
    %2648 = vmatpush.bf16.msra.mxu0 %v2589
    %2649 = vmatpush.bf16.msra.mxu0 %v2585
    %2650 = vmatpush.bf16.msra.mxu0 %v2581
    %2651 = vmatpush.bf16.msra.mxu0 %v2577
    %2652 = vmatpush.bf16.msra.mxu0 %v2573
    %2653 = vmatpush.bf16.msra.mxu0 %v2569
    %2654 = vmatmul.bf16.gmra.mxu0 %v2439
    %v2655 = vpop.f32.mrf.mxu0
    %v2656 = vadd.f32 0.0, %v2655
    %v2657 = vpop.f32.mrf.mxu0
    %v2658 = vadd.f32 0.0, %v2657
    %2659 = vdwg.mxu0
    %2660 = vmatpush.bf16.msra.mxu0 %v2598
    %2661 = vmatpush.bf16.msra.mxu0 %v2594
    %2662 = vmatpush.bf16.msra.mxu0 %v2590
    %2663 = vmatpush.bf16.msra.mxu0 %v2586
    %2664 = vmatpush.bf16.msra.mxu0 %v2582
    %2665 = vmatpush.bf16.msra.mxu0 %v2578
    %2666 = vmatpush.bf16.msra.mxu0 %v2574
    %2667 = vmatpush.bf16.msra.mxu0 %v2570
    %2668 = vmatmul.bf16.gmra.mxu0 %v2439
    %v2669 = vpop.f32.mrf.mxu0
    %v2670 = vadd.f32 0.0, %v2669
    %v2671 = vpop.f32.mrf.mxu0
    %v2672 = vadd.f32 0.0, %v2671
    %2673 = vdwg.mxu0
    %2674 = vmatpush.bf16.msra.mxu0 %v2599
    %2675 = vmatpush.bf16.msra.mxu0 %v2595
    %2676 = vmatpush.bf16.msra.mxu0 %v2591
    %2677 = vmatpush.bf16.msra.mxu0 %v2587
    %2678 = vmatpush.bf16.msra.mxu0 %v2583
    %2679 = vmatpush.bf16.msra.mxu0 %v2579
    %2680 = vmatpush.bf16.msra.mxu0 %v2575
    %2681 = vmatpush.bf16.msra.mxu0 %v2571
    %2682 = vmatmul.bf16.gmra.mxu0 %v2439
    %v2683 = vpop.f32.mrf.mxu0
    %v2684 = vadd.f32 0.0, %v2683
    %v2685 = vpop.f32.mrf.mxu0
    %v2686 = vadd.f32 0.0, %v2685
    %2687 = vdwg.mxu0
    %v2688 = vadd.f32 %v2429, %v2642
    %v2689 = vadd.f32 %v2430, %v2656
    %v2690 = vadd.f32 %v2431, %v2670
    %v2691 = vadd.f32 %v2432, %v2684
    %v2692 = vadd.f32 %v2433, %v2644
    %v2693 = vadd.f32 %v2434, %v2658
    %v2694 = vadd.f32 %v2435, %v2672
    %v2695 = vadd.f32 %v2436, %v2686
    %v2696 = vld [vmem:[#allocation3] sm:$0xff]
    %v2697 = vld [vmem:[#allocation3 + $0x8] sm:$0xff]
    %v2698 = vxor.u32 %v2688, 2147483648
    %v2699 = vxor.u32 %v2692, 2147483648
    %v2700 = vmul.f32 %v2698, 1.442695
    %v2701 = vpow.pop %v2700
    %v2702 = vmul.f32 %v2699, 1.442695
    %v2703 = vpow.pop %v2702
    %v2704 = vadd.f32 %v2701, 1.0
    %v2705 = vadd.f32 %v2703, 1.0
    %v2706 = vrcp.pop %v2704
    %v2707 = vmul.f32 %v2704, %v2706
    %v2708 = vsub.f32 1.0, %v2707
    %v2709 = vmul.f32 %v2706, %v2708
    %v2710 = vadd.f32 %v2706, %v2709
    %vm2711 = vweird.f32 %v2704
    %vm2712 = vweird.f32 %v2706
    %vm2713 = vmor %vm2711, %vm2712
    %v2714 = vsel %vm2713, %v2706, %v2710
    %v2715 = vand.u32 2147483647, %v2704
    %vm2716 = vcmp.eq.f32.partialorder %v2715, 8.507059e+37
    %v2717 = vand.u32 %v2704, 2147483648
    %v2718 = vor.u32 1.1754944e-38, %v2717
    %v2719 = vsel %vm2716, %v2718, %v2714
    %v2720 = vmul.f32 1.0, %v2719
    %v2721 = vrcp.pop %v2705
    %v2722 = vmul.f32 %v2705, %v2721
    %v2723 = vsub.f32 1.0, %v2722
    %v2724 = vmul.f32 %v2721, %v2723
    %v2725 = vadd.f32 %v2721, %v2724
    %vm2726 = vweird.f32 %v2705
    %vm2727 = vweird.f32 %v2721
    %vm2728 = vmor %vm2726, %vm2727
    %v2729 = vsel %vm2728, %v2721, %v2725
    %v2730 = vand.u32 2147483647, %v2705
    %vm2731 = vcmp.eq.f32.partialorder %v2730, 8.507059e+37
    %v2732 = vand.u32 %v2705, 2147483648
    %v2733 = vor.u32 1.1754944e-38, %v2732
    %v2734 = vsel %vm2731, %v2733, %v2729
    %v2735 = vmul.f32 1.0, %v2734
    %v2736 = vxor.u32 %v2689, 2147483648
    %v2737 = vxor.u32 %v2693, 2147483648
    %v2738 = vmul.f32 %v2736, 1.442695
    %v2739 = vpow.pop %v2738
    %v2740 = vmul.f32 %v2737, 1.442695
    %v2741 = vpow.pop %v2740
    %v2742 = vadd.f32 %v2739, 1.0
    %v2743 = vadd.f32 %v2741, 1.0
    %v2744 = vrcp.pop %v2742
    %v2745 = vmul.f32 %v2742, %v2744
    %v2746 = vsub.f32 1.0, %v2745
    %v2747 = vmul.f32 %v2744, %v2746
    %v2748 = vadd.f32 %v2744, %v2747
    %vm2749 = vweird.f32 %v2742
    %vm2750 = vweird.f32 %v2744
    %vm2751 = vmor %vm2749, %vm2750
    %v2752 = vsel %vm2751, %v2744, %v2748
    %v2753 = vand.u32 2147483647, %v2742
    %vm2754 = vcmp.eq.f32.partialorder %v2753, 8.507059e+37
    %v2755 = vand.u32 %v2742, 2147483648
    %v2756 = vor.u32 1.1754944e-38, %v2755
    %v2757 = vsel %vm2754, %v2756, %v2752
    %v2758 = vmul.f32 1.0, %v2757
    %v2759 = vrcp.pop %v2743
    %v2760 = vmul.f32 %v2743, %v2759
    %v2761 = vsub.f32 1.0, %v2760
    %v2762 = vmul.f32 %v2759, %v2761
    %v2763 = vadd.f32 %v2759, %v2762
    %vm2764 = vweird.f32 %v2743
    %vm2765 = vweird.f32 %v2759
    %vm2766 = vmor %vm2764, %vm2765
    %v2767 = vsel %vm2766, %v2759, %v2763
    %v2768 = vand.u32 2147483647, %v2743
    %vm2769 = vcmp.eq.f32.partialorder %v2768, 8.507059e+37
    %v2770 = vand.u32 %v2743, 2147483648
    %v2771 = vor.u32 1.1754944e-38, %v2770
    %v2772 = vsel %vm2769, %v2771, %v2767
    %v2773 = vmul.f32 1.0, %v2772
    %v2774 = vtanh.pop %v2690
    %v2775 = vtanh.pop %v2694
    %v2776 = vxor.u32 %v2691, 2147483648
    %v2777 = vxor.u32 %v2695, 2147483648
    %v2778 = vmul.f32 %v2776, 1.442695
    %v2779 = vpow.pop %v2778
    %v2780 = vmul.f32 %v2777, 1.442695
    %v2781 = vpow.pop %v2780
    %v2782 = vadd.f32 %v2779, 1.0
    %v2783 = vadd.f32 %v2781, 1.0
    %v2784 = vrcp.pop %v2782
    %v2785 = vmul.f32 %v2782, %v2784
    %v2786 = vsub.f32 1.0, %v2785
    %v2787 = vmul.f32 %v2784, %v2786
    %v2788 = vadd.f32 %v2784, %v2787
    %vm2789 = vweird.f32 %v2782
    %vm2790 = vweird.f32 %v2784
    %vm2791 = vmor %vm2789, %vm2790
    %v2792 = vsel %vm2791, %v2784, %v2788
    %v2793 = vand.u32 2147483647, %v2782
    %vm2794 = vcmp.eq.f32.partialorder %v2793, 8.507059e+37
    %v2795 = vand.u32 %v2782, 2147483648
    %v2796 = vor.u32 1.1754944e-38, %v2795
    %v2797 = vsel %vm2794, %v2796, %v2792
    %v2798 = vmul.f32 1.0, %v2797
    %v2799 = vrcp.pop %v2783
    %v2800 = vmul.f32 %v2783, %v2799
    %v2801 = vsub.f32 1.0, %v2800
    %v2802 = vmul.f32 %v2799, %v2801
    %v2803 = vadd.f32 %v2799, %v2802
    %vm2804 = vweird.f32 %v2783
    %vm2805 = vweird.f32 %v2799
    %vm2806 = vmor %vm2804, %vm2805
    %v2807 = vsel %vm2806, %v2799, %v2803
    %v2808 = vand.u32 2147483647, %v2783
    %vm2809 = vcmp.eq.f32.partialorder %v2808, 8.507059e+37
    %v2810 = vand.u32 %v2783, 2147483648
    %v2811 = vor.u32 1.1754944e-38, %v2810
    %v2812 = vsel %vm2809, %v2811, %v2807
    %v2813 = vmul.f32 1.0, %v2812
    %v2814 = vmul.f32 %v2758, %v2696
    %v2815 = vmul.f32 %v2773, %v2697
    %v2816 = vmul.f32 %v2720, %v2774
    %v2817 = vmul.f32 %v2735, %v2775
    %v2818 = vadd.f32 %v2814, %v2816
    %v2819 = vadd.f32 %v2815, %v2817
    %v2820 = vtanh.pop %v2818
    %v2821 = vtanh.pop %v2819
    %v2822 = vmul.f32 %v2798, %v2820
    %v2823 = vmul.f32 %v2813, %v2821
    %2824 = vst [vmem:[#allocation2] sm:$0xff] %v2822
    %2825 = vst [vmem:[#allocation2 + $0x8] sm:$0xff] %v2823
    %2826 = vst [vmem:[#allocation3] sm:$0xff] %v2818
    %2827 = vst [vmem:[#allocation3 + $0x8] sm:$0xff] %v2819
    %v2828 = vpack.c.bf16 %v2822, %v2822
    %v2829 = vpack.c.bf16 %v2823, %v2823
    %s2830 = scalar_lea.vmem [#allocation14], 16
    %2831 = vst [vmem:[%s2830] sm:$0xf] %v2828
    %2832 = vst [vmem:[%s2830 + $0x4] sm:$0xf] %v2829
    %v2833 = vld [vmem:[#allocation4] sm:$0xff]
    %v2834 = vld [vmem:[#allocation4 + $0x8] sm:$0xff]
    %v2835 = vld [vmem:[#allocation5] sm:$0xff]
    %v2836 = vld [vmem:[#allocation5 + $0x8] sm:$0xff]
    %s2837 = smul.u32 10, 4
    %s2838 = smul.addr %s2837, 8
    %s2839 = scalar_lea.vmem [#allocation7], %s2838
    %v2840 = vld [vmem:[%s2839] sm:$0xff]
    %v2841 = vld [vmem:[%s2839 + $0x8] sm:$0xff]
    %v2842 = vld [vmem:[%s2839 + $0x10] sm:$0xff]
    %v2843 = vld [vmem:[%s2839 + $0x18] sm:$0xff]
    %v2844 = vld [vmem:[%s2839 + $0x20] sm:$0xff]
    %v2845 = vld [vmem:[%s2839 + $0x28] sm:$0xff]
    %v2846 = vld [vmem:[%s2839 + $0x30] sm:$0xff]
    %v2847 = vld [vmem:[%s2839 + $0x38] sm:$0xff]
    %v2848 = vpack.c.bf16 %v2834, %v2833
    %v2849 = vld [vmem:[#allocation13] sm:$0xff]
    %v2850 = vld [vmem:[#allocation13 + $0x8] sm:$0xff]
    %v2851 = vld [vmem:[#allocation13 + $0x10] sm:$0xff]
    %v2852 = vld [vmem:[#allocation13 + $0x18] sm:$0xff]
    %v2853 = vld [vmem:[#allocation13 + $0x20] sm:$0xff]
    %v2854 = vld [vmem:[#allocation13 + $0x28] sm:$0xff]
    %v2855 = vld [vmem:[#allocation13 + $0x30] sm:$0xff]
    %v2856 = vld [vmem:[#allocation13 + $0x38] sm:$0xff]
    %v2857 = vld [vmem:[#allocation13 + $0x40] sm:$0xff]
    %v2858 = vld [vmem:[#allocation13 + $0x48] sm:$0xff]
    %v2859 = vld [vmem:[#allocation13 + $0x50] sm:$0xff]
    %v2860 = vld [vmem:[#allocation13 + $0x58] sm:$0xff]
    %v2861 = vld [vmem:[#allocation13 + $0x60] sm:$0xff]
    %v2862 = vld [vmem:[#allocation13 + $0x68] sm:$0xff]
    %v2863 = vld [vmem:[#allocation13 + $0x70] sm:$0xff]
    %v2864 = vld [vmem:[#allocation13 + $0x78] sm:$0xff]
    %v2865 = vld [vmem:[#allocation13 + $0x80] sm:$0xff]
    %v2866 = vld [vmem:[#allocation13 + $0x88] sm:$0xff]
    %v2867 = vld [vmem:[#allocation13 + $0x90] sm:$0xff]
    %v2868 = vld [vmem:[#allocation13 + $0x98] sm:$0xff]
    %v2869 = vld [vmem:[#allocation13 + $0xa0] sm:$0xff]
    %v2870 = vld [vmem:[#allocation13 + $0xa8] sm:$0xff]
    %v2871 = vld [vmem:[#allocation13 + $0xb0] sm:$0xff]
    %v2872 = vld [vmem:[#allocation13 + $0xb8] sm:$0xff]
    %v2873 = vld [vmem:[#allocation13 + $0xc0] sm:$0xff]
    %v2874 = vld [vmem:[#allocation13 + $0xc8] sm:$0xff]
    %v2875 = vld [vmem:[#allocation13 + $0xd0] sm:$0xff]
    %v2876 = vld [vmem:[#allocation13 + $0xd8] sm:$0xff]
    %v2877 = vld [vmem:[#allocation13 + $0xe0] sm:$0xff]
    %v2878 = vld [vmem:[#allocation13 + $0xe8] sm:$0xff]
    %v2879 = vld [vmem:[#allocation13 + $0xf0] sm:$0xff]
    %v2880 = vld [vmem:[#allocation13 + $0xf8] sm:$0xff]
    %v2913 = vunpack.c.l.b16 %v2849
    %v2914 = vunpack.c.h.b16 %v2849
    %v2915 = vunpack.c.l.b16 %v2850
    %v2916 = vunpack.c.h.b16 %v2850
    %v2917 = vunpack.c.l.b16 %v2851
    %v2918 = vunpack.c.h.b16 %v2851
    %v2919 = vunpack.c.l.b16 %v2852
    %v2920 = vunpack.c.h.b16 %v2852
    %v2921 = vunpack.c.l.b16 %v2853
    %v2922 = vunpack.c.h.b16 %v2853
    %v2923 = vunpack.c.l.b16 %v2854
    %v2924 = vunpack.c.h.b16 %v2854
    %v2925 = vunpack.c.l.b16 %v2855
    %v2926 = vunpack.c.h.b16 %v2855
    %v2927 = vunpack.c.l.b16 %v2856
    %v2928 = vunpack.c.h.b16 %v2856
    %v2929 = vunpack.c.l.b16 %v2857
    %v2930 = vunpack.c.h.b16 %v2857
    %v2931 = vunpack.c.l.b16 %v2858
    %v2932 = vunpack.c.h.b16 %v2858
    %v2933 = vunpack.c.l.b16 %v2859
    %v2934 = vunpack.c.h.b16 %v2859
    %v2935 = vunpack.c.l.b16 %v2860
    %v2936 = vunpack.c.h.b16 %v2860
    %v2937 = vunpack.c.l.b16 %v2861
    %v2938 = vunpack.c.h.b16 %v2861
    %v2939 = vunpack.c.l.b16 %v2862
    %v2940 = vunpack.c.h.b16 %v2862
    %v2941 = vunpack.c.l.b16 %v2863
    %v2942 = vunpack.c.h.b16 %v2863
    %v2943 = vunpack.c.l.b16 %v2864
    %v2944 = vunpack.c.h.b16 %v2864
    %v2945 = vunpack.c.l.b16 %v2865
    %v2946 = vunpack.c.h.b16 %v2865
    %v2947 = vunpack.c.l.b16 %v2866
    %v2948 = vunpack.c.h.b16 %v2866
    %v2949 = vunpack.c.l.b16 %v2867
    %v2950 = vunpack.c.h.b16 %v2867
    %v2951 = vunpack.c.l.b16 %v2868
    %v2952 = vunpack.c.h.b16 %v2868
    %v2953 = vunpack.c.l.b16 %v2869
    %v2954 = vunpack.c.h.b16 %v2869
    %v2955 = vunpack.c.l.b16 %v2870
    %v2956 = vunpack.c.h.b16 %v2870
    %v2957 = vunpack.c.l.b16 %v2871
    %v2958 = vunpack.c.h.b16 %v2871
    %v2959 = vunpack.c.l.b16 %v2872
    %v2960 = vunpack.c.h.b16 %v2872
    %v2961 = vunpack.c.l.b16 %v2873
    %v2962 = vunpack.c.h.b16 %v2873
    %v2963 = vunpack.c.l.b16 %v2874
    %v2964 = vunpack.c.h.b16 %v2874
    %v2965 = vunpack.c.l.b16 %v2875
    %v2966 = vunpack.c.h.b16 %v2875
    %v2967 = vunpack.c.l.b16 %v2876
    %v2968 = vunpack.c.h.b16 %v2876
    %v2969 = vunpack.c.l.b16 %v2877
    %v2970 = vunpack.c.h.b16 %v2877
    %v2971 = vunpack.c.l.b16 %v2878
    %v2972 = vunpack.c.h.b16 %v2878
    %v2973 = vunpack.c.l.b16 %v2879
    %v2974 = vunpack.c.h.b16 %v2879
    %v2975 = vunpack.c.l.b16 %v2880
    %v2976 = vunpack.c.h.b16 %v2880
    %v2977 = vpack.c.b16 %v2917, %v2913
    %v2978 = vpack.c.b16 %v2918, %v2914
    %v2979 = vpack.c.b16 %v2919, %v2915
    %v2980 = vpack.c.b16 %v2920, %v2916
    %v2981 = vpack.c.b16 %v2925, %v2921
    %v2982 = vpack.c.b16 %v2926, %v2922
    %v2983 = vpack.c.b16 %v2927, %v2923
    %v2984 = vpack.c.b16 %v2928, %v2924
    %v2985 = vpack.c.b16 %v2933, %v2929
    %v2986 = vpack.c.b16 %v2934, %v2930
    %v2987 = vpack.c.b16 %v2935, %v2931
    %v2988 = vpack.c.b16 %v2936, %v2932
    %v2989 = vpack.c.b16 %v2941, %v2937
    %v2990 = vpack.c.b16 %v2942, %v2938
    %v2991 = vpack.c.b16 %v2943, %v2939
    %v2992 = vpack.c.b16 %v2944, %v2940
    %v2993 = vpack.c.b16 %v2949, %v2945
    %v2994 = vpack.c.b16 %v2950, %v2946
    %v2995 = vpack.c.b16 %v2951, %v2947
    %v2996 = vpack.c.b16 %v2952, %v2948
    %v2997 = vpack.c.b16 %v2957, %v2953
    %v2998 = vpack.c.b16 %v2958, %v2954
    %v2999 = vpack.c.b16 %v2959, %v2955
    %v3000 = vpack.c.b16 %v2960, %v2956
    %v3001 = vpack.c.b16 %v2965, %v2961
    %v3002 = vpack.c.b16 %v2966, %v2962
    %v3003 = vpack.c.b16 %v2967, %v2963
    %v3004 = vpack.c.b16 %v2968, %v2964
    %v3005 = vpack.c.b16 %v2973, %v2969
    %v3006 = vpack.c.b16 %v2974, %v2970
    %v3007 = vpack.c.b16 %v2975, %v2971
    %v3008 = vpack.c.b16 %v2976, %v2972
    %3041 = vmatpush.bf16.msra.mxu0 %v3005
    %3042 = vmatpush.bf16.msra.mxu0 %v3001
    %3043 = vmatpush.bf16.msra.mxu0 %v2997
    %3044 = vmatpush.bf16.msra.mxu0 %v2993
    %3045 = vmatpush.bf16.msra.mxu0 %v2989
    %3046 = vmatpush.bf16.msra.mxu0 %v2985
    %3047 = vmatpush.bf16.msra.mxu0 %v2981
    %3048 = vmatpush.bf16.msra.mxu0 %v2977
    %3049 = vmatmul.bf16.gmra.mxu0 %v2848
    %v3050 = vpop.f32.mrf.mxu0
    %v3051 = vadd.f32 0.0, %v3050
    %v3052 = vpop.f32.mrf.mxu0
    %v3053 = vadd.f32 0.0, %v3052
    %3054 = vdwg.mxu0
    %3055 = vmatpush.bf16.msra.mxu0 %v3006
    %3056 = vmatpush.bf16.msra.mxu0 %v3002
    %3057 = vmatpush.bf16.msra.mxu0 %v2998
    %3058 = vmatpush.bf16.msra.mxu0 %v2994
    %3059 = vmatpush.bf16.msra.mxu0 %v2990
    %3060 = vmatpush.bf16.msra.mxu0 %v2986
    %3061 = vmatpush.bf16.msra.mxu0 %v2982
    %3062 = vmatpush.bf16.msra.mxu0 %v2978
    %3063 = vmatmul.bf16.gmra.mxu0 %v2848
    %v3064 = vpop.f32.mrf.mxu0
    %v3065 = vadd.f32 0.0, %v3064
    %v3066 = vpop.f32.mrf.mxu0
    %v3067 = vadd.f32 0.0, %v3066
    %3068 = vdwg.mxu0
    %3069 = vmatpush.bf16.msra.mxu0 %v3007
    %3070 = vmatpush.bf16.msra.mxu0 %v3003
    %3071 = vmatpush.bf16.msra.mxu0 %v2999
    %3072 = vmatpush.bf16.msra.mxu0 %v2995
    %3073 = vmatpush.bf16.msra.mxu0 %v2991
    %3074 = vmatpush.bf16.msra.mxu0 %v2987
    %3075 = vmatpush.bf16.msra.mxu0 %v2983
    %3076 = vmatpush.bf16.msra.mxu0 %v2979
    %3077 = vmatmul.bf16.gmra.mxu0 %v2848
    %v3078 = vpop.f32.mrf.mxu0
    %v3079 = vadd.f32 0.0, %v3078
    %v3080 = vpop.f32.mrf.mxu0
    %v3081 = vadd.f32 0.0, %v3080
    %3082 = vdwg.mxu0
    %3083 = vmatpush.bf16.msra.mxu0 %v3008
    %3084 = vmatpush.bf16.msra.mxu0 %v3004
    %3085 = vmatpush.bf16.msra.mxu0 %v3000
    %3086 = vmatpush.bf16.msra.mxu0 %v2996
    %3087 = vmatpush.bf16.msra.mxu0 %v2992
    %3088 = vmatpush.bf16.msra.mxu0 %v2988
    %3089 = vmatpush.bf16.msra.mxu0 %v2984
    %3090 = vmatpush.bf16.msra.mxu0 %v2980
    %3091 = vmatmul.bf16.gmra.mxu0 %v2848
    %v3092 = vpop.f32.mrf.mxu0
    %v3093 = vadd.f32 0.0, %v3092
    %v3094 = vpop.f32.mrf.mxu0
    %v3095 = vadd.f32 0.0, %v3094
    %3096 = vdwg.mxu0
    %v3097 = vadd.f32 %v2840, %v3051
    %v3098 = vadd.f32 %v2841, %v3065
    %v3099 = vadd.f32 %v2842, %v3079
    %v3100 = vadd.f32 %v2843, %v3093
    %v3101 = vadd.f32 %v2844, %v3053
    %v3102 = vadd.f32 %v2845, %v3067
    %v3103 = vadd.f32 %v2846, %v3081
    %v3104 = vadd.f32 %v2847, %v3095
    %v3105 = vxor.u32 %v3097, 2147483648
    %v3106 = vxor.u32 %v3101, 2147483648
    %v3107 = vmul.f32 %v3105, 1.442695
    %v3108 = vpow.pop %v3107
    %v3109 = vmul.f32 %v3106, 1.442695
    %v3110 = vpow.pop %v3109
    %v3111 = vadd.f32 %v3108, 1.0
    %v3112 = vadd.f32 %v3110, 1.0
    %v3113 = vrcp.pop %v3111
    %v3114 = vmul.f32 %v3111, %v3113
    %v3115 = vsub.f32 1.0, %v3114
    %v3116 = vmul.f32 %v3113, %v3115
    %v3117 = vadd.f32 %v3113, %v3116
    %vm3118 = vweird.f32 %v3111
    %vm3119 = vweird.f32 %v3113
    %vm3120 = vmor %vm3118, %vm3119
    %v3121 = vsel %vm3120, %v3113, %v3117
    %v3122 = vand.u32 2147483647, %v3111
    %vm3123 = vcmp.eq.f32.partialorder %v3122, 8.507059e+37
    %v3124 = vand.u32 %v3111, 2147483648
    %v3125 = vor.u32 1.1754944e-38, %v3124
    %v3126 = vsel %vm3123, %v3125, %v3121
    %v3127 = vmul.f32 1.0, %v3126
    %v3128 = vrcp.pop %v3112
    %v3129 = vmul.f32 %v3112, %v3128
    %v3130 = vsub.f32 1.0, %v3129
    %v3131 = vmul.f32 %v3128, %v3130
    %v3132 = vadd.f32 %v3128, %v3131
    %vm3133 = vweird.f32 %v3112
    %vm3134 = vweird.f32 %v3128
    %vm3135 = vmor %vm3133, %vm3134
    %v3136 = vsel %vm3135, %v3128, %v3132
    %v3137 = vand.u32 2147483647, %v3112
    %vm3138 = vcmp.eq.f32.partialorder %v3137, 8.507059e+37
    %v3139 = vand.u32 %v3112, 2147483648
    %v3140 = vor.u32 1.1754944e-38, %v3139
    %v3141 = vsel %vm3138, %v3140, %v3136
    %v3142 = vmul.f32 1.0, %v3141
    %v3143 = vxor.u32 %v3098, 2147483648
    %v3144 = vxor.u32 %v3102, 2147483648
    %v3145 = vmul.f32 %v3143, 1.442695
    %v3146 = vpow.pop %v3145
    %v3147 = vmul.f32 %v3144, 1.442695
    %v3148 = vpow.pop %v3147
    %v3149 = vadd.f32 %v3146, 1.0
    %v3150 = vadd.f32 %v3148, 1.0
    %v3151 = vrcp.pop %v3149
    %v3152 = vmul.f32 %v3149, %v3151
    %v3153 = vsub.f32 1.0, %v3152
    %v3154 = vmul.f32 %v3151, %v3153
    %v3155 = vadd.f32 %v3151, %v3154
    %vm3156 = vweird.f32 %v3149
    %vm3157 = vweird.f32 %v3151
    %vm3158 = vmor %vm3156, %vm3157
    %v3159 = vsel %vm3158, %v3151, %v3155
    %v3160 = vand.u32 2147483647, %v3149
    %vm3161 = vcmp.eq.f32.partialorder %v3160, 8.507059e+37
    %v3162 = vand.u32 %v3149, 2147483648
    %v3163 = vor.u32 1.1754944e-38, %v3162
    %v3164 = vsel %vm3161, %v3163, %v3159
    %v3165 = vmul.f32 1.0, %v3164
    %v3166 = vrcp.pop %v3150
    %v3167 = vmul.f32 %v3150, %v3166
    %v3168 = vsub.f32 1.0, %v3167
    %v3169 = vmul.f32 %v3166, %v3168
    %v3170 = vadd.f32 %v3166, %v3169
    %vm3171 = vweird.f32 %v3150
    %vm3172 = vweird.f32 %v3166
    %vm3173 = vmor %vm3171, %vm3172
    %v3174 = vsel %vm3173, %v3166, %v3170
    %v3175 = vand.u32 2147483647, %v3150
    %vm3176 = vcmp.eq.f32.partialorder %v3175, 8.507059e+37
    %v3177 = vand.u32 %v3150, 2147483648
    %v3178 = vor.u32 1.1754944e-38, %v3177
    %v3179 = vsel %vm3176, %v3178, %v3174
    %v3180 = vmul.f32 1.0, %v3179
    %v3181 = vtanh.pop %v3099
    %v3182 = vtanh.pop %v3103
    %v3183 = vxor.u32 %v3100, 2147483648
    %v3184 = vxor.u32 %v3104, 2147483648
    %v3185 = vmul.f32 %v3183, 1.442695
    %v3186 = vpow.pop %v3185
    %v3187 = vmul.f32 %v3184, 1.442695
    %v3188 = vpow.pop %v3187
    %v3189 = vadd.f32 %v3186, 1.0
    %v3190 = vadd.f32 %v3188, 1.0
    %v3191 = vrcp.pop %v3189
    %v3192 = vmul.f32 %v3189, %v3191
    %v3193 = vsub.f32 1.0, %v3192
    %v3194 = vmul.f32 %v3191, %v3193
    %v3195 = vadd.f32 %v3191, %v3194
    %vm3196 = vweird.f32 %v3189
    %vm3197 = vweird.f32 %v3191
    %vm3198 = vmor %vm3196, %vm3197
    %v3199 = vsel %vm3198, %v3191, %v3195
    %v3200 = vand.u32 2147483647, %v3189
    %vm3201 = vcmp.eq.f32.partialorder %v3200, 8.507059e+37
    %v3202 = vand.u32 %v3189, 2147483648
    %v3203 = vor.u32 1.1754944e-38, %v3202
    %v3204 = vsel %vm3201, %v3203, %v3199
    %v3205 = vmul.f32 1.0, %v3204
    %v3206 = vrcp.pop %v3190
    %v3207 = vmul.f32 %v3190, %v3206
    %v3208 = vsub.f32 1.0, %v3207
    %v3209 = vmul.f32 %v3206, %v3208
    %v3210 = vadd.f32 %v3206, %v3209
    %vm3211 = vweird.f32 %v3190
    %vm3212 = vweird.f32 %v3206
    %vm3213 = vmor %vm3211, %vm3212
    %v3214 = vsel %vm3213, %v3206, %v3210
    %v3215 = vand.u32 2147483647, %v3190
    %vm3216 = vcmp.eq.f32.partialorder %v3215, 8.507059e+37
    %v3217 = vand.u32 %v3190, 2147483648
    %v3218 = vor.u32 1.1754944e-38, %v3217
    %v3219 = vsel %vm3216, %v3218, %v3214
    %v3220 = vmul.f32 1.0, %v3219
    %v3221 = vmul.f32 %v3165, %v2835
    %v3222 = vmul.f32 %v3180, %v2836
    %v3223 = vmul.f32 %v3127, %v3181
    %v3224 = vmul.f32 %v3142, %v3182
    %v3225 = vadd.f32 %v3221, %v3223
    %v3226 = vadd.f32 %v3222, %v3224
    %v3227 = vtanh.pop %v3225
    %v3228 = vtanh.pop %v3226
    %v3229 = vmul.f32 %v3205, %v3227
    %v3230 = vmul.f32 %v3220, %v3228
    %3231 = vst [vmem:[#allocation4] sm:$0xff] %v3229
    %3232 = vst [vmem:[#allocation4 + $0x8] sm:$0xff] %v3230
    %3233 = vst [vmem:[#allocation5] sm:$0xff] %v3225
    %3234 = vst [vmem:[#allocation5 + $0x8] sm:$0xff] %v3226
    %v3235 = vpack.c.bf16 %v3229, %v3229
    %v3236 = vpack.c.bf16 %v3230, %v3230
    %s3237 = scalar_lea.vmem [#allocation15], 40
    %3238 = vst [vmem:[%s3237] sm:$0xf] %v3235
    %3239 = vst [vmem:[%s3237 + $0x4] sm:$0xf] %v3236
    %s3240 = smul.u32 6, 4
    %s3241 = smul.addr %s3240, 8
    %s3242 = scalar_lea.vmem [#allocation6], %s3241
    %v3243 = vld [vmem:[%s3242] sm:$0xff]
    %v3244 = vld [vmem:[%s3242 + $0x8] sm:$0xff]
    %v3245 = vld [vmem:[%s3242 + $0x10] sm:$0xff]
    %v3246 = vld [vmem:[%s3242 + $0x18] sm:$0xff]
    %v3247 = vld [vmem:[%s3242 + $0x20] sm:$0xff]
    %v3248 = vld [vmem:[%s3242 + $0x28] sm:$0xff]
    %v3249 = vld [vmem:[%s3242 + $0x30] sm:$0xff]
    %v3250 = vld [vmem:[%s3242 + $0x38] sm:$0xff]
    %v3251 = vld [vmem:[#allocation2] sm:$0xff]
    %v3252 = vld [vmem:[#allocation2 + $0x8] sm:$0xff]
    %v3253 = vpack.c.bf16 %v3252, %v3251
    %v3254 = vld [vmem:[%s4] sm:$0xff]
    %v3255 = vld [vmem:[%s4 + $0x8] sm:$0xff]
    %v3256 = vld [vmem:[%s4 + $0x10] sm:$0xff]
    %v3257 = vld [vmem:[%s4 + $0x18] sm:$0xff]
    %v3258 = vld [vmem:[%s4 + $0x20] sm:$0xff]
    %v3259 = vld [vmem:[%s4 + $0x28] sm:$0xff]
    %v3260 = vld [vmem:[%s4 + $0x30] sm:$0xff]
    %v3261 = vld [vmem:[%s4 + $0x38] sm:$0xff]
    %v3262 = vld [vmem:[%s4 + $0x40] sm:$0xff]
    %v3263 = vld [vmem:[%s4 + $0x48] sm:$0xff]
    %v3264 = vld [vmem:[%s4 + $0x50] sm:$0xff]
    %v3265 = vld [vmem:[%s4 + $0x58] sm:$0xff]
    %v3266 = vld [vmem:[%s4 + $0x60] sm:$0xff]
    %v3267 = vld [vmem:[%s4 + $0x68] sm:$0xff]
    %v3268 = vld [vmem:[%s4 + $0x70] sm:$0xff]
    %v3269 = vld [vmem:[%s4 + $0x78] sm:$0xff]
    %v3270 = vld [vmem:[%s4 + $0x80] sm:$0xff]
    %v3271 = vld [vmem:[%s4 + $0x88] sm:$0xff]
    %v3272 = vld [vmem:[%s4 + $0x90] sm:$0xff]
    %v3273 = vld [vmem:[%s4 + $0x98] sm:$0xff]
    %v3274 = vld [vmem:[%s4 + $0xa0] sm:$0xff]
    %v3275 = vld [vmem:[%s4 + $0xa8] sm:$0xff]
    %v3276 = vld [vmem:[%s4 + $0xb0] sm:$0xff]
    %v3277 = vld [vmem:[%s4 + $0xb8] sm:$0xff]
    %v3278 = vld [vmem:[%s4 + $0xc0] sm:$0xff]
    %v3279 = vld [vmem:[%s4 + $0xc8] sm:$0xff]
    %v3280 = vld [vmem:[%s4 + $0xd0] sm:$0xff]
    %v3281 = vld [vmem:[%s4 + $0xd8] sm:$0xff]
    %v3282 = vld [vmem:[%s4 + $0xe0] sm:$0xff]
    %v3283 = vld [vmem:[%s4 + $0xe8] sm:$0xff]
    %v3284 = vld [vmem:[%s4 + $0xf0] sm:$0xff]
    %v3285 = vld [vmem:[%s4 + $0xf8] sm:$0xff]
    %v3318 = vunpack.c.l.b16 %v3254
    %v3319 = vunpack.c.h.b16 %v3254
    %v3320 = vunpack.c.l.b16 %v3255
    %v3321 = vunpack.c.h.b16 %v3255
    %v3322 = vunpack.c.l.b16 %v3256
    %v3323 = vunpack.c.h.b16 %v3256
    %v3324 = vunpack.c.l.b16 %v3257
    %v3325 = vunpack.c.h.b16 %v3257
    %v3326 = vunpack.c.l.b16 %v3258
    %v3327 = vunpack.c.h.b16 %v3258
    %v3328 = vunpack.c.l.b16 %v3259
    %v3329 = vunpack.c.h.b16 %v3259
    %v3330 = vunpack.c.l.b16 %v3260
    %v3331 = vunpack.c.h.b16 %v3260
    %v3332 = vunpack.c.l.b16 %v3261
    %v3333 = vunpack.c.h.b16 %v3261
    %v3334 = vunpack.c.l.b16 %v3262
    %v3335 = vunpack.c.h.b16 %v3262
    %v3336 = vunpack.c.l.b16 %v3263
    %v3337 = vunpack.c.h.b16 %v3263
    %v3338 = vunpack.c.l.b16 %v3264
    %v3339 = vunpack.c.h.b16 %v3264
    %v3340 = vunpack.c.l.b16 %v3265
    %v3341 = vunpack.c.h.b16 %v3265
    %v3342 = vunpack.c.l.b16 %v3266
    %v3343 = vunpack.c.h.b16 %v3266
    %v3344 = vunpack.c.l.b16 %v3267
    %v3345 = vunpack.c.h.b16 %v3267
    %v3346 = vunpack.c.l.b16 %v3268
    %v3347 = vunpack.c.h.b16 %v3268
    %v3348 = vunpack.c.l.b16 %v3269
    %v3349 = vunpack.c.h.b16 %v3269
    %v3350 = vunpack.c.l.b16 %v3270
    %v3351 = vunpack.c.h.b16 %v3270
    %v3352 = vunpack.c.l.b16 %v3271
    %v3353 = vunpack.c.h.b16 %v3271
    %v3354 = vunpack.c.l.b16 %v3272
    %v3355 = vunpack.c.h.b16 %v3272
    %v3356 = vunpack.c.l.b16 %v3273
    %v3357 = vunpack.c.h.b16 %v3273
    %v3358 = vunpack.c.l.b16 %v3274
    %v3359 = vunpack.c.h.b16 %v3274
    %v3360 = vunpack.c.l.b16 %v3275
    %v3361 = vunpack.c.h.b16 %v3275
    %v3362 = vunpack.c.l.b16 %v3276
    %v3363 = vunpack.c.h.b16 %v3276
    %v3364 = vunpack.c.l.b16 %v3277
    %v3365 = vunpack.c.h.b16 %v3277
    %v3366 = vunpack.c.l.b16 %v3278
    %v3367 = vunpack.c.h.b16 %v3278
    %v3368 = vunpack.c.l.b16 %v3279
    %v3369 = vunpack.c.h.b16 %v3279
    %v3370 = vunpack.c.l.b16 %v3280
    %v3371 = vunpack.c.h.b16 %v3280
    %v3372 = vunpack.c.l.b16 %v3281
    %v3373 = vunpack.c.h.b16 %v3281
    %v3374 = vunpack.c.l.b16 %v3282
    %v3375 = vunpack.c.h.b16 %v3282
    %v3376 = vunpack.c.l.b16 %v3283
    %v3377 = vunpack.c.h.b16 %v3283
    %v3378 = vunpack.c.l.b16 %v3284
    %v3379 = vunpack.c.h.b16 %v3284
    %v3380 = vunpack.c.l.b16 %v3285
    %v3381 = vunpack.c.h.b16 %v3285
    %v3382 = vpack.c.b16 %v3322, %v3318
    %v3383 = vpack.c.b16 %v3323, %v3319
    %v3384 = vpack.c.b16 %v3324, %v3320
    %v3385 = vpack.c.b16 %v3325, %v3321
    %v3386 = vpack.c.b16 %v3330, %v3326
    %v3387 = vpack.c.b16 %v3331, %v3327
    %v3388 = vpack.c.b16 %v3332, %v3328
    %v3389 = vpack.c.b16 %v3333, %v3329
    %v3390 = vpack.c.b16 %v3338, %v3334
    %v3391 = vpack.c.b16 %v3339, %v3335
    %v3392 = vpack.c.b16 %v3340, %v3336
    %v3393 = vpack.c.b16 %v3341, %v3337
    %v3394 = vpack.c.b16 %v3346, %v3342
    %v3395 = vpack.c.b16 %v3347, %v3343
    %v3396 = vpack.c.b16 %v3348, %v3344
    %v3397 = vpack.c.b16 %v3349, %v3345
    %v3398 = vpack.c.b16 %v3354, %v3350
    %v3399 = vpack.c.b16 %v3355, %v3351
    %v3400 = vpack.c.b16 %v3356, %v3352
    %v3401 = vpack.c.b16 %v3357, %v3353
    %v3402 = vpack.c.b16 %v3362, %v3358
    %v3403 = vpack.c.b16 %v3363, %v3359
    %v3404 = vpack.c.b16 %v3364, %v3360
    %v3405 = vpack.c.b16 %v3365, %v3361
    %v3406 = vpack.c.b16 %v3370, %v3366
    %v3407 = vpack.c.b16 %v3371, %v3367
    %v3408 = vpack.c.b16 %v3372, %v3368
    %v3409 = vpack.c.b16 %v3373, %v3369
    %v3410 = vpack.c.b16 %v3378, %v3374
    %v3411 = vpack.c.b16 %v3379, %v3375
    %v3412 = vpack.c.b16 %v3380, %v3376
    %v3413 = vpack.c.b16 %v3381, %v3377
    %3446 = vmatpush.bf16.msra.mxu0 %v3410
    %3447 = vmatpush.bf16.msra.mxu0 %v3406
    %3448 = vmatpush.bf16.msra.mxu0 %v3402
    %3449 = vmatpush.bf16.msra.mxu0 %v3398
    %3450 = vmatpush.bf16.msra.mxu0 %v3394
    %3451 = vmatpush.bf16.msra.mxu0 %v3390
    %3452 = vmatpush.bf16.msra.mxu0 %v3386
    %3453 = vmatpush.bf16.msra.mxu0 %v3382
    %3454 = vmatmul.bf16.gmra.mxu0 %v3253
    %v3455 = vpop.f32.mrf.mxu0
    %v3456 = vadd.f32 0.0, %v3455
    %v3457 = vpop.f32.mrf.mxu0
    %v3458 = vadd.f32 0.0, %v3457
    %3459 = vdwg.mxu0
    %3460 = vmatpush.bf16.msra.mxu0 %v3411
    %3461 = vmatpush.bf16.msra.mxu0 %v3407
    %3462 = vmatpush.bf16.msra.mxu0 %v3403
    %3463 = vmatpush.bf16.msra.mxu0 %v3399
    %3464 = vmatpush.bf16.msra.mxu0 %v3395
    %3465 = vmatpush.bf16.msra.mxu0 %v3391
    %3466 = vmatpush.bf16.msra.mxu0 %v3387
    %3467 = vmatpush.bf16.msra.mxu0 %v3383
    %3468 = vmatmul.bf16.gmra.mxu0 %v3253
    %v3469 = vpop.f32.mrf.mxu0
    %v3470 = vadd.f32 0.0, %v3469
    %v3471 = vpop.f32.mrf.mxu0
    %v3472 = vadd.f32 0.0, %v3471
    %3473 = vdwg.mxu0
    %3474 = vmatpush.bf16.msra.mxu0 %v3412
    %3475 = vmatpush.bf16.msra.mxu0 %v3408
    %3476 = vmatpush.bf16.msra.mxu0 %v3404
    %3477 = vmatpush.bf16.msra.mxu0 %v3400
    %3478 = vmatpush.bf16.msra.mxu0 %v3396
    %3479 = vmatpush.bf16.msra.mxu0 %v3392
    %3480 = vmatpush.bf16.msra.mxu0 %v3388
    %3481 = vmatpush.bf16.msra.mxu0 %v3384
    %3482 = vmatmul.bf16.gmra.mxu0 %v3253
    %v3483 = vpop.f32.mrf.mxu0
    %v3484 = vadd.f32 0.0, %v3483
    %v3485 = vpop.f32.mrf.mxu0
    %v3486 = vadd.f32 0.0, %v3485
    %3487 = vdwg.mxu0
    %3488 = vmatpush.bf16.msra.mxu0 %v3413
    %3489 = vmatpush.bf16.msra.mxu0 %v3409
    %3490 = vmatpush.bf16.msra.mxu0 %v3405
    %3491 = vmatpush.bf16.msra.mxu0 %v3401
    %3492 = vmatpush.bf16.msra.mxu0 %v3397
    %3493 = vmatpush.bf16.msra.mxu0 %v3393
    %3494 = vmatpush.bf16.msra.mxu0 %v3389
    %3495 = vmatpush.bf16.msra.mxu0 %v3385
    %3496 = vmatmul.bf16.gmra.mxu0 %v3253
    %v3497 = vpop.f32.mrf.mxu0
    %v3498 = vadd.f32 0.0, %v3497
    %v3499 = vpop.f32.mrf.mxu0
    %v3500 = vadd.f32 0.0, %v3499
    %3501 = vdwg.mxu0
    %v3502 = vadd.f32 %v3243, %v3456
    %v3503 = vadd.f32 %v3244, %v3470
    %v3504 = vadd.f32 %v3245, %v3484
    %v3505 = vadd.f32 %v3246, %v3498
    %v3506 = vadd.f32 %v3247, %v3458
    %v3507 = vadd.f32 %v3248, %v3472
    %v3508 = vadd.f32 %v3249, %v3486
    %v3509 = vadd.f32 %v3250, %v3500
    %v3510 = vld [vmem:[#allocation3] sm:$0xff]
    %v3511 = vld [vmem:[#allocation3 + $0x8] sm:$0xff]
    %v3512 = vxor.u32 %v3502, 2147483648
    %v3513 = vxor.u32 %v3506, 2147483648
    %v3514 = vmul.f32 %v3512, 1.442695
    %v3515 = vpow.pop %v3514
    %v3516 = vmul.f32 %v3513, 1.442695
    %v3517 = vpow.pop %v3516
    %v3518 = vadd.f32 %v3515, 1.0
    %v3519 = vadd.f32 %v3517, 1.0
    %v3520 = vrcp.pop %v3518
    %v3521 = vmul.f32 %v3518, %v3520
    %v3522 = vsub.f32 1.0, %v3521
    %v3523 = vmul.f32 %v3520, %v3522
    %v3524 = vadd.f32 %v3520, %v3523
    %vm3525 = vweird.f32 %v3518
    %vm3526 = vweird.f32 %v3520
    %vm3527 = vmor %vm3525, %vm3526
    %v3528 = vsel %vm3527, %v3520, %v3524
    %v3529 = vand.u32 2147483647, %v3518
    %vm3530 = vcmp.eq.f32.partialorder %v3529, 8.507059e+37
    %v3531 = vand.u32 %v3518, 2147483648
    %v3532 = vor.u32 1.1754944e-38, %v3531
    %v3533 = vsel %vm3530, %v3532, %v3528
    %v3534 = vmul.f32 1.0, %v3533
    %v3535 = vrcp.pop %v3519
    %v3536 = vmul.f32 %v3519, %v3535
    %v3537 = vsub.f32 1.0, %v3536
    %v3538 = vmul.f32 %v3535, %v3537
    %v3539 = vadd.f32 %v3535, %v3538
    %vm3540 = vweird.f32 %v3519
    %vm3541 = vweird.f32 %v3535
    %vm3542 = vmor %vm3540, %vm3541
    %v3543 = vsel %vm3542, %v3535, %v3539
    %v3544 = vand.u32 2147483647, %v3519
    %vm3545 = vcmp.eq.f32.partialorder %v3544, 8.507059e+37
    %v3546 = vand.u32 %v3519, 2147483648
    %v3547 = vor.u32 1.1754944e-38, %v3546
    %v3548 = vsel %vm3545, %v3547, %v3543
    %v3549 = vmul.f32 1.0, %v3548
    %v3550 = vxor.u32 %v3503, 2147483648
    %v3551 = vxor.u32 %v3507, 2147483648
    %v3552 = vmul.f32 %v3550, 1.442695
    %v3553 = vpow.pop %v3552
    %v3554 = vmul.f32 %v3551, 1.442695
    %v3555 = vpow.pop %v3554
    %v3556 = vadd.f32 %v3553, 1.0
    %v3557 = vadd.f32 %v3555, 1.0
    %v3558 = vrcp.pop %v3556
    %v3559 = vmul.f32 %v3556, %v3558
    %v3560 = vsub.f32 1.0, %v3559
    %v3561 = vmul.f32 %v3558, %v3560
    %v3562 = vadd.f32 %v3558, %v3561
    %vm3563 = vweird.f32 %v3556
    %vm3564 = vweird.f32 %v3558
    %vm3565 = vmor %vm3563, %vm3564
    %v3566 = vsel %vm3565, %v3558, %v3562
    %v3567 = vand.u32 2147483647, %v3556
    %vm3568 = vcmp.eq.f32.partialorder %v3567, 8.507059e+37
    %v3569 = vand.u32 %v3556, 2147483648
    %v3570 = vor.u32 1.1754944e-38, %v3569
    %v3571 = vsel %vm3568, %v3570, %v3566
    %v3572 = vmul.f32 1.0, %v3571
    %v3573 = vrcp.pop %v3557
    %v3574 = vmul.f32 %v3557, %v3573
    %v3575 = vsub.f32 1.0, %v3574
    %v3576 = vmul.f32 %v3573, %v3575
    %v3577 = vadd.f32 %v3573, %v3576
    %vm3578 = vweird.f32 %v3557
    %vm3579 = vweird.f32 %v3573
    %vm3580 = vmor %vm3578, %vm3579
    %v3581 = vsel %vm3580, %v3573, %v3577
    %v3582 = vand.u32 2147483647, %v3557
    %vm3583 = vcmp.eq.f32.partialorder %v3582, 8.507059e+37
    %v3584 = vand.u32 %v3557, 2147483648
    %v3585 = vor.u32 1.1754944e-38, %v3584
    %v3586 = vsel %vm3583, %v3585, %v3581
    %v3587 = vmul.f32 1.0, %v3586
    %v3588 = vtanh.pop %v3504
    %v3589 = vtanh.pop %v3508
    %v3590 = vxor.u32 %v3505, 2147483648
    %v3591 = vxor.u32 %v3509, 2147483648
    %v3592 = vmul.f32 %v3590, 1.442695
    %v3593 = vpow.pop %v3592
    %v3594 = vmul.f32 %v3591, 1.442695
    %v3595 = vpow.pop %v3594
    %v3596 = vadd.f32 %v3593, 1.0
    %v3597 = vadd.f32 %v3595, 1.0
    %v3598 = vrcp.pop %v3596
    %v3599 = vmul.f32 %v3596, %v3598
    %v3600 = vsub.f32 1.0, %v3599
    %v3601 = vmul.f32 %v3598, %v3600
    %v3602 = vadd.f32 %v3598, %v3601
    %vm3603 = vweird.f32 %v3596
    %vm3604 = vweird.f32 %v3598
    %vm3605 = vmor %vm3603, %vm3604
    %v3606 = vsel %vm3605, %v3598, %v3602
    %v3607 = vand.u32 2147483647, %v3596
    %vm3608 = vcmp.eq.f32.partialorder %v3607, 8.507059e+37
    %v3609 = vand.u32 %v3596, 2147483648
    %v3610 = vor.u32 1.1754944e-38, %v3609
    %v3611 = vsel %vm3608, %v3610, %v3606
    %v3612 = vmul.f32 1.0, %v3611
    %v3613 = vrcp.pop %v3597
    %v3614 = vmul.f32 %v3597, %v3613
    %v3615 = vsub.f32 1.0, %v3614
    %v3616 = vmul.f32 %v3613, %v3615
    %v3617 = vadd.f32 %v3613, %v3616
    %vm3618 = vweird.f32 %v3597
    %vm3619 = vweird.f32 %v3613
    %vm3620 = vmor %vm3618, %vm3619
    %v3621 = vsel %vm3620, %v3613, %v3617
    %v3622 = vand.u32 2147483647, %v3597
    %vm3623 = vcmp.eq.f32.partialorder %v3622, 8.507059e+37
    %v3624 = vand.u32 %v3597, 2147483648
    %v3625 = vor.u32 1.1754944e-38, %v3624
    %v3626 = vsel %vm3623, %v3625, %v3621
    %v3627 = vmul.f32 1.0, %v3626
    %v3628 = vmul.f32 %v3572, %v3510
    %v3629 = vmul.f32 %v3587, %v3511
    %v3630 = vmul.f32 %v3534, %v3588
    %v3631 = vmul.f32 %v3549, %v3589
    %v3632 = vadd.f32 %v3628, %v3630
    %v3633 = vadd.f32 %v3629, %v3631
    %v3634 = vtanh.pop %v3632
    %v3635 = vtanh.pop %v3633
    %v3636 = vmul.f32 %v3612, %v3634
    %v3637 = vmul.f32 %v3627, %v3635
    %3638 = vst [vmem:[#allocation2] sm:$0xff] %v3636
    %3639 = vst [vmem:[#allocation2 + $0x8] sm:$0xff] %v3637
    %3640 = vst [vmem:[#allocation3] sm:$0xff] %v3632
    %3641 = vst [vmem:[#allocation3 + $0x8] sm:$0xff] %v3633
    %v3642 = vpack.c.bf16 %v3636, %v3636
    %v3643 = vpack.c.bf16 %v3637, %v3637
    %s3644 = scalar_lea.vmem [#allocation14], 24
    %3645 = vst [vmem:[%s3644] sm:$0xf] %v3642
    %3646 = vst [vmem:[%s3644 + $0x4] sm:$0xf] %v3643
    %v3647 = vld [vmem:[#allocation4] sm:$0xff]
    %v3648 = vld [vmem:[#allocation4 + $0x8] sm:$0xff]
    %v3649 = vld [vmem:[#allocation5] sm:$0xff]
    %v3650 = vld [vmem:[#allocation5 + $0x8] sm:$0xff]
    %s3651 = smul.u32 8, 4
    %s3652 = smul.addr %s3651, 8
    %s3653 = scalar_lea.vmem [#allocation7], %s3652
    %v3654 = vld [vmem:[%s3653] sm:$0xff]
    %v3655 = vld [vmem:[%s3653 + $0x8] sm:$0xff]
    %v3656 = vld [vmem:[%s3653 + $0x10] sm:$0xff]
    %v3657 = vld [vmem:[%s3653 + $0x18] sm:$0xff]
    %v3658 = vld [vmem:[%s3653 + $0x20] sm:$0xff]
    %v3659 = vld [vmem:[%s3653 + $0x28] sm:$0xff]
    %v3660 = vld [vmem:[%s3653 + $0x30] sm:$0xff]
    %v3661 = vld [vmem:[%s3653 + $0x38] sm:$0xff]
    %v3662 = vpack.c.bf16 %v3648, %v3647
    %v3663 = vld [vmem:[#allocation13] sm:$0xff]
    %v3664 = vld [vmem:[#allocation13 + $0x8] sm:$0xff]
    %v3665 = vld [vmem:[#allocation13 + $0x10] sm:$0xff]
    %v3666 = vld [vmem:[#allocation13 + $0x18] sm:$0xff]
    %v3667 = vld [vmem:[#allocation13 + $0x20] sm:$0xff]
    %v3668 = vld [vmem:[#allocation13 + $0x28] sm:$0xff]
    %v3669 = vld [vmem:[#allocation13 + $0x30] sm:$0xff]
    %v3670 = vld [vmem:[#allocation13 + $0x38] sm:$0xff]
    %v3671 = vld [vmem:[#allocation13 + $0x40] sm:$0xff]
    %v3672 = vld [vmem:[#allocation13 + $0x48] sm:$0xff]
    %v3673 = vld [vmem:[#allocation13 + $0x50] sm:$0xff]
    %v3674 = vld [vmem:[#allocation13 + $0x58] sm:$0xff]
    %v3675 = vld [vmem:[#allocation13 + $0x60] sm:$0xff]
    %v3676 = vld [vmem:[#allocation13 + $0x68] sm:$0xff]
    %v3677 = vld [vmem:[#allocation13 + $0x70] sm:$0xff]
    %v3678 = vld [vmem:[#allocation13 + $0x78] sm:$0xff]
    %v3679 = vld [vmem:[#allocation13 + $0x80] sm:$0xff]
    %v3680 = vld [vmem:[#allocation13 + $0x88] sm:$0xff]
    %v3681 = vld [vmem:[#allocation13 + $0x90] sm:$0xff]
    %v3682 = vld [vmem:[#allocation13 + $0x98] sm:$0xff]
    %v3683 = vld [vmem:[#allocation13 + $0xa0] sm:$0xff]
    %v3684 = vld [vmem:[#allocation13 + $0xa8] sm:$0xff]
    %v3685 = vld [vmem:[#allocation13 + $0xb0] sm:$0xff]
    %v3686 = vld [vmem:[#allocation13 + $0xb8] sm:$0xff]
    %v3687 = vld [vmem:[#allocation13 + $0xc0] sm:$0xff]
    %v3688 = vld [vmem:[#allocation13 + $0xc8] sm:$0xff]
    %v3689 = vld [vmem:[#allocation13 + $0xd0] sm:$0xff]
    %v3690 = vld [vmem:[#allocation13 + $0xd8] sm:$0xff]
    %v3691 = vld [vmem:[#allocation13 + $0xe0] sm:$0xff]
    %v3692 = vld [vmem:[#allocation13 + $0xe8] sm:$0xff]
    %v3693 = vld [vmem:[#allocation13 + $0xf0] sm:$0xff]
    %v3694 = vld [vmem:[#allocation13 + $0xf8] sm:$0xff]
    %v3727 = vunpack.c.l.b16 %v3663
    %v3728 = vunpack.c.h.b16 %v3663
    %v3729 = vunpack.c.l.b16 %v3664
    %v3730 = vunpack.c.h.b16 %v3664
    %v3731 = vunpack.c.l.b16 %v3665
    %v3732 = vunpack.c.h.b16 %v3665
    %v3733 = vunpack.c.l.b16 %v3666
    %v3734 = vunpack.c.h.b16 %v3666
    %v3735 = vunpack.c.l.b16 %v3667
    %v3736 = vunpack.c.h.b16 %v3667
    %v3737 = vunpack.c.l.b16 %v3668
    %v3738 = vunpack.c.h.b16 %v3668
    %v3739 = vunpack.c.l.b16 %v3669
    %v3740 = vunpack.c.h.b16 %v3669
    %v3741 = vunpack.c.l.b16 %v3670
    %v3742 = vunpack.c.h.b16 %v3670
    %v3743 = vunpack.c.l.b16 %v3671
    %v3744 = vunpack.c.h.b16 %v3671
    %v3745 = vunpack.c.l.b16 %v3672
    %v3746 = vunpack.c.h.b16 %v3672
    %v3747 = vunpack.c.l.b16 %v3673
    %v3748 = vunpack.c.h.b16 %v3673
    %v3749 = vunpack.c.l.b16 %v3674
    %v3750 = vunpack.c.h.b16 %v3674
    %v3751 = vunpack.c.l.b16 %v3675
    %v3752 = vunpack.c.h.b16 %v3675
    %v3753 = vunpack.c.l.b16 %v3676
    %v3754 = vunpack.c.h.b16 %v3676
    %v3755 = vunpack.c.l.b16 %v3677
    %v3756 = vunpack.c.h.b16 %v3677
    %v3757 = vunpack.c.l.b16 %v3678
    %v3758 = vunpack.c.h.b16 %v3678
    %v3759 = vunpack.c.l.b16 %v3679
    %v3760 = vunpack.c.h.b16 %v3679
    %v3761 = vunpack.c.l.b16 %v3680
    %v3762 = vunpack.c.h.b16 %v3680
    %v3763 = vunpack.c.l.b16 %v3681
    %v3764 = vunpack.c.h.b16 %v3681
    %v3765 = vunpack.c.l.b16 %v3682
    %v3766 = vunpack.c.h.b16 %v3682
    %v3767 = vunpack.c.l.b16 %v3683
    %v3768 = vunpack.c.h.b16 %v3683
    %v3769 = vunpack.c.l.b16 %v3684
    %v3770 = vunpack.c.h.b16 %v3684
    %v3771 = vunpack.c.l.b16 %v3685
    %v3772 = vunpack.c.h.b16 %v3685
    %v3773 = vunpack.c.l.b16 %v3686
    %v3774 = vunpack.c.h.b16 %v3686
    %v3775 = vunpack.c.l.b16 %v3687
    %v3776 = vunpack.c.h.b16 %v3687
    %v3777 = vunpack.c.l.b16 %v3688
    %v3778 = vunpack.c.h.b16 %v3688
    %v3779 = vunpack.c.l.b16 %v3689
    %v3780 = vunpack.c.h.b16 %v3689
    %v3781 = vunpack.c.l.b16 %v3690
    %v3782 = vunpack.c.h.b16 %v3690
    %v3783 = vunpack.c.l.b16 %v3691
    %v3784 = vunpack.c.h.b16 %v3691
    %v3785 = vunpack.c.l.b16 %v3692
    %v3786 = vunpack.c.h.b16 %v3692
    %v3787 = vunpack.c.l.b16 %v3693
    %v3788 = vunpack.c.h.b16 %v3693
    %v3789 = vunpack.c.l.b16 %v3694
    %v3790 = vunpack.c.h.b16 %v3694
    %v3791 = vpack.c.b16 %v3731, %v3727
    %v3792 = vpack.c.b16 %v3732, %v3728
    %v3793 = vpack.c.b16 %v3733, %v3729
    %v3794 = vpack.c.b16 %v3734, %v3730
    %v3795 = vpack.c.b16 %v3739, %v3735
    %v3796 = vpack.c.b16 %v3740, %v3736
    %v3797 = vpack.c.b16 %v3741, %v3737
    %v3798 = vpack.c.b16 %v3742, %v3738
    %v3799 = vpack.c.b16 %v3747, %v3743
    %v3800 = vpack.c.b16 %v3748, %v3744
    %v3801 = vpack.c.b16 %v3749, %v3745
    %v3802 = vpack.c.b16 %v3750, %v3746
    %v3803 = vpack.c.b16 %v3755, %v3751
    %v3804 = vpack.c.b16 %v3756, %v3752
    %v3805 = vpack.c.b16 %v3757, %v3753
    %v3806 = vpack.c.b16 %v3758, %v3754
    %v3807 = vpack.c.b16 %v3763, %v3759
    %v3808 = vpack.c.b16 %v3764, %v3760
    %v3809 = vpack.c.b16 %v3765, %v3761
    %v3810 = vpack.c.b16 %v3766, %v3762
    %v3811 = vpack.c.b16 %v3771, %v3767
    %v3812 = vpack.c.b16 %v3772, %v3768
    %v3813 = vpack.c.b16 %v3773, %v3769
    %v3814 = vpack.c.b16 %v3774, %v3770
    %v3815 = vpack.c.b16 %v3779, %v3775
    %v3816 = vpack.c.b16 %v3780, %v3776
    %v3817 = vpack.c.b16 %v3781, %v3777
    %v3818 = vpack.c.b16 %v3782, %v3778
    %v3819 = vpack.c.b16 %v3787, %v3783
    %v3820 = vpack.c.b16 %v3788, %v3784
    %v3821 = vpack.c.b16 %v3789, %v3785
    %v3822 = vpack.c.b16 %v3790, %v3786
    %3855 = vmatpush.bf16.msra.mxu0 %v3819
    %3856 = vmatpush.bf16.msra.mxu0 %v3815
    %3857 = vmatpush.bf16.msra.mxu0 %v3811
    %3858 = vmatpush.bf16.msra.mxu0 %v3807
    %3859 = vmatpush.bf16.msra.mxu0 %v3803
    %3860 = vmatpush.bf16.msra.mxu0 %v3799
    %3861 = vmatpush.bf16.msra.mxu0 %v3795
    %3862 = vmatpush.bf16.msra.mxu0 %v3791
    %3863 = vmatmul.bf16.gmra.mxu0 %v3662
    %v3864 = vpop.f32.mrf.mxu0
    %v3865 = vadd.f32 0.0, %v3864
    %v3866 = vpop.f32.mrf.mxu0
    %v3867 = vadd.f32 0.0, %v3866
    %3868 = vdwg.mxu0
    %3869 = vmatpush.bf16.msra.mxu0 %v3820
    %3870 = vmatpush.bf16.msra.mxu0 %v3816
    %3871 = vmatpush.bf16.msra.mxu0 %v3812
    %3872 = vmatpush.bf16.msra.mxu0 %v3808
    %3873 = vmatpush.bf16.msra.mxu0 %v3804
    %3874 = vmatpush.bf16.msra.mxu0 %v3800
    %3875 = vmatpush.bf16.msra.mxu0 %v3796
    %3876 = vmatpush.bf16.msra.mxu0 %v3792
    %3877 = vmatmul.bf16.gmra.mxu0 %v3662
    %v3878 = vpop.f32.mrf.mxu0
    %v3879 = vadd.f32 0.0, %v3878
    %v3880 = vpop.f32.mrf.mxu0
    %v3881 = vadd.f32 0.0, %v3880
    %3882 = vdwg.mxu0
    %3883 = vmatpush.bf16.msra.mxu0 %v3821
    %3884 = vmatpush.bf16.msra.mxu0 %v3817
    %3885 = vmatpush.bf16.msra.mxu0 %v3813
    %3886 = vmatpush.bf16.msra.mxu0 %v3809
    %3887 = vmatpush.bf16.msra.mxu0 %v3805
    %3888 = vmatpush.bf16.msra.mxu0 %v3801
    %3889 = vmatpush.bf16.msra.mxu0 %v3797
    %3890 = vmatpush.bf16.msra.mxu0 %v3793
    %3891 = vmatmul.bf16.gmra.mxu0 %v3662
    %v3892 = vpop.f32.mrf.mxu0
    %v3893 = vadd.f32 0.0, %v3892
    %v3894 = vpop.f32.mrf.mxu0
    %v3895 = vadd.f32 0.0, %v3894
    %3896 = vdwg.mxu0
    %3897 = vmatpush.bf16.msra.mxu0 %v3822
    %3898 = vmatpush.bf16.msra.mxu0 %v3818
    %3899 = vmatpush.bf16.msra.mxu0 %v3814
    %3900 = vmatpush.bf16.msra.mxu0 %v3810
    %3901 = vmatpush.bf16.msra.mxu0 %v3806
    %3902 = vmatpush.bf16.msra.mxu0 %v3802
    %3903 = vmatpush.bf16.msra.mxu0 %v3798
    %3904 = vmatpush.bf16.msra.mxu0 %v3794
    %3905 = vmatmul.bf16.gmra.mxu0 %v3662
    %v3906 = vpop.f32.mrf.mxu0
    %v3907 = vadd.f32 0.0, %v3906
    %v3908 = vpop.f32.mrf.mxu0
    %v3909 = vadd.f32 0.0, %v3908
    %3910 = vdwg.mxu0
    %v3911 = vadd.f32 %v3654, %v3865
    %v3912 = vadd.f32 %v3655, %v3879
    %v3913 = vadd.f32 %v3656, %v3893
    %v3914 = vadd.f32 %v3657, %v3907
    %v3915 = vadd.f32 %v3658, %v3867
    %v3916 = vadd.f32 %v3659, %v3881
    %v3917 = vadd.f32 %v3660, %v3895
    %v3918 = vadd.f32 %v3661, %v3909
    %v3919 = vxor.u32 %v3911, 2147483648
    %v3920 = vxor.u32 %v3915, 2147483648
    %v3921 = vmul.f32 %v3919, 1.442695
    %v3922 = vpow.pop %v3921
    %v3923 = vmul.f32 %v3920, 1.442695
    %v3924 = vpow.pop %v3923
    %v3925 = vadd.f32 %v3922, 1.0
    %v3926 = vadd.f32 %v3924, 1.0
    %v3927 = vrcp.pop %v3925
    %v3928 = vmul.f32 %v3925, %v3927
    %v3929 = vsub.f32 1.0, %v3928
    %v3930 = vmul.f32 %v3927, %v3929
    %v3931 = vadd.f32 %v3927, %v3930
    %vm3932 = vweird.f32 %v3925
    %vm3933 = vweird.f32 %v3927
    %vm3934 = vmor %vm3932, %vm3933
    %v3935 = vsel %vm3934, %v3927, %v3931
    %v3936 = vand.u32 2147483647, %v3925
    %vm3937 = vcmp.eq.f32.partialorder %v3936, 8.507059e+37
    %v3938 = vand.u32 %v3925, 2147483648
    %v3939 = vor.u32 1.1754944e-38, %v3938
    %v3940 = vsel %vm3937, %v3939, %v3935
    %v3941 = vmul.f32 1.0, %v3940
    %v3942 = vrcp.pop %v3926
    %v3943 = vmul.f32 %v3926, %v3942
    %v3944 = vsub.f32 1.0, %v3943
    %v3945 = vmul.f32 %v3942, %v3944
    %v3946 = vadd.f32 %v3942, %v3945
    %vm3947 = vweird.f32 %v3926
    %vm3948 = vweird.f32 %v3942
    %vm3949 = vmor %vm3947, %vm3948
    %v3950 = vsel %vm3949, %v3942, %v3946
    %v3951 = vand.u32 2147483647, %v3926
    %vm3952 = vcmp.eq.f32.partialorder %v3951, 8.507059e+37
    %v3953 = vand.u32 %v3926, 2147483648
    %v3954 = vor.u32 1.1754944e-38, %v3953
    %v3955 = vsel %vm3952, %v3954, %v3950
    %v3956 = vmul.f32 1.0, %v3955
    %v3957 = vxor.u32 %v3912, 2147483648
    %v3958 = vxor.u32 %v3916, 2147483648
    %v3959 = vmul.f32 %v3957, 1.442695
    %v3960 = vpow.pop %v3959
    %v3961 = vmul.f32 %v3958, 1.442695
    %v3962 = vpow.pop %v3961
    %v3963 = vadd.f32 %v3960, 1.0
    %v3964 = vadd.f32 %v3962, 1.0
    %v3965 = vrcp.pop %v3963
    %v3966 = vmul.f32 %v3963, %v3965
    %v3967 = vsub.f32 1.0, %v3966
    %v3968 = vmul.f32 %v3965, %v3967
    %v3969 = vadd.f32 %v3965, %v3968
    %vm3970 = vweird.f32 %v3963
    %vm3971 = vweird.f32 %v3965
    %vm3972 = vmor %vm3970, %vm3971
    %v3973 = vsel %vm3972, %v3965, %v3969
    %v3974 = vand.u32 2147483647, %v3963
    %vm3975 = vcmp.eq.f32.partialorder %v3974, 8.507059e+37
    %v3976 = vand.u32 %v3963, 2147483648
    %v3977 = vor.u32 1.1754944e-38, %v3976
    %v3978 = vsel %vm3975, %v3977, %v3973
    %v3979 = vmul.f32 1.0, %v3978
    %v3980 = vrcp.pop %v3964
    %v3981 = vmul.f32 %v3964, %v3980
    %v3982 = vsub.f32 1.0, %v3981
    %v3983 = vmul.f32 %v3980, %v3982
    %v3984 = vadd.f32 %v3980, %v3983
    %vm3985 = vweird.f32 %v3964
    %vm3986 = vweird.f32 %v3980
    %vm3987 = vmor %vm3985, %vm3986
    %v3988 = vsel %vm3987, %v3980, %v3984
    %v3989 = vand.u32 2147483647, %v3964
    %vm3990 = vcmp.eq.f32.partialorder %v3989, 8.507059e+37
    %v3991 = vand.u32 %v3964, 2147483648
    %v3992 = vor.u32 1.1754944e-38, %v3991
    %v3993 = vsel %vm3990, %v3992, %v3988
    %v3994 = vmul.f32 1.0, %v3993
    %v3995 = vtanh.pop %v3913
    %v3996 = vtanh.pop %v3917
    %v3997 = vxor.u32 %v3914, 2147483648
    %v3998 = vxor.u32 %v3918, 2147483648
    %v3999 = vmul.f32 %v3997, 1.442695
    %v4000 = vpow.pop %v3999
    %v4001 = vmul.f32 %v3998, 1.442695
    %v4002 = vpow.pop %v4001
    %v4003 = vadd.f32 %v4000, 1.0
    %v4004 = vadd.f32 %v4002, 1.0
    %v4005 = vrcp.pop %v4003
    %v4006 = vmul.f32 %v4003, %v4005
    %v4007 = vsub.f32 1.0, %v4006
    %v4008 = vmul.f32 %v4005, %v4007
    %v4009 = vadd.f32 %v4005, %v4008
    %vm4010 = vweird.f32 %v4003
    %vm4011 = vweird.f32 %v4005
    %vm4012 = vmor %vm4010, %vm4011
    %v4013 = vsel %vm4012, %v4005, %v4009
    %v4014 = vand.u32 2147483647, %v4003
    %vm4015 = vcmp.eq.f32.partialorder %v4014, 8.507059e+37
    %v4016 = vand.u32 %v4003, 2147483648
    %v4017 = vor.u32 1.1754944e-38, %v4016
    %v4018 = vsel %vm4015, %v4017, %v4013
    %v4019 = vmul.f32 1.0, %v4018
    %v4020 = vrcp.pop %v4004
    %v4021 = vmul.f32 %v4004, %v4020
    %v4022 = vsub.f32 1.0, %v4021
    %v4023 = vmul.f32 %v4020, %v4022
    %v4024 = vadd.f32 %v4020, %v4023
    %vm4025 = vweird.f32 %v4004
    %vm4026 = vweird.f32 %v4020
    %vm4027 = vmor %vm4025, %vm4026
    %v4028 = vsel %vm4027, %v4020, %v4024
    %v4029 = vand.u32 2147483647, %v4004
    %vm4030 = vcmp.eq.f32.partialorder %v4029, 8.507059e+37
    %v4031 = vand.u32 %v4004, 2147483648
    %v4032 = vor.u32 1.1754944e-38, %v4031
    %v4033 = vsel %vm4030, %v4032, %v4028
    %v4034 = vmul.f32 1.0, %v4033
    %v4035 = vmul.f32 %v3979, %v3649
    %v4036 = vmul.f32 %v3994, %v3650
    %v4037 = vmul.f32 %v3941, %v3995
    %v4038 = vmul.f32 %v3956, %v3996
    %v4039 = vadd.f32 %v4035, %v4037
    %v4040 = vadd.f32 %v4036, %v4038
    %v4041 = vtanh.pop %v4039
    %v4042 = vtanh.pop %v4040
    %v4043 = vmul.f32 %v4019, %v4041
    %v4044 = vmul.f32 %v4034, %v4042
    %4045 = vst [vmem:[#allocation4] sm:$0xff] %v4043
    %4046 = vst [vmem:[#allocation4 + $0x8] sm:$0xff] %v4044
    %4047 = vst [vmem:[#allocation5] sm:$0xff] %v4039
    %4048 = vst [vmem:[#allocation5 + $0x8] sm:$0xff] %v4040
    %v4049 = vpack.c.bf16 %v4043, %v4043
    %v4050 = vpack.c.bf16 %v4044, %v4044
    %s4051 = scalar_lea.vmem [#allocation15], 32
    %4052 = vst [vmem:[%s4051] sm:$0xf] %v4049
    %4053 = vst [vmem:[%s4051 + $0x4] sm:$0xf] %v4050
    %s4054 = smul.addr %s3651, 8
    %s4055 = scalar_lea.vmem [#allocation6], %s4054
    %v4056 = vld [vmem:[%s4055] sm:$0xff]
    %v4057 = vld [vmem:[%s4055 + $0x8] sm:$0xff]
    %v4058 = vld [vmem:[%s4055 + $0x10] sm:$0xff]
    %v4059 = vld [vmem:[%s4055 + $0x18] sm:$0xff]
    %v4060 = vld [vmem:[%s4055 + $0x20] sm:$0xff]
    %v4061 = vld [vmem:[%s4055 + $0x28] sm:$0xff]
    %v4062 = vld [vmem:[%s4055 + $0x30] sm:$0xff]
    %v4063 = vld [vmem:[%s4055 + $0x38] sm:$0xff]
    %v4064 = vld [vmem:[#allocation2] sm:$0xff]
    %v4065 = vld [vmem:[#allocation2 + $0x8] sm:$0xff]
    %v4066 = vpack.c.bf16 %v4065, %v4064
    %v4067 = vld [vmem:[%s4] sm:$0xff]
    %v4068 = vld [vmem:[%s4 + $0x8] sm:$0xff]
    %v4069 = vld [vmem:[%s4 + $0x10] sm:$0xff]
    %v4070 = vld [vmem:[%s4 + $0x18] sm:$0xff]
    %v4071 = vld [vmem:[%s4 + $0x20] sm:$0xff]
    %v4072 = vld [vmem:[%s4 + $0x28] sm:$0xff]
    %v4073 = vld [vmem:[%s4 + $0x30] sm:$0xff]
    %v4074 = vld [vmem:[%s4 + $0x38] sm:$0xff]
    %v4075 = vld [vmem:[%s4 + $0x40] sm:$0xff]
    %v4076 = vld [vmem:[%s4 + $0x48] sm:$0xff]
    %v4077 = vld [vmem:[%s4 + $0x50] sm:$0xff]
    %v4078 = vld [vmem:[%s4 + $0x58] sm:$0xff]
    %v4079 = vld [vmem:[%s4 + $0x60] sm:$0xff]
    %v4080 = vld [vmem:[%s4 + $0x68] sm:$0xff]
    %v4081 = vld [vmem:[%s4 + $0x70] sm:$0xff]
    %v4082 = vld [vmem:[%s4 + $0x78] sm:$0xff]
    %v4083 = vld [vmem:[%s4 + $0x80] sm:$0xff]
    %v4084 = vld [vmem:[%s4 + $0x88] sm:$0xff]
    %v4085 = vld [vmem:[%s4 + $0x90] sm:$0xff]
    %v4086 = vld [vmem:[%s4 + $0x98] sm:$0xff]
    %v4087 = vld [vmem:[%s4 + $0xa0] sm:$0xff]
    %v4088 = vld [vmem:[%s4 + $0xa8] sm:$0xff]
    %v4089 = vld [vmem:[%s4 + $0xb0] sm:$0xff]
    %v4090 = vld [vmem:[%s4 + $0xb8] sm:$0xff]
    %v4091 = vld [vmem:[%s4 + $0xc0] sm:$0xff]
    %v4092 = vld [vmem:[%s4 + $0xc8] sm:$0xff]
    %v4093 = vld [vmem:[%s4 + $0xd0] sm:$0xff]
    %v4094 = vld [vmem:[%s4 + $0xd8] sm:$0xff]
    %v4095 = vld [vmem:[%s4 + $0xe0] sm:$0xff]
    %v4096 = vld [vmem:[%s4 + $0xe8] sm:$0xff]
    %v4097 = vld [vmem:[%s4 + $0xf0] sm:$0xff]
    %v4098 = vld [vmem:[%s4 + $0xf8] sm:$0xff]
    %v4131 = vunpack.c.l.b16 %v4067
    %v4132 = vunpack.c.h.b16 %v4067
    %v4133 = vunpack.c.l.b16 %v4068
    %v4134 = vunpack.c.h.b16 %v4068
    %v4135 = vunpack.c.l.b16 %v4069
    %v4136 = vunpack.c.h.b16 %v4069
    %v4137 = vunpack.c.l.b16 %v4070
    %v4138 = vunpack.c.h.b16 %v4070
    %v4139 = vunpack.c.l.b16 %v4071
    %v4140 = vunpack.c.h.b16 %v4071
    %v4141 = vunpack.c.l.b16 %v4072
    %v4142 = vunpack.c.h.b16 %v4072
    %v4143 = vunpack.c.l.b16 %v4073
    %v4144 = vunpack.c.h.b16 %v4073
    %v4145 = vunpack.c.l.b16 %v4074
    %v4146 = vunpack.c.h.b16 %v4074
    %v4147 = vunpack.c.l.b16 %v4075
    %v4148 = vunpack.c.h.b16 %v4075
    %v4149 = vunpack.c.l.b16 %v4076
    %v4150 = vunpack.c.h.b16 %v4076
    %v4151 = vunpack.c.l.b16 %v4077
    %v4152 = vunpack.c.h.b16 %v4077
    %v4153 = vunpack.c.l.b16 %v4078
    %v4154 = vunpack.c.h.b16 %v4078
    %v4155 = vunpack.c.l.b16 %v4079
    %v4156 = vunpack.c.h.b16 %v4079
    %v4157 = vunpack.c.l.b16 %v4080
    %v4158 = vunpack.c.h.b16 %v4080
    %v4159 = vunpack.c.l.b16 %v4081
    %v4160 = vunpack.c.h.b16 %v4081
    %v4161 = vunpack.c.l.b16 %v4082
    %v4162 = vunpack.c.h.b16 %v4082
    %v4163 = vunpack.c.l.b16 %v4083
    %v4164 = vunpack.c.h.b16 %v4083
    %v4165 = vunpack.c.l.b16 %v4084
    %v4166 = vunpack.c.h.b16 %v4084
    %v4167 = vunpack.c.l.b16 %v4085
    %v4168 = vunpack.c.h.b16 %v4085
    %v4169 = vunpack.c.l.b16 %v4086
    %v4170 = vunpack.c.h.b16 %v4086
    %v4171 = vunpack.c.l.b16 %v4087
    %v4172 = vunpack.c.h.b16 %v4087
    %v4173 = vunpack.c.l.b16 %v4088
    %v4174 = vunpack.c.h.b16 %v4088
    %v4175 = vunpack.c.l.b16 %v4089
    %v4176 = vunpack.c.h.b16 %v4089
    %v4177 = vunpack.c.l.b16 %v4090
    %v4178 = vunpack.c.h.b16 %v4090
    %v4179 = vunpack.c.l.b16 %v4091
    %v4180 = vunpack.c.h.b16 %v4091
    %v4181 = vunpack.c.l.b16 %v4092
    %v4182 = vunpack.c.h.b16 %v4092
    %v4183 = vunpack.c.l.b16 %v4093
    %v4184 = vunpack.c.h.b16 %v4093
    %v4185 = vunpack.c.l.b16 %v4094
    %v4186 = vunpack.c.h.b16 %v4094
    %v4187 = vunpack.c.l.b16 %v4095
    %v4188 = vunpack.c.h.b16 %v4095
    %v4189 = vunpack.c.l.b16 %v4096
    %v4190 = vunpack.c.h.b16 %v4096
    %v4191 = vunpack.c.l.b16 %v4097
    %v4192 = vunpack.c.h.b16 %v4097
    %v4193 = vunpack.c.l.b16 %v4098
    %v4194 = vunpack.c.h.b16 %v4098
    %v4195 = vpack.c.b16 %v4135, %v4131
    %v4196 = vpack.c.b16 %v4136, %v4132
    %v4197 = vpack.c.b16 %v4137, %v4133
    %v4198 = vpack.c.b16 %v4138, %v4134
    %v4199 = vpack.c.b16 %v4143, %v4139
    %v4200 = vpack.c.b16 %v4144, %v4140
    %v4201 = vpack.c.b16 %v4145, %v4141
    %v4202 = vpack.c.b16 %v4146, %v4142
    %v4203 = vpack.c.b16 %v4151, %v4147
    %v4204 = vpack.c.b16 %v4152, %v4148
    %v4205 = vpack.c.b16 %v4153, %v4149
    %v4206 = vpack.c.b16 %v4154, %v4150
    %v4207 = vpack.c.b16 %v4159, %v4155
    %v4208 = vpack.c.b16 %v4160, %v4156
    %v4209 = vpack.c.b16 %v4161, %v4157
    %v4210 = vpack.c.b16 %v4162, %v4158
    %v4211 = vpack.c.b16 %v4167, %v4163
    %v4212 = vpack.c.b16 %v4168, %v4164
    %v4213 = vpack.c.b16 %v4169, %v4165
    %v4214 = vpack.c.b16 %v4170, %v4166
    %v4215 = vpack.c.b16 %v4175, %v4171
    %v4216 = vpack.c.b16 %v4176, %v4172
    %v4217 = vpack.c.b16 %v4177, %v4173
    %v4218 = vpack.c.b16 %v4178, %v4174
    %v4219 = vpack.c.b16 %v4183, %v4179
    %v4220 = vpack.c.b16 %v4184, %v4180
    %v4221 = vpack.c.b16 %v4185, %v4181
    %v4222 = vpack.c.b16 %v4186, %v4182
    %v4223 = vpack.c.b16 %v4191, %v4187
    %v4224 = vpack.c.b16 %v4192, %v4188
    %v4225 = vpack.c.b16 %v4193, %v4189
    %v4226 = vpack.c.b16 %v4194, %v4190
    %4259 = vmatpush.bf16.msra.mxu0 %v4223
    %4260 = vmatpush.bf16.msra.mxu0 %v4219
    %4261 = vmatpush.bf16.msra.mxu0 %v4215
    %4262 = vmatpush.bf16.msra.mxu0 %v4211
    %4263 = vmatpush.bf16.msra.mxu0 %v4207
    %4264 = vmatpush.bf16.msra.mxu0 %v4203
    %4265 = vmatpush.bf16.msra.mxu0 %v4199
    %4266 = vmatpush.bf16.msra.mxu0 %v4195
    %4267 = vmatmul.bf16.gmra.mxu0 %v4066
    %v4268 = vpop.f32.mrf.mxu0
    %v4269 = vadd.f32 0.0, %v4268
    %v4270 = vpop.f32.mrf.mxu0
    %v4271 = vadd.f32 0.0, %v4270
    %4272 = vdwg.mxu0
    %4273 = vmatpush.bf16.msra.mxu0 %v4224
    %4274 = vmatpush.bf16.msra.mxu0 %v4220
    %4275 = vmatpush.bf16.msra.mxu0 %v4216
    %4276 = vmatpush.bf16.msra.mxu0 %v4212
    %4277 = vmatpush.bf16.msra.mxu0 %v4208
    %4278 = vmatpush.bf16.msra.mxu0 %v4204
    %4279 = vmatpush.bf16.msra.mxu0 %v4200
    %4280 = vmatpush.bf16.msra.mxu0 %v4196
    %4281 = vmatmul.bf16.gmra.mxu0 %v4066
    %v4282 = vpop.f32.mrf.mxu0
    %v4283 = vadd.f32 0.0, %v4282
    %v4284 = vpop.f32.mrf.mxu0
    %v4285 = vadd.f32 0.0, %v4284
    %4286 = vdwg.mxu0
    %4287 = vmatpush.bf16.msra.mxu0 %v4225
    %4288 = vmatpush.bf16.msra.mxu0 %v4221
    %4289 = vmatpush.bf16.msra.mxu0 %v4217
    %4290 = vmatpush.bf16.msra.mxu0 %v4213
    %4291 = vmatpush.bf16.msra.mxu0 %v4209
    %4292 = vmatpush.bf16.msra.mxu0 %v4205
    %4293 = vmatpush.bf16.msra.mxu0 %v4201
    %4294 = vmatpush.bf16.msra.mxu0 %v4197
    %4295 = vmatmul.bf16.gmra.mxu0 %v4066
    %v4296 = vpop.f32.mrf.mxu0
    %v4297 = vadd.f32 0.0, %v4296
    %v4298 = vpop.f32.mrf.mxu0
    %v4299 = vadd.f32 0.0, %v4298
    %4300 = vdwg.mxu0
    %4301 = vmatpush.bf16.msra.mxu0 %v4226
    %4302 = vmatpush.bf16.msra.mxu0 %v4222
    %4303 = vmatpush.bf16.msra.mxu0 %v4218
    %4304 = vmatpush.bf16.msra.mxu0 %v4214
    %4305 = vmatpush.bf16.msra.mxu0 %v4210
    %4306 = vmatpush.bf16.msra.mxu0 %v4206
    %4307 = vmatpush.bf16.msra.mxu0 %v4202
    %4308 = vmatpush.bf16.msra.mxu0 %v4198
    %4309 = vmatmul.bf16.gmra.mxu0 %v4066
    %v4310 = vpop.f32.mrf.mxu0
    %v4311 = vadd.f32 0.0, %v4310
    %v4312 = vpop.f32.mrf.mxu0
    %v4313 = vadd.f32 0.0, %v4312
    %4314 = vdwg.mxu0
    %v4315 = vadd.f32 %v4056, %v4269
    %v4316 = vadd.f32 %v4057, %v4283
    %v4317 = vadd.f32 %v4058, %v4297
    %v4318 = vadd.f32 %v4059, %v4311
    %v4319 = vadd.f32 %v4060, %v4271
    %v4320 = vadd.f32 %v4061, %v4285
    %v4321 = vadd.f32 %v4062, %v4299
    %v4322 = vadd.f32 %v4063, %v4313
    %v4323 = vld [vmem:[#allocation3] sm:$0xff]
    %v4324 = vld [vmem:[#allocation3 + $0x8] sm:$0xff]
    %v4325 = vxor.u32 %v4315, 2147483648
    %v4326 = vxor.u32 %v4319, 2147483648
    %v4327 = vmul.f32 %v4325, 1.442695
    %v4328 = vpow.pop %v4327
    %v4329 = vmul.f32 %v4326, 1.442695
    %v4330 = vpow.pop %v4329
    %v4331 = vadd.f32 %v4328, 1.0
    %v4332 = vadd.f32 %v4330, 1.0
    %v4333 = vrcp.pop %v4331
    %v4334 = vmul.f32 %v4331, %v4333
    %v4335 = vsub.f32 1.0, %v4334
    %v4336 = vmul.f32 %v4333, %v4335
    %v4337 = vadd.f32 %v4333, %v4336
    %vm4338 = vweird.f32 %v4331
    %vm4339 = vweird.f32 %v4333
    %vm4340 = vmor %vm4338, %vm4339
    %v4341 = vsel %vm4340, %v4333, %v4337
    %v4342 = vand.u32 2147483647, %v4331
    %vm4343 = vcmp.eq.f32.partialorder %v4342, 8.507059e+37
    %v4344 = vand.u32 %v4331, 2147483648
    %v4345 = vor.u32 1.1754944e-38, %v4344
    %v4346 = vsel %vm4343, %v4345, %v4341
    %v4347 = vmul.f32 1.0, %v4346
    %v4348 = vrcp.pop %v4332
    %v4349 = vmul.f32 %v4332, %v4348
    %v4350 = vsub.f32 1.0, %v4349
    %v4351 = vmul.f32 %v4348, %v4350
    %v4352 = vadd.f32 %v4348, %v4351
    %vm4353 = vweird.f32 %v4332
    %vm4354 = vweird.f32 %v4348
    %vm4355 = vmor %vm4353, %vm4354
    %v4356 = vsel %vm4355, %v4348, %v4352
    %v4357 = vand.u32 2147483647, %v4332
    %vm4358 = vcmp.eq.f32.partialorder %v4357, 8.507059e+37
    %v4359 = vand.u32 %v4332, 2147483648
    %v4360 = vor.u32 1.1754944e-38, %v4359
    %v4361 = vsel %vm4358, %v4360, %v4356
    %v4362 = vmul.f32 1.0, %v4361
    %v4363 = vxor.u32 %v4316, 2147483648
    %v4364 = vxor.u32 %v4320, 2147483648
    %v4365 = vmul.f32 %v4363, 1.442695
    %v4366 = vpow.pop %v4365
    %v4367 = vmul.f32 %v4364, 1.442695
    %v4368 = vpow.pop %v4367
    %v4369 = vadd.f32 %v4366, 1.0
    %v4370 = vadd.f32 %v4368, 1.0
    %v4371 = vrcp.pop %v4369
    %v4372 = vmul.f32 %v4369, %v4371
    %v4373 = vsub.f32 1.0, %v4372
    %v4374 = vmul.f32 %v4371, %v4373
    %v4375 = vadd.f32 %v4371, %v4374
    %vm4376 = vweird.f32 %v4369
    %vm4377 = vweird.f32 %v4371
    %vm4378 = vmor %vm4376, %vm4377
    %v4379 = vsel %vm4378, %v4371, %v4375
    %v4380 = vand.u32 2147483647, %v4369
    %vm4381 = vcmp.eq.f32.partialorder %v4380, 8.507059e+37
    %v4382 = vand.u32 %v4369, 2147483648
    %v4383 = vor.u32 1.1754944e-38, %v4382
    %v4384 = vsel %vm4381, %v4383, %v4379
    %v4385 = vmul.f32 1.0, %v4384
    %v4386 = vrcp.pop %v4370
    %v4387 = vmul.f32 %v4370, %v4386
    %v4388 = vsub.f32 1.0, %v4387
    %v4389 = vmul.f32 %v4386, %v4388
    %v4390 = vadd.f32 %v4386, %v4389
    %vm4391 = vweird.f32 %v4370
    %vm4392 = vweird.f32 %v4386
    %vm4393 = vmor %vm4391, %vm4392
    %v4394 = vsel %vm4393, %v4386, %v4390
    %v4395 = vand.u32 2147483647, %v4370
    %vm4396 = vcmp.eq.f32.partialorder %v4395, 8.507059e+37
    %v4397 = vand.u32 %v4370, 2147483648
    %v4398 = vor.u32 1.1754944e-38, %v4397
    %v4399 = vsel %vm4396, %v4398, %v4394
    %v4400 = vmul.f32 1.0, %v4399
    %v4401 = vtanh.pop %v4317
    %v4402 = vtanh.pop %v4321
    %v4403 = vxor.u32 %v4318, 2147483648
    %v4404 = vxor.u32 %v4322, 2147483648
    %v4405 = vmul.f32 %v4403, 1.442695
    %v4406 = vpow.pop %v4405
    %v4407 = vmul.f32 %v4404, 1.442695
    %v4408 = vpow.pop %v4407
    %v4409 = vadd.f32 %v4406, 1.0
    %v4410 = vadd.f32 %v4408, 1.0
    %v4411 = vrcp.pop %v4409
    %v4412 = vmul.f32 %v4409, %v4411
    %v4413 = vsub.f32 1.0, %v4412
    %v4414 = vmul.f32 %v4411, %v4413
    %v4415 = vadd.f32 %v4411, %v4414
    %vm4416 = vweird.f32 %v4409
    %vm4417 = vweird.f32 %v4411
    %vm4418 = vmor %vm4416, %vm4417
    %v4419 = vsel %vm4418, %v4411, %v4415
    %v4420 = vand.u32 2147483647, %v4409
    %vm4421 = vcmp.eq.f32.partialorder %v4420, 8.507059e+37
    %v4422 = vand.u32 %v4409, 2147483648
    %v4423 = vor.u32 1.1754944e-38, %v4422
    %v4424 = vsel %vm4421, %v4423, %v4419
    %v4425 = vmul.f32 1.0, %v4424
    %v4426 = vrcp.pop %v4410
    %v4427 = vmul.f32 %v4410, %v4426
    %v4428 = vsub.f32 1.0, %v4427
    %v4429 = vmul.f32 %v4426, %v4428
    %v4430 = vadd.f32 %v4426, %v4429
    %vm4431 = vweird.f32 %v4410
    %vm4432 = vweird.f32 %v4426
    %vm4433 = vmor %vm4431, %vm4432
    %v4434 = vsel %vm4433, %v4426, %v4430
    %v4435 = vand.u32 2147483647, %v4410
    %vm4436 = vcmp.eq.f32.partialorder %v4435, 8.507059e+37
    %v4437 = vand.u32 %v4410, 2147483648
    %v4438 = vor.u32 1.1754944e-38, %v4437
    %v4439 = vsel %vm4436, %v4438, %v4434
    %v4440 = vmul.f32 1.0, %v4439
    %v4441 = vmul.f32 %v4385, %v4323
    %v4442 = vmul.f32 %v4400, %v4324
    %v4443 = vmul.f32 %v4347, %v4401
    %v4444 = vmul.f32 %v4362, %v4402
    %v4445 = vadd.f32 %v4441, %v4443
    %v4446 = vadd.f32 %v4442, %v4444
    %v4447 = vtanh.pop %v4445
    %v4448 = vtanh.pop %v4446
    %v4449 = vmul.f32 %v4425, %v4447
    %v4450 = vmul.f32 %v4440, %v4448
    %4451 = vst [vmem:[#allocation2] sm:$0xff] %v4449
    %4452 = vst [vmem:[#allocation2 + $0x8] sm:$0xff] %v4450
    %4453 = vst [vmem:[#allocation3] sm:$0xff] %v4445
    %4454 = vst [vmem:[#allocation3 + $0x8] sm:$0xff] %v4446
    %v4455 = vpack.c.bf16 %v4449, %v4449
    %v4456 = vpack.c.bf16 %v4450, %v4450
    %s4457 = scalar_lea.vmem [#allocation14], 32
    %4458 = vst [vmem:[%s4457] sm:$0xf] %v4455
    %4459 = vst [vmem:[%s4457 + $0x4] sm:$0xf] %v4456
    %v4460 = vld [vmem:[#allocation4] sm:$0xff]
    %v4461 = vld [vmem:[#allocation4 + $0x8] sm:$0xff]
    %v4462 = vld [vmem:[#allocation5] sm:$0xff]
    %v4463 = vld [vmem:[#allocation5 + $0x8] sm:$0xff]
    %s4464 = smul.addr %s3240, 8
    %s4465 = scalar_lea.vmem [#allocation7], %s4464
    %v4466 = vld [vmem:[%s4465] sm:$0xff]
    %v4467 = vld [vmem:[%s4465 + $0x8] sm:$0xff]
    %v4468 = vld [vmem:[%s4465 + $0x10] sm:$0xff]
    %v4469 = vld [vmem:[%s4465 + $0x18] sm:$0xff]
    %v4470 = vld [vmem:[%s4465 + $0x20] sm:$0xff]
    %v4471 = vld [vmem:[%s4465 + $0x28] sm:$0xff]
    %v4472 = vld [vmem:[%s4465 + $0x30] sm:$0xff]
    %v4473 = vld [vmem:[%s4465 + $0x38] sm:$0xff]
    %v4474 = vpack.c.bf16 %v4461, %v4460
    %v4475 = vld [vmem:[#allocation13] sm:$0xff]
    %v4476 = vld [vmem:[#allocation13 + $0x8] sm:$0xff]
    %v4477 = vld [vmem:[#allocation13 + $0x10] sm:$0xff]
    %v4478 = vld [vmem:[#allocation13 + $0x18] sm:$0xff]
    %v4479 = vld [vmem:[#allocation13 + $0x20] sm:$0xff]
    %v4480 = vld [vmem:[#allocation13 + $0x28] sm:$0xff]
    %v4481 = vld [vmem:[#allocation13 + $0x30] sm:$0xff]
    %v4482 = vld [vmem:[#allocation13 + $0x38] sm:$0xff]
    %v4483 = vld [vmem:[#allocation13 + $0x40] sm:$0xff]
    %v4484 = vld [vmem:[#allocation13 + $0x48] sm:$0xff]
    %v4485 = vld [vmem:[#allocation13 + $0x50] sm:$0xff]
    %v4486 = vld [vmem:[#allocation13 + $0x58] sm:$0xff]
    %v4487 = vld [vmem:[#allocation13 + $0x60] sm:$0xff]
    %v4488 = vld [vmem:[#allocation13 + $0x68] sm:$0xff]
    %v4489 = vld [vmem:[#allocation13 + $0x70] sm:$0xff]
    %v4490 = vld [vmem:[#allocation13 + $0x78] sm:$0xff]
    %v4491 = vld [vmem:[#allocation13 + $0x80] sm:$0xff]
    %v4492 = vld [vmem:[#allocation13 + $0x88] sm:$0xff]
    %v4493 = vld [vmem:[#allocation13 + $0x90] sm:$0xff]
    %v4494 = vld [vmem:[#allocation13 + $0x98] sm:$0xff]
    %v4495 = vld [vmem:[#allocation13 + $0xa0] sm:$0xff]
    %v4496 = vld [vmem:[#allocation13 + $0xa8] sm:$0xff]
    %v4497 = vld [vmem:[#allocation13 + $0xb0] sm:$0xff]
    %v4498 = vld [vmem:[#allocation13 + $0xb8] sm:$0xff]
    %v4499 = vld [vmem:[#allocation13 + $0xc0] sm:$0xff]
    %v4500 = vld [vmem:[#allocation13 + $0xc8] sm:$0xff]
    %v4501 = vld [vmem:[#allocation13 + $0xd0] sm:$0xff]
    %v4502 = vld [vmem:[#allocation13 + $0xd8] sm:$0xff]
    %v4503 = vld [vmem:[#allocation13 + $0xe0] sm:$0xff]
    %v4504 = vld [vmem:[#allocation13 + $0xe8] sm:$0xff]
    %v4505 = vld [vmem:[#allocation13 + $0xf0] sm:$0xff]
    %v4506 = vld [vmem:[#allocation13 + $0xf8] sm:$0xff]
    %v4539 = vunpack.c.l.b16 %v4475
    %v4540 = vunpack.c.h.b16 %v4475
    %v4541 = vunpack.c.l.b16 %v4476
    %v4542 = vunpack.c.h.b16 %v4476
    %v4543 = vunpack.c.l.b16 %v4477
    %v4544 = vunpack.c.h.b16 %v4477
    %v4545 = vunpack.c.l.b16 %v4478
    %v4546 = vunpack.c.h.b16 %v4478
    %v4547 = vunpack.c.l.b16 %v4479
    %v4548 = vunpack.c.h.b16 %v4479
    %v4549 = vunpack.c.l.b16 %v4480
    %v4550 = vunpack.c.h.b16 %v4480
    %v4551 = vunpack.c.l.b16 %v4481
    %v4552 = vunpack.c.h.b16 %v4481
    %v4553 = vunpack.c.l.b16 %v4482
    %v4554 = vunpack.c.h.b16 %v4482
    %v4555 = vunpack.c.l.b16 %v4483
    %v4556 = vunpack.c.h.b16 %v4483
    %v4557 = vunpack.c.l.b16 %v4484
    %v4558 = vunpack.c.h.b16 %v4484
    %v4559 = vunpack.c.l.b16 %v4485
    %v4560 = vunpack.c.h.b16 %v4485
    %v4561 = vunpack.c.l.b16 %v4486
    %v4562 = vunpack.c.h.b16 %v4486
    %v4563 = vunpack.c.l.b16 %v4487
    %v4564 = vunpack.c.h.b16 %v4487
    %v4565 = vunpack.c.l.b16 %v4488
    %v4566 = vunpack.c.h.b16 %v4488
    %v4567 = vunpack.c.l.b16 %v4489
    %v4568 = vunpack.c.h.b16 %v4489
    %v4569 = vunpack.c.l.b16 %v4490
    %v4570 = vunpack.c.h.b16 %v4490
    %v4571 = vunpack.c.l.b16 %v4491
    %v4572 = vunpack.c.h.b16 %v4491
    %v4573 = vunpack.c.l.b16 %v4492
    %v4574 = vunpack.c.h.b16 %v4492
    %v4575 = vunpack.c.l.b16 %v4493
    %v4576 = vunpack.c.h.b16 %v4493
    %v4577 = vunpack.c.l.b16 %v4494
    %v4578 = vunpack.c.h.b16 %v4494
    %v4579 = vunpack.c.l.b16 %v4495
    %v4580 = vunpack.c.h.b16 %v4495
    %v4581 = vunpack.c.l.b16 %v4496
    %v4582 = vunpack.c.h.b16 %v4496
    %v4583 = vunpack.c.l.b16 %v4497
    %v4584 = vunpack.c.h.b16 %v4497
    %v4585 = vunpack.c.l.b16 %v4498
    %v4586 = vunpack.c.h.b16 %v4498
    %v4587 = vunpack.c.l.b16 %v4499
    %v4588 = vunpack.c.h.b16 %v4499
    %v4589 = vunpack.c.l.b16 %v4500
    %v4590 = vunpack.c.h.b16 %v4500
    %v4591 = vunpack.c.l.b16 %v4501
    %v4592 = vunpack.c.h.b16 %v4501
    %v4593 = vunpack.c.l.b16 %v4502
    %v4594 = vunpack.c.h.b16 %v4502
    %v4595 = vunpack.c.l.b16 %v4503
    %v4596 = vunpack.c.h.b16 %v4503
    %v4597 = vunpack.c.l.b16 %v4504
    %v4598 = vunpack.c.h.b16 %v4504
    %v4599 = vunpack.c.l.b16 %v4505
    %v4600 = vunpack.c.h.b16 %v4505
    %v4601 = vunpack.c.l.b16 %v4506
    %v4602 = vunpack.c.h.b16 %v4506
    %v4603 = vpack.c.b16 %v4543, %v4539
    %v4604 = vpack.c.b16 %v4544, %v4540
    %v4605 = vpack.c.b16 %v4545, %v4541
    %v4606 = vpack.c.b16 %v4546, %v4542
    %v4607 = vpack.c.b16 %v4551, %v4547
    %v4608 = vpack.c.b16 %v4552, %v4548
    %v4609 = vpack.c.b16 %v4553, %v4549
    %v4610 = vpack.c.b16 %v4554, %v4550
    %v4611 = vpack.c.b16 %v4559, %v4555
    %v4612 = vpack.c.b16 %v4560, %v4556
    %v4613 = vpack.c.b16 %v4561, %v4557
    %v4614 = vpack.c.b16 %v4562, %v4558
    %v4615 = vpack.c.b16 %v4567, %v4563
    %v4616 = vpack.c.b16 %v4568, %v4564
    %v4617 = vpack.c.b16 %v4569, %v4565
    %v4618 = vpack.c.b16 %v4570, %v4566
    %v4619 = vpack.c.b16 %v4575, %v4571
    %v4620 = vpack.c.b16 %v4576, %v4572
    %v4621 = vpack.c.b16 %v4577, %v4573
    %v4622 = vpack.c.b16 %v4578, %v4574
    %v4623 = vpack.c.b16 %v4583, %v4579
    %v4624 = vpack.c.b16 %v4584, %v4580
    %v4625 = vpack.c.b16 %v4585, %v4581
    %v4626 = vpack.c.b16 %v4586, %v4582
    %v4627 = vpack.c.b16 %v4591, %v4587
    %v4628 = vpack.c.b16 %v4592, %v4588
    %v4629 = vpack.c.b16 %v4593, %v4589
    %v4630 = vpack.c.b16 %v4594, %v4590
    %v4631 = vpack.c.b16 %v4599, %v4595
    %v4632 = vpack.c.b16 %v4600, %v4596
    %v4633 = vpack.c.b16 %v4601, %v4597
    %v4634 = vpack.c.b16 %v4602, %v4598
    %4667 = vmatpush.bf16.msra.mxu0 %v4631
    %4668 = vmatpush.bf16.msra.mxu0 %v4627
    %4669 = vmatpush.bf16.msra.mxu0 %v4623
    %4670 = vmatpush.bf16.msra.mxu0 %v4619
    %4671 = vmatpush.bf16.msra.mxu0 %v4615
    %4672 = vmatpush.bf16.msra.mxu0 %v4611
    %4673 = vmatpush.bf16.msra.mxu0 %v4607
    %4674 = vmatpush.bf16.msra.mxu0 %v4603
    %4675 = vmatmul.bf16.gmra.mxu0 %v4474
    %v4676 = vpop.f32.mrf.mxu0
    %v4677 = vadd.f32 0.0, %v4676
    %v4678 = vpop.f32.mrf.mxu0
    %v4679 = vadd.f32 0.0, %v4678
    %4680 = vdwg.mxu0
    %4681 = vmatpush.bf16.msra.mxu0 %v4632
    %4682 = vmatpush.bf16.msra.mxu0 %v4628
    %4683 = vmatpush.bf16.msra.mxu0 %v4624
    %4684 = vmatpush.bf16.msra.mxu0 %v4620
    %4685 = vmatpush.bf16.msra.mxu0 %v4616
    %4686 = vmatpush.bf16.msra.mxu0 %v4612
    %4687 = vmatpush.bf16.msra.mxu0 %v4608
    %4688 = vmatpush.bf16.msra.mxu0 %v4604
    %4689 = vmatmul.bf16.gmra.mxu0 %v4474
    %v4690 = vpop.f32.mrf.mxu0
    %v4691 = vadd.f32 0.0, %v4690
    %v4692 = vpop.f32.mrf.mxu0
    %v4693 = vadd.f32 0.0, %v4692
    %4694 = vdwg.mxu0
    %4695 = vmatpush.bf16.msra.mxu0 %v4633
    %4696 = vmatpush.bf16.msra.mxu0 %v4629
    %4697 = vmatpush.bf16.msra.mxu0 %v4625
    %4698 = vmatpush.bf16.msra.mxu0 %v4621
    %4699 = vmatpush.bf16.msra.mxu0 %v4617
    %4700 = vmatpush.bf16.msra.mxu0 %v4613
    %4701 = vmatpush.bf16.msra.mxu0 %v4609
    %4702 = vmatpush.bf16.msra.mxu0 %v4605
    %4703 = vmatmul.bf16.gmra.mxu0 %v4474
    %v4704 = vpop.f32.mrf.mxu0
    %v4705 = vadd.f32 0.0, %v4704
    %v4706 = vpop.f32.mrf.mxu0
    %v4707 = vadd.f32 0.0, %v4706
    %4708 = vdwg.mxu0
    %4709 = vmatpush.bf16.msra.mxu0 %v4634
    %4710 = vmatpush.bf16.msra.mxu0 %v4630
    %4711 = vmatpush.bf16.msra.mxu0 %v4626
    %4712 = vmatpush.bf16.msra.mxu0 %v4622
    %4713 = vmatpush.bf16.msra.mxu0 %v4618
    %4714 = vmatpush.bf16.msra.mxu0 %v4614
    %4715 = vmatpush.bf16.msra.mxu0 %v4610
    %4716 = vmatpush.bf16.msra.mxu0 %v4606
    %4717 = vmatmul.bf16.gmra.mxu0 %v4474
    %v4718 = vpop.f32.mrf.mxu0
    %v4719 = vadd.f32 0.0, %v4718
    %v4720 = vpop.f32.mrf.mxu0
    %v4721 = vadd.f32 0.0, %v4720
    %4722 = vdwg.mxu0
    %v4723 = vadd.f32 %v4466, %v4677
    %v4724 = vadd.f32 %v4467, %v4691
    %v4725 = vadd.f32 %v4468, %v4705
    %v4726 = vadd.f32 %v4469, %v4719
    %v4727 = vadd.f32 %v4470, %v4679
    %v4728 = vadd.f32 %v4471, %v4693
    %v4729 = vadd.f32 %v4472, %v4707
    %v4730 = vadd.f32 %v4473, %v4721
    %v4731 = vxor.u32 %v4723, 2147483648
    %v4732 = vxor.u32 %v4727, 2147483648
    %v4733 = vmul.f32 %v4731, 1.442695
    %v4734 = vpow.pop %v4733
    %v4735 = vmul.f32 %v4732, 1.442695
    %v4736 = vpow.pop %v4735
    %v4737 = vadd.f32 %v4734, 1.0
    %v4738 = vadd.f32 %v4736, 1.0
    %v4739 = vrcp.pop %v4737
    %v4740 = vmul.f32 %v4737, %v4739
    %v4741 = vsub.f32 1.0, %v4740
    %v4742 = vmul.f32 %v4739, %v4741
    %v4743 = vadd.f32 %v4739, %v4742
    %vm4744 = vweird.f32 %v4737
    %vm4745 = vweird.f32 %v4739
    %vm4746 = vmor %vm4744, %vm4745
    %v4747 = vsel %vm4746, %v4739, %v4743
    %v4748 = vand.u32 2147483647, %v4737
    %vm4749 = vcmp.eq.f32.partialorder %v4748, 8.507059e+37
    %v4750 = vand.u32 %v4737, 2147483648
    %v4751 = vor.u32 1.1754944e-38, %v4750
    %v4752 = vsel %vm4749, %v4751, %v4747
    %v4753 = vmul.f32 1.0, %v4752
    %v4754 = vrcp.pop %v4738
    %v4755 = vmul.f32 %v4738, %v4754
    %v4756 = vsub.f32 1.0, %v4755
    %v4757 = vmul.f32 %v4754, %v4756
    %v4758 = vadd.f32 %v4754, %v4757
    %vm4759 = vweird.f32 %v4738
    %vm4760 = vweird.f32 %v4754
    %vm4761 = vmor %vm4759, %vm4760
    %v4762 = vsel %vm4761, %v4754, %v4758
    %v4763 = vand.u32 2147483647, %v4738
    %vm4764 = vcmp.eq.f32.partialorder %v4763, 8.507059e+37
    %v4765 = vand.u32 %v4738, 2147483648
    %v4766 = vor.u32 1.1754944e-38, %v4765
    %v4767 = vsel %vm4764, %v4766, %v4762
    %v4768 = vmul.f32 1.0, %v4767
    %v4769 = vxor.u32 %v4724, 2147483648
    %v4770 = vxor.u32 %v4728, 2147483648
    %v4771 = vmul.f32 %v4769, 1.442695
    %v4772 = vpow.pop %v4771
    %v4773 = vmul.f32 %v4770, 1.442695
    %v4774 = vpow.pop %v4773
    %v4775 = vadd.f32 %v4772, 1.0
    %v4776 = vadd.f32 %v4774, 1.0
    %v4777 = vrcp.pop %v4775
    %v4778 = vmul.f32 %v4775, %v4777
    %v4779 = vsub.f32 1.0, %v4778
    %v4780 = vmul.f32 %v4777, %v4779
    %v4781 = vadd.f32 %v4777, %v4780
    %vm4782 = vweird.f32 %v4775
    %vm4783 = vweird.f32 %v4777
    %vm4784 = vmor %vm4782, %vm4783
    %v4785 = vsel %vm4784, %v4777, %v4781
    %v4786 = vand.u32 2147483647, %v4775
    %vm4787 = vcmp.eq.f32.partialorder %v4786, 8.507059e+37
    %v4788 = vand.u32 %v4775, 2147483648
    %v4789 = vor.u32 1.1754944e-38, %v4788
    %v4790 = vsel %vm4787, %v4789, %v4785
    %v4791 = vmul.f32 1.0, %v4790
    %v4792 = vrcp.pop %v4776
    %v4793 = vmul.f32 %v4776, %v4792
    %v4794 = vsub.f32 1.0, %v4793
    %v4795 = vmul.f32 %v4792, %v4794
    %v4796 = vadd.f32 %v4792, %v4795
    %vm4797 = vweird.f32 %v4776
    %vm4798 = vweird.f32 %v4792
    %vm4799 = vmor %vm4797, %vm4798
    %v4800 = vsel %vm4799, %v4792, %v4796
    %v4801 = vand.u32 2147483647, %v4776
    %vm4802 = vcmp.eq.f32.partialorder %v4801, 8.507059e+37
    %v4803 = vand.u32 %v4776, 2147483648
    %v4804 = vor.u32 1.1754944e-38, %v4803
    %v4805 = vsel %vm4802, %v4804, %v4800
    %v4806 = vmul.f32 1.0, %v4805
    %v4807 = vtanh.pop %v4725
    %v4808 = vtanh.pop %v4729
    %v4809 = vxor.u32 %v4726, 2147483648
    %v4810 = vxor.u32 %v4730, 2147483648
    %v4811 = vmul.f32 %v4809, 1.442695
    %v4812 = vpow.pop %v4811
    %v4813 = vmul.f32 %v4810, 1.442695
    %v4814 = vpow.pop %v4813
    %v4815 = vadd.f32 %v4812, 1.0
    %v4816 = vadd.f32 %v4814, 1.0
    %v4817 = vrcp.pop %v4815
    %v4818 = vmul.f32 %v4815, %v4817
    %v4819 = vsub.f32 1.0, %v4818
    %v4820 = vmul.f32 %v4817, %v4819
    %v4821 = vadd.f32 %v4817, %v4820
    %vm4822 = vweird.f32 %v4815
    %vm4823 = vweird.f32 %v4817
    %vm4824 = vmor %vm4822, %vm4823
    %v4825 = vsel %vm4824, %v4817, %v4821
    %v4826 = vand.u32 2147483647, %v4815
    %vm4827 = vcmp.eq.f32.partialorder %v4826, 8.507059e+37
    %v4828 = vand.u32 %v4815, 2147483648
    %v4829 = vor.u32 1.1754944e-38, %v4828
    %v4830 = vsel %vm4827, %v4829, %v4825
    %v4831 = vmul.f32 1.0, %v4830
    %v4832 = vrcp.pop %v4816
    %v4833 = vmul.f32 %v4816, %v4832
    %v4834 = vsub.f32 1.0, %v4833
    %v4835 = vmul.f32 %v4832, %v4834
    %v4836 = vadd.f32 %v4832, %v4835
    %vm4837 = vweird.f32 %v4816
    %vm4838 = vweird.f32 %v4832
    %vm4839 = vmor %vm4837, %vm4838
    %v4840 = vsel %vm4839, %v4832, %v4836
    %v4841 = vand.u32 2147483647, %v4816
    %vm4842 = vcmp.eq.f32.partialorder %v4841, 8.507059e+37
    %v4843 = vand.u32 %v4816, 2147483648
    %v4844 = vor.u32 1.1754944e-38, %v4843
    %v4845 = vsel %vm4842, %v4844, %v4840
    %v4846 = vmul.f32 1.0, %v4845
    %v4847 = vmul.f32 %v4791, %v4462
    %v4848 = vmul.f32 %v4806, %v4463
    %v4849 = vmul.f32 %v4753, %v4807
    %v4850 = vmul.f32 %v4768, %v4808
    %v4851 = vadd.f32 %v4847, %v4849
    %v4852 = vadd.f32 %v4848, %v4850
    %v4853 = vtanh.pop %v4851
    %v4854 = vtanh.pop %v4852
    %v4855 = vmul.f32 %v4831, %v4853
    %v4856 = vmul.f32 %v4846, %v4854
    %4857 = vst [vmem:[#allocation4] sm:$0xff] %v4855
    %4858 = vst [vmem:[#allocation4 + $0x8] sm:$0xff] %v4856
    %4859 = vst [vmem:[#allocation5] sm:$0xff] %v4851
    %4860 = vst [vmem:[#allocation5 + $0x8] sm:$0xff] %v4852
    %v4861 = vpack.c.bf16 %v4855, %v4855
    %v4862 = vpack.c.bf16 %v4856, %v4856
    %s4863 = scalar_lea.vmem [#allocation15], 24
    %4864 = vst [vmem:[%s4863] sm:$0xf] %v4861
    %4865 = vst [vmem:[%s4863 + $0x4] sm:$0xf] %v4862
    %s4866 = smul.addr %s2837, 8
    %s4867 = scalar_lea.vmem [#allocation6], %s4866
    %v4868 = vld [vmem:[%s4867] sm:$0xff]
    %v4869 = vld [vmem:[%s4867 + $0x8] sm:$0xff]
    %v4870 = vld [vmem:[%s4867 + $0x10] sm:$0xff]
    %v4871 = vld [vmem:[%s4867 + $0x18] sm:$0xff]
    %v4872 = vld [vmem:[%s4867 + $0x20] sm:$0xff]
    %v4873 = vld [vmem:[%s4867 + $0x28] sm:$0xff]
    %v4874 = vld [vmem:[%s4867 + $0x30] sm:$0xff]
    %v4875 = vld [vmem:[%s4867 + $0x38] sm:$0xff]
    %v4876 = vld [vmem:[#allocation2] sm:$0xff]
    %v4877 = vld [vmem:[#allocation2 + $0x8] sm:$0xff]
    %v4878 = vpack.c.bf16 %v4877, %v4876
    %v4879 = vld [vmem:[%s4] sm:$0xff]
    %v4880 = vld [vmem:[%s4 + $0x8] sm:$0xff]
    %v4881 = vld [vmem:[%s4 + $0x10] sm:$0xff]
    %v4882 = vld [vmem:[%s4 + $0x18] sm:$0xff]
    %v4883 = vld [vmem:[%s4 + $0x20] sm:$0xff]
    %v4884 = vld [vmem:[%s4 + $0x28] sm:$0xff]
    %v4885 = vld [vmem:[%s4 + $0x30] sm:$0xff]
    %v4886 = vld [vmem:[%s4 + $0x38] sm:$0xff]
    %v4887 = vld [vmem:[%s4 + $0x40] sm:$0xff]
    %v4888 = vld [vmem:[%s4 + $0x48] sm:$0xff]
    %v4889 = vld [vmem:[%s4 + $0x50] sm:$0xff]
    %v4890 = vld [vmem:[%s4 + $0x58] sm:$0xff]
    %v4891 = vld [vmem:[%s4 + $0x60] sm:$0xff]
    %v4892 = vld [vmem:[%s4 + $0x68] sm:$0xff]
    %v4893 = vld [vmem:[%s4 + $0x70] sm:$0xff]
    %v4894 = vld [vmem:[%s4 + $0x78] sm:$0xff]
    %v4895 = vld [vmem:[%s4 + $0x80] sm:$0xff]
    %v4896 = vld [vmem:[%s4 + $0x88] sm:$0xff]
    %v4897 = vld [vmem:[%s4 + $0x90] sm:$0xff]
    %v4898 = vld [vmem:[%s4 + $0x98] sm:$0xff]
    %v4899 = vld [vmem:[%s4 + $0xa0] sm:$0xff]
    %v4900 = vld [vmem:[%s4 + $0xa8] sm:$0xff]
    %v4901 = vld [vmem:[%s4 + $0xb0] sm:$0xff]
    %v4902 = vld [vmem:[%s4 + $0xb8] sm:$0xff]
    %v4903 = vld [vmem:[%s4 + $0xc0] sm:$0xff]
    %v4904 = vld [vmem:[%s4 + $0xc8] sm:$0xff]
    %v4905 = vld [vmem:[%s4 + $0xd0] sm:$0xff]
    %v4906 = vld [vmem:[%s4 + $0xd8] sm:$0xff]
    %v4907 = vld [vmem:[%s4 + $0xe0] sm:$0xff]
    %v4908 = vld [vmem:[%s4 + $0xe8] sm:$0xff]
    %v4909 = vld [vmem:[%s4 + $0xf0] sm:$0xff]
    %v4910 = vld [vmem:[%s4 + $0xf8] sm:$0xff]
    %v4943 = vunpack.c.l.b16 %v4879
    %v4944 = vunpack.c.h.b16 %v4879
    %v4945 = vunpack.c.l.b16 %v4880
    %v4946 = vunpack.c.h.b16 %v4880
    %v4947 = vunpack.c.l.b16 %v4881
    %v4948 = vunpack.c.h.b16 %v4881
    %v4949 = vunpack.c.l.b16 %v4882
    %v4950 = vunpack.c.h.b16 %v4882
    %v4951 = vunpack.c.l.b16 %v4883
    %v4952 = vunpack.c.h.b16 %v4883
    %v4953 = vunpack.c.l.b16 %v4884
    %v4954 = vunpack.c.h.b16 %v4884
    %v4955 = vunpack.c.l.b16 %v4885
    %v4956 = vunpack.c.h.b16 %v4885
    %v4957 = vunpack.c.l.b16 %v4886
    %v4958 = vunpack.c.h.b16 %v4886
    %v4959 = vunpack.c.l.b16 %v4887
    %v4960 = vunpack.c.h.b16 %v4887
    %v4961 = vunpack.c.l.b16 %v4888
    %v4962 = vunpack.c.h.b16 %v4888
    %v4963 = vunpack.c.l.b16 %v4889
    %v4964 = vunpack.c.h.b16 %v4889
    %v4965 = vunpack.c.l.b16 %v4890
    %v4966 = vunpack.c.h.b16 %v4890
    %v4967 = vunpack.c.l.b16 %v4891
    %v4968 = vunpack.c.h.b16 %v4891
    %v4969 = vunpack.c.l.b16 %v4892
    %v4970 = vunpack.c.h.b16 %v4892
    %v4971 = vunpack.c.l.b16 %v4893
    %v4972 = vunpack.c.h.b16 %v4893
    %v4973 = vunpack.c.l.b16 %v4894
    %v4974 = vunpack.c.h.b16 %v4894
    %v4975 = vunpack.c.l.b16 %v4895
    %v4976 = vunpack.c.h.b16 %v4895
    %v4977 = vunpack.c.l.b16 %v4896
    %v4978 = vunpack.c.h.b16 %v4896
    %v4979 = vunpack.c.l.b16 %v4897
    %v4980 = vunpack.c.h.b16 %v4897
    %v4981 = vunpack.c.l.b16 %v4898
    %v4982 = vunpack.c.h.b16 %v4898
    %v4983 = vunpack.c.l.b16 %v4899
    %v4984 = vunpack.c.h.b16 %v4899
    %v4985 = vunpack.c.l.b16 %v4900
    %v4986 = vunpack.c.h.b16 %v4900
    %v4987 = vunpack.c.l.b16 %v4901
    %v4988 = vunpack.c.h.b16 %v4901
    %v4989 = vunpack.c.l.b16 %v4902
    %v4990 = vunpack.c.h.b16 %v4902
    %v4991 = vunpack.c.l.b16 %v4903
    %v4992 = vunpack.c.h.b16 %v4903
    %v4993 = vunpack.c.l.b16 %v4904
    %v4994 = vunpack.c.h.b16 %v4904
    %v4995 = vunpack.c.l.b16 %v4905
    %v4996 = vunpack.c.h.b16 %v4905
    %v4997 = vunpack.c.l.b16 %v4906
    %v4998 = vunpack.c.h.b16 %v4906
    %v4999 = vunpack.c.l.b16 %v4907
    %v5000 = vunpack.c.h.b16 %v4907
    %v5001 = vunpack.c.l.b16 %v4908
    %v5002 = vunpack.c.h.b16 %v4908
    %v5003 = vunpack.c.l.b16 %v4909
    %v5004 = vunpack.c.h.b16 %v4909
    %v5005 = vunpack.c.l.b16 %v4910
    %v5006 = vunpack.c.h.b16 %v4910
    %v5007 = vpack.c.b16 %v4947, %v4943
    %v5008 = vpack.c.b16 %v4948, %v4944
    %v5009 = vpack.c.b16 %v4949, %v4945
    %v5010 = vpack.c.b16 %v4950, %v4946
    %v5011 = vpack.c.b16 %v4955, %v4951
    %v5012 = vpack.c.b16 %v4956, %v4952
    %v5013 = vpack.c.b16 %v4957, %v4953
    %v5014 = vpack.c.b16 %v4958, %v4954
    %v5015 = vpack.c.b16 %v4963, %v4959
    %v5016 = vpack.c.b16 %v4964, %v4960
    %v5017 = vpack.c.b16 %v4965, %v4961
    %v5018 = vpack.c.b16 %v4966, %v4962
    %v5019 = vpack.c.b16 %v4971, %v4967
    %v5020 = vpack.c.b16 %v4972, %v4968
    %v5021 = vpack.c.b16 %v4973, %v4969
    %v5022 = vpack.c.b16 %v4974, %v4970
    %v5023 = vpack.c.b16 %v4979, %v4975
    %v5024 = vpack.c.b16 %v4980, %v4976
    %v5025 = vpack.c.b16 %v4981, %v4977
    %v5026 = vpack.c.b16 %v4982, %v4978
    %v5027 = vpack.c.b16 %v4987, %v4983
    %v5028 = vpack.c.b16 %v4988, %v4984
    %v5029 = vpack.c.b16 %v4989, %v4985
    %v5030 = vpack.c.b16 %v4990, %v4986
    %v5031 = vpack.c.b16 %v4995, %v4991
    %v5032 = vpack.c.b16 %v4996, %v4992
    %v5033 = vpack.c.b16 %v4997, %v4993
    %v5034 = vpack.c.b16 %v4998, %v4994
    %v5035 = vpack.c.b16 %v5003, %v4999
    %v5036 = vpack.c.b16 %v5004, %v5000
    %v5037 = vpack.c.b16 %v5005, %v5001
    %v5038 = vpack.c.b16 %v5006, %v5002
    %5071 = vmatpush.bf16.msra.mxu0 %v5035
    %5072 = vmatpush.bf16.msra.mxu0 %v5031
    %5073 = vmatpush.bf16.msra.mxu0 %v5027
    %5074 = vmatpush.bf16.msra.mxu0 %v5023
    %5075 = vmatpush.bf16.msra.mxu0 %v5019
    %5076 = vmatpush.bf16.msra.mxu0 %v5015
    %5077 = vmatpush.bf16.msra.mxu0 %v5011
    %5078 = vmatpush.bf16.msra.mxu0 %v5007
    %5079 = vmatmul.bf16.gmra.mxu0 %v4878
    %v5080 = vpop.f32.mrf.mxu0
    %v5081 = vadd.f32 0.0, %v5080
    %v5082 = vpop.f32.mrf.mxu0
    %v5083 = vadd.f32 0.0, %v5082
    %5084 = vdwg.mxu0
    %5085 = vmatpush.bf16.msra.mxu0 %v5036
    %5086 = vmatpush.bf16.msra.mxu0 %v5032
    %5087 = vmatpush.bf16.msra.mxu0 %v5028
    %5088 = vmatpush.bf16.msra.mxu0 %v5024
    %5089 = vmatpush.bf16.msra.mxu0 %v5020
    %5090 = vmatpush.bf16.msra.mxu0 %v5016
    %5091 = vmatpush.bf16.msra.mxu0 %v5012
    %5092 = vmatpush.bf16.msra.mxu0 %v5008
    %5093 = vmatmul.bf16.gmra.mxu0 %v4878
    %v5094 = vpop.f32.mrf.mxu0
    %v5095 = vadd.f32 0.0, %v5094
    %v5096 = vpop.f32.mrf.mxu0
    %v5097 = vadd.f32 0.0, %v5096
    %5098 = vdwg.mxu0
    %5099 = vmatpush.bf16.msra.mxu0 %v5037
    %5100 = vmatpush.bf16.msra.mxu0 %v5033
    %5101 = vmatpush.bf16.msra.mxu0 %v5029
    %5102 = vmatpush.bf16.msra.mxu0 %v5025
    %5103 = vmatpush.bf16.msra.mxu0 %v5021
    %5104 = vmatpush.bf16.msra.mxu0 %v5017
    %5105 = vmatpush.bf16.msra.mxu0 %v5013
    %5106 = vmatpush.bf16.msra.mxu0 %v5009
    %5107 = vmatmul.bf16.gmra.mxu0 %v4878
    %v5108 = vpop.f32.mrf.mxu0
    %v5109 = vadd.f32 0.0, %v5108
    %v5110 = vpop.f32.mrf.mxu0
    %v5111 = vadd.f32 0.0, %v5110
    %5112 = vdwg.mxu0
    %5113 = vmatpush.bf16.msra.mxu0 %v5038
    %5114 = vmatpush.bf16.msra.mxu0 %v5034
    %5115 = vmatpush.bf16.msra.mxu0 %v5030
    %5116 = vmatpush.bf16.msra.mxu0 %v5026
    %5117 = vmatpush.bf16.msra.mxu0 %v5022
    %5118 = vmatpush.bf16.msra.mxu0 %v5018
    %5119 = vmatpush.bf16.msra.mxu0 %v5014
    %5120 = vmatpush.bf16.msra.mxu0 %v5010
    %5121 = vmatmul.bf16.gmra.mxu0 %v4878
    %v5122 = vpop.f32.mrf.mxu0
    %v5123 = vadd.f32 0.0, %v5122
    %v5124 = vpop.f32.mrf.mxu0
    %v5125 = vadd.f32 0.0, %v5124
    %5126 = vdwg.mxu0
    %v5127 = vadd.f32 %v4868, %v5081
    %v5128 = vadd.f32 %v4869, %v5095
    %v5129 = vadd.f32 %v4870, %v5109
    %v5130 = vadd.f32 %v4871, %v5123
    %v5131 = vadd.f32 %v4872, %v5083
    %v5132 = vadd.f32 %v4873, %v5097
    %v5133 = vadd.f32 %v4874, %v5111
    %v5134 = vadd.f32 %v4875, %v5125
    %v5135 = vld [vmem:[#allocation3] sm:$0xff]
    %v5136 = vld [vmem:[#allocation3 + $0x8] sm:$0xff]
    %v5137 = vxor.u32 %v5127, 2147483648
    %v5138 = vxor.u32 %v5131, 2147483648
    %v5139 = vmul.f32 %v5137, 1.442695
    %v5140 = vpow.pop %v5139
    %v5141 = vmul.f32 %v5138, 1.442695
    %v5142 = vpow.pop %v5141
    %v5143 = vadd.f32 %v5140, 1.0
    %v5144 = vadd.f32 %v5142, 1.0
    %v5145 = vrcp.pop %v5143
    %v5146 = vmul.f32 %v5143, %v5145
    %v5147 = vsub.f32 1.0, %v5146
    %v5148 = vmul.f32 %v5145, %v5147
    %v5149 = vadd.f32 %v5145, %v5148
    %vm5150 = vweird.f32 %v5143
    %vm5151 = vweird.f32 %v5145
    %vm5152 = vmor %vm5150, %vm5151
    %v5153 = vsel %vm5152, %v5145, %v5149
    %v5154 = vand.u32 2147483647, %v5143
    %vm5155 = vcmp.eq.f32.partialorder %v5154, 8.507059e+37
    %v5156 = vand.u32 %v5143, 2147483648
    %v5157 = vor.u32 1.1754944e-38, %v5156
    %v5158 = vsel %vm5155, %v5157, %v5153
    %v5159 = vmul.f32 1.0, %v5158
    %v5160 = vrcp.pop %v5144
    %v5161 = vmul.f32 %v5144, %v5160
    %v5162 = vsub.f32 1.0, %v5161
    %v5163 = vmul.f32 %v5160, %v5162
    %v5164 = vadd.f32 %v5160, %v5163
    %vm5165 = vweird.f32 %v5144
    %vm5166 = vweird.f32 %v5160
    %vm5167 = vmor %vm5165, %vm5166
    %v5168 = vsel %vm5167, %v5160, %v5164
    %v5169 = vand.u32 2147483647, %v5144
    %vm5170 = vcmp.eq.f32.partialorder %v5169, 8.507059e+37
    %v5171 = vand.u32 %v5144, 2147483648
    %v5172 = vor.u32 1.1754944e-38, %v5171
    %v5173 = vsel %vm5170, %v5172, %v5168
    %v5174 = vmul.f32 1.0, %v5173
    %v5175 = vxor.u32 %v5128, 2147483648
    %v5176 = vxor.u32 %v5132, 2147483648
    %v5177 = vmul.f32 %v5175, 1.442695
    %v5178 = vpow.pop %v5177
    %v5179 = vmul.f32 %v5176, 1.442695
    %v5180 = vpow.pop %v5179
    %v5181 = vadd.f32 %v5178, 1.0
    %v5182 = vadd.f32 %v5180, 1.0
    %v5183 = vrcp.pop %v5181
    %v5184 = vmul.f32 %v5181, %v5183
    %v5185 = vsub.f32 1.0, %v5184
    %v5186 = vmul.f32 %v5183, %v5185
    %v5187 = vadd.f32 %v5183, %v5186
    %vm5188 = vweird.f32 %v5181
    %vm5189 = vweird.f32 %v5183
    %vm5190 = vmor %vm5188, %vm5189
    %v5191 = vsel %vm5190, %v5183, %v5187
    %v5192 = vand.u32 2147483647, %v5181
    %vm5193 = vcmp.eq.f32.partialorder %v5192, 8.507059e+37
    %v5194 = vand.u32 %v5181, 2147483648
    %v5195 = vor.u32 1.1754944e-38, %v5194
    %v5196 = vsel %vm5193, %v5195, %v5191
    %v5197 = vmul.f32 1.0, %v5196
    %v5198 = vrcp.pop %v5182
    %v5199 = vmul.f32 %v5182, %v5198
    %v5200 = vsub.f32 1.0, %v5199
    %v5201 = vmul.f32 %v5198, %v5200
    %v5202 = vadd.f32 %v5198, %v5201
    %vm5203 = vweird.f32 %v5182
    %vm5204 = vweird.f32 %v5198
    %vm5205 = vmor %vm5203, %vm5204
    %v5206 = vsel %vm5205, %v5198, %v5202
    %v5207 = vand.u32 2147483647, %v5182
    %vm5208 = vcmp.eq.f32.partialorder %v5207, 8.507059e+37
    %v5209 = vand.u32 %v5182, 2147483648
    %v5210 = vor.u32 1.1754944e-38, %v5209
    %v5211 = vsel %vm5208, %v5210, %v5206
    %v5212 = vmul.f32 1.0, %v5211
    %v5213 = vtanh.pop %v5129
    %v5214 = vtanh.pop %v5133
    %v5215 = vxor.u32 %v5130, 2147483648
    %v5216 = vxor.u32 %v5134, 2147483648
    %v5217 = vmul.f32 %v5215, 1.442695
    %v5218 = vpow.pop %v5217
    %v5219 = vmul.f32 %v5216, 1.442695
    %v5220 = vpow.pop %v5219
    %v5221 = vadd.f32 %v5218, 1.0
    %v5222 = vadd.f32 %v5220, 1.0
    %v5223 = vrcp.pop %v5221
    %v5224 = vmul.f32 %v5221, %v5223
    %v5225 = vsub.f32 1.0, %v5224
    %v5226 = vmul.f32 %v5223, %v5225
    %v5227 = vadd.f32 %v5223, %v5226
    %vm5228 = vweird.f32 %v5221
    %vm5229 = vweird.f32 %v5223
    %vm5230 = vmor %vm5228, %vm5229
    %v5231 = vsel %vm5230, %v5223, %v5227
    %v5232 = vand.u32 2147483647, %v5221
    %vm5233 = vcmp.eq.f32.partialorder %v5232, 8.507059e+37
    %v5234 = vand.u32 %v5221, 2147483648
    %v5235 = vor.u32 1.1754944e-38, %v5234
    %v5236 = vsel %vm5233, %v5235, %v5231
    %v5237 = vmul.f32 1.0, %v5236
    %v5238 = vrcp.pop %v5222
    %v5239 = vmul.f32 %v5222, %v5238
    %v5240 = vsub.f32 1.0, %v5239
    %v5241 = vmul.f32 %v5238, %v5240
    %v5242 = vadd.f32 %v5238, %v5241
    %vm5243 = vweird.f32 %v5222
    %vm5244 = vweird.f32 %v5238
    %vm5245 = vmor %vm5243, %vm5244
    %v5246 = vsel %vm5245, %v5238, %v5242
    %v5247 = vand.u32 2147483647, %v5222
    %vm5248 = vcmp.eq.f32.partialorder %v5247, 8.507059e+37
    %v5249 = vand.u32 %v5222, 2147483648
    %v5250 = vor.u32 1.1754944e-38, %v5249
    %v5251 = vsel %vm5248, %v5250, %v5246
    %v5252 = vmul.f32 1.0, %v5251
    %v5253 = vmul.f32 %v5197, %v5135
    %v5254 = vmul.f32 %v5212, %v5136
    %v5255 = vmul.f32 %v5159, %v5213
    %v5256 = vmul.f32 %v5174, %v5214
    %v5257 = vadd.f32 %v5253, %v5255
    %v5258 = vadd.f32 %v5254, %v5256
    %v5259 = vtanh.pop %v5257
    %v5260 = vtanh.pop %v5258
    %v5261 = vmul.f32 %v5237, %v5259
    %v5262 = vmul.f32 %v5252, %v5260
    %5263 = vst [vmem:[#allocation2] sm:$0xff] %v5261
    %5264 = vst [vmem:[#allocation2 + $0x8] sm:$0xff] %v5262
    %5265 = vst [vmem:[#allocation3] sm:$0xff] %v5257
    %5266 = vst [vmem:[#allocation3 + $0x8] sm:$0xff] %v5258
    %v5267 = vpack.c.bf16 %v5261, %v5261
    %v5268 = vpack.c.bf16 %v5262, %v5262
    %s5269 = scalar_lea.vmem [#allocation14], 40
    %5270 = vst [vmem:[%s5269] sm:$0xf] %v5267
    %5271 = vst [vmem:[%s5269 + $0x4] sm:$0xf] %v5268
    %v5272 = vld [vmem:[#allocation4] sm:$0xff]
    %v5273 = vld [vmem:[#allocation4 + $0x8] sm:$0xff]
    %v5274 = vld [vmem:[#allocation5] sm:$0xff]
    %v5275 = vld [vmem:[#allocation5 + $0x8] sm:$0xff]
    %s5276 = smul.addr %s2426, 8
    %s5277 = scalar_lea.vmem [#allocation7], %s5276
    %v5278 = vld [vmem:[%s5277] sm:$0xff]
    %v5279 = vld [vmem:[%s5277 + $0x8] sm:$0xff]
    %v5280 = vld [vmem:[%s5277 + $0x10] sm:$0xff]
    %v5281 = vld [vmem:[%s5277 + $0x18] sm:$0xff]
    %v5282 = vld [vmem:[%s5277 + $0x20] sm:$0xff]
    %v5283 = vld [vmem:[%s5277 + $0x28] sm:$0xff]
    %v5284 = vld [vmem:[%s5277 + $0x30] sm:$0xff]
    %v5285 = vld [vmem:[%s5277 + $0x38] sm:$0xff]
    %v5286 = vpack.c.bf16 %v5273, %v5272
    %v5287 = vld [vmem:[#allocation13] sm:$0xff]
    %v5288 = vld [vmem:[#allocation13 + $0x8] sm:$0xff]
    %v5289 = vld [vmem:[#allocation13 + $0x10] sm:$0xff]
    %v5290 = vld [vmem:[#allocation13 + $0x18] sm:$0xff]
    %v5291 = vld [vmem:[#allocation13 + $0x20] sm:$0xff]
    %v5292 = vld [vmem:[#allocation13 + $0x28] sm:$0xff]
    %v5293 = vld [vmem:[#allocation13 + $0x30] sm:$0xff]
    %v5294 = vld [vmem:[#allocation13 + $0x38] sm:$0xff]
    %v5295 = vld [vmem:[#allocation13 + $0x40] sm:$0xff]
    %v5296 = vld [vmem:[#allocation13 + $0x48] sm:$0xff]
    %v5297 = vld [vmem:[#allocation13 + $0x50] sm:$0xff]
    %v5298 = vld [vmem:[#allocation13 + $0x58] sm:$0xff]
    %v5299 = vld [vmem:[#allocation13 + $0x60] sm:$0xff]
    %v5300 = vld [vmem:[#allocation13 + $0x68] sm:$0xff]
    %v5301 = vld [vmem:[#allocation13 + $0x70] sm:$0xff]
    %v5302 = vld [vmem:[#allocation13 + $0x78] sm:$0xff]
    %v5303 = vld [vmem:[#allocation13 + $0x80] sm:$0xff]
    %v5304 = vld [vmem:[#allocation13 + $0x88] sm:$0xff]
    %v5305 = vld [vmem:[#allocation13 + $0x90] sm:$0xff]
    %v5306 = vld [vmem:[#allocation13 + $0x98] sm:$0xff]
    %v5307 = vld [vmem:[#allocation13 + $0xa0] sm:$0xff]
    %v5308 = vld [vmem:[#allocation13 + $0xa8] sm:$0xff]
    %v5309 = vld [vmem:[#allocation13 + $0xb0] sm:$0xff]
    %v5310 = vld [vmem:[#allocation13 + $0xb8] sm:$0xff]
    %v5311 = vld [vmem:[#allocation13 + $0xc0] sm:$0xff]
    %v5312 = vld [vmem:[#allocation13 + $0xc8] sm:$0xff]
    %v5313 = vld [vmem:[#allocation13 + $0xd0] sm:$0xff]
    %v5314 = vld [vmem:[#allocation13 + $0xd8] sm:$0xff]
    %v5315 = vld [vmem:[#allocation13 + $0xe0] sm:$0xff]
    %v5316 = vld [vmem:[#allocation13 + $0xe8] sm:$0xff]
    %v5317 = vld [vmem:[#allocation13 + $0xf0] sm:$0xff]
    %v5318 = vld [vmem:[#allocation13 + $0xf8] sm:$0xff]
    %v5351 = vunpack.c.l.b16 %v5287
    %v5352 = vunpack.c.h.b16 %v5287
    %v5353 = vunpack.c.l.b16 %v5288
    %v5354 = vunpack.c.h.b16 %v5288
    %v5355 = vunpack.c.l.b16 %v5289
    %v5356 = vunpack.c.h.b16 %v5289
    %v5357 = vunpack.c.l.b16 %v5290
    %v5358 = vunpack.c.h.b16 %v5290
    %v5359 = vunpack.c.l.b16 %v5291
    %v5360 = vunpack.c.h.b16 %v5291
    %v5361 = vunpack.c.l.b16 %v5292
    %v5362 = vunpack.c.h.b16 %v5292
    %v5363 = vunpack.c.l.b16 %v5293
    %v5364 = vunpack.c.h.b16 %v5293
    %v5365 = vunpack.c.l.b16 %v5294
    %v5366 = vunpack.c.h.b16 %v5294
    %v5367 = vunpack.c.l.b16 %v5295
    %v5368 = vunpack.c.h.b16 %v5295
    %v5369 = vunpack.c.l.b16 %v5296
    %v5370 = vunpack.c.h.b16 %v5296
    %v5371 = vunpack.c.l.b16 %v5297
    %v5372 = vunpack.c.h.b16 %v5297
    %v5373 = vunpack.c.l.b16 %v5298
    %v5374 = vunpack.c.h.b16 %v5298
    %v5375 = vunpack.c.l.b16 %v5299
    %v5376 = vunpack.c.h.b16 %v5299
    %v5377 = vunpack.c.l.b16 %v5300
    %v5378 = vunpack.c.h.b16 %v5300
    %v5379 = vunpack.c.l.b16 %v5301
    %v5380 = vunpack.c.h.b16 %v5301
    %v5381 = vunpack.c.l.b16 %v5302
    %v5382 = vunpack.c.h.b16 %v5302
    %v5383 = vunpack.c.l.b16 %v5303
    %v5384 = vunpack.c.h.b16 %v5303
    %v5385 = vunpack.c.l.b16 %v5304
    %v5386 = vunpack.c.h.b16 %v5304
    %v5387 = vunpack.c.l.b16 %v5305
    %v5388 = vunpack.c.h.b16 %v5305
    %v5389 = vunpack.c.l.b16 %v5306
    %v5390 = vunpack.c.h.b16 %v5306
    %v5391 = vunpack.c.l.b16 %v5307
    %v5392 = vunpack.c.h.b16 %v5307
    %v5393 = vunpack.c.l.b16 %v5308
    %v5394 = vunpack.c.h.b16 %v5308
    %v5395 = vunpack.c.l.b16 %v5309
    %v5396 = vunpack.c.h.b16 %v5309
    %v5397 = vunpack.c.l.b16 %v5310
    %v5398 = vunpack.c.h.b16 %v5310
    %v5399 = vunpack.c.l.b16 %v5311
    %v5400 = vunpack.c.h.b16 %v5311
    %v5401 = vunpack.c.l.b16 %v5312
    %v5402 = vunpack.c.h.b16 %v5312
    %v5403 = vunpack.c.l.b16 %v5313
    %v5404 = vunpack.c.h.b16 %v5313
    %v5405 = vunpack.c.l.b16 %v5314
    %v5406 = vunpack.c.h.b16 %v5314
    %v5407 = vunpack.c.l.b16 %v5315
    %v5408 = vunpack.c.h.b16 %v5315
    %v5409 = vunpack.c.l.b16 %v5316
    %v5410 = vunpack.c.h.b16 %v5316
    %v5411 = vunpack.c.l.b16 %v5317
    %v5412 = vunpack.c.h.b16 %v5317
    %v5413 = vunpack.c.l.b16 %v5318
    %v5414 = vunpack.c.h.b16 %v5318
    %v5415 = vpack.c.b16 %v5355, %v5351
    %v5416 = vpack.c.b16 %v5356, %v5352
    %v5417 = vpack.c.b16 %v5357, %v5353
    %v5418 = vpack.c.b16 %v5358, %v5354
    %v5419 = vpack.c.b16 %v5363, %v5359
    %v5420 = vpack.c.b16 %v5364, %v5360
    %v5421 = vpack.c.b16 %v5365, %v5361
    %v5422 = vpack.c.b16 %v5366, %v5362
    %v5423 = vpack.c.b16 %v5371, %v5367
    %v5424 = vpack.c.b16 %v5372, %v5368
    %v5425 = vpack.c.b16 %v5373, %v5369
    %v5426 = vpack.c.b16 %v5374, %v5370
    %v5427 = vpack.c.b16 %v5379, %v5375
    %v5428 = vpack.c.b16 %v5380, %v5376
    %v5429 = vpack.c.b16 %v5381, %v5377
    %v5430 = vpack.c.b16 %v5382, %v5378
    %v5431 = vpack.c.b16 %v5387, %v5383
    %v5432 = vpack.c.b16 %v5388, %v5384
    %v5433 = vpack.c.b16 %v5389, %v5385
    %v5434 = vpack.c.b16 %v5390, %v5386
    %v5435 = vpack.c.b16 %v5395, %v5391
    %v5436 = vpack.c.b16 %v5396, %v5392
    %v5437 = vpack.c.b16 %v5397, %v5393
    %v5438 = vpack.c.b16 %v5398, %v5394
    %v5439 = vpack.c.b16 %v5403, %v5399
    %v5440 = vpack.c.b16 %v5404, %v5400
    %v5441 = vpack.c.b16 %v5405, %v5401
    %v5442 = vpack.c.b16 %v5406, %v5402
    %v5443 = vpack.c.b16 %v5411, %v5407
    %v5444 = vpack.c.b16 %v5412, %v5408
    %v5445 = vpack.c.b16 %v5413, %v5409
    %v5446 = vpack.c.b16 %v5414, %v5410
    %5479 = vmatpush.bf16.msra.mxu0 %v5443
    %5480 = vmatpush.bf16.msra.mxu0 %v5439
    %5481 = vmatpush.bf16.msra.mxu0 %v5435
    %5482 = vmatpush.bf16.msra.mxu0 %v5431
    %5483 = vmatpush.bf16.msra.mxu0 %v5427
    %5484 = vmatpush.bf16.msra.mxu0 %v5423
    %5485 = vmatpush.bf16.msra.mxu0 %v5419
    %5486 = vmatpush.bf16.msra.mxu0 %v5415
    %5487 = vmatmul.bf16.gmra.mxu0 %v5286
    %v5488 = vpop.f32.mrf.mxu0
    %v5489 = vadd.f32 0.0, %v5488
    %v5490 = vpop.f32.mrf.mxu0
    %v5491 = vadd.f32 0.0, %v5490
    %5492 = vdwg.mxu0
    %5493 = vmatpush.bf16.msra.mxu0 %v5444
    %5494 = vmatpush.bf16.msra.mxu0 %v5440
    %5495 = vmatpush.bf16.msra.mxu0 %v5436
    %5496 = vmatpush.bf16.msra.mxu0 %v5432
    %5497 = vmatpush.bf16.msra.mxu0 %v5428
    %5498 = vmatpush.bf16.msra.mxu0 %v5424
    %5499 = vmatpush.bf16.msra.mxu0 %v5420
    %5500 = vmatpush.bf16.msra.mxu0 %v5416
    %5501 = vmatmul.bf16.gmra.mxu0 %v5286
    %v5502 = vpop.f32.mrf.mxu0
    %v5503 = vadd.f32 0.0, %v5502
    %v5504 = vpop.f32.mrf.mxu0
    %v5505 = vadd.f32 0.0, %v5504
    %5506 = vdwg.mxu0
    %5507 = vmatpush.bf16.msra.mxu0 %v5445
    %5508 = vmatpush.bf16.msra.mxu0 %v5441
    %5509 = vmatpush.bf16.msra.mxu0 %v5437
    %5510 = vmatpush.bf16.msra.mxu0 %v5433
    %5511 = vmatpush.bf16.msra.mxu0 %v5429
    %5512 = vmatpush.bf16.msra.mxu0 %v5425
    %5513 = vmatpush.bf16.msra.mxu0 %v5421
    %5514 = vmatpush.bf16.msra.mxu0 %v5417
    %5515 = vmatmul.bf16.gmra.mxu0 %v5286
    %v5516 = vpop.f32.mrf.mxu0
    %v5517 = vadd.f32 0.0, %v5516
    %v5518 = vpop.f32.mrf.mxu0
    %v5519 = vadd.f32 0.0, %v5518
    %5520 = vdwg.mxu0
    %5521 = vmatpush.bf16.msra.mxu0 %v5446
    %5522 = vmatpush.bf16.msra.mxu0 %v5442
    %5523 = vmatpush.bf16.msra.mxu0 %v5438
    %5524 = vmatpush.bf16.msra.mxu0 %v5434
    %5525 = vmatpush.bf16.msra.mxu0 %v5430
    %5526 = vmatpush.bf16.msra.mxu0 %v5426
    %5527 = vmatpush.bf16.msra.mxu0 %v5422
    %5528 = vmatpush.bf16.msra.mxu0 %v5418
    %5529 = vmatmul.bf16.gmra.mxu0 %v5286
    %v5530 = vpop.f32.mrf.mxu0
    %v5531 = vadd.f32 0.0, %v5530
    %v5532 = vpop.f32.mrf.mxu0
    %v5533 = vadd.f32 0.0, %v5532
    %5534 = vdwg.mxu0
    %v5535 = vadd.f32 %v5278, %v5489
    %v5536 = vadd.f32 %v5279, %v5503
    %v5537 = vadd.f32 %v5280, %v5517
    %v5538 = vadd.f32 %v5281, %v5531
    %v5539 = vadd.f32 %v5282, %v5491
    %v5540 = vadd.f32 %v5283, %v5505
    %v5541 = vadd.f32 %v5284, %v5519
    %v5542 = vadd.f32 %v5285, %v5533
    %v5543 = vxor.u32 %v5535, 2147483648
    %v5544 = vxor.u32 %v5539, 2147483648
    %v5545 = vmul.f32 %v5543, 1.442695
    %v5546 = vpow.pop %v5545
    %v5547 = vmul.f32 %v5544, 1.442695
    %v5548 = vpow.pop %v5547
    %v5549 = vadd.f32 %v5546, 1.0
    %v5550 = vadd.f32 %v5548, 1.0
    %v5551 = vrcp.pop %v5549
    %v5552 = vmul.f32 %v5549, %v5551
    %v5553 = vsub.f32 1.0, %v5552
    %v5554 = vmul.f32 %v5551, %v5553
    %v5555 = vadd.f32 %v5551, %v5554
    %vm5556 = vweird.f32 %v5549
    %vm5557 = vweird.f32 %v5551
    %vm5558 = vmor %vm5556, %vm5557
    %v5559 = vsel %vm5558, %v5551, %v5555
    %v5560 = vand.u32 2147483647, %v5549
    %vm5561 = vcmp.eq.f32.partialorder %v5560, 8.507059e+37
    %v5562 = vand.u32 %v5549, 2147483648
    %v5563 = vor.u32 1.1754944e-38, %v5562
    %v5564 = vsel %vm5561, %v5563, %v5559
    %v5565 = vmul.f32 1.0, %v5564
    %v5566 = vrcp.pop %v5550
    %v5567 = vmul.f32 %v5550, %v5566
    %v5568 = vsub.f32 1.0, %v5567
    %v5569 = vmul.f32 %v5566, %v5568
    %v5570 = vadd.f32 %v5566, %v5569
    %vm5571 = vweird.f32 %v5550
    %vm5572 = vweird.f32 %v5566
    %vm5573 = vmor %vm5571, %vm5572
    %v5574 = vsel %vm5573, %v5566, %v5570
    %v5575 = vand.u32 2147483647, %v5550
    %vm5576 = vcmp.eq.f32.partialorder %v5575, 8.507059e+37
    %v5577 = vand.u32 %v5550, 2147483648
    %v5578 = vor.u32 1.1754944e-38, %v5577
    %v5579 = vsel %vm5576, %v5578, %v5574
    %v5580 = vmul.f32 1.0, %v5579
    %v5581 = vxor.u32 %v5536, 2147483648
    %v5582 = vxor.u32 %v5540, 2147483648
    %v5583 = vmul.f32 %v5581, 1.442695
    %v5584 = vpow.pop %v5583
    %v5585 = vmul.f32 %v5582, 1.442695
    %v5586 = vpow.pop %v5585
    %v5587 = vadd.f32 %v5584, 1.0
    %v5588 = vadd.f32 %v5586, 1.0
    %v5589 = vrcp.pop %v5587
    %v5590 = vmul.f32 %v5587, %v5589
    %v5591 = vsub.f32 1.0, %v5590
    %v5592 = vmul.f32 %v5589, %v5591
    %v5593 = vadd.f32 %v5589, %v5592
    %vm5594 = vweird.f32 %v5587
    %vm5595 = vweird.f32 %v5589
    %vm5596 = vmor %vm5594, %vm5595
    %v5597 = vsel %vm5596, %v5589, %v5593
    %v5598 = vand.u32 2147483647, %v5587
    %vm5599 = vcmp.eq.f32.partialorder %v5598, 8.507059e+37
    %v5600 = vand.u32 %v5587, 2147483648
    %v5601 = vor.u32 1.1754944e-38, %v5600
    %v5602 = vsel %vm5599, %v5601, %v5597
    %v5603 = vmul.f32 1.0, %v5602
    %v5604 = vrcp.pop %v5588
    %v5605 = vmul.f32 %v5588, %v5604
    %v5606 = vsub.f32 1.0, %v5605
    %v5607 = vmul.f32 %v5604, %v5606
    %v5608 = vadd.f32 %v5604, %v5607
    %vm5609 = vweird.f32 %v5588
    %vm5610 = vweird.f32 %v5604
    %vm5611 = vmor %vm5609, %vm5610
    %v5612 = vsel %vm5611, %v5604, %v5608
    %v5613 = vand.u32 2147483647, %v5588
    %vm5614 = vcmp.eq.f32.partialorder %v5613, 8.507059e+37
    %v5615 = vand.u32 %v5588, 2147483648
    %v5616 = vor.u32 1.1754944e-38, %v5615
    %v5617 = vsel %vm5614, %v5616, %v5612
    %v5618 = vmul.f32 1.0, %v5617
    %v5619 = vtanh.pop %v5537
    %v5620 = vtanh.pop %v5541
    %v5621 = vxor.u32 %v5538, 2147483648
    %v5622 = vxor.u32 %v5542, 2147483648
    %v5623 = vmul.f32 %v5621, 1.442695
    %v5624 = vpow.pop %v5623
    %v5625 = vmul.f32 %v5622, 1.442695
    %v5626 = vpow.pop %v5625
    %v5627 = vadd.f32 %v5624, 1.0
    %v5628 = vadd.f32 %v5626, 1.0
    %v5629 = vrcp.pop %v5627
    %v5630 = vmul.f32 %v5627, %v5629
    %v5631 = vsub.f32 1.0, %v5630
    %v5632 = vmul.f32 %v5629, %v5631
    %v5633 = vadd.f32 %v5629, %v5632
    %vm5634 = vweird.f32 %v5627
    %vm5635 = vweird.f32 %v5629
    %vm5636 = vmor %vm5634, %vm5635
    %v5637 = vsel %vm5636, %v5629, %v5633
    %v5638 = vand.u32 2147483647, %v5627
    %vm5639 = vcmp.eq.f32.partialorder %v5638, 8.507059e+37
    %v5640 = vand.u32 %v5627, 2147483648
    %v5641 = vor.u32 1.1754944e-38, %v5640
    %v5642 = vsel %vm5639, %v5641, %v5637
    %v5643 = vmul.f32 1.0, %v5642
    %v5644 = vrcp.pop %v5628
    %v5645 = vmul.f32 %v5628, %v5644
    %v5646 = vsub.f32 1.0, %v5645
    %v5647 = vmul.f32 %v5644, %v5646
    %v5648 = vadd.f32 %v5644, %v5647
    %vm5649 = vweird.f32 %v5628
    %vm5650 = vweird.f32 %v5644
    %vm5651 = vmor %vm5649, %vm5650
    %v5652 = vsel %vm5651, %v5644, %v5648
    %v5653 = vand.u32 2147483647, %v5628
    %vm5654 = vcmp.eq.f32.partialorder %v5653, 8.507059e+37
    %v5655 = vand.u32 %v5628, 2147483648
    %v5656 = vor.u32 1.1754944e-38, %v5655
    %v5657 = vsel %vm5654, %v5656, %v5652
    %v5658 = vmul.f32 1.0, %v5657
    %v5659 = vmul.f32 %v5603, %v5274
    %v5660 = vmul.f32 %v5618, %v5275
    %v5661 = vmul.f32 %v5565, %v5619
    %v5662 = vmul.f32 %v5580, %v5620
    %v5663 = vadd.f32 %v5659, %v5661
    %v5664 = vadd.f32 %v5660, %v5662
    %v5665 = vtanh.pop %v5663
    %v5666 = vtanh.pop %v5664
    %v5667 = vmul.f32 %v5643, %v5665
    %v5668 = vmul.f32 %v5658, %v5666
    %5669 = vst [vmem:[#allocation4] sm:$0xff] %v5667
    %5670 = vst [vmem:[#allocation4 + $0x8] sm:$0xff] %v5668
    %5671 = vst [vmem:[#allocation5] sm:$0xff] %v5663
    %5672 = vst [vmem:[#allocation5 + $0x8] sm:$0xff] %v5664
    %v5673 = vpack.c.bf16 %v5667, %v5667
    %v5674 = vpack.c.bf16 %v5668, %v5668
    %s5675 = scalar_lea.vmem [#allocation15], 16
    %5676 = vst [vmem:[%s5675] sm:$0xf] %v5673
    %5677 = vst [vmem:[%s5675 + $0x4] sm:$0xf] %v5674
    %s5678 = smul.addr %s2023, 8
    %s5679 = scalar_lea.vmem [#allocation6], %s5678
    %v5680 = vld [vmem:[%s5679] sm:$0xff]
    %v5681 = vld [vmem:[%s5679 + $0x8] sm:$0xff]
    %v5682 = vld [vmem:[%s5679 + $0x10] sm:$0xff]
    %v5683 = vld [vmem:[%s5679 + $0x18] sm:$0xff]
    %v5684 = vld [vmem:[%s5679 + $0x20] sm:$0xff]
    %v5685 = vld [vmem:[%s5679 + $0x28] sm:$0xff]
    %v5686 = vld [vmem:[%s5679 + $0x30] sm:$0xff]
    %v5687 = vld [vmem:[%s5679 + $0x38] sm:$0xff]
    %v5688 = vld [vmem:[#allocation2] sm:$0xff]
    %v5689 = vld [vmem:[#allocation2 + $0x8] sm:$0xff]
    %v5690 = vpack.c.bf16 %v5689, %v5688
    %v5691 = vld [vmem:[%s4] sm:$0xff]
    %v5692 = vld [vmem:[%s4 + $0x8] sm:$0xff]
    %v5693 = vld [vmem:[%s4 + $0x10] sm:$0xff]
    %v5694 = vld [vmem:[%s4 + $0x18] sm:$0xff]
    %v5695 = vld [vmem:[%s4 + $0x20] sm:$0xff]
    %v5696 = vld [vmem:[%s4 + $0x28] sm:$0xff]
    %v5697 = vld [vmem:[%s4 + $0x30] sm:$0xff]
    %v5698 = vld [vmem:[%s4 + $0x38] sm:$0xff]
    %v5699 = vld [vmem:[%s4 + $0x40] sm:$0xff]
    %v5700 = vld [vmem:[%s4 + $0x48] sm:$0xff]
    %v5701 = vld [vmem:[%s4 + $0x50] sm:$0xff]
    %v5702 = vld [vmem:[%s4 + $0x58] sm:$0xff]
    %v5703 = vld [vmem:[%s4 + $0x60] sm:$0xff]
    %v5704 = vld [vmem:[%s4 + $0x68] sm:$0xff]
    %v5705 = vld [vmem:[%s4 + $0x70] sm:$0xff]
    %v5706 = vld [vmem:[%s4 + $0x78] sm:$0xff]
    %v5707 = vld [vmem:[%s4 + $0x80] sm:$0xff]
    %v5708 = vld [vmem:[%s4 + $0x88] sm:$0xff]
    %v5709 = vld [vmem:[%s4 + $0x90] sm:$0xff]
    %v5710 = vld [vmem:[%s4 + $0x98] sm:$0xff]
    %v5711 = vld [vmem:[%s4 + $0xa0] sm:$0xff]
    %v5712 = vld [vmem:[%s4 + $0xa8] sm:$0xff]
    %v5713 = vld [vmem:[%s4 + $0xb0] sm:$0xff]
    %v5714 = vld [vmem:[%s4 + $0xb8] sm:$0xff]
    %v5715 = vld [vmem:[%s4 + $0xc0] sm:$0xff]
    %v5716 = vld [vmem:[%s4 + $0xc8] sm:$0xff]
    %v5717 = vld [vmem:[%s4 + $0xd0] sm:$0xff]
    %v5718 = vld [vmem:[%s4 + $0xd8] sm:$0xff]
    %v5719 = vld [vmem:[%s4 + $0xe0] sm:$0xff]
    %v5720 = vld [vmem:[%s4 + $0xe8] sm:$0xff]
    %v5721 = vld [vmem:[%s4 + $0xf0] sm:$0xff]
    %v5722 = vld [vmem:[%s4 + $0xf8] sm:$0xff]
    %v5755 = vunpack.c.l.b16 %v5691
    %v5756 = vunpack.c.h.b16 %v5691
    %v5757 = vunpack.c.l.b16 %v5692
    %v5758 = vunpack.c.h.b16 %v5692
    %v5759 = vunpack.c.l.b16 %v5693
    %v5760 = vunpack.c.h.b16 %v5693
    %v5761 = vunpack.c.l.b16 %v5694
    %v5762 = vunpack.c.h.b16 %v5694
    %v5763 = vunpack.c.l.b16 %v5695
    %v5764 = vunpack.c.h.b16 %v5695
    %v5765 = vunpack.c.l.b16 %v5696
    %v5766 = vunpack.c.h.b16 %v5696
    %v5767 = vunpack.c.l.b16 %v5697
    %v5768 = vunpack.c.h.b16 %v5697
    %v5769 = vunpack.c.l.b16 %v5698
    %v5770 = vunpack.c.h.b16 %v5698
    %v5771 = vunpack.c.l.b16 %v5699
    %v5772 = vunpack.c.h.b16 %v5699
    %v5773 = vunpack.c.l.b16 %v5700
    %v5774 = vunpack.c.h.b16 %v5700
    %v5775 = vunpack.c.l.b16 %v5701
    %v5776 = vunpack.c.h.b16 %v5701
    %v5777 = vunpack.c.l.b16 %v5702
    %v5778 = vunpack.c.h.b16 %v5702
    %v5779 = vunpack.c.l.b16 %v5703
    %v5780 = vunpack.c.h.b16 %v5703
    %v5781 = vunpack.c.l.b16 %v5704
    %v5782 = vunpack.c.h.b16 %v5704
    %v5783 = vunpack.c.l.b16 %v5705
    %v5784 = vunpack.c.h.b16 %v5705
    %v5785 = vunpack.c.l.b16 %v5706
    %v5786 = vunpack.c.h.b16 %v5706
    %v5787 = vunpack.c.l.b16 %v5707
    %v5788 = vunpack.c.h.b16 %v5707
    %v5789 = vunpack.c.l.b16 %v5708
    %v5790 = vunpack.c.h.b16 %v5708
    %v5791 = vunpack.c.l.b16 %v5709
    %v5792 = vunpack.c.h.b16 %v5709
    %v5793 = vunpack.c.l.b16 %v5710
    %v5794 = vunpack.c.h.b16 %v5710
    %v5795 = vunpack.c.l.b16 %v5711
    %v5796 = vunpack.c.h.b16 %v5711
    %v5797 = vunpack.c.l.b16 %v5712
    %v5798 = vunpack.c.h.b16 %v5712
    %v5799 = vunpack.c.l.b16 %v5713
    %v5800 = vunpack.c.h.b16 %v5713
    %v5801 = vunpack.c.l.b16 %v5714
    %v5802 = vunpack.c.h.b16 %v5714
    %v5803 = vunpack.c.l.b16 %v5715
    %v5804 = vunpack.c.h.b16 %v5715
    %v5805 = vunpack.c.l.b16 %v5716
    %v5806 = vunpack.c.h.b16 %v5716
    %v5807 = vunpack.c.l.b16 %v5717
    %v5808 = vunpack.c.h.b16 %v5717
    %v5809 = vunpack.c.l.b16 %v5718
    %v5810 = vunpack.c.h.b16 %v5718
    %v5811 = vunpack.c.l.b16 %v5719
    %v5812 = vunpack.c.h.b16 %v5719
    %v5813 = vunpack.c.l.b16 %v5720
    %v5814 = vunpack.c.h.b16 %v5720
    %v5815 = vunpack.c.l.b16 %v5721
    %v5816 = vunpack.c.h.b16 %v5721
    %v5817 = vunpack.c.l.b16 %v5722
    %v5818 = vunpack.c.h.b16 %v5722
    %v5819 = vpack.c.b16 %v5759, %v5755
    %v5820 = vpack.c.b16 %v5760, %v5756
    %v5821 = vpack.c.b16 %v5761, %v5757
    %v5822 = vpack.c.b16 %v5762, %v5758
    %v5823 = vpack.c.b16 %v5767, %v5763
    %v5824 = vpack.c.b16 %v5768, %v5764
    %v5825 = vpack.c.b16 %v5769, %v5765
    %v5826 = vpack.c.b16 %v5770, %v5766
    %v5827 = vpack.c.b16 %v5775, %v5771
    %v5828 = vpack.c.b16 %v5776, %v5772
    %v5829 = vpack.c.b16 %v5777, %v5773
    %v5830 = vpack.c.b16 %v5778, %v5774
    %v5831 = vpack.c.b16 %v5783, %v5779
    %v5832 = vpack.c.b16 %v5784, %v5780
    %v5833 = vpack.c.b16 %v5785, %v5781
    %v5834 = vpack.c.b16 %v5786, %v5782
    %v5835 = vpack.c.b16 %v5791, %v5787
    %v5836 = vpack.c.b16 %v5792, %v5788
    %v5837 = vpack.c.b16 %v5793, %v5789
    %v5838 = vpack.c.b16 %v5794, %v5790
    %v5839 = vpack.c.b16 %v5799, %v5795
    %v5840 = vpack.c.b16 %v5800, %v5796
    %v5841 = vpack.c.b16 %v5801, %v5797
    %v5842 = vpack.c.b16 %v5802, %v5798
    %v5843 = vpack.c.b16 %v5807, %v5803
    %v5844 = vpack.c.b16 %v5808, %v5804
    %v5845 = vpack.c.b16 %v5809, %v5805
    %v5846 = vpack.c.b16 %v5810, %v5806
    %v5847 = vpack.c.b16 %v5815, %v5811
    %v5848 = vpack.c.b16 %v5816, %v5812
    %v5849 = vpack.c.b16 %v5817, %v5813
    %v5850 = vpack.c.b16 %v5818, %v5814
    %5883 = vmatpush.bf16.msra.mxu0 %v5847
    %5884 = vmatpush.bf16.msra.mxu0 %v5843
    %5885 = vmatpush.bf16.msra.mxu0 %v5839
    %5886 = vmatpush.bf16.msra.mxu0 %v5835
    %5887 = vmatpush.bf16.msra.mxu0 %v5831
    %5888 = vmatpush.bf16.msra.mxu0 %v5827
    %5889 = vmatpush.bf16.msra.mxu0 %v5823
    %5890 = vmatpush.bf16.msra.mxu0 %v5819
    %5891 = vmatmul.bf16.gmra.mxu0 %v5690
    %v5892 = vpop.f32.mrf.mxu0
    %v5893 = vadd.f32 0.0, %v5892
    %v5894 = vpop.f32.mrf.mxu0
    %v5895 = vadd.f32 0.0, %v5894
    %5896 = vdwg.mxu0
    %5897 = vmatpush.bf16.msra.mxu0 %v5848
    %5898 = vmatpush.bf16.msra.mxu0 %v5844
    %5899 = vmatpush.bf16.msra.mxu0 %v5840
    %5900 = vmatpush.bf16.msra.mxu0 %v5836
    %5901 = vmatpush.bf16.msra.mxu0 %v5832
    %5902 = vmatpush.bf16.msra.mxu0 %v5828
    %5903 = vmatpush.bf16.msra.mxu0 %v5824
    %5904 = vmatpush.bf16.msra.mxu0 %v5820
    %5905 = vmatmul.bf16.gmra.mxu0 %v5690
    %v5906 = vpop.f32.mrf.mxu0
    %v5907 = vadd.f32 0.0, %v5906
    %v5908 = vpop.f32.mrf.mxu0
    %v5909 = vadd.f32 0.0, %v5908
    %5910 = vdwg.mxu0
    %5911 = vmatpush.bf16.msra.mxu0 %v5849
    %5912 = vmatpush.bf16.msra.mxu0 %v5845
    %5913 = vmatpush.bf16.msra.mxu0 %v5841
    %5914 = vmatpush.bf16.msra.mxu0 %v5837
    %5915 = vmatpush.bf16.msra.mxu0 %v5833
    %5916 = vmatpush.bf16.msra.mxu0 %v5829
    %5917 = vmatpush.bf16.msra.mxu0 %v5825
    %5918 = vmatpush.bf16.msra.mxu0 %v5821
    %5919 = vmatmul.bf16.gmra.mxu0 %v5690
    %v5920 = vpop.f32.mrf.mxu0
    %v5921 = vadd.f32 0.0, %v5920
    %v5922 = vpop.f32.mrf.mxu0
    %v5923 = vadd.f32 0.0, %v5922
    %5924 = vdwg.mxu0
    %5925 = vmatpush.bf16.msra.mxu0 %v5850
    %5926 = vmatpush.bf16.msra.mxu0 %v5846
    %5927 = vmatpush.bf16.msra.mxu0 %v5842
    %5928 = vmatpush.bf16.msra.mxu0 %v5838
    %5929 = vmatpush.bf16.msra.mxu0 %v5834
    %5930 = vmatpush.bf16.msra.mxu0 %v5830
    %5931 = vmatpush.bf16.msra.mxu0 %v5826
    %5932 = vmatpush.bf16.msra.mxu0 %v5822
    %5933 = vmatmul.bf16.gmra.mxu0 %v5690
    %v5934 = vpop.f32.mrf.mxu0
    %v5935 = vadd.f32 0.0, %v5934
    %v5936 = vpop.f32.mrf.mxu0
    %v5937 = vadd.f32 0.0, %v5936
    %5938 = vdwg.mxu0
    %v5939 = vadd.f32 %v5680, %v5893
    %v5940 = vadd.f32 %v5681, %v5907
    %v5941 = vadd.f32 %v5682, %v5921
    %v5942 = vadd.f32 %v5683, %v5935
    %v5943 = vadd.f32 %v5684, %v5895
    %v5944 = vadd.f32 %v5685, %v5909
    %v5945 = vadd.f32 %v5686, %v5923
    %v5946 = vadd.f32 %v5687, %v5937
    %v5947 = vld [vmem:[#allocation3] sm:$0xff]
    %v5948 = vld [vmem:[#allocation3 + $0x8] sm:$0xff]
    %v5949 = vxor.u32 %v5939, 2147483648
    %v5950 = vxor.u32 %v5943, 2147483648
    %v5951 = vmul.f32 %v5949, 1.442695
    %v5952 = vpow.pop %v5951
    %v5953 = vmul.f32 %v5950, 1.442695
    %v5954 = vpow.pop %v5953
    %v5955 = vadd.f32 %v5952, 1.0
    %v5956 = vadd.f32 %v5954, 1.0
    %v5957 = vrcp.pop %v5955
    %v5958 = vmul.f32 %v5955, %v5957
    %v5959 = vsub.f32 1.0, %v5958
    %v5960 = vmul.f32 %v5957, %v5959
    %v5961 = vadd.f32 %v5957, %v5960
    %vm5962 = vweird.f32 %v5955
    %vm5963 = vweird.f32 %v5957
    %vm5964 = vmor %vm5962, %vm5963
    %v5965 = vsel %vm5964, %v5957, %v5961
    %v5966 = vand.u32 2147483647, %v5955
    %vm5967 = vcmp.eq.f32.partialorder %v5966, 8.507059e+37
    %v5968 = vand.u32 %v5955, 2147483648
    %v5969 = vor.u32 1.1754944e-38, %v5968
    %v5970 = vsel %vm5967, %v5969, %v5965
    %v5971 = vmul.f32 1.0, %v5970
    %v5972 = vrcp.pop %v5956
    %v5973 = vmul.f32 %v5956, %v5972
    %v5974 = vsub.f32 1.0, %v5973
    %v5975 = vmul.f32 %v5972, %v5974
    %v5976 = vadd.f32 %v5972, %v5975
    %vm5977 = vweird.f32 %v5956
    %vm5978 = vweird.f32 %v5972
    %vm5979 = vmor %vm5977, %vm5978
    %v5980 = vsel %vm5979, %v5972, %v5976
    %v5981 = vand.u32 2147483647, %v5956
    %vm5982 = vcmp.eq.f32.partialorder %v5981, 8.507059e+37
    %v5983 = vand.u32 %v5956, 2147483648
    %v5984 = vor.u32 1.1754944e-38, %v5983
    %v5985 = vsel %vm5982, %v5984, %v5980
    %v5986 = vmul.f32 1.0, %v5985
    %v5987 = vxor.u32 %v5940, 2147483648
    %v5988 = vxor.u32 %v5944, 2147483648
    %v5989 = vmul.f32 %v5987, 1.442695
    %v5990 = vpow.pop %v5989
    %v5991 = vmul.f32 %v5988, 1.442695
    %v5992 = vpow.pop %v5991
    %v5993 = vadd.f32 %v5990, 1.0
    %v5994 = vadd.f32 %v5992, 1.0
    %v5995 = vrcp.pop %v5993
    %v5996 = vmul.f32 %v5993, %v5995
    %v5997 = vsub.f32 1.0, %v5996
    %v5998 = vmul.f32 %v5995, %v5997
    %v5999 = vadd.f32 %v5995, %v5998
    %vm6000 = vweird.f32 %v5993
    %vm6001 = vweird.f32 %v5995
    %vm6002 = vmor %vm6000, %vm6001
    %v6003 = vsel %vm6002, %v5995, %v5999
    %v6004 = vand.u32 2147483647, %v5993
    %vm6005 = vcmp.eq.f32.partialorder %v6004, 8.507059e+37
    %v6006 = vand.u32 %v5993, 2147483648
    %v6007 = vor.u32 1.1754944e-38, %v6006
    %v6008 = vsel %vm6005, %v6007, %v6003
    %v6009 = vmul.f32 1.0, %v6008
    %v6010 = vrcp.pop %v5994
    %v6011 = vmul.f32 %v5994, %v6010
    %v6012 = vsub.f32 1.0, %v6011
    %v6013 = vmul.f32 %v6010, %v6012
    %v6014 = vadd.f32 %v6010, %v6013
    %vm6015 = vweird.f32 %v5994
    %vm6016 = vweird.f32 %v6010
    %vm6017 = vmor %vm6015, %vm6016
    %v6018 = vsel %vm6017, %v6010, %v6014
    %v6019 = vand.u32 2147483647, %v5994
    %vm6020 = vcmp.eq.f32.partialorder %v6019, 8.507059e+37
    %v6021 = vand.u32 %v5994, 2147483648
    %v6022 = vor.u32 1.1754944e-38, %v6021
    %v6023 = vsel %vm6020, %v6022, %v6018
    %v6024 = vmul.f32 1.0, %v6023
    %v6025 = vtanh.pop %v5941
    %v6026 = vtanh.pop %v5945
    %v6027 = vxor.u32 %v5942, 2147483648
    %v6028 = vxor.u32 %v5946, 2147483648
    %v6029 = vmul.f32 %v6027, 1.442695
    %v6030 = vpow.pop %v6029
    %v6031 = vmul.f32 %v6028, 1.442695
    %v6032 = vpow.pop %v6031
    %v6033 = vadd.f32 %v6030, 1.0
    %v6034 = vadd.f32 %v6032, 1.0
    %v6035 = vrcp.pop %v6033
    %v6036 = vmul.f32 %v6033, %v6035
    %v6037 = vsub.f32 1.0, %v6036
    %v6038 = vmul.f32 %v6035, %v6037
    %v6039 = vadd.f32 %v6035, %v6038
    %vm6040 = vweird.f32 %v6033
    %vm6041 = vweird.f32 %v6035
    %vm6042 = vmor %vm6040, %vm6041
    %v6043 = vsel %vm6042, %v6035, %v6039
    %v6044 = vand.u32 2147483647, %v6033
    %vm6045 = vcmp.eq.f32.partialorder %v6044, 8.507059e+37
    %v6046 = vand.u32 %v6033, 2147483648
    %v6047 = vor.u32 1.1754944e-38, %v6046
    %v6048 = vsel %vm6045, %v6047, %v6043
    %v6049 = vmul.f32 1.0, %v6048
    %v6050 = vrcp.pop %v6034
    %v6051 = vmul.f32 %v6034, %v6050
    %v6052 = vsub.f32 1.0, %v6051
    %v6053 = vmul.f32 %v6050, %v6052
    %v6054 = vadd.f32 %v6050, %v6053
    %vm6055 = vweird.f32 %v6034
    %vm6056 = vweird.f32 %v6050
    %vm6057 = vmor %vm6055, %vm6056
    %v6058 = vsel %vm6057, %v6050, %v6054
    %v6059 = vand.u32 2147483647, %v6034
    %vm6060 = vcmp.eq.f32.partialorder %v6059, 8.507059e+37
    %v6061 = vand.u32 %v6034, 2147483648
    %v6062 = vor.u32 1.1754944e-38, %v6061
    %v6063 = vsel %vm6060, %v6062, %v6058
    %v6064 = vmul.f32 1.0, %v6063
    %v6065 = vmul.f32 %v6009, %v5947
    %v6066 = vmul.f32 %v6024, %v5948
    %v6067 = vmul.f32 %v5971, %v6025
    %v6068 = vmul.f32 %v5986, %v6026
    %v6069 = vadd.f32 %v6065, %v6067
    %v6070 = vadd.f32 %v6066, %v6068
    %v6071 = vtanh.pop %v6069
    %v6072 = vtanh.pop %v6070
    %v6073 = vmul.f32 %v6049, %v6071
    %v6074 = vmul.f32 %v6064, %v6072
    %6075 = vst [vmem:[#allocation2] sm:$0xff] %v6073
    %6076 = vst [vmem:[#allocation2 + $0x8] sm:$0xff] %v6074
    %6077 = vst [vmem:[#allocation3] sm:$0xff] %v6069
    %6078 = vst [vmem:[#allocation3 + $0x8] sm:$0xff] %v6070
    %v6079 = vpack.c.bf16 %v6073, %v6073
    %v6080 = vpack.c.bf16 %v6074, %v6074
    %s6081 = scalar_lea.vmem [#allocation14], 48
    %6082 = vst [vmem:[%s6081] sm:$0xf] %v6079
    %6083 = vst [vmem:[%s6081 + $0x4] sm:$0xf] %v6080
    %v6084 = vld [vmem:[#allocation4] sm:$0xff]
    %v6085 = vld [vmem:[#allocation4 + $0x8] sm:$0xff]
    %v6086 = vld [vmem:[#allocation5] sm:$0xff]
    %v6087 = vld [vmem:[#allocation5 + $0x8] sm:$0xff]
    %s6088 = smul.addr %s1612, 8
    %s6089 = scalar_lea.vmem [#allocation7], %s6088
    %v6090 = vld [vmem:[%s6089] sm:$0xff]
    %v6091 = vld [vmem:[%s6089 + $0x8] sm:$0xff]
    %v6092 = vld [vmem:[%s6089 + $0x10] sm:$0xff]
    %v6093 = vld [vmem:[%s6089 + $0x18] sm:$0xff]
    %v6094 = vld [vmem:[%s6089 + $0x20] sm:$0xff]
    %v6095 = vld [vmem:[%s6089 + $0x28] sm:$0xff]
    %v6096 = vld [vmem:[%s6089 + $0x30] sm:$0xff]
    %v6097 = vld [vmem:[%s6089 + $0x38] sm:$0xff]
    %v6098 = vpack.c.bf16 %v6085, %v6084
    %v6099 = vld [vmem:[#allocation13] sm:$0xff]
    %v6100 = vld [vmem:[#allocation13 + $0x8] sm:$0xff]
    %v6101 = vld [vmem:[#allocation13 + $0x10] sm:$0xff]
    %v6102 = vld [vmem:[#allocation13 + $0x18] sm:$0xff]
    %v6103 = vld [vmem:[#allocation13 + $0x20] sm:$0xff]
    %v6104 = vld [vmem:[#allocation13 + $0x28] sm:$0xff]
    %v6105 = vld [vmem:[#allocation13 + $0x30] sm:$0xff]
    %v6106 = vld [vmem:[#allocation13 + $0x38] sm:$0xff]
    %v6107 = vld [vmem:[#allocation13 + $0x40] sm:$0xff]
    %v6108 = vld [vmem:[#allocation13 + $0x48] sm:$0xff]
    %v6109 = vld [vmem:[#allocation13 + $0x50] sm:$0xff]
    %v6110 = vld [vmem:[#allocation13 + $0x58] sm:$0xff]
    %v6111 = vld [vmem:[#allocation13 + $0x60] sm:$0xff]
    %v6112 = vld [vmem:[#allocation13 + $0x68] sm:$0xff]
    %v6113 = vld [vmem:[#allocation13 + $0x70] sm:$0xff]
    %v6114 = vld [vmem:[#allocation13 + $0x78] sm:$0xff]
    %v6115 = vld [vmem:[#allocation13 + $0x80] sm:$0xff]
    %v6116 = vld [vmem:[#allocation13 + $0x88] sm:$0xff]
    %v6117 = vld [vmem:[#allocation13 + $0x90] sm:$0xff]
    %v6118 = vld [vmem:[#allocation13 + $0x98] sm:$0xff]
    %v6119 = vld [vmem:[#allocation13 + $0xa0] sm:$0xff]
    %v6120 = vld [vmem:[#allocation13 + $0xa8] sm:$0xff]
    %v6121 = vld [vmem:[#allocation13 + $0xb0] sm:$0xff]
    %v6122 = vld [vmem:[#allocation13 + $0xb8] sm:$0xff]
    %v6123 = vld [vmem:[#allocation13 + $0xc0] sm:$0xff]
    %v6124 = vld [vmem:[#allocation13 + $0xc8] sm:$0xff]
    %v6125 = vld [vmem:[#allocation13 + $0xd0] sm:$0xff]
    %v6126 = vld [vmem:[#allocation13 + $0xd8] sm:$0xff]
    %v6127 = vld [vmem:[#allocation13 + $0xe0] sm:$0xff]
    %v6128 = vld [vmem:[#allocation13 + $0xe8] sm:$0xff]
    %v6129 = vld [vmem:[#allocation13 + $0xf0] sm:$0xff]
    %v6130 = vld [vmem:[#allocation13 + $0xf8] sm:$0xff]
    %v6163 = vunpack.c.l.b16 %v6099
    %v6164 = vunpack.c.h.b16 %v6099
    %v6165 = vunpack.c.l.b16 %v6100
    %v6166 = vunpack.c.h.b16 %v6100
    %v6167 = vunpack.c.l.b16 %v6101
    %v6168 = vunpack.c.h.b16 %v6101
    %v6169 = vunpack.c.l.b16 %v6102
    %v6170 = vunpack.c.h.b16 %v6102
    %v6171 = vunpack.c.l.b16 %v6103
    %v6172 = vunpack.c.h.b16 %v6103
    %v6173 = vunpack.c.l.b16 %v6104
    %v6174 = vunpack.c.h.b16 %v6104
    %v6175 = vunpack.c.l.b16 %v6105
    %v6176 = vunpack.c.h.b16 %v6105
    %v6177 = vunpack.c.l.b16 %v6106
    %v6178 = vunpack.c.h.b16 %v6106
    %v6179 = vunpack.c.l.b16 %v6107
    %v6180 = vunpack.c.h.b16 %v6107
    %v6181 = vunpack.c.l.b16 %v6108
    %v6182 = vunpack.c.h.b16 %v6108
    %v6183 = vunpack.c.l.b16 %v6109
    %v6184 = vunpack.c.h.b16 %v6109
    %v6185 = vunpack.c.l.b16 %v6110
    %v6186 = vunpack.c.h.b16 %v6110
    %v6187 = vunpack.c.l.b16 %v6111
    %v6188 = vunpack.c.h.b16 %v6111
    %v6189 = vunpack.c.l.b16 %v6112
    %v6190 = vunpack.c.h.b16 %v6112
    %v6191 = vunpack.c.l.b16 %v6113
    %v6192 = vunpack.c.h.b16 %v6113
    %v6193 = vunpack.c.l.b16 %v6114
    %v6194 = vunpack.c.h.b16 %v6114
    %v6195 = vunpack.c.l.b16 %v6115
    %v6196 = vunpack.c.h.b16 %v6115
    %v6197 = vunpack.c.l.b16 %v6116
    %v6198 = vunpack.c.h.b16 %v6116
    %v6199 = vunpack.c.l.b16 %v6117
    %v6200 = vunpack.c.h.b16 %v6117
    %v6201 = vunpack.c.l.b16 %v6118
    %v6202 = vunpack.c.h.b16 %v6118
    %v6203 = vunpack.c.l.b16 %v6119
    %v6204 = vunpack.c.h.b16 %v6119
    %v6205 = vunpack.c.l.b16 %v6120
    %v6206 = vunpack.c.h.b16 %v6120
    %v6207 = vunpack.c.l.b16 %v6121
    %v6208 = vunpack.c.h.b16 %v6121
    %v6209 = vunpack.c.l.b16 %v6122
    %v6210 = vunpack.c.h.b16 %v6122
    %v6211 = vunpack.c.l.b16 %v6123
    %v6212 = vunpack.c.h.b16 %v6123
    %v6213 = vunpack.c.l.b16 %v6124
    %v6214 = vunpack.c.h.b16 %v6124
    %v6215 = vunpack.c.l.b16 %v6125
    %v6216 = vunpack.c.h.b16 %v6125
    %v6217 = vunpack.c.l.b16 %v6126
    %v6218 = vunpack.c.h.b16 %v6126
    %v6219 = vunpack.c.l.b16 %v6127
    %v6220 = vunpack.c.h.b16 %v6127
    %v6221 = vunpack.c.l.b16 %v6128
    %v6222 = vunpack.c.h.b16 %v6128
    %v6223 = vunpack.c.l.b16 %v6129
    %v6224 = vunpack.c.h.b16 %v6129
    %v6225 = vunpack.c.l.b16 %v6130
    %v6226 = vunpack.c.h.b16 %v6130
    %v6227 = vpack.c.b16 %v6167, %v6163
    %v6228 = vpack.c.b16 %v6168, %v6164
    %v6229 = vpack.c.b16 %v6169, %v6165
    %v6230 = vpack.c.b16 %v6170, %v6166
    %v6231 = vpack.c.b16 %v6175, %v6171
    %v6232 = vpack.c.b16 %v6176, %v6172
    %v6233 = vpack.c.b16 %v6177, %v6173
    %v6234 = vpack.c.b16 %v6178, %v6174
    %v6235 = vpack.c.b16 %v6183, %v6179
    %v6236 = vpack.c.b16 %v6184, %v6180
    %v6237 = vpack.c.b16 %v6185, %v6181
    %v6238 = vpack.c.b16 %v6186, %v6182
    %v6239 = vpack.c.b16 %v6191, %v6187
    %v6240 = vpack.c.b16 %v6192, %v6188
    %v6241 = vpack.c.b16 %v6193, %v6189
    %v6242 = vpack.c.b16 %v6194, %v6190
    %v6243 = vpack.c.b16 %v6199, %v6195
    %v6244 = vpack.c.b16 %v6200, %v6196
    %v6245 = vpack.c.b16 %v6201, %v6197
    %v6246 = vpack.c.b16 %v6202, %v6198
    %v6247 = vpack.c.b16 %v6207, %v6203
    %v6248 = vpack.c.b16 %v6208, %v6204
    %v6249 = vpack.c.b16 %v6209, %v6205
    %v6250 = vpack.c.b16 %v6210, %v6206
    %v6251 = vpack.c.b16 %v6215, %v6211
    %v6252 = vpack.c.b16 %v6216, %v6212
    %v6253 = vpack.c.b16 %v6217, %v6213
    %v6254 = vpack.c.b16 %v6218, %v6214
    %v6255 = vpack.c.b16 %v6223, %v6219
    %v6256 = vpack.c.b16 %v6224, %v6220
    %v6257 = vpack.c.b16 %v6225, %v6221
    %v6258 = vpack.c.b16 %v6226, %v6222
    %6291 = vmatpush.bf16.msra.mxu0 %v6255
    %6292 = vmatpush.bf16.msra.mxu0 %v6251
    %6293 = vmatpush.bf16.msra.mxu0 %v6247
    %6294 = vmatpush.bf16.msra.mxu0 %v6243
    %6295 = vmatpush.bf16.msra.mxu0 %v6239
    %6296 = vmatpush.bf16.msra.mxu0 %v6235
    %6297 = vmatpush.bf16.msra.mxu0 %v6231
    %6298 = vmatpush.bf16.msra.mxu0 %v6227
    %6299 = vmatmul.bf16.gmra.mxu0 %v6098
    %v6300 = vpop.f32.mrf.mxu0
    %v6301 = vadd.f32 0.0, %v6300
    %v6302 = vpop.f32.mrf.mxu0
    %v6303 = vadd.f32 0.0, %v6302
    %6304 = vdwg.mxu0
    %6305 = vmatpush.bf16.msra.mxu0 %v6256
    %6306 = vmatpush.bf16.msra.mxu0 %v6252
    %6307 = vmatpush.bf16.msra.mxu0 %v6248
    %6308 = vmatpush.bf16.msra.mxu0 %v6244
    %6309 = vmatpush.bf16.msra.mxu0 %v6240
    %6310 = vmatpush.bf16.msra.mxu0 %v6236
    %6311 = vmatpush.bf16.msra.mxu0 %v6232
    %6312 = vmatpush.bf16.msra.mxu0 %v6228
    %6313 = vmatmul.bf16.gmra.mxu0 %v6098
    %v6314 = vpop.f32.mrf.mxu0
    %v6315 = vadd.f32 0.0, %v6314
    %v6316 = vpop.f32.mrf.mxu0
    %v6317 = vadd.f32 0.0, %v6316
    %6318 = vdwg.mxu0
    %6319 = vmatpush.bf16.msra.mxu0 %v6257
    %6320 = vmatpush.bf16.msra.mxu0 %v6253
    %6321 = vmatpush.bf16.msra.mxu0 %v6249
    %6322 = vmatpush.bf16.msra.mxu0 %v6245
    %6323 = vmatpush.bf16.msra.mxu0 %v6241
    %6324 = vmatpush.bf16.msra.mxu0 %v6237
    %6325 = vmatpush.bf16.msra.mxu0 %v6233
    %6326 = vmatpush.bf16.msra.mxu0 %v6229
    %6327 = vmatmul.bf16.gmra.mxu0 %v6098
    %v6328 = vpop.f32.mrf.mxu0
    %v6329 = vadd.f32 0.0, %v6328
    %v6330 = vpop.f32.mrf.mxu0
    %v6331 = vadd.f32 0.0, %v6330
    %6332 = vdwg.mxu0
    %6333 = vmatpush.bf16.msra.mxu0 %v6258
    %6334 = vmatpush.bf16.msra.mxu0 %v6254
    %6335 = vmatpush.bf16.msra.mxu0 %v6250
    %6336 = vmatpush.bf16.msra.mxu0 %v6246
    %6337 = vmatpush.bf16.msra.mxu0 %v6242
    %6338 = vmatpush.bf16.msra.mxu0 %v6238
    %6339 = vmatpush.bf16.msra.mxu0 %v6234
    %6340 = vmatpush.bf16.msra.mxu0 %v6230
    %6341 = vmatmul.bf16.gmra.mxu0 %v6098
    %v6342 = vpop.f32.mrf.mxu0
    %v6343 = vadd.f32 0.0, %v6342
    %v6344 = vpop.f32.mrf.mxu0
    %v6345 = vadd.f32 0.0, %v6344
    %6346 = vdwg.mxu0
    %v6347 = vadd.f32 %v6090, %v6301
    %v6348 = vadd.f32 %v6091, %v6315
    %v6349 = vadd.f32 %v6092, %v6329
    %v6350 = vadd.f32 %v6093, %v6343
    %v6351 = vadd.f32 %v6094, %v6303
    %v6352 = vadd.f32 %v6095, %v6317
    %v6353 = vadd.f32 %v6096, %v6331
    %v6354 = vadd.f32 %v6097, %v6345
    %v6355 = vxor.u32 %v6347, 2147483648
    %v6356 = vxor.u32 %v6351, 2147483648
    %v6357 = vmul.f32 %v6355, 1.442695
    %v6358 = vpow.pop %v6357
    %v6359 = vmul.f32 %v6356, 1.442695
    %v6360 = vpow.pop %v6359
    %v6361 = vadd.f32 %v6358, 1.0
    %v6362 = vadd.f32 %v6360, 1.0
    %v6363 = vrcp.pop %v6361
    %v6364 = vmul.f32 %v6361, %v6363
    %v6365 = vsub.f32 1.0, %v6364
    %v6366 = vmul.f32 %v6363, %v6365
    %v6367 = vadd.f32 %v6363, %v6366
    %vm6368 = vweird.f32 %v6361
    %vm6369 = vweird.f32 %v6363
    %vm6370 = vmor %vm6368, %vm6369
    %v6371 = vsel %vm6370, %v6363, %v6367
    %v6372 = vand.u32 2147483647, %v6361
    %vm6373 = vcmp.eq.f32.partialorder %v6372, 8.507059e+37
    %v6374 = vand.u32 %v6361, 2147483648
    %v6375 = vor.u32 1.1754944e-38, %v6374
    %v6376 = vsel %vm6373, %v6375, %v6371
    %v6377 = vmul.f32 1.0, %v6376
    %v6378 = vrcp.pop %v6362
    %v6379 = vmul.f32 %v6362, %v6378
    %v6380 = vsub.f32 1.0, %v6379
    %v6381 = vmul.f32 %v6378, %v6380
    %v6382 = vadd.f32 %v6378, %v6381
    %vm6383 = vweird.f32 %v6362
    %vm6384 = vweird.f32 %v6378
    %vm6385 = vmor %vm6383, %vm6384
    %v6386 = vsel %vm6385, %v6378, %v6382
    %v6387 = vand.u32 2147483647, %v6362
    %vm6388 = vcmp.eq.f32.partialorder %v6387, 8.507059e+37
    %v6389 = vand.u32 %v6362, 2147483648
    %v6390 = vor.u32 1.1754944e-38, %v6389
    %v6391 = vsel %vm6388, %v6390, %v6386
    %v6392 = vmul.f32 1.0, %v6391
    %v6393 = vxor.u32 %v6348, 2147483648
    %v6394 = vxor.u32 %v6352, 2147483648
    %v6395 = vmul.f32 %v6393, 1.442695
    %v6396 = vpow.pop %v6395
    %v6397 = vmul.f32 %v6394, 1.442695
    %v6398 = vpow.pop %v6397
    %v6399 = vadd.f32 %v6396, 1.0
    %v6400 = vadd.f32 %v6398, 1.0
    %v6401 = vrcp.pop %v6399
    %v6402 = vmul.f32 %v6399, %v6401
    %v6403 = vsub.f32 1.0, %v6402
    %v6404 = vmul.f32 %v6401, %v6403
    %v6405 = vadd.f32 %v6401, %v6404
    %vm6406 = vweird.f32 %v6399
    %vm6407 = vweird.f32 %v6401
    %vm6408 = vmor %vm6406, %vm6407
    %v6409 = vsel %vm6408, %v6401, %v6405
    %v6410 = vand.u32 2147483647, %v6399
    %vm6411 = vcmp.eq.f32.partialorder %v6410, 8.507059e+37
    %v6412 = vand.u32 %v6399, 2147483648
    %v6413 = vor.u32 1.1754944e-38, %v6412
    %v6414 = vsel %vm6411, %v6413, %v6409
    %v6415 = vmul.f32 1.0, %v6414
    %v6416 = vrcp.pop %v6400
    %v6417 = vmul.f32 %v6400, %v6416
    %v6418 = vsub.f32 1.0, %v6417
    %v6419 = vmul.f32 %v6416, %v6418
    %v6420 = vadd.f32 %v6416, %v6419
    %vm6421 = vweird.f32 %v6400
    %vm6422 = vweird.f32 %v6416
    %vm6423 = vmor %vm6421, %vm6422
    %v6424 = vsel %vm6423, %v6416, %v6420
    %v6425 = vand.u32 2147483647, %v6400
    %vm6426 = vcmp.eq.f32.partialorder %v6425, 8.507059e+37
    %v6427 = vand.u32 %v6400, 2147483648
    %v6428 = vor.u32 1.1754944e-38, %v6427
    %v6429 = vsel %vm6426, %v6428, %v6424
    %v6430 = vmul.f32 1.0, %v6429
    %v6431 = vtanh.pop %v6349
    %v6432 = vtanh.pop %v6353
    %v6433 = vxor.u32 %v6350, 2147483648
    %v6434 = vxor.u32 %v6354, 2147483648
    %v6435 = vmul.f32 %v6433, 1.442695
    %v6436 = vpow.pop %v6435
    %v6437 = vmul.f32 %v6434, 1.442695
    %v6438 = vpow.pop %v6437
    %v6439 = vadd.f32 %v6436, 1.0
    %v6440 = vadd.f32 %v6438, 1.0
    %v6441 = vrcp.pop %v6439
    %v6442 = vmul.f32 %v6439, %v6441
    %v6443 = vsub.f32 1.0, %v6442
    %v6444 = vmul.f32 %v6441, %v6443
    %v6445 = vadd.f32 %v6441, %v6444
    %vm6446 = vweird.f32 %v6439
    %vm6447 = vweird.f32 %v6441
    %vm6448 = vmor %vm6446, %vm6447
    %v6449 = vsel %vm6448, %v6441, %v6445
    %v6450 = vand.u32 2147483647, %v6439
    %vm6451 = vcmp.eq.f32.partialorder %v6450, 8.507059e+37
    %v6452 = vand.u32 %v6439, 2147483648
    %v6453 = vor.u32 1.1754944e-38, %v6452
    %v6454 = vsel %vm6451, %v6453, %v6449
    %v6455 = vmul.f32 1.0, %v6454
    %v6456 = vrcp.pop %v6440
    %v6457 = vmul.f32 %v6440, %v6456
    %v6458 = vsub.f32 1.0, %v6457
    %v6459 = vmul.f32 %v6456, %v6458
    %v6460 = vadd.f32 %v6456, %v6459
    %vm6461 = vweird.f32 %v6440
    %vm6462 = vweird.f32 %v6456
    %vm6463 = vmor %vm6461, %vm6462
    %v6464 = vsel %vm6463, %v6456, %v6460
    %v6465 = vand.u32 2147483647, %v6440
    %vm6466 = vcmp.eq.f32.partialorder %v6465, 8.507059e+37
    %v6467 = vand.u32 %v6440, 2147483648
    %v6468 = vor.u32 1.1754944e-38, %v6467
    %v6469 = vsel %vm6466, %v6468, %v6464
    %v6470 = vmul.f32 1.0, %v6469
    %v6471 = vmul.f32 %v6415, %v6086
    %v6472 = vmul.f32 %v6430, %v6087
    %v6473 = vmul.f32 %v6377, %v6431
    %v6474 = vmul.f32 %v6392, %v6432
    %v6475 = vadd.f32 %v6471, %v6473
    %v6476 = vadd.f32 %v6472, %v6474
    %v6477 = vtanh.pop %v6475
    %v6478 = vtanh.pop %v6476
    %v6479 = vmul.f32 %v6455, %v6477
    %v6480 = vmul.f32 %v6470, %v6478
    %6481 = vst [vmem:[#allocation4] sm:$0xff] %v6479
    %6482 = vst [vmem:[#allocation4 + $0x8] sm:$0xff] %v6480
    %6483 = vst [vmem:[#allocation5] sm:$0xff] %v6475
    %6484 = vst [vmem:[#allocation5 + $0x8] sm:$0xff] %v6476
    %v6485 = vpack.c.bf16 %v6479, %v6479
    %v6486 = vpack.c.bf16 %v6480, %v6480
    %s6487 = scalar_lea.vmem [#allocation15], 8
    %6488 = vst [vmem:[%s6487] sm:$0xf] %v6485
    %6489 = vst [vmem:[%s6487 + $0x4] sm:$0xf] %v6486
    %s6490 = smul.addr %s1209, 8
    %s6491 = scalar_lea.vmem [#allocation6], %s6490
    %v6492 = vld [vmem:[%s6491] sm:$0xff]
    %v6493 = vld [vmem:[%s6491 + $0x8] sm:$0xff]
    %v6494 = vld [vmem:[%s6491 + $0x10] sm:$0xff]
    %v6495 = vld [vmem:[%s6491 + $0x18] sm:$0xff]
    %v6496 = vld [vmem:[%s6491 + $0x20] sm:$0xff]
    %v6497 = vld [vmem:[%s6491 + $0x28] sm:$0xff]
    %v6498 = vld [vmem:[%s6491 + $0x30] sm:$0xff]
    %v6499 = vld [vmem:[%s6491 + $0x38] sm:$0xff]
    %v6500 = vld [vmem:[#allocation2] sm:$0xff]
    %v6501 = vld [vmem:[#allocation2 + $0x8] sm:$0xff]
    %v6502 = vpack.c.bf16 %v6501, %v6500
    %v6503 = vld [vmem:[%s4] sm:$0xff]
    %v6504 = vld [vmem:[%s4 + $0x8] sm:$0xff]
    %v6505 = vld [vmem:[%s4 + $0x10] sm:$0xff]
    %v6506 = vld [vmem:[%s4 + $0x18] sm:$0xff]
    %v6507 = vld [vmem:[%s4 + $0x20] sm:$0xff]
    %v6508 = vld [vmem:[%s4 + $0x28] sm:$0xff]
    %v6509 = vld [vmem:[%s4 + $0x30] sm:$0xff]
    %v6510 = vld [vmem:[%s4 + $0x38] sm:$0xff]
    %v6511 = vld [vmem:[%s4 + $0x40] sm:$0xff]
    %v6512 = vld [vmem:[%s4 + $0x48] sm:$0xff]
    %v6513 = vld [vmem:[%s4 + $0x50] sm:$0xff]
    %v6514 = vld [vmem:[%s4 + $0x58] sm:$0xff]
    %v6515 = vld [vmem:[%s4 + $0x60] sm:$0xff]
    %v6516 = vld [vmem:[%s4 + $0x68] sm:$0xff]
    %v6517 = vld [vmem:[%s4 + $0x70] sm:$0xff]
    %v6518 = vld [vmem:[%s4 + $0x78] sm:$0xff]
    %v6519 = vld [vmem:[%s4 + $0x80] sm:$0xff]
    %v6520 = vld [vmem:[%s4 + $0x88] sm:$0xff]
    %v6521 = vld [vmem:[%s4 + $0x90] sm:$0xff]
    %v6522 = vld [vmem:[%s4 + $0x98] sm:$0xff]
    %v6523 = vld [vmem:[%s4 + $0xa0] sm:$0xff]
    %v6524 = vld [vmem:[%s4 + $0xa8] sm:$0xff]
    %v6525 = vld [vmem:[%s4 + $0xb0] sm:$0xff]
    %v6526 = vld [vmem:[%s4 + $0xb8] sm:$0xff]
    %v6527 = vld [vmem:[%s4 + $0xc0] sm:$0xff]
    %v6528 = vld [vmem:[%s4 + $0xc8] sm:$0xff]
    %v6529 = vld [vmem:[%s4 + $0xd0] sm:$0xff]
    %v6530 = vld [vmem:[%s4 + $0xd8] sm:$0xff]
    %v6531 = vld [vmem:[%s4 + $0xe0] sm:$0xff]
    %v6532 = vld [vmem:[%s4 + $0xe8] sm:$0xff]
    %v6533 = vld [vmem:[%s4 + $0xf0] sm:$0xff]
    %v6534 = vld [vmem:[%s4 + $0xf8] sm:$0xff]
    %v6567 = vunpack.c.l.b16 %v6503
    %v6568 = vunpack.c.h.b16 %v6503
    %v6569 = vunpack.c.l.b16 %v6504
    %v6570 = vunpack.c.h.b16 %v6504
    %v6571 = vunpack.c.l.b16 %v6505
    %v6572 = vunpack.c.h.b16 %v6505
    %v6573 = vunpack.c.l.b16 %v6506
    %v6574 = vunpack.c.h.b16 %v6506
    %v6575 = vunpack.c.l.b16 %v6507
    %v6576 = vunpack.c.h.b16 %v6507
    %v6577 = vunpack.c.l.b16 %v6508
    %v6578 = vunpack.c.h.b16 %v6508
    %v6579 = vunpack.c.l.b16 %v6509
    %v6580 = vunpack.c.h.b16 %v6509
    %v6581 = vunpack.c.l.b16 %v6510
    %v6582 = vunpack.c.h.b16 %v6510
    %v6583 = vunpack.c.l.b16 %v6511
    %v6584 = vunpack.c.h.b16 %v6511
    %v6585 = vunpack.c.l.b16 %v6512
    %v6586 = vunpack.c.h.b16 %v6512
    %v6587 = vunpack.c.l.b16 %v6513
    %v6588 = vunpack.c.h.b16 %v6513
    %v6589 = vunpack.c.l.b16 %v6514
    %v6590 = vunpack.c.h.b16 %v6514
    %v6591 = vunpack.c.l.b16 %v6515
    %v6592 = vunpack.c.h.b16 %v6515
    %v6593 = vunpack.c.l.b16 %v6516
    %v6594 = vunpack.c.h.b16 %v6516
    %v6595 = vunpack.c.l.b16 %v6517
    %v6596 = vunpack.c.h.b16 %v6517
    %v6597 = vunpack.c.l.b16 %v6518
    %v6598 = vunpack.c.h.b16 %v6518
    %v6599 = vunpack.c.l.b16 %v6519
    %v6600 = vunpack.c.h.b16 %v6519
    %v6601 = vunpack.c.l.b16 %v6520
    %v6602 = vunpack.c.h.b16 %v6520
    %v6603 = vunpack.c.l.b16 %v6521
    %v6604 = vunpack.c.h.b16 %v6521
    %v6605 = vunpack.c.l.b16 %v6522
    %v6606 = vunpack.c.h.b16 %v6522
    %v6607 = vunpack.c.l.b16 %v6523
    %v6608 = vunpack.c.h.b16 %v6523
    %v6609 = vunpack.c.l.b16 %v6524
    %v6610 = vunpack.c.h.b16 %v6524
    %v6611 = vunpack.c.l.b16 %v6525
    %v6612 = vunpack.c.h.b16 %v6525
    %v6613 = vunpack.c.l.b16 %v6526
    %v6614 = vunpack.c.h.b16 %v6526
    %v6615 = vunpack.c.l.b16 %v6527
    %v6616 = vunpack.c.h.b16 %v6527
    %v6617 = vunpack.c.l.b16 %v6528
    %v6618 = vunpack.c.h.b16 %v6528
    %v6619 = vunpack.c.l.b16 %v6529
    %v6620 = vunpack.c.h.b16 %v6529
    %v6621 = vunpack.c.l.b16 %v6530
    %v6622 = vunpack.c.h.b16 %v6530
    %v6623 = vunpack.c.l.b16 %v6531
    %v6624 = vunpack.c.h.b16 %v6531
    %v6625 = vunpack.c.l.b16 %v6532
    %v6626 = vunpack.c.h.b16 %v6532
    %v6627 = vunpack.c.l.b16 %v6533
    %v6628 = vunpack.c.h.b16 %v6533
    %v6629 = vunpack.c.l.b16 %v6534
    %v6630 = vunpack.c.h.b16 %v6534
    %v6631 = vpack.c.b16 %v6571, %v6567
    %v6632 = vpack.c.b16 %v6572, %v6568
    %v6633 = vpack.c.b16 %v6573, %v6569
    %v6634 = vpack.c.b16 %v6574, %v6570
    %v6635 = vpack.c.b16 %v6579, %v6575
    %v6636 = vpack.c.b16 %v6580, %v6576
    %v6637 = vpack.c.b16 %v6581, %v6577
    %v6638 = vpack.c.b16 %v6582, %v6578
    %v6639 = vpack.c.b16 %v6587, %v6583
    %v6640 = vpack.c.b16 %v6588, %v6584
    %v6641 = vpack.c.b16 %v6589, %v6585
    %v6642 = vpack.c.b16 %v6590, %v6586
    %v6643 = vpack.c.b16 %v6595, %v6591
    %v6644 = vpack.c.b16 %v6596, %v6592
    %v6645 = vpack.c.b16 %v6597, %v6593
    %v6646 = vpack.c.b16 %v6598, %v6594
    %v6647 = vpack.c.b16 %v6603, %v6599
    %v6648 = vpack.c.b16 %v6604, %v6600
    %v6649 = vpack.c.b16 %v6605, %v6601
    %v6650 = vpack.c.b16 %v6606, %v6602
    %v6651 = vpack.c.b16 %v6611, %v6607
    %v6652 = vpack.c.b16 %v6612, %v6608
    %v6653 = vpack.c.b16 %v6613, %v6609
    %v6654 = vpack.c.b16 %v6614, %v6610
    %v6655 = vpack.c.b16 %v6619, %v6615
    %v6656 = vpack.c.b16 %v6620, %v6616
    %v6657 = vpack.c.b16 %v6621, %v6617
    %v6658 = vpack.c.b16 %v6622, %v6618
    %v6659 = vpack.c.b16 %v6627, %v6623
    %v6660 = vpack.c.b16 %v6628, %v6624
    %v6661 = vpack.c.b16 %v6629, %v6625
    %v6662 = vpack.c.b16 %v6630, %v6626
    %6695 = vmatpush.bf16.msra.mxu0 %v6659
    %6696 = vmatpush.bf16.msra.mxu0 %v6655
    %6697 = vmatpush.bf16.msra.mxu0 %v6651
    %6698 = vmatpush.bf16.msra.mxu0 %v6647
    %6699 = vmatpush.bf16.msra.mxu0 %v6643
    %6700 = vmatpush.bf16.msra.mxu0 %v6639
    %6701 = vmatpush.bf16.msra.mxu0 %v6635
    %6702 = vmatpush.bf16.msra.mxu0 %v6631
    %6703 = vmatmul.bf16.gmra.mxu0 %v6502
    %v6704 = vpop.f32.mrf.mxu0
    %v6705 = vadd.f32 0.0, %v6704
    %v6706 = vpop.f32.mrf.mxu0
    %v6707 = vadd.f32 0.0, %v6706
    %6708 = vdwg.mxu0
    %6709 = vmatpush.bf16.msra.mxu0 %v6660
    %6710 = vmatpush.bf16.msra.mxu0 %v6656
    %6711 = vmatpush.bf16.msra.mxu0 %v6652
    %6712 = vmatpush.bf16.msra.mxu0 %v6648
    %6713 = vmatpush.bf16.msra.mxu0 %v6644
    %6714 = vmatpush.bf16.msra.mxu0 %v6640
    %6715 = vmatpush.bf16.msra.mxu0 %v6636
    %6716 = vmatpush.bf16.msra.mxu0 %v6632
    %6717 = vmatmul.bf16.gmra.mxu0 %v6502
    %v6718 = vpop.f32.mrf.mxu0
    %v6719 = vadd.f32 0.0, %v6718
    %v6720 = vpop.f32.mrf.mxu0
    %v6721 = vadd.f32 0.0, %v6720
    %6722 = vdwg.mxu0
    %6723 = vmatpush.bf16.msra.mxu0 %v6661
    %6724 = vmatpush.bf16.msra.mxu0 %v6657
    %6725 = vmatpush.bf16.msra.mxu0 %v6653
    %6726 = vmatpush.bf16.msra.mxu0 %v6649
    %6727 = vmatpush.bf16.msra.mxu0 %v6645
    %6728 = vmatpush.bf16.msra.mxu0 %v6641
    %6729 = vmatpush.bf16.msra.mxu0 %v6637
    %6730 = vmatpush.bf16.msra.mxu0 %v6633
    %6731 = vmatmul.bf16.gmra.mxu0 %v6502
    %v6732 = vpop.f32.mrf.mxu0
    %v6733 = vadd.f32 0.0, %v6732
    %v6734 = vpop.f32.mrf.mxu0
    %v6735 = vadd.f32 0.0, %v6734
    %6736 = vdwg.mxu0
    %6737 = vmatpush.bf16.msra.mxu0 %v6662
    %6738 = vmatpush.bf16.msra.mxu0 %v6658
    %6739 = vmatpush.bf16.msra.mxu0 %v6654
    %6740 = vmatpush.bf16.msra.mxu0 %v6650
    %6741 = vmatpush.bf16.msra.mxu0 %v6646
    %6742 = vmatpush.bf16.msra.mxu0 %v6642
    %6743 = vmatpush.bf16.msra.mxu0 %v6638
    %6744 = vmatpush.bf16.msra.mxu0 %v6634
    %6745 = vmatmul.bf16.gmra.mxu0 %v6502
    %v6746 = vpop.f32.mrf.mxu0
    %v6747 = vadd.f32 0.0, %v6746
    %v6748 = vpop.f32.mrf.mxu0
    %v6749 = vadd.f32 0.0, %v6748
    %6750 = vdwg.mxu0
    %v6751 = vadd.f32 %v6492, %v6705
    %v6752 = vadd.f32 %v6493, %v6719
    %v6753 = vadd.f32 %v6494, %v6733
    %v6754 = vadd.f32 %v6495, %v6747
    %v6755 = vadd.f32 %v6496, %v6707
    %v6756 = vadd.f32 %v6497, %v6721
    %v6757 = vadd.f32 %v6498, %v6735
    %v6758 = vadd.f32 %v6499, %v6749
    %v6759 = vld [vmem:[#allocation3] sm:$0xff]
    %v6760 = vld [vmem:[#allocation3 + $0x8] sm:$0xff]
    %v6761 = vxor.u32 %v6751, 2147483648
    %v6762 = vxor.u32 %v6755, 2147483648
    %v6763 = vmul.f32 %v6761, 1.442695
    %v6764 = vpow.pop %v6763
    %v6765 = vmul.f32 %v6762, 1.442695
    %v6766 = vpow.pop %v6765
    %v6767 = vadd.f32 %v6764, 1.0
    %v6768 = vadd.f32 %v6766, 1.0
    %v6769 = vrcp.pop %v6767
    %v6770 = vmul.f32 %v6767, %v6769
    %v6771 = vsub.f32 1.0, %v6770
    %v6772 = vmul.f32 %v6769, %v6771
    %v6773 = vadd.f32 %v6769, %v6772
    %vm6774 = vweird.f32 %v6767
    %vm6775 = vweird.f32 %v6769
    %vm6776 = vmor %vm6774, %vm6775
    %v6777 = vsel %vm6776, %v6769, %v6773
    %v6778 = vand.u32 2147483647, %v6767
    %vm6779 = vcmp.eq.f32.partialorder %v6778, 8.507059e+37
    %v6780 = vand.u32 %v6767, 2147483648
    %v6781 = vor.u32 1.1754944e-38, %v6780
    %v6782 = vsel %vm6779, %v6781, %v6777
    %v6783 = vmul.f32 1.0, %v6782
    %v6784 = vrcp.pop %v6768
    %v6785 = vmul.f32 %v6768, %v6784
    %v6786 = vsub.f32 1.0, %v6785
    %v6787 = vmul.f32 %v6784, %v6786
    %v6788 = vadd.f32 %v6784, %v6787
    %vm6789 = vweird.f32 %v6768
    %vm6790 = vweird.f32 %v6784
    %vm6791 = vmor %vm6789, %vm6790
    %v6792 = vsel %vm6791, %v6784, %v6788
    %v6793 = vand.u32 2147483647, %v6768
    %vm6794 = vcmp.eq.f32.partialorder %v6793, 8.507059e+37
    %v6795 = vand.u32 %v6768, 2147483648
    %v6796 = vor.u32 1.1754944e-38, %v6795
    %v6797 = vsel %vm6794, %v6796, %v6792
    %v6798 = vmul.f32 1.0, %v6797
    %v6799 = vxor.u32 %v6752, 2147483648
    %v6800 = vxor.u32 %v6756, 2147483648
    %v6801 = vmul.f32 %v6799, 1.442695
    %v6802 = vpow.pop %v6801
    %v6803 = vmul.f32 %v6800, 1.442695
    %v6804 = vpow.pop %v6803
    %v6805 = vadd.f32 %v6802, 1.0
    %v6806 = vadd.f32 %v6804, 1.0
    %v6807 = vrcp.pop %v6805
    %v6808 = vmul.f32 %v6805, %v6807
    %v6809 = vsub.f32 1.0, %v6808
    %v6810 = vmul.f32 %v6807, %v6809
    %v6811 = vadd.f32 %v6807, %v6810
    %vm6812 = vweird.f32 %v6805
    %vm6813 = vweird.f32 %v6807
    %vm6814 = vmor %vm6812, %vm6813
    %v6815 = vsel %vm6814, %v6807, %v6811
    %v6816 = vand.u32 2147483647, %v6805
    %vm6817 = vcmp.eq.f32.partialorder %v6816, 8.507059e+37
    %v6818 = vand.u32 %v6805, 2147483648
    %v6819 = vor.u32 1.1754944e-38, %v6818
    %v6820 = vsel %vm6817, %v6819, %v6815
    %v6821 = vmul.f32 1.0, %v6820
    %v6822 = vrcp.pop %v6806
    %v6823 = vmul.f32 %v6806, %v6822
    %v6824 = vsub.f32 1.0, %v6823
    %v6825 = vmul.f32 %v6822, %v6824
    %v6826 = vadd.f32 %v6822, %v6825
    %vm6827 = vweird.f32 %v6806
    %vm6828 = vweird.f32 %v6822
    %vm6829 = vmor %vm6827, %vm6828
    %v6830 = vsel %vm6829, %v6822, %v6826
    %v6831 = vand.u32 2147483647, %v6806
    %vm6832 = vcmp.eq.f32.partialorder %v6831, 8.507059e+37
    %v6833 = vand.u32 %v6806, 2147483648
    %v6834 = vor.u32 1.1754944e-38, %v6833
    %v6835 = vsel %vm6832, %v6834, %v6830
    %v6836 = vmul.f32 1.0, %v6835
    %v6837 = vtanh.pop %v6753
    %v6838 = vtanh.pop %v6757
    %v6839 = vxor.u32 %v6754, 2147483648
    %v6840 = vxor.u32 %v6758, 2147483648
    %v6841 = vmul.f32 %v6839, 1.442695
    %v6842 = vpow.pop %v6841
    %v6843 = vmul.f32 %v6840, 1.442695
    %v6844 = vpow.pop %v6843
    %v6845 = vadd.f32 %v6842, 1.0
    %v6846 = vadd.f32 %v6844, 1.0
    %v6847 = vrcp.pop %v6845
    %v6848 = vmul.f32 %v6845, %v6847
    %v6849 = vsub.f32 1.0, %v6848
    %v6850 = vmul.f32 %v6847, %v6849
    %v6851 = vadd.f32 %v6847, %v6850
    %vm6852 = vweird.f32 %v6845
    %vm6853 = vweird.f32 %v6847
    %vm6854 = vmor %vm6852, %vm6853
    %v6855 = vsel %vm6854, %v6847, %v6851
    %v6856 = vand.u32 2147483647, %v6845
    %vm6857 = vcmp.eq.f32.partialorder %v6856, 8.507059e+37
    %v6858 = vand.u32 %v6845, 2147483648
    %v6859 = vor.u32 1.1754944e-38, %v6858
    %v6860 = vsel %vm6857, %v6859, %v6855
    %v6861 = vmul.f32 1.0, %v6860
    %v6862 = vrcp.pop %v6846
    %v6863 = vmul.f32 %v6846, %v6862
    %v6864 = vsub.f32 1.0, %v6863
    %v6865 = vmul.f32 %v6862, %v6864
    %v6866 = vadd.f32 %v6862, %v6865
    %vm6867 = vweird.f32 %v6846
    %vm6868 = vweird.f32 %v6862
    %vm6869 = vmor %vm6867, %vm6868
    %v6870 = vsel %vm6869, %v6862, %v6866
    %v6871 = vand.u32 2147483647, %v6846
    %vm6872 = vcmp.eq.f32.partialorder %v6871, 8.507059e+37
    %v6873 = vand.u32 %v6846, 2147483648
    %v6874 = vor.u32 1.1754944e-38, %v6873
    %v6875 = vsel %vm6872, %v6874, %v6870
    %v6876 = vmul.f32 1.0, %v6875
    %v6877 = vmul.f32 %v6821, %v6759
    %v6878 = vmul.f32 %v6836, %v6760
    %v6879 = vmul.f32 %v6783, %v6837
    %v6880 = vmul.f32 %v6798, %v6838
    %v6881 = vadd.f32 %v6877, %v6879
    %v6882 = vadd.f32 %v6878, %v6880
    %v6883 = vtanh.pop %v6881
    %v6884 = vtanh.pop %v6882
    %v6885 = vmul.f32 %v6861, %v6883
    %v6886 = vmul.f32 %v6876, %v6884
    %6887 = vst [vmem:[#allocation2] sm:$0xff] %v6885
    %6888 = vst [vmem:[#allocation2 + $0x8] sm:$0xff] %v6886
    %6889 = vst [vmem:[#allocation3] sm:$0xff] %v6881
    %6890 = vst [vmem:[#allocation3 + $0x8] sm:$0xff] %v6882
    %v6891 = vpack.c.bf16 %v6885, %v6885
    %v6892 = vpack.c.bf16 %v6886, %v6886
    %s6893 = scalar_lea.vmem [#allocation14], 56
    %6894 = vst [vmem:[%s6893] sm:$0xf] %v6891
    %6895 = vst [vmem:[%s6893 + $0x4] sm:$0xf] %v6892
    %v6896 = vld [vmem:[#allocation4] sm:$0xff]
    %v6897 = vld [vmem:[#allocation4 + $0x8] sm:$0xff]
    %v6898 = vld [vmem:[#allocation5] sm:$0xff]
    %v6899 = vld [vmem:[#allocation5 + $0x8] sm:$0xff]
    %s6900 = smul.addr %s799, 8
    %s6901 = scalar_lea.vmem [#allocation7], %s6900
    %v6902 = vld [vmem:[%s6901] sm:$0xff]
    %v6903 = vld [vmem:[%s6901 + $0x8] sm:$0xff]
    %v6904 = vld [vmem:[%s6901 + $0x10] sm:$0xff]
    %v6905 = vld [vmem:[%s6901 + $0x18] sm:$0xff]
    %v6906 = vld [vmem:[%s6901 + $0x20] sm:$0xff]
    %v6907 = vld [vmem:[%s6901 + $0x28] sm:$0xff]
    %v6908 = vld [vmem:[%s6901 + $0x30] sm:$0xff]
    %v6909 = vld [vmem:[%s6901 + $0x38] sm:$0xff]
    %v6910 = vpack.c.bf16 %v6897, %v6896
    %v6911 = vld [vmem:[#allocation13] sm:$0xff]
    %v6912 = vld [vmem:[#allocation13 + $0x8] sm:$0xff]
    %v6913 = vld [vmem:[#allocation13 + $0x10] sm:$0xff]
    %v6914 = vld [vmem:[#allocation13 + $0x18] sm:$0xff]
    %v6915 = vld [vmem:[#allocation13 + $0x20] sm:$0xff]
    %v6916 = vld [vmem:[#allocation13 + $0x28] sm:$0xff]
    %v6917 = vld [vmem:[#allocation13 + $0x30] sm:$0xff]
    %v6918 = vld [vmem:[#allocation13 + $0x38] sm:$0xff]
    %v6919 = vld [vmem:[#allocation13 + $0x40] sm:$0xff]
    %v6920 = vld [vmem:[#allocation13 + $0x48] sm:$0xff]
    %v6921 = vld [vmem:[#allocation13 + $0x50] sm:$0xff]
    %v6922 = vld [vmem:[#allocation13 + $0x58] sm:$0xff]
    %v6923 = vld [vmem:[#allocation13 + $0x60] sm:$0xff]
    %v6924 = vld [vmem:[#allocation13 + $0x68] sm:$0xff]
    %v6925 = vld [vmem:[#allocation13 + $0x70] sm:$0xff]
    %v6926 = vld [vmem:[#allocation13 + $0x78] sm:$0xff]
    %v6927 = vld [vmem:[#allocation13 + $0x80] sm:$0xff]
    %v6928 = vld [vmem:[#allocation13 + $0x88] sm:$0xff]
    %v6929 = vld [vmem:[#allocation13 + $0x90] sm:$0xff]
    %v6930 = vld [vmem:[#allocation13 + $0x98] sm:$0xff]
    %v6931 = vld [vmem:[#allocation13 + $0xa0] sm:$0xff]
    %v6932 = vld [vmem:[#allocation13 + $0xa8] sm:$0xff]
    %v6933 = vld [vmem:[#allocation13 + $0xb0] sm:$0xff]
    %v6934 = vld [vmem:[#allocation13 + $0xb8] sm:$0xff]
    %v6935 = vld [vmem:[#allocation13 + $0xc0] sm:$0xff]
    %v6936 = vld [vmem:[#allocation13 + $0xc8] sm:$0xff]
    %v6937 = vld [vmem:[#allocation13 + $0xd0] sm:$0xff]
    %v6938 = vld [vmem:[#allocation13 + $0xd8] sm:$0xff]
    %v6939 = vld [vmem:[#allocation13 + $0xe0] sm:$0xff]
    %v6940 = vld [vmem:[#allocation13 + $0xe8] sm:$0xff]
    %v6941 = vld [vmem:[#allocation13 + $0xf0] sm:$0xff]
    %v6942 = vld [vmem:[#allocation13 + $0xf8] sm:$0xff]
    %v6975 = vunpack.c.l.b16 %v6911
    %v6976 = vunpack.c.h.b16 %v6911
    %v6977 = vunpack.c.l.b16 %v6912
    %v6978 = vunpack.c.h.b16 %v6912
    %v6979 = vunpack.c.l.b16 %v6913
    %v6980 = vunpack.c.h.b16 %v6913
    %v6981 = vunpack.c.l.b16 %v6914
    %v6982 = vunpack.c.h.b16 %v6914
    %v6983 = vunpack.c.l.b16 %v6915
    %v6984 = vunpack.c.h.b16 %v6915
    %v6985 = vunpack.c.l.b16 %v6916
    %v6986 = vunpack.c.h.b16 %v6916
    %v6987 = vunpack.c.l.b16 %v6917
    %v6988 = vunpack.c.h.b16 %v6917
    %v6989 = vunpack.c.l.b16 %v6918
    %v6990 = vunpack.c.h.b16 %v6918
    %v6991 = vunpack.c.l.b16 %v6919
    %v6992 = vunpack.c.h.b16 %v6919
    %v6993 = vunpack.c.l.b16 %v6920
    %v6994 = vunpack.c.h.b16 %v6920
    %v6995 = vunpack.c.l.b16 %v6921
    %v6996 = vunpack.c.h.b16 %v6921
    %v6997 = vunpack.c.l.b16 %v6922
    %v6998 = vunpack.c.h.b16 %v6922
    %v6999 = vunpack.c.l.b16 %v6923
    %v7000 = vunpack.c.h.b16 %v6923
    %v7001 = vunpack.c.l.b16 %v6924
    %v7002 = vunpack.c.h.b16 %v6924
    %v7003 = vunpack.c.l.b16 %v6925
    %v7004 = vunpack.c.h.b16 %v6925
    %v7005 = vunpack.c.l.b16 %v6926
    %v7006 = vunpack.c.h.b16 %v6926
    %v7007 = vunpack.c.l.b16 %v6927
    %v7008 = vunpack.c.h.b16 %v6927
    %v7009 = vunpack.c.l.b16 %v6928
    %v7010 = vunpack.c.h.b16 %v6928
    %v7011 = vunpack.c.l.b16 %v6929
    %v7012 = vunpack.c.h.b16 %v6929
    %v7013 = vunpack.c.l.b16 %v6930
    %v7014 = vunpack.c.h.b16 %v6930
    %v7015 = vunpack.c.l.b16 %v6931
    %v7016 = vunpack.c.h.b16 %v6931
    %v7017 = vunpack.c.l.b16 %v6932
    %v7018 = vunpack.c.h.b16 %v6932
    %v7019 = vunpack.c.l.b16 %v6933
    %v7020 = vunpack.c.h.b16 %v6933
    %v7021 = vunpack.c.l.b16 %v6934
    %v7022 = vunpack.c.h.b16 %v6934
    %v7023 = vunpack.c.l.b16 %v6935
    %v7024 = vunpack.c.h.b16 %v6935
    %v7025 = vunpack.c.l.b16 %v6936
    %v7026 = vunpack.c.h.b16 %v6936
    %v7027 = vunpack.c.l.b16 %v6937
    %v7028 = vunpack.c.h.b16 %v6937
    %v7029 = vunpack.c.l.b16 %v6938
    %v7030 = vunpack.c.h.b16 %v6938
    %v7031 = vunpack.c.l.b16 %v6939
    %v7032 = vunpack.c.h.b16 %v6939
    %v7033 = vunpack.c.l.b16 %v6940
    %v7034 = vunpack.c.h.b16 %v6940
    %v7035 = vunpack.c.l.b16 %v6941
    %v7036 = vunpack.c.h.b16 %v6941
    %v7037 = vunpack.c.l.b16 %v6942
    %v7038 = vunpack.c.h.b16 %v6942
    %v7039 = vpack.c.b16 %v6979, %v6975
    %v7040 = vpack.c.b16 %v6980, %v6976
    %v7041 = vpack.c.b16 %v6981, %v6977
    %v7042 = vpack.c.b16 %v6982, %v6978
    %v7043 = vpack.c.b16 %v6987, %v6983
    %v7044 = vpack.c.b16 %v6988, %v6984
    %v7045 = vpack.c.b16 %v6989, %v6985
    %v7046 = vpack.c.b16 %v6990, %v6986
    %v7047 = vpack.c.b16 %v6995, %v6991
    %v7048 = vpack.c.b16 %v6996, %v6992
    %v7049 = vpack.c.b16 %v6997, %v6993
    %v7050 = vpack.c.b16 %v6998, %v6994
    %v7051 = vpack.c.b16 %v7003, %v6999
    %v7052 = vpack.c.b16 %v7004, %v7000
    %v7053 = vpack.c.b16 %v7005, %v7001
    %v7054 = vpack.c.b16 %v7006, %v7002
    %v7055 = vpack.c.b16 %v7011, %v7007
    %v7056 = vpack.c.b16 %v7012, %v7008
    %v7057 = vpack.c.b16 %v7013, %v7009
    %v7058 = vpack.c.b16 %v7014, %v7010
    %v7059 = vpack.c.b16 %v7019, %v7015
    %v7060 = vpack.c.b16 %v7020, %v7016
    %v7061 = vpack.c.b16 %v7021, %v7017
    %v7062 = vpack.c.b16 %v7022, %v7018
    %v7063 = vpack.c.b16 %v7027, %v7023
    %v7064 = vpack.c.b16 %v7028, %v7024
    %v7065 = vpack.c.b16 %v7029, %v7025
    %v7066 = vpack.c.b16 %v7030, %v7026
    %v7067 = vpack.c.b16 %v7035, %v7031
    %v7068 = vpack.c.b16 %v7036, %v7032
    %v7069 = vpack.c.b16 %v7037, %v7033
    %v7070 = vpack.c.b16 %v7038, %v7034
    %7103 = vmatpush.bf16.msra.mxu0 %v7067
    %7104 = vmatpush.bf16.msra.mxu0 %v7063
    %7105 = vmatpush.bf16.msra.mxu0 %v7059
    %7106 = vmatpush.bf16.msra.mxu0 %v7055
    %7107 = vmatpush.bf16.msra.mxu0 %v7051
    %7108 = vmatpush.bf16.msra.mxu0 %v7047
    %7109 = vmatpush.bf16.msra.mxu0 %v7043
    %7110 = vmatpush.bf16.msra.mxu0 %v7039
    %7111 = vmatmul.bf16.gmra.mxu0 %v6910
    %v7112 = vpop.f32.mrf.mxu0
    %v7113 = vadd.f32 0.0, %v7112
    %v7114 = vpop.f32.mrf.mxu0
    %v7115 = vadd.f32 0.0, %v7114
    %7116 = vdwg.mxu0
    %7117 = vmatpush.bf16.msra.mxu0 %v7068
    %7118 = vmatpush.bf16.msra.mxu0 %v7064
    %7119 = vmatpush.bf16.msra.mxu0 %v7060
    %7120 = vmatpush.bf16.msra.mxu0 %v7056
    %7121 = vmatpush.bf16.msra.mxu0 %v7052
    %7122 = vmatpush.bf16.msra.mxu0 %v7048
    %7123 = vmatpush.bf16.msra.mxu0 %v7044
    %7124 = vmatpush.bf16.msra.mxu0 %v7040
    %7125 = vmatmul.bf16.gmra.mxu0 %v6910
    %v7126 = vpop.f32.mrf.mxu0
    %v7127 = vadd.f32 0.0, %v7126
    %v7128 = vpop.f32.mrf.mxu0
    %v7129 = vadd.f32 0.0, %v7128
    %7130 = vdwg.mxu0
    %7131 = vmatpush.bf16.msra.mxu0 %v7069
    %7132 = vmatpush.bf16.msra.mxu0 %v7065
    %7133 = vmatpush.bf16.msra.mxu0 %v7061
    %7134 = vmatpush.bf16.msra.mxu0 %v7057
    %7135 = vmatpush.bf16.msra.mxu0 %v7053
    %7136 = vmatpush.bf16.msra.mxu0 %v7049
    %7137 = vmatpush.bf16.msra.mxu0 %v7045
    %7138 = vmatpush.bf16.msra.mxu0 %v7041
    %7139 = vmatmul.bf16.gmra.mxu0 %v6910
    %v7140 = vpop.f32.mrf.mxu0
    %v7141 = vadd.f32 0.0, %v7140
    %v7142 = vpop.f32.mrf.mxu0
    %v7143 = vadd.f32 0.0, %v7142
    %7144 = vdwg.mxu0
    %7145 = vmatpush.bf16.msra.mxu0 %v7070
    %7146 = vmatpush.bf16.msra.mxu0 %v7066
    %7147 = vmatpush.bf16.msra.mxu0 %v7062
    %7148 = vmatpush.bf16.msra.mxu0 %v7058
    %7149 = vmatpush.bf16.msra.mxu0 %v7054
    %7150 = vmatpush.bf16.msra.mxu0 %v7050
    %7151 = vmatpush.bf16.msra.mxu0 %v7046
    %7152 = vmatpush.bf16.msra.mxu0 %v7042
    %7153 = vmatmul.bf16.gmra.mxu0 %v6910
    %v7154 = vpop.f32.mrf.mxu0
    %v7155 = vadd.f32 0.0, %v7154
    %v7156 = vpop.f32.mrf.mxu0
    %v7157 = vadd.f32 0.0, %v7156
    %7158 = vdwg.mxu0
    %v7159 = vadd.f32 %v6902, %v7113
    %v7160 = vadd.f32 %v6903, %v7127
    %v7161 = vadd.f32 %v6904, %v7141
    %v7162 = vadd.f32 %v6905, %v7155
    %v7163 = vadd.f32 %v6906, %v7115
    %v7164 = vadd.f32 %v6907, %v7129
    %v7165 = vadd.f32 %v6908, %v7143
    %v7166 = vadd.f32 %v6909, %v7157
    %v7167 = vxor.u32 %v7159, 2147483648
    %v7168 = vxor.u32 %v7163, 2147483648
    %v7169 = vmul.f32 %v7167, 1.442695
    %v7170 = vpow.pop %v7169
    %v7171 = vmul.f32 %v7168, 1.442695
    %v7172 = vpow.pop %v7171
    %v7173 = vadd.f32 %v7170, 1.0
    %v7174 = vadd.f32 %v7172, 1.0
    %v7175 = vrcp.pop %v7173
    %v7176 = vmul.f32 %v7173, %v7175
    %v7177 = vsub.f32 1.0, %v7176
    %v7178 = vmul.f32 %v7175, %v7177
    %v7179 = vadd.f32 %v7175, %v7178
    %vm7180 = vweird.f32 %v7173
    %vm7181 = vweird.f32 %v7175
    %vm7182 = vmor %vm7180, %vm7181
    %v7183 = vsel %vm7182, %v7175, %v7179
    %v7184 = vand.u32 2147483647, %v7173
    %vm7185 = vcmp.eq.f32.partialorder %v7184, 8.507059e+37
    %v7186 = vand.u32 %v7173, 2147483648
    %v7187 = vor.u32 1.1754944e-38, %v7186
    %v7188 = vsel %vm7185, %v7187, %v7183
    %v7189 = vmul.f32 1.0, %v7188
    %v7190 = vrcp.pop %v7174
    %v7191 = vmul.f32 %v7174, %v7190
    %v7192 = vsub.f32 1.0, %v7191
    %v7193 = vmul.f32 %v7190, %v7192
    %v7194 = vadd.f32 %v7190, %v7193
    %vm7195 = vweird.f32 %v7174
    %vm7196 = vweird.f32 %v7190
    %vm7197 = vmor %vm7195, %vm7196
    %v7198 = vsel %vm7197, %v7190, %v7194
    %v7199 = vand.u32 2147483647, %v7174
    %vm7200 = vcmp.eq.f32.partialorder %v7199, 8.507059e+37
    %v7201 = vand.u32 %v7174, 2147483648
    %v7202 = vor.u32 1.1754944e-38, %v7201
    %v7203 = vsel %vm7200, %v7202, %v7198
    %v7204 = vmul.f32 1.0, %v7203
    %v7205 = vxor.u32 %v7160, 2147483648
    %v7206 = vxor.u32 %v7164, 2147483648
    %v7207 = vmul.f32 %v7205, 1.442695
    %v7208 = vpow.pop %v7207
    %v7209 = vmul.f32 %v7206, 1.442695
    %v7210 = vpow.pop %v7209
    %v7211 = vadd.f32 %v7208, 1.0
    %v7212 = vadd.f32 %v7210, 1.0
    %v7213 = vrcp.pop %v7211
    %v7214 = vmul.f32 %v7211, %v7213
    %v7215 = vsub.f32 1.0, %v7214
    %v7216 = vmul.f32 %v7213, %v7215
    %v7217 = vadd.f32 %v7213, %v7216
    %vm7218 = vweird.f32 %v7211
    %vm7219 = vweird.f32 %v7213
    %vm7220 = vmor %vm7218, %vm7219
    %v7221 = vsel %vm7220, %v7213, %v7217
    %v7222 = vand.u32 2147483647, %v7211
    %vm7223 = vcmp.eq.f32.partialorder %v7222, 8.507059e+37
    %v7224 = vand.u32 %v7211, 2147483648
    %v7225 = vor.u32 1.1754944e-38, %v7224
    %v7226 = vsel %vm7223, %v7225, %v7221
    %v7227 = vmul.f32 1.0, %v7226
    %v7228 = vrcp.pop %v7212
    %v7229 = vmul.f32 %v7212, %v7228
    %v7230 = vsub.f32 1.0, %v7229
    %v7231 = vmul.f32 %v7228, %v7230
    %v7232 = vadd.f32 %v7228, %v7231
    %vm7233 = vweird.f32 %v7212
    %vm7234 = vweird.f32 %v7228
    %vm7235 = vmor %vm7233, %vm7234
    %v7236 = vsel %vm7235, %v7228, %v7232
    %v7237 = vand.u32 2147483647, %v7212
    %vm7238 = vcmp.eq.f32.partialorder %v7237, 8.507059e+37
    %v7239 = vand.u32 %v7212, 2147483648
    %v7240 = vor.u32 1.1754944e-38, %v7239
    %v7241 = vsel %vm7238, %v7240, %v7236
    %v7242 = vmul.f32 1.0, %v7241
    %v7243 = vtanh.pop %v7161
    %v7244 = vtanh.pop %v7165
    %v7245 = vxor.u32 %v7162, 2147483648
    %v7246 = vxor.u32 %v7166, 2147483648
    %v7247 = vmul.f32 %v7245, 1.442695
    %v7248 = vpow.pop %v7247
    %v7249 = vmul.f32 %v7246, 1.442695
    %v7250 = vpow.pop %v7249
    %v7251 = vadd.f32 %v7248, 1.0
    %v7252 = vadd.f32 %v7250, 1.0
    %v7253 = vrcp.pop %v7251
    %v7254 = vmul.f32 %v7251, %v7253
    %v7255 = vsub.f32 1.0, %v7254
    %v7256 = vmul.f32 %v7253, %v7255
    %v7257 = vadd.f32 %v7253, %v7256
    %vm7258 = vweird.f32 %v7251
    %vm7259 = vweird.f32 %v7253
    %vm7260 = vmor %vm7258, %vm7259
    %v7261 = vsel %vm7260, %v7253, %v7257
    %v7262 = vand.u32 2147483647, %v7251
    %vm7263 = vcmp.eq.f32.partialorder %v7262, 8.507059e+37
    %v7264 = vand.u32 %v7251, 2147483648
    %v7265 = vor.u32 1.1754944e-38, %v7264
    %v7266 = vsel %vm7263, %v7265, %v7261
    %v7267 = vmul.f32 1.0, %v7266
    %v7268 = vrcp.pop %v7252
    %v7269 = vmul.f32 %v7252, %v7268
    %v7270 = vsub.f32 1.0, %v7269
    %v7271 = vmul.f32 %v7268, %v7270
    %v7272 = vadd.f32 %v7268, %v7271
    %vm7273 = vweird.f32 %v7252
    %vm7274 = vweird.f32 %v7268
    %vm7275 = vmor %vm7273, %vm7274
    %v7276 = vsel %vm7275, %v7268, %v7272
    %v7277 = vand.u32 2147483647, %v7252
    %vm7278 = vcmp.eq.f32.partialorder %v7277, 8.507059e+37
    %v7279 = vand.u32 %v7252, 2147483648
    %v7280 = vor.u32 1.1754944e-38, %v7279
    %v7281 = vsel %vm7278, %v7280, %v7276
    %v7282 = vmul.f32 1.0, %v7281
    %v7283 = vmul.f32 %v7227, %v6898
    %v7284 = vmul.f32 %v7242, %v6899
    %v7285 = vmul.f32 %v7189, %v7243
    %v7286 = vmul.f32 %v7204, %v7244
    %v7287 = vadd.f32 %v7283, %v7285
    %v7288 = vadd.f32 %v7284, %v7286
    %v7289 = vtanh.pop %v7287
    %v7290 = vtanh.pop %v7288
    %v7291 = vmul.f32 %v7267, %v7289
    %v7292 = vmul.f32 %v7282, %v7290
    %7293 = vst [vmem:[#allocation4] sm:$0xff] %v7291
    %7294 = vst [vmem:[#allocation4 + $0x8] sm:$0xff] %v7292
    %7295 = vst [vmem:[#allocation5] sm:$0xff] %v7287
    %7296 = vst [vmem:[#allocation5 + $0x8] sm:$0xff] %v7288
    %v7297 = vpack.c.bf16 %v7291, %v7291
    %v7298 = vpack.c.bf16 %v7292, %v7292
    %7299 = vst [vmem:[#allocation15] sm:$0xf] %v7297
    %7300 = vst [vmem:[#allocation15 + $0x4] sm:$0xf] %v7298
    // Predicated region
    $region50: #{tpu_custom_call.1} parent=1 // pred_check
      _
    $region51: #{tpu_custom_call.1} parent=1 // pred_check_branch
      %7302 = sbr.rel (0) target = $region53
    $region52: #{tpu_custom_call.1} parent=1 // pred_region
      %7304 = vsyncadd [#allocation10], 0
      %s7305 = sshll.u32 [#allocation14], 4
      %s7306 = int_to_ptr.vmem [resolvable:$true] %s7305
      %s7307 = sshll.u32 %s8, 4
      %s7308 = int_to_ptr.hbm [resolvable:$true] %s7307
      %7313 = dma.vmem_to_hbm [thread:$0]  %s7306, 1024, %s7308, [#allocation10], 64, 64, 4
    $region53: #{tpu_custom_call.1} parent=1 // pred_fallthru
      _
    // Predicated region
    $region54: #{tpu_custom_call.1} parent=1 // pred_check
      _
    $region55: #{tpu_custom_call.1} parent=1 // pred_check_branch
      %7315 = sbr.rel (0) target = $region57
    $region56: #{tpu_custom_call.1} parent=1 // pred_region
      %s7316 = ssub.s32 0, 0
      %s7317 = smul.u32 16, %s7316
      %7319 = vsyncadd [#allocation16], 0
      %s7320 = smul.addr %s7317, 4
      %s7321 = scalar_lea.hbm %s9, %s7320
      %s7322 = sshll.u32 [#allocation15], 4
      %s7323 = int_to_ptr.vmem [resolvable:$true] %s7322
      %s7324 = sshll.u32 %s7321, 4
      %s7325 = int_to_ptr.hbm [resolvable:$true] %s7324
      %7330 = dma.vmem_to_hbm [thread:$0]  %s7323, 1024, %s7325, [#allocation16], 64, 64, 4
    $region57: #{tpu_custom_call.1} parent=1 // pred_fallthru
      _
    // Predicated region
    $region58: #{tpu_custom_call.1} parent=1 // pred_check
      _
    $region59: #{tpu_custom_call.1} parent=1 // pred_check_branch
      %7332 = sbr.rel (0) target = $region61
    $region60: #{tpu_custom_call.1} parent=1 // pred_region
      %7334 = dma.done [#allocation10], 1024
    $region61: #{tpu_custom_call.1} parent=1 // pred_fallthru
      _
    // Predicated region
    $region62: #{tpu_custom_call.1} parent=1 // pred_check
      _
    $region63: #{tpu_custom_call.1} parent=1 // pred_check_branch
      %7336 = sbr.rel (0) target = $region65
    $region64: #{tpu_custom_call.1} parent=1 // pred_region
      %7338 = dma.done [#allocation16], 1024
    $region65: #{tpu_custom_call.1} parent=1 // pred_fallthru
      _
    %7339 = vsyncpa [#allocation9], 1
    %7340 = vsyncpa [#allocation12], 1
    %7341 = vsyncpa [#allocation10], 1
    %7342 = vsyncpa [#allocation16], 1

</llo_original>
